<compile_context>
chip_gen: v7x
topology: tpu7x:2x2x1
jax: 0.10.0
libtpu: 0.0.40
codegen_flags: <defaults>
</compile_context>

<pallas_src>
import functools
import math

import jax
import jax.numpy as jnp
from jax.experimental import pallas as pl
from jax.experimental.pallas import tpu as pltpu


# ----------------------------------------------------------------------------
# Pallas kernel: O = maybe_relu(A @ B + bias), single full-K / full-N block.
# A, B are bf16; accumulate f32 on the MXU; bias+ReLU+output-cast fused.
# ----------------------------------------------------------------------------
def _matmul_bias_kernel(a_ref, b_ref, bias_ref, o_ref, *, apply_relu):
    acc = jnp.dot(a_ref[...], b_ref[...], preferred_element_type=jnp.float32)
    r = acc + bias_ref[...]  # bias is (1, N) f32, broadcasts over rows
    if apply_relu:
        r = jnp.maximum(r, 0.0)
    o_ref[...] = r.astype(o_ref.dtype)


def matmul_bias(a, b, bias, *, apply_relu, out_dtype=jnp.bfloat16, tm_cap=512):
    """a: (M, K) bf16, b: (K, N) bf16, bias: (N,) f32 -> (M, N) out_dtype.

    K and N are ALWAYS single full-extent blocks; only M is tiled.  That is
    what makes a partial last M block safe: OOB reads only feed output rows
    that are dropped by the clipped store, and there is no retained
    accumulator a garbage row could leak into.  Do NOT add a K or N grid axis
    here without zero-padding the operands first.
    """
    M, K = a.shape
    K2, N = b.shape
    assert K == K2 and bias.shape == (N,)

    # tm_cap=512 keeps >=2 grid steps for the larger conv layers (lets both
    # v7x TensorCores work) while bounding per-step overhead on v5e/v6e.
    tm = M if M <= tm_cap else tm_cap  # tm_cap is a multiple of 16
    grid_m = pl.cdiv(M, tm)

    bias2 = bias.reshape(1, N)

    cost = pl.CostEstimate(
        flops=2 * M * N * K,
        transcendentals=0,
        bytes_accessed=(
            M * K * a.dtype.itemsize
            + K * N * b.dtype.itemsize
            + N * bias.dtype.itemsize
            + M * N * jnp.dtype(out_dtype).itemsize
        ),
    )

    return pl.pallas_call(
        functools.partial(_matmul_bias_kernel, apply_relu=apply_relu),
        out_shape=jax.ShapeDtypeStruct((M, N), out_dtype),
        grid=(grid_m,),
        in_specs=[
            pl.BlockSpec((tm, K), lambda i: (i, 0)),
            pl.BlockSpec((K, N), lambda i: (0, 0)),  # weight stays resident
            pl.BlockSpec((1, N), lambda i: (0, 0)),
        ],
        out_specs=pl.BlockSpec((tm, N), lambda i: (i, 0)),
        compiler_params=pltpu.CompilerParams(
            dimension_semantics=("parallel",),
        ),
        cost_estimate=cost,
    )(a, b, bias2)


# ----------------------------------------------------------------------------
# Fused FC head: out = (relu(x @ W1 + b1)) @ W2 + b2, tiled over M only.
# ----------------------------------------------------------------------------
def _fc_head_kernel(x_ref, w1_ref, b1_ref, w2_ref, b2_ref, o_ref):
    h = jnp.dot(x_ref[...], w1_ref[...], preferred_element_type=jnp.float32)
    h = jnp.maximum(h + b1_ref[...], 0.0)
    o = jnp.dot(h.astype(jnp.bfloat16), w2_ref[...],
                preferred_element_type=jnp.float32)
    o_ref[...] = (o + b2_ref[...]).astype(o_ref.dtype)


def fc_head(x, w1, b1, w2, b2, *, tm_cap=256):
    """x: (M, K1) bf16, w1: (K1, N1) bf16, w2: (N1, N2) bf16 -> (M, N2) f32."""
    M, K1 = x.shape
    K1b, N1 = w1.shape
    N1b, N2 = w2.shape
    assert K1 == K1b and N1 == N1b

    # M-tiling bounds the x block to tm*K1*2B (~2.6 MB at tm=256) regardless
    # of batch — safe under v5e's 16 MiB scoped and v7x's 64 MiB physical VMEM
    # — and gives >=2 "parallel" steps at larger batch for v7x's two cores.
    # K1 and N1/N2 stay full-extent single blocks (see matmul_bias note).
    tm = M if M <= tm_cap else tm_cap
    grid_m = pl.cdiv(M, tm)

    cost = pl.CostEstimate(
        flops=2 * M * (K1 * N1 + N1 * N2),
        transcendentals=0,
        bytes_accessed=(
            M * K1 * 2 + K1 * N1 * 2 + N1 * N2 * 2 + (N1 + N2) * 4 + M * N2 * 4
        ),
    )

    # TODO(synk): the ~2.65 MB w1 DMA is still exposed on the first grid step;
    # K1=5184 is not a multiple of 128, so clean K-tiling needs zero-padded K,
    # and fully hiding it needs a cross-call weight prefetch (P10 pattern).
    return pl.pallas_call(
        _fc_head_kernel,
        out_shape=jax.ShapeDtypeStruct((M, N2), jnp.float32),
        grid=(grid_m,),
        in_specs=[
            pl.BlockSpec((tm, K1), lambda i: (i, 0)),
            pl.BlockSpec((K1, N1), lambda i: (0, 0)),  # resident across M steps
            pl.BlockSpec((1, N1), lambda i: (0, 0)),
            pl.BlockSpec((N1, N2), lambda i: (0, 0)),
            pl.BlockSpec((1, N2), lambda i: (0, 0)),
        ],
        out_specs=pl.BlockSpec((tm, N2), lambda i: (i, 0)),
        compiler_params=pltpu.CompilerParams(
            dimension_semantics=("parallel",),
        ),
        cost_estimate=cost,
    )(x, w1, b1.reshape(1, N1), w2, b2.reshape(1, N2))


# ----------------------------------------------------------------------------
# Conv2d (valid padding, stride 2) = im2col (bf16, XLA glue) + Pallas matmul
# ----------------------------------------------------------------------------
def conv2d_relu(x_nhwc, w, b, *, stride=2):
    """x_nhwc: (N, H, W, Cin) bf16, w: (kh, kw, Cin, Cout) bf16, b: (Cout,) f32."""
    N, H, W, C = x_nhwc.shape
    kh, kw, cin, cout = w.shape
    Ho = (H - kh) // stride + 1
    Wo = (W - kw) // stride + 1

    # im2col patch extraction stays as XLA glue (the 9 strided slices + stack
    # fuse); everything is bf16 so the col matrix streams half the HBM bytes
    # it did in f32.
    # TODO(synk): moving im2col inside the Pallas kernel (9 shifted strided
    # reads of an NHWC VMEM tile) would remove this HBM round trip entirely,
    # but stride-2 sublane slicing inside Mosaic is not a clean lowering today.
    patches = []
    for dy in range(kh):
        for dx in range(kw):
            patches.append(
                jax.lax.slice(
                    x_nhwc,
                    (0, dy, dx, 0),
                    (N, dy + stride * (Ho - 1) + 1, dx + stride * (Wo - 1) + 1, C),
                    (1, stride, stride, 1),
                )
            )
    # (N, Ho, Wo, kh*kw, Cin) -> (N*Ho*Wo, kh*kw*Cin), column order (dy, dx, cin)
    col = jnp.stack(patches, axis=3).reshape(N * Ho * Wo, kh * kw * C)
    w2 = w.reshape(kh * kw * cin, cout)
    out = matmul_bias(col, w2, b, apply_relu=True, out_dtype=jnp.bfloat16)
    return out.reshape(N, Ho, Wo, cout)


# ----------------------------------------------------------------------------
# DQN parameters (deterministic synthetic init; weights stored in bf16)
# ----------------------------------------------------------------------------
def init_dqn_params(key, in_channels, out_channels):
    keys = jax.random.split(key, 10)

    def uni(k, shape, fan_in, dtype=jnp.float32):
        bound = 1.0 / math.sqrt(fan_in)
        v = jax.random.uniform(k, shape, jnp.float32, -bound, bound)
        return v.astype(dtype)

    p = {}
    # conv weights stored as (kh, kw, cin, cout) bf16
    p["w1"] = uni(keys[0], (3, 3, in_channels, 32), 3 * 3 * in_channels, jnp.bfloat16)
    p["b1"] = uni(keys[1], (32,), 3 * 3 * in_channels)
    p["w2"] = uni(keys[2], (3, 3, 32, 64), 3 * 3 * 32, jnp.bfloat16)
    p["b2"] = uni(keys[3], (64,), 3 * 3 * 32)
    p["w3"] = uni(keys[4], (3, 3, 64, 64), 3 * 3 * 64, jnp.bfloat16)
    p["b3"] = uni(keys[5], (64,), 3 * 3 * 64)
    # fc1 weight stored as (in, out) bf16 with rows in NHWC-flatten order
    # (h, w, c) so no activation transpose is needed before the flatten.
    # (A PyTorch fc1 weight would be permuted once at conversion time.)
    p["w4"] = uni(keys[6], (9 * 9 * 64, 256), 64 * 9 * 9, jnp.bfloat16)
    p["b4"] = uni(keys[7], (256,), 64 * 9 * 9)
    p["w5"] = uni(keys[8], (256, out_channels), 256, jnp.bfloat16)
    p["b5"] = uni(keys[9], (out_channels,), 256)
    return p


def dqn_forward(params, x_nchw):
    """x_nchw: (N, in_channels, 84, 84) f32 -> (N, out_channels) f32."""
    # Single relayout of the (small) input; cast to bf16 first so the
    # transpose moves half the bytes.  All conv activations stay bf16 NHWC.
    x = jnp.transpose(x_nchw.astype(jnp.bfloat16), (0, 2, 3, 1))
    x = conv2d_relu(x, params["w1"], params["b1"], stride=2)   # (N, 41, 41, 32)
    x = conv2d_relu(x, params["w2"], params["b2"], stride=2)   # (N, 20, 20, 64)
    x = conv2d_relu(x, params["w3"], params["b3"], stride=2)   # (N, 9, 9, 64)
    # w4 rows are in NHWC-flatten order, so flatten directly (no transpose).
    x = x.reshape(-1, 9 * 9 * 64)
    return fc_head(x, params["w4"], params["b4"], params["w5"], params["b5"])


# Pure-JAX reference: same bf16-quantized weights, f32 activations/math.
# (The Pallas path keeps bf16 activations between layers; the 1e-2 tolerance
# covers that documented quantization difference.)
def dqn_forward_ref(params, x_nchw):
    f32 = jnp.float32
    hi = jax.lax.Precision.HIGHEST

    def conv(x, w, b):
        y = jax.lax.conv_general_dilated(
            x, w.astype(f32), window_strides=(2, 2), padding="VALID",
            dimension_numbers=("NHWC", "HWIO", "NHWC"), precision=hi,
        )
        return jax.nn.relu(y + b)

    x = jnp.transpose(x_nchw, (0, 2, 3, 1))
    x = conv(x, params["w1"], params["b1"])
    x = conv(x, params["w2"], params["b2"])
    x = conv(x, params["w3"], params["b3"])
    x = x.reshape(-1, 9 * 9 * 64)   # NHWC flatten, matching w4's row order
    x = jax.nn.relu(jnp.dot(x, params["w4"].astype(f32), precision=hi) + params["b4"])
    return jnp.dot(x, params["w5"].astype(f32), precision=hi) + params["b5"]


if __name__ == "__main__":
    batch, in_channels, out_channels = 2, 4, 6
    key = jax.random.PRNGKey(0)
    k_param, k_x = jax.random.split(key)

    params = init_dqn_params(k_param, in_channels, out_channels)
    # fc1 hard-codes 64*9*9, which implies the canonical 84x84 Atari input
    # after three stride-2 valid 3x3 convs (84 -> 41 -> 20 -> 9).
    x = jax.random.uniform(k_x, (batch, in_channels, 84, 84), jnp.float32, -1.0, 1.0)

    out = jax.block_until_ready(jax.jit(dqn_forward)(params, x))
    assert out.shape == (batch, out_channels)

    ref = jax.block_until_ready(jax.jit(dqn_forward_ref)(params, x))
    assert jnp.allclose(out, ref, rtol=1e-2, atol=1e-2), "mismatch vs reference"

    print("KERNEL_OK")
</pallas_src>

<mosaic_0001>
module attributes {stable_mosaic.version = 11 : i64} {
  func.func @_matmul_bias_kernel(%arg0: i32, %arg1: memref<512x36xbf16, #tpu.memory_space<vmem>>, %arg2: memref<36x32xbf16, #tpu.memory_space<vmem>>, %arg3: memref<1x32xf32, #tpu.memory_space<vmem>>, %arg4: memref<512x32xbf16, #tpu.memory_space<vmem>>) attributes {dimension_semantics = [#tpu.dimension_semantics<parallel>], iteration_bounds = array<i64: 7>, scalar_prefetch = 0 : i64, scratch_operands = 0 : i64, tpu.core_type = #tpu.core_type<tc>, window_params = [{transform_indices = @transform_0, window_bounds = array<i64: 512, 36>}, {pipeline_mode = #tpu.pipeline_mode<synchronous>, transform_indices = @transform_1, window_bounds = array<i64: 36, 32>}, {pipeline_mode = #tpu.pipeline_mode<synchronous>, transform_indices = @transform_2, window_bounds = array<i64: 1, 32>}, {transform_indices = @transform_3, window_bounds = array<i64: 512, 32>}]} {
    %c0 = arith.constant 0 : index
    %c0_0 = arith.constant 0 : index
    %0 = vector.load %arg1[%c0, %c0_0] : memref<512x36xbf16, #tpu.memory_space<vmem>>, vector<512x36xbf16>
    %c0_1 = arith.constant 0 : index
    %c0_2 = arith.constant 0 : index
    %1 = vector.load %arg2[%c0_1, %c0_2] : memref<36x32xbf16, #tpu.memory_space<vmem>>, vector<36x32xbf16>
    %cst = arith.constant dense<0.000000e+00> : vector<512x32xf32>
    %2 = tpu.matmul %0, %1, %cst {dimension_numbers = #tpu.dot_dimension_numbers<[1], [0], [0], [1], [0, 0, 1, 1], [], []>} : vector<512x36xbf16>, vector<36x32xbf16>, vector<512x32xf32> -> vector<512x32xf32>
    %c0_3 = arith.constant 0 : index
    %c0_4 = arith.constant 0 : index
    %3 = vector.load %arg3[%c0_3, %c0_4] : memref<1x32xf32, #tpu.memory_space<vmem>>, vector<1x32xf32>
    %4 = vector.broadcast %3 : vector<1x32xf32> to vector<512x32xf32>
    %5 = arith.addf %2, %4 : vector<512x32xf32>
    %cst_5 = arith.constant 0.000000e+00 : f32
    %6 = vector.broadcast %cst_5 : f32 to vector<512x32xf32>
    %7 = arith.maximumf %5, %6 : vector<512x32xf32>
    %8 = arith.truncf %7 : vector<512x32xf32> to vector<512x32xbf16>
    %c0_6 = arith.constant 0 : index
    %c0_7 = arith.constant 0 : index
    %9 = vector.load %arg4[%c0_6, %c0_7] : memref<512x32xbf16, #tpu.memory_space<vmem>>, vector<512x32xbf16>
    tpu.vector_store %arg4[%c0_6, %c0_7], %8 {strides = array<i32>} : memref<512x32xbf16, #tpu.memory_space<vmem>>, vector<512x32xbf16>,
    return
  }
  func.func @transform_0(%arg0: i32) -> (i32, i32) {
    %c0_i32 = arith.constant 0 : i32
    %c0_i32_0 = arith.constant 0 : i32
    return %arg0, %c0_i32 : i32, i32
  }
  func.func @transform_1(%arg0: i32) -> (i32, i32) {
    %c0_i32 = arith.constant 0 : i32
    %c0_i32_0 = arith.constant 0 : i32
    %c0_i32_1 = arith.constant 0 : i32
    return %c0_i32, %c0_i32_0 : i32, i32
  }
  func.func @transform_2(%arg0: i32) -> (i32, i32) {
    %c0_i32 = arith.constant 0 : i32
    %c0_i32_0 = arith.constant 0 : i32
    %c0_i32_1 = arith.constant 0 : i32
    return %c0_i32, %c0_i32_0 : i32, i32
  }
  func.func @transform_3(%arg0: i32) -> (i32, i32) {
    %c0_i32 = arith.constant 0 : i32
    %c0_i32_0 = arith.constant 0 : i32
    return %arg0, %c0_i32 : i32, i32
  }
}

module attributes {stable_mosaic.version = 11 : i64} {
  func.func @_matmul_bias_kernel(%arg0: i32, %arg1: memref<512x288xbf16, #tpu.memory_space<vmem>>, %arg2: memref<288x64xbf16, #tpu.memory_space<vmem>>, %arg3: memref<1x64xf32, #tpu.memory_space<vmem>>, %arg4: memref<512x64xbf16, #tpu.memory_space<vmem>>) attributes {dimension_semantics = [#tpu.dimension_semantics<parallel>], iteration_bounds = array<i64: 2>, scalar_prefetch = 0 : i64, scratch_operands = 0 : i64, tpu.core_type = #tpu.core_type<tc>, window_params = [{transform_indices = @transform_0, window_bounds = array<i64: 512, 288>}, {pipeline_mode = #tpu.pipeline_mode<synchronous>, transform_indices = @transform_1, window_bounds = array<i64: 288, 64>}, {pipeline_mode = #tpu.pipeline_mode<synchronous>, transform_indices = @transform_2, window_bounds = array<i64: 1, 64>}, {transform_indices = @transform_3, window_bounds = array<i64: 512, 64>}]} {
    %c0 = arith.constant 0 : index
    %c0_0 = arith.constant 0 : index
    %0 = vector.load %arg1[%c0, %c0_0] : memref<512x288xbf16, #tpu.memory_space<vmem>>, vector<512x288xbf16>
    %c0_1 = arith.constant 0 : index
    %c0_2 = arith.constant 0 : index
    %1 = vector.load %arg2[%c0_1, %c0_2] : memref<288x64xbf16, #tpu.memory_space<vmem>>, vector<288x64xbf16>
    %cst = arith.constant dense<0.000000e+00> : vector<512x64xf32>
    %2 = tpu.matmul %0, %1, %cst {dimension_numbers = #tpu.dot_dimension_numbers<[1], [0], [0], [1], [0, 0, 1, 1], [], []>} : vector<512x288xbf16>, vector<288x64xbf16>, vector<512x64xf32> -> vector<512x64xf32>
    %c0_3 = arith.constant 0 : index
    %c0_4 = arith.constant 0 : index
    %3 = vector.load %arg3[%c0_3, %c0_4] : memref<1x64xf32, #tpu.memory_space<vmem>>, vector<1x64xf32>
    %4 = vector.broadcast %3 : vector<1x64xf32> to vector<512x64xf32>
    %5 = arith.addf %2, %4 : vector<512x64xf32>
    %cst_5 = arith.constant 0.000000e+00 : f32
    %6 = vector.broadcast %cst_5 : f32 to vector<512x64xf32>
    %7 = arith.maximumf %5, %6 : vector<512x64xf32>
    %8 = arith.truncf %7 : vector<512x64xf32> to vector<512x64xbf16>
    %c0_6 = arith.constant 0 : index
    %c0_7 = arith.constant 0 : index
    %9 = vector.load %arg4[%c0_6, %c0_7] : memref<512x64xbf16, #tpu.memory_space<vmem>>, vector<512x64xbf16>
    tpu.vector_store %arg4[%c0_6, %c0_7], %8 {strides = array<i32>} : memref<512x64xbf16, #tpu.memory_space<vmem>>, vector<512x64xbf16>,
    return
  }
  func.func @transform_0(%arg0: i32) -> (i32, i32) {
    %c0_i32 = arith.constant 0 : i32
    %c0_i32_0 = arith.constant 0 : i32
    return %arg0, %c0_i32 : i32, i32
  }
  func.func @transform_1(%arg0: i32) -> (i32, i32) {
    %c0_i32 = arith.constant 0 : i32
    %c0_i32_0 = arith.constant 0 : i32
    %c0_i32_1 = arith.constant 0 : i32
    return %c0_i32, %c0_i32_0 : i32, i32
  }
  func.func @transform_2(%arg0: i32) -> (i32, i32) {
    %c0_i32 = arith.constant 0 : i32
    %c0_i32_0 = arith.constant 0 : i32
    %c0_i32_1 = arith.constant 0 : i32
    return %c0_i32, %c0_i32_0 : i32, i32
  }
  func.func @transform_3(%arg0: i32) -> (i32, i32) {
    %c0_i32 = arith.constant 0 : i32
    %c0_i32_0 = arith.constant 0 : i32
    return %arg0, %c0_i32 : i32, i32
  }
}

module attributes {stable_mosaic.version = 11 : i64} {
  func.func @_matmul_bias_kernel(%arg0: i32, %arg1: memref<162x576xbf16, #tpu.memory_space<vmem>>, %arg2: memref<576x64xbf16, #tpu.memory_space<vmem>>, %arg3: memref<1x64xf32, #tpu.memory_space<vmem>>, %arg4: memref<162x64xbf16, #tpu.memory_space<vmem>>) attributes {dimension_semantics = [#tpu.dimension_semantics<parallel>], iteration_bounds = array<i64: 1>, scalar_prefetch = 0 : i64, scratch_operands = 0 : i64, tpu.core_type = #tpu.core_type<tc>, window_params = [{transform_indices = @transform_0, window_bounds = array<i64: 162, 576>}, {pipeline_mode = #tpu.pipeline_mode<synchronous>, transform_indices = @transform_1, window_bounds = array<i64: 576, 64>}, {pipeline_mode = #tpu.pipeline_mode<synchronous>, transform_indices = @transform_2, window_bounds = array<i64: 1, 64>}, {transform_indices = @transform_3, window_bounds = array<i64: 162, 64>}]} {
    %c0 = arith.constant 0 : index
    %c0_0 = arith.constant 0 : index
    %0 = vector.load %arg1[%c0, %c0_0] : memref<162x576xbf16, #tpu.memory_space<vmem>>, vector<162x576xbf16>
    %c0_1 = arith.constant 0 : index
    %c0_2 = arith.constant 0 : index
    %1 = vector.load %arg2[%c0_1, %c0_2] : memref<576x64xbf16, #tpu.memory_space<vmem>>, vector<576x64xbf16>
    %cst = arith.constant dense<0.000000e+00> : vector<162x64xf32>
    %2 = tpu.matmul %0, %1, %cst {dimension_numbers = #tpu.dot_dimension_numbers<[1], [0], [0], [1], [0, 0, 1, 1], [], []>} : vector<162x576xbf16>, vector<576x64xbf16>, vector<162x64xf32> -> vector<162x64xf32>
    %c0_3 = arith.constant 0 : index
    %c0_4 = arith.constant 0 : index
    %3 = vector.load %arg3[%c0_3, %c0_4] : memref<1x64xf32, #tpu.memory_space<vmem>>, vector<1x64xf32>
    %4 = vector.broadcast %3 : vector<1x64xf32> to vector<162x64xf32>
    %5 = arith.addf %2, %4 : vector<162x64xf32>
    %cst_5 = arith.constant 0.000000e+00 : f32
    %6 = vector.broadcast %cst_5 : f32 to vector<162x64xf32>
    %7 = arith.maximumf %5, %6 : vector<162x64xf32>
    %8 = arith.truncf %7 : vector<162x64xf32> to vector<162x64xbf16>
    %c0_6 = arith.constant 0 : index
    %c0_7 = arith.constant 0 : index
    %9 = vector.load %arg4[%c0_6, %c0_7] : memref<162x64xbf16, #tpu.memory_space<vmem>>, vector<162x64xbf16>
    tpu.vector_store %arg4[%c0_6, %c0_7], %8 {strides = array<i32>} : memref<162x64xbf16, #tpu.memory_space<vmem>>, vector<162x64xbf16>,
    return
  }
  func.func @transform_0(%arg0: i32) -> (i32, i32) {
    %c0_i32 = arith.constant 0 : i32
    %c0_i32_0 = arith.constant 0 : i32
    return %arg0, %c0_i32 : i32, i32
  }
  func.func @transform_1(%arg0: i32) -> (i32, i32) {
    %c0_i32 = arith.constant 0 : i32
    %c0_i32_0 = arith.constant 0 : i32
    %c0_i32_1 = arith.constant 0 : i32
    return %c0_i32, %c0_i32_0 : i32, i32
  }
  func.func @transform_2(%arg0: i32) -> (i32, i32) {
    %c0_i32 = arith.constant 0 : i32
    %c0_i32_0 = arith.constant 0 : i32
    %c0_i32_1 = arith.constant 0 : i32
    return %c0_i32, %c0_i32_0 : i32, i32
  }
  func.func @transform_3(%arg0: i32) -> (i32, i32) {
    %c0_i32 = arith.constant 0 : i32
    %c0_i32_0 = arith.constant 0 : i32
    return %arg0, %c0_i32 : i32, i32
  }
}

module attributes {stable_mosaic.version = 11 : i64} {
  func.func @_fc_head_kernel(%arg0: i32, %arg1: memref<2x5184xbf16, #tpu.memory_space<vmem>>, %arg2: memref<5184x256xbf16, #tpu.memory_space<vmem>>, %arg3: memref<1x256xf32, #tpu.memory_space<vmem>>, %arg4: memref<256x6xbf16, #tpu.memory_space<vmem>>, %arg5: memref<1x6xf32, #tpu.memory_space<vmem>>, %arg6: memref<2x6xf32, #tpu.memory_space<vmem>>) attributes {dimension_semantics = [#tpu.dimension_semantics<parallel>], iteration_bounds = array<i64: 1>, scalar_prefetch = 0 : i64, scratch_operands = 0 : i64, tpu.core_type = #tpu.core_type<tc>, window_params = [{transform_indices = @transform_0, window_bounds = array<i64: 2, 5184>}, {pipeline_mode = #tpu.pipeline_mode<synchronous>, transform_indices = @transform_1, window_bounds = array<i64: 5184, 256>}, {pipeline_mode = #tpu.pipeline_mode<synchronous>, transform_indices = @transform_2, window_bounds = array<i64: 1, 256>}, {pipeline_mode = #tpu.pipeline_mode<synchronous>, transform_indices = @transform_3, window_bounds = array<i64: 256, 6>}, {pipeline_mode = #tpu.pipeline_mode<synchronous>, transform_indices = @transform_4, window_bounds = array<i64: 1, 6>}, {transform_indices = @transform_5, window_bounds = array<i64: 2, 6>}]} {
    %c0 = arith.constant 0 : index
    %c0_0 = arith.constant 0 : index
    %0 = vector.load %arg1[%c0, %c0_0] : memref<2x5184xbf16, #tpu.memory_space<vmem>>, vector<2x5184xbf16>
    %c0_1 = arith.constant 0 : index
    %c0_2 = arith.constant 0 : index
    %1 = vector.load %arg2[%c0_1, %c0_2] : memref<5184x256xbf16, #tpu.memory_space<vmem>>, vector<5184x256xbf16>
    %cst = arith.constant dense<0.000000e+00> : vector<2x256xf32>
    %2 = tpu.matmul %0, %1, %cst {dimension_numbers = #tpu.dot_dimension_numbers<[1], [0], [0], [1], [0, 0, 1, 1], [], []>} : vector<2x5184xbf16>, vector<5184x256xbf16>, vector<2x256xf32> -> vector<2x256xf32>
    %c0_3 = arith.constant 0 : index
    %c0_4 = arith.constant 0 : index
    %3 = vector.load %arg3[%c0_3, %c0_4] : memref<1x256xf32, #tpu.memory_space<vmem>>, vector<1x256xf32>
    %4 = vector.broadcast %3 : vector<1x256xf32> to vector<2x256xf32>
    %5 = arith.addf %2, %4 : vector<2x256xf32>
    %cst_5 = arith.constant 0.000000e+00 : f32
    %6 = vector.broadcast %cst_5 : f32 to vector<2x256xf32>
    %7 = arith.maximumf %5, %6 : vector<2x256xf32>
    %8 = arith.truncf %7 : vector<2x256xf32> to vector<2x256xbf16>
    %c0_6 = arith.constant 0 : index
    %c0_7 = arith.constant 0 : index
    %9 = vector.load %arg4[%c0_6, %c0_7] : memref<256x6xbf16, #tpu.memory_space<vmem>>, vector<256x6xbf16>
    %cst_8 = arith.constant dense<0.000000e+00> : vector<2x6xf32>
    %10 = tpu.matmul %8, %9, %cst_8 {dimension_numbers = #tpu.dot_dimension_numbers<[1], [0], [0], [1], [0, 0, 1, 1], [], []>} : vector<2x256xbf16>, vector<256x6xbf16>, vector<2x6xf32> -> vector<2x6xf32>
    %c0_9 = arith.constant 0 : index
    %c0_10 = arith.constant 0 : index
    %11 = vector.load %arg5[%c0_9, %c0_10] : memref<1x6xf32, #tpu.memory_space<vmem>>, vector<1x6xf32>
    %12 = vector.broadcast %11 : vector<1x6xf32> to vector<2x6xf32>
    %13 = arith.addf %10, %12 : vector<2x6xf32>
    %c0_11 = arith.constant 0 : index
    %c0_12 = arith.constant 0 : index
    %14 = vector.load %arg6[%c0_11, %c0_12] : memref<2x6xf32, #tpu.memory_space<vmem>>, vector<2x6xf32>
    tpu.vector_store %arg6[%c0_11, %c0_12], %13 {strides = array<i32>} : memref<2x6xf32, #tpu.memory_space<vmem>>, vector<2x6xf32>,
    return
  }
  func.func @transform_0(%arg0: i32) -> (i32, i32) {
    %c0_i32 = arith.constant 0 : i32
    %c0_i32_0 = arith.constant 0 : i32
    return %arg0, %c0_i32 : i32, i32
  }
  func.func @transform_1(%arg0: i32) -> (i32, i32) {
    %c0_i32 = arith.constant 0 : i32
    %c0_i32_0 = arith.constant 0 : i32
    %c0_i32_1 = arith.constant 0 : i32
    return %c0_i32, %c0_i32_0 : i32, i32
  }
  func.func @transform_2(%arg0: i32) -> (i32, i32) {
    %c0_i32 = arith.constant 0 : i32
    %c0_i32_0 = arith.constant 0 : i32
    %c0_i32_1 = arith.constant 0 : i32
    return %c0_i32, %c0_i32_0 : i32, i32
  }
  func.func @transform_3(%arg0: i32) -> (i32, i32) {
    %c0_i32 = arith.constant 0 : i32
    %c0_i32_0 = arith.constant 0 : i32
    %c0_i32_1 = arith.constant 0 : i32
    return %c0_i32, %c0_i32_0 : i32, i32
  }
  func.func @transform_4(%arg0: i32) -> (i32, i32) {
    %c0_i32 = arith.constant 0 : i32
    %c0_i32_0 = arith.constant 0 : i32
    %c0_i32_1 = arith.constant 0 : i32
    return %c0_i32, %c0_i32_0 : i32, i32
  }
  func.func @transform_5(%arg0: i32) -> (i32, i32) {
    %c0_i32 = arith.constant 0 : i32
    %c0_i32_0 = arith.constant 0 : i32
    return %arg0, %c0_i32 : i32, i32
  }
}

</mosaic_0001>

<llo_original>
// kernel: dqn_forward.4
$region0: #{dqn_forward.4}
  #allocation0 [shape = 'u32[]', space=smem, size = 0x4, offset = 0x4, fixed_abs, tag = 'smem constant byte address 0x4 - core index']
  #allocation1 [shape = 'u32[144,128]{1,0:T(1,128)}', space=vmem, size = 0x12000, scoped, tag = 'internal scratch']
  %s0 = inlined_call_operand.vmem [shape: bf16[3362,36], index: 0, kind: input, shape index: {}]
  %s1 = inlined_call_operand.vmem [shape: bf16[36,32], index: 1, kind: input, shape index: {}]
  %s2 = inlined_call_operand.vmem [shape: f32[1,32], index: 2, kind: input, shape index: {}]
  %s3 = inlined_call_operand.vmem [shape: bf16[3362,32], index: 3, kind: output, shape index: {}]
  %s4 = sld [smem:[#allocation0]]
  $region89: #{dqn_forward.4} parent=0
    _
  %s6 = ssub.s32 1, %s4
  %s7 = scalar_select 0, %s6, %s4
  $region1: #{dqn_forward.4} parent=0
    #allocation2 [shape = 'u8[262144]{0}', space=vmem, size = 0x40000, scoped, tag = 'output window, operand 0']
    loop: start=0, step=1, limit=9
    $region2: #{dqn_forward.4} parent=1 // loop_pre_header
      _
    $region3: #{dqn_forward.4} parent=1 // loop_header
      %s9 = sphi 0, %s13
      %p10 = scmp.ge.s32.totalorder %s9, 9
      %s19 = sphi 0, %s21
      %s22 = sphi 0, %s19
      %s23 = sphi 0, %s22
      %s39 = sphi 0, %s23
      %s43 = sphi 0, %s43
      %s45 = sphi 0, %s43
      %s46 = sphi 0, %s45
      %s60 = sphi 0, %s46
      %s64 = sphi 0, %s64
      %s66 = sphi 0, %s64
      %s67 = sphi 0, %s66
      %s81 = sphi 0, %s67
      %s87 = sphi 0, %s89
      %s90 = sphi 0, %s87
      %s91 = sphi 0, %s90
      %s107 = sphi 0, %s91
    $region4: #{dqn_forward.4} parent=1 // loop_header_branch
      %12 = sbr.rel (%p10) target = $region8
    $region5: #{dqn_forward.4} parent=1 // loop_body
      %s14 = ssub.s32 %s9, 1
      %s15 = ssub.s32 %s9, 2
      %s16 = sadd.s32 %s9, 1
      %s17 = ssub.s32 %s9, %s16
      %p18 = scmp.eq.s32.totalorder %s17, 0
      %s20 = sadd.s32 %s19, 1
      %s21 = scalar_select %p18, %s19, %s20
      %p24 = pneg %p18
      %p25 = scmp.eq.s32.totalorder %s9, 6
      %p26 = por %p24, %p25
      %p27 = scmp.ne.s32.totalorder %s19, %s22
      %p28 = scmp.eq.s32.totalorder %s9, 0
      %p29 = por %p27, %p28
      %p30 = scmp.ne.s32.totalorder %s19, %s22
      %p31 = scmp.eq.s32.totalorder %s14, 6
      %p32 = por %p30, %p31
      %p33 = scmp.ne.s32.totalorder %s22, %s23
      %p34 = scmp.eq.s32.totalorder %s14, 0
      %p35 = por %p33, %p34
      %p36 = scmp.ne.s32.totalorder %s22, %s23
      %p37 = scmp.eq.s32.totalorder %s15, 6
      %p38 = por %p36, %p37
      %p40 = scmp.ne.s32.totalorder %s23, %s39
      %p41 = scmp.eq.s32.totalorder %s15, 0
      %p42 = por %p40, %p41
      %s44 = sadd.s32 %s43, 1
      %p47 = scmp.eq.s32.totalorder %s9, 6
      %p48 = scmp.ne.s32.totalorder %s43, %s45
      %p49 = scmp.eq.s32.totalorder %s9, 0
      %p50 = por %p48, %p49
      %p51 = scmp.ne.s32.totalorder %s43, %s45
      %p52 = scmp.eq.s32.totalorder %s14, 6
      %p53 = por %p51, %p52
      %p54 = scmp.ne.s32.totalorder %s45, %s46
      %p55 = scmp.eq.s32.totalorder %s14, 0
      %p56 = por %p54, %p55
      %p57 = scmp.ne.s32.totalorder %s45, %s46
      %p58 = scmp.eq.s32.totalorder %s15, 6
      %p59 = por %p57, %p58
      %p61 = scmp.ne.s32.totalorder %s46, %s60
      %p62 = scmp.eq.s32.totalorder %s15, 0
      %p63 = por %p61, %p62
      %s65 = sadd.s32 %s64, 1
      %p68 = scmp.eq.s32.totalorder %s9, 6
      %p69 = scmp.ne.s32.totalorder %s64, %s66
      %p70 = scmp.eq.s32.totalorder %s9, 0
      %p71 = por %p69, %p70
      %p72 = scmp.ne.s32.totalorder %s64, %s66
      %p73 = scmp.eq.s32.totalorder %s14, 6
      %p74 = por %p72, %p73
      %p75 = scmp.ne.s32.totalorder %s66, %s67
      %p76 = scmp.eq.s32.totalorder %s14, 0
      %p77 = por %p75, %p76
      %p78 = scmp.ne.s32.totalorder %s66, %s67
      %p79 = scmp.eq.s32.totalorder %s15, 6
      %p80 = por %p78, %p79
      %p82 = scmp.ne.s32.totalorder %s67, %s81
      %p83 = scmp.eq.s32.totalorder %s15, 0
      %p84 = por %p82, %p83
      %s85 = ssub.s32 %s9, %s16
      %p86 = scmp.eq.s32.totalorder %s85, 0
      %s88 = sadd.s32 %s87, 1
      %s89 = scalar_select %p86, %s87, %s88
      %p92 = pneg %p86
      %p93 = scmp.eq.s32.totalorder %s9, 6
      %p94 = por %p92, %p93
      %p95 = scmp.ne.s32.totalorder %s87, %s90
      %p96 = scmp.eq.s32.totalorder %s9, 0
      %p97 = por %p95, %p96
      %p98 = scmp.ne.s32.totalorder %s87, %s90
      %p99 = scmp.eq.s32.totalorder %s14, 6
      %p100 = por %p98, %p99
      %p101 = scmp.ne.s32.totalorder %s90, %s91
      %p102 = scmp.eq.s32.totalorder %s14, 0
      %p103 = por %p101, %p102
      %p104 = scmp.ne.s32.totalorder %s90, %s91
      %p105 = scmp.eq.s32.totalorder %s15, 6
      %p106 = por %p104, %p105
      %p108 = scmp.ne.s32.totalorder %s91, %s107
      %p109 = scmp.eq.s32.totalorder %s15, 0
      %p110 = por %p108, %p109
      %p111 = scmp.le.s32.totalorder 1, %s9
      %p112 = scmp.lt.s32.totalorder %s9, 8
      %p113 = pnand %p111, %p112
      %p114 = pneg %p113
      // Predicated region
      $region9: #{dqn_forward.4} parent=5 // pred_check
        _
      $region10: #{dqn_forward.4} parent=5 // pred_check_branch
        %116 = sbr.rel (%p113) target = $region12
      $region11: #{dqn_forward.4} parent=5 // pred_region
        %s117 = ssub.s32 %s9, 1
        // Predicated region
        $region13: #{dqn_forward.4} parent=11 // pred_check
          %p118 = pneg %p56
        $region14: #{dqn_forward.4} parent=11 // pred_check_branch
          %120 = sbr.rel (%p118) target = $region16
        $region15: #{dqn_forward.4} parent=11 // pred_region
          _
        $region16: #{dqn_forward.4} parent=11 // pred_fallthru
          _
        // Predicated region
        $region17: #{dqn_forward.4} parent=11 // pred_check
          %p121 = pneg %p77
        $region18: #{dqn_forward.4} parent=11 // pred_check_branch
          %123 = sbr.rel (%p121) target = $region20
        $region19: #{dqn_forward.4} parent=11 // pred_region
          _
        $region20: #{dqn_forward.4} parent=11 // pred_fallthru
          _
      $region12: #{dqn_forward.4} parent=5 // pred_fallthru
        _
      %p124 = scmp.lt.s32.totalorder %s9, 7
      // Predicated region
      $region21: #{dqn_forward.4} parent=5 // pred_check
        %p125 = pneg %p124
      $region22: #{dqn_forward.4} parent=5 // pred_check_branch
        %127 = sbr.rel (%p125) target = $region24
      $region23: #{dqn_forward.4} parent=5 // pred_region
        // Predicated region
        $region25: #{dqn_forward.4} parent=23 // pred_check
          %p128 = pneg %p29
        $region26: #{dqn_forward.4} parent=23 // pred_check_branch
          %130 = sbr.rel (%p128) target = $region28
        $region27: #{dqn_forward.4} parent=23 // pred_region
          %s131 = smul.u32 64, %s9
          %s132 = ssub.s32 421, %s131
          %p133 = scmp.lt.s32.totalorder %s132, 64
          %s134 = scalar_select %p133, %s132, 64
          %s135 = smul.u32 64, %s134
          %p136 = scmp.lt.s32.totalorder %s131, 420
          %s137 = scalar_select %p136, %s131, 420
          %s138 = smul.addr %s137, 4
          %s139 = scalar_lea.vmem %s0, %s138
          %s140 = smul.u32 64, %s9
          %s141 = ssub.s32 421, %s140
          %p142 = scmp.lt.s32.totalorder %s141, 64
          %s143 = scalar_select %p142, %s141, 64
          %s144 = smul.u32 64, %s143
        $region28: #{dqn_forward.4} parent=23 // pred_fallthru
          _
      $region24: #{dqn_forward.4} parent=5 // pred_fallthru
        _
      %p145 = scmp.le.s32.totalorder 1, %s9
      %p146 = scmp.lt.s32.totalorder %s9, 8
      %p147 = pnand %p145, %p146
      %p148 = pneg %p147
      // Predicated region
      $region29: #{dqn_forward.4} parent=5 // pred_check
        _
      $region30: #{dqn_forward.4} parent=5 // pred_check_branch
        %150 = sbr.rel (%p147) target = $region32
      $region31: #{dqn_forward.4} parent=5 // pred_region
        %s151 = ssub.s32 %s9, 1
        %s152 = smul.u32 64, %s14
        %s153 = ssub.s32 421, %s152
        %p154 = scmp.lt.s32.totalorder %s153, 64
        %s155 = scalar_select %p154, %s153, 64
        %s156 = smul.u32 64, %s155
        %p157 = scmp.lt.s32.totalorder %s152, 420
        %s158 = scalar_select %p157, %s152, 420
        %s159 = smul.addr %s158, 4
        %s160 = scalar_lea.vmem %s0, %s159
        %p161 = pneg %p35
        %p162 = pneg %p32
        %p163 = pneg %p56
        %p164 = pneg %p53
        %p165 = pneg %p77
        %p166 = pneg %p74
        %p167 = pneg %p103
        %p168 = pneg %p100
        %s169 = sand.u32 %s90, 1
        %s170 = sand.u32 %s90, 1
        %s171 = smul.addr %s170, 256
        %s172 = scalar_lea.vmem [#allocation2], %s171
        %s173 = smul.u32 64, %s14
        %s174 = ssub.s32 421, %s173
        %p175 = scmp.lt.s32.totalorder %s174, 64
        %s176 = scalar_select %p175, %s174, 64
        %s177 = smul.u32 64, %s176
        %p178 = scmp.lt.s32.totalorder %s173, 420
        %s179 = scalar_select %p178, %s173, 420
        %s180 = smul.addr %s179, 4
        %s181 = scalar_lea.vmem %s0, %s180
        %s182 = smul.u32 64, %s14
        %s183 = ssub.s32 421, %s182
        %p184 = scmp.lt.s32.totalorder %s183, 64
        %s185 = scalar_select %p184, %s183, 64
        %s186 = smul.u32 64, %s185
        %s187 = smul.u32 64, %s14
        %s188 = ssub.s32 421, %s187
        %p189 = scmp.lt.s32.totalorder %s188, 64
        %s190 = scalar_select %p189, %s188, 64
        %s191 = smul.u32 64, %s190
        %v193 = vld [vmem:[%s181] sm:$0xf]
        %v194 = vld [vmem:[%s181 + $0x4] sm:$0xf]
        %v195 = vld [vmem:[%s181 + $0x8] sm:$0xf]
        %v196 = vld [vmem:[%s181 + $0xc] sm:$0xf]
        %v197 = vld [vmem:[%s181 + $0x10] sm:$0xf]
        %v198 = vld [vmem:[%s181 + $0x14] sm:$0xf]
        %v199 = vld [vmem:[%s181 + $0x18] sm:$0xf]
        %v200 = vld [vmem:[%s181 + $0x1c] sm:$0xf]
        %v201 = vld [vmem:[%s181 + $0x20] sm:$0xf]
        %v202 = vld [vmem:[%s181 + $0x24] sm:$0xf]
        %v203 = vld [vmem:[%s181 + $0x28] sm:$0xf]
        %v204 = vld [vmem:[%s181 + $0x2c] sm:$0xf]
        %v205 = vld [vmem:[%s181 + $0x30] sm:$0xf]
        %v206 = vld [vmem:[%s181 + $0x34] sm:$0xf]
        %v207 = vld [vmem:[%s181 + $0x38] sm:$0xf]
        %v208 = vld [vmem:[%s181 + $0x3c] sm:$0xf]
        %v209 = vld [vmem:[%s181 + $0x40] sm:$0xf]
        %v210 = vld [vmem:[%s181 + $0x44] sm:$0xf]
        %v211 = vld [vmem:[%s181 + $0x48] sm:$0xf]
        %v212 = vld [vmem:[%s181 + $0x4c] sm:$0xf]
        %v213 = vld [vmem:[%s181 + $0x50] sm:$0xf]
        %v214 = vld [vmem:[%s181 + $0x54] sm:$0xf]
        %v215 = vld [vmem:[%s181 + $0x58] sm:$0xf]
        %v216 = vld [vmem:[%s181 + $0x5c] sm:$0xf]
        %v217 = vld [vmem:[%s181 + $0x60] sm:$0xf]
        %v218 = vld [vmem:[%s181 + $0x64] sm:$0xf]
        %v219 = vld [vmem:[%s181 + $0x68] sm:$0xf]
        %v220 = vld [vmem:[%s181 + $0x6c] sm:$0xf]
        %v221 = vld [vmem:[%s181 + $0x70] sm:$0xf]
        %v222 = vld [vmem:[%s181 + $0x74] sm:$0xf]
        %v223 = vld [vmem:[%s181 + $0x78] sm:$0xf]
        %v224 = vld [vmem:[%s181 + $0x7c] sm:$0xf]
        %v225 = vld [vmem:[%s181 + $0x80] sm:$0xf]
        %v226 = vld [vmem:[%s181 + $0x84] sm:$0xf]
        %v227 = vld [vmem:[%s181 + $0x88] sm:$0xf]
        %v228 = vld [vmem:[%s181 + $0x8c] sm:$0xf]
        %v229 = vld [vmem:[%s181 + $0x90] sm:$0xf]
        %v230 = vld [vmem:[%s181 + $0x94] sm:$0xf]
        %v231 = vld [vmem:[%s181 + $0x98] sm:$0xf]
        %v232 = vld [vmem:[%s181 + $0x9c] sm:$0xf]
        %v233 = vld [vmem:[%s181 + $0xa0] sm:$0xf]
        %v234 = vld [vmem:[%s181 + $0xa4] sm:$0xf]
        %v235 = vld [vmem:[%s181 + $0xa8] sm:$0xf]
        %v236 = vld [vmem:[%s181 + $0xac] sm:$0xf]
        %v237 = vld [vmem:[%s181 + $0xb0] sm:$0xf]
        %v238 = vld [vmem:[%s181 + $0xb4] sm:$0xf]
        %v239 = vld [vmem:[%s181 + $0xb8] sm:$0xf]
        %v240 = vld [vmem:[%s181 + $0xbc] sm:$0xf]
        %v241 = vld [vmem:[%s181 + $0xc0] sm:$0xf]
        %v242 = vld [vmem:[%s181 + $0xc4] sm:$0xf]
        %v243 = vld [vmem:[%s181 + $0xc8] sm:$0xf]
        %v244 = vld [vmem:[%s181 + $0xcc] sm:$0xf]
        %v245 = vld [vmem:[%s181 + $0xd0] sm:$0xf]
        %v246 = vld [vmem:[%s181 + $0xd4] sm:$0xf]
        %v247 = vld [vmem:[%s181 + $0xd8] sm:$0xf]
        %v248 = vld [vmem:[%s181 + $0xdc] sm:$0xf]
        %v249 = vld [vmem:[%s181 + $0xe0] sm:$0xf]
        %v250 = vld [vmem:[%s181 + $0xe4] sm:$0xf]
        %v251 = vld [vmem:[%s181 + $0xe8] sm:$0xf]
        %v252 = vld [vmem:[%s181 + $0xec] sm:$0xf]
        %v253 = vld [vmem:[%s181 + $0xf0] sm:$0xf]
        %v254 = vld [vmem:[%s181 + $0xf4] sm:$0xf]
        %v255 = vld [vmem:[%s181 + $0xf8] sm:$0xf]
        %v256 = vld [vmem:[%s181 + $0xfc] sm:$0xf]
        %v257 = vld [vmem:[%s1] sm:$0xf]
        %v258 = vld [vmem:[%s1 + $0x4] sm:$0xf]
        %v259 = vld [vmem:[%s1 + $0x8] sm:$0xf]
        %v260 = vld [vmem:[%s1 + $0xc] sm:$0xf]
        %v261 = vld [vmem:[%s1 + $0x10] sm:$0x3]
        %v262 = vld [vmem:[%s2] sm:$0x1]
        %v264 = vlaneseq
        %v265 = vshrl.u32 %v264, 7
        %v266 = vsub.s32 0, %v265
        %v267 = vrot.slane %v262, %v266
        %v333 = vunpack.c.l.b16 %v193
        %v334 = vunpack.c.l.b16 %v194
        %v335 = vunpack.c.l.b16 %v195
        %v336 = vunpack.c.l.b16 %v196
        %v337 = vunpack.c.l.b16 %v197
        %v338 = vunpack.c.l.b16 %v198
        %v339 = vunpack.c.l.b16 %v199
        %v340 = vunpack.c.l.b16 %v200
        %v341 = vunpack.c.l.b16 %v201
        %v342 = vunpack.c.l.b16 %v202
        %v343 = vunpack.c.l.b16 %v203
        %v344 = vunpack.c.l.b16 %v204
        %v345 = vunpack.c.l.b16 %v205
        %v346 = vunpack.c.l.b16 %v206
        %v347 = vunpack.c.l.b16 %v207
        %v348 = vunpack.c.l.b16 %v208
        %v349 = vunpack.c.l.b16 %v209
        %v350 = vunpack.c.l.b16 %v210
        %v351 = vunpack.c.l.b16 %v211
        %v352 = vunpack.c.l.b16 %v212
        %v353 = vunpack.c.l.b16 %v213
        %v354 = vunpack.c.l.b16 %v214
        %v355 = vunpack.c.l.b16 %v215
        %v356 = vunpack.c.l.b16 %v216
        %v357 = vunpack.c.l.b16 %v217
        %v358 = vunpack.c.l.b16 %v218
        %v359 = vunpack.c.l.b16 %v219
        %v360 = vunpack.c.l.b16 %v220
        %v361 = vunpack.c.l.b16 %v221
        %v362 = vunpack.c.l.b16 %v222
        %v363 = vunpack.c.l.b16 %v223
        %v364 = vunpack.c.l.b16 %v224
        %v365 = vunpack.c.l.b16 %v225
        %v366 = vunpack.c.l.b16 %v226
        %v367 = vunpack.c.l.b16 %v227
        %v368 = vunpack.c.l.b16 %v228
        %v369 = vunpack.c.l.b16 %v229
        %v370 = vunpack.c.l.b16 %v230
        %v371 = vunpack.c.l.b16 %v231
        %v372 = vunpack.c.l.b16 %v232
        %v373 = vunpack.c.l.b16 %v233
        %v374 = vunpack.c.l.b16 %v234
        %v375 = vunpack.c.l.b16 %v235
        %v376 = vunpack.c.l.b16 %v236
        %v377 = vunpack.c.l.b16 %v237
        %v378 = vunpack.c.l.b16 %v238
        %v379 = vunpack.c.l.b16 %v239
        %v380 = vunpack.c.l.b16 %v240
        %v381 = vunpack.c.l.b16 %v241
        %v382 = vunpack.c.l.b16 %v242
        %v383 = vunpack.c.l.b16 %v243
        %v384 = vunpack.c.l.b16 %v244
        %v385 = vunpack.c.l.b16 %v245
        %v386 = vunpack.c.l.b16 %v246
        %v387 = vunpack.c.l.b16 %v247
        %v388 = vunpack.c.l.b16 %v248
        %v389 = vunpack.c.l.b16 %v249
        %v390 = vunpack.c.l.b16 %v250
        %v391 = vunpack.c.l.b16 %v251
        %v392 = vunpack.c.l.b16 %v252
        %v393 = vunpack.c.l.b16 %v253
        %v394 = vunpack.c.l.b16 %v254
        %v395 = vunpack.c.l.b16 %v255
        %v396 = vunpack.c.l.b16 %v256
        %v397 = vpack.c.b16 %v334, %v333
        %v398 = vpack.c.b16 %v336, %v335
        %v399 = vpack.c.b16 %v338, %v337
        %v400 = vpack.c.b16 %v340, %v339
        %v401 = vpack.c.b16 %v342, %v341
        %v402 = vpack.c.b16 %v344, %v343
        %v403 = vpack.c.b16 %v346, %v345
        %v404 = vpack.c.b16 %v348, %v347
        %v405 = vpack.c.b16 %v350, %v349
        %v406 = vpack.c.b16 %v352, %v351
        %v407 = vpack.c.b16 %v354, %v353
        %v408 = vpack.c.b16 %v356, %v355
        %v409 = vpack.c.b16 %v358, %v357
        %v410 = vpack.c.b16 %v360, %v359
        %v411 = vpack.c.b16 %v362, %v361
        %v412 = vpack.c.b16 %v364, %v363
        %v413 = vpack.c.b16 %v366, %v365
        %v414 = vpack.c.b16 %v368, %v367
        %v415 = vpack.c.b16 %v370, %v369
        %v416 = vpack.c.b16 %v372, %v371
        %v417 = vpack.c.b16 %v374, %v373
        %v418 = vpack.c.b16 %v376, %v375
        %v419 = vpack.c.b16 %v378, %v377
        %v420 = vpack.c.b16 %v380, %v379
        %v421 = vpack.c.b16 %v382, %v381
        %v422 = vpack.c.b16 %v384, %v383
        %v423 = vpack.c.b16 %v386, %v385
        %v424 = vpack.c.b16 %v388, %v387
        %v425 = vpack.c.b16 %v390, %v389
        %v426 = vpack.c.b16 %v392, %v391
        %v427 = vpack.c.b16 %v394, %v393
        %v428 = vpack.c.b16 %v396, %v395
        %v434 = vunpack.c.l.b16 %v257
        %v435 = vunpack.c.l.b16 %v258
        %v436 = vunpack.c.l.b16 %v259
        %v437 = vunpack.c.l.b16 %v260
        %v438 = vunpack.c.l.b16 %v261
        %v439 = vpack.c.b16 %v435, %v434
        %v440 = vpack.c.b16 %v437, %v436
        %v441 = vpack.c.b16 %v438, %v438
        %vm444 = vcmask 293888
        %v446 = vsel %vm444, %v397, 0
        %v449 = vsel %vm444, %v398, 0
        %v452 = vsel %vm444, %v399, 0
        %v455 = vsel %vm444, %v400, 0
        %v458 = vsel %vm444, %v401, 0
        %v461 = vsel %vm444, %v402, 0
        %v464 = vsel %vm444, %v403, 0
        %v467 = vsel %vm444, %v404, 0
        %v470 = vsel %vm444, %v405, 0
        %v473 = vsel %vm444, %v406, 0
        %v476 = vsel %vm444, %v407, 0
        %v479 = vsel %vm444, %v408, 0
        %v482 = vsel %vm444, %v409, 0
        %v485 = vsel %vm444, %v410, 0
        %v488 = vsel %vm444, %v411, 0
        %v491 = vsel %vm444, %v412, 0
        %v494 = vsel %vm444, %v413, 0
        %v497 = vsel %vm444, %v414, 0
        %v500 = vsel %vm444, %v415, 0
        %v503 = vsel %vm444, %v416, 0
        %v506 = vsel %vm444, %v417, 0
        %v509 = vsel %vm444, %v418, 0
        %v512 = vsel %vm444, %v419, 0
        %v515 = vsel %vm444, %v420, 0
        %v518 = vsel %vm444, %v421, 0
        %v521 = vsel %vm444, %v422, 0
        %v524 = vsel %vm444, %v423, 0
        %v527 = vsel %vm444, %v424, 0
        %v530 = vsel %vm444, %v425, 0
        %v533 = vsel %vm444, %v426, 0
        %v536 = vsel %vm444, %v427, 0
        %v539 = vsel %vm444, %v428, 0
        %vm541 = vcmask 1041408
        %v543 = vsel %vm541, %v441, 0
        %545 = vmatprep.subr.bf16.mxu0 0
        %546 = vmatpush1.bf16.msra.mxu0 %v439
        %547 = vmatprep.subr.bf16.mxu0 0
        %548 = vmatpush1.bf16.msra.mxu0 %v440
        %549 = vmatprep.subr.bf16.mxu0 0
        %550 = vmatpush1.bf16.msra.mxu0 %v543
        %551 = vmatprep.subr.bf16.mxu0 0
        %552 = vmatpush1.bf16.msra.mxu0 0
        %553 = vmatprep.subr.bf16.mxu0 0
        %554 = vmatpush1.bf16.msra.mxu0 0
        %555 = vmatprep.subr.bf16.mxu0 0
        %556 = vmatpush1.bf16.msra.mxu0 0
        %557 = vmatprep.subr.bf16.mxu0 0
        %558 = vmatpush1.bf16.msra.mxu0 0
        %559 = vmatprep.subr.bf16.mxu0 0
        %560 = vmatpush1.bf16.msra.mxu0 0
        %561 = vmatprep.subr.bf16.mxu0 0
        %562 = vmatpush1.bf16.msra.mxu0 0
        %563 = vmatprep.subr.bf16.mxu0 0
        %564 = vmatpush1.bf16.msra.mxu0 0
        %565 = vmatprep.subr.bf16.mxu0 0
        %566 = vmatpush1.bf16.msra.mxu0 0
        %567 = vmatprep.subr.bf16.mxu0 0
        %568 = vmatpush1.bf16.msra.mxu0 0
        %569 = vmatprep.subr.bf16.mxu0 0
        %570 = vmatpush1.bf16.msra.mxu0 0
        %571 = vmatprep.subr.bf16.mxu0 0
        %572 = vmatpush1.bf16.msra.mxu0 0
        %573 = vmatprep.subr.bf16.mxu0 0
        %574 = vmatpush1.bf16.msra.mxu0 0
        %575 = vmatprep.subr.bf16.mxu0 0
        %576 = vmatpush1.bf16.msra.mxu0 0
        %577 = vmatprep.mubr.bf16.mxu0 0
        %578 = vmatmul.mubr.bf16.gmra.mrb[0].mxu0 %v446
        %v579 = vpop.f32.mrb[0].mxu0
        %v580 = vadd.f32 %v267, %v579
        %v581 = vpop.f32.mrb[0].mxu0
        %v582 = vpop.f32.mrb[0].mxu0
        %v583 = vadd.f32 %v267, %v582
        %v584 = vpop.f32.mrb[0].mxu0
        %585 = vmatprep.mubr.bf16.mxu0 0
        %586 = vmatmul.mubr.bf16.gmra.mrb[0].mxu0 %v449
        %v587 = vpop.f32.mrb[0].mxu0
        %v588 = vadd.f32 %v267, %v587
        %v589 = vpop.f32.mrb[0].mxu0
        %v590 = vpop.f32.mrb[0].mxu0
        %v591 = vadd.f32 %v267, %v590
        %v592 = vpop.f32.mrb[0].mxu0
        %593 = vmatprep.mubr.bf16.mxu0 0
        %594 = vmatmul.mubr.bf16.gmra.mrb[0].mxu0 %v452
        %v595 = vpop.f32.mrb[0].mxu0
        %v596 = vadd.f32 %v267, %v595
        %v597 = vpop.f32.mrb[0].mxu0
        %v598 = vpop.f32.mrb[0].mxu0
        %v599 = vadd.f32 %v267, %v598
        %v600 = vpop.f32.mrb[0].mxu0
        %601 = vmatprep.mubr.bf16.mxu0 0
        %602 = vmatmul.mubr.bf16.gmra.mrb[0].mxu0 %v455
        %v603 = vpop.f32.mrb[0].mxu0
        %v604 = vadd.f32 %v267, %v603
        %v605 = vpop.f32.mrb[0].mxu0
        %v606 = vpop.f32.mrb[0].mxu0
        %v607 = vadd.f32 %v267, %v606
        %v608 = vpop.f32.mrb[0].mxu0
        %609 = vmatprep.mubr.bf16.mxu0 0
        %610 = vmatmul.mubr.bf16.gmra.mrb[0].mxu0 %v458
        %v611 = vpop.f32.mrb[0].mxu0
        %v612 = vadd.f32 %v267, %v611
        %v613 = vpop.f32.mrb[0].mxu0
        %v614 = vpop.f32.mrb[0].mxu0
        %v615 = vadd.f32 %v267, %v614
        %v616 = vpop.f32.mrb[0].mxu0
        %617 = vmatprep.mubr.bf16.mxu0 0
        %618 = vmatmul.mubr.bf16.gmra.mrb[0].mxu0 %v461
        %v619 = vpop.f32.mrb[0].mxu0
        %v620 = vadd.f32 %v267, %v619
        %v621 = vpop.f32.mrb[0].mxu0
        %v622 = vpop.f32.mrb[0].mxu0
        %v623 = vadd.f32 %v267, %v622
        %v624 = vpop.f32.mrb[0].mxu0
        %625 = vmatprep.mubr.bf16.mxu0 0
        %626 = vmatmul.mubr.bf16.gmra.mrb[0].mxu0 %v464
        %v627 = vpop.f32.mrb[0].mxu0
        %v628 = vadd.f32 %v267, %v627
        %v629 = vpop.f32.mrb[0].mxu0
        %v630 = vpop.f32.mrb[0].mxu0
        %v631 = vadd.f32 %v267, %v630
        %v632 = vpop.f32.mrb[0].mxu0
        %633 = vmatprep.mubr.bf16.mxu0 0
        %634 = vmatmul.mubr.bf16.gmra.mrb[0].mxu0 %v467
        %v635 = vpop.f32.mrb[0].mxu0
        %v636 = vadd.f32 %v267, %v635
        %v637 = vpop.f32.mrb[0].mxu0
        %v638 = vpop.f32.mrb[0].mxu0
        %v639 = vadd.f32 %v267, %v638
        %v640 = vpop.f32.mrb[0].mxu0
        %641 = vmatprep.mubr.bf16.mxu0 0
        %642 = vmatmul.mubr.bf16.gmra.mrb[0].mxu0 %v470
        %v643 = vpop.f32.mrb[0].mxu0
        %v644 = vadd.f32 %v267, %v643
        %v645 = vpop.f32.mrb[0].mxu0
        %v646 = vpop.f32.mrb[0].mxu0
        %v647 = vadd.f32 %v267, %v646
        %v648 = vpop.f32.mrb[0].mxu0
        %649 = vmatprep.mubr.bf16.mxu0 0
        %650 = vmatmul.mubr.bf16.gmra.mrb[0].mxu0 %v473
        %v651 = vpop.f32.mrb[0].mxu0
        %v652 = vadd.f32 %v267, %v651
        %v653 = vpop.f32.mrb[0].mxu0
        %v654 = vpop.f32.mrb[0].mxu0
        %v655 = vadd.f32 %v267, %v654
        %v656 = vpop.f32.mrb[0].mxu0
        %657 = vmatprep.mubr.bf16.mxu0 0
        %658 = vmatmul.mubr.bf16.gmra.mrb[0].mxu0 %v476
        %v659 = vpop.f32.mrb[0].mxu0
        %v660 = vadd.f32 %v267, %v659
        %v661 = vpop.f32.mrb[0].mxu0
        %v662 = vpop.f32.mrb[0].mxu0
        %v663 = vadd.f32 %v267, %v662
        %v664 = vpop.f32.mrb[0].mxu0
        %665 = vmatprep.mubr.bf16.mxu0 0
        %666 = vmatmul.mubr.bf16.gmra.mrb[0].mxu0 %v479
        %v667 = vpop.f32.mrb[0].mxu0
        %v668 = vadd.f32 %v267, %v667
        %v669 = vpop.f32.mrb[0].mxu0
        %v670 = vpop.f32.mrb[0].mxu0
        %v671 = vadd.f32 %v267, %v670
        %v672 = vpop.f32.mrb[0].mxu0
        %673 = vmatprep.mubr.bf16.mxu0 0
        %674 = vmatmul.mubr.bf16.gmra.mrb[0].mxu0 %v482
        %v675 = vpop.f32.mrb[0].mxu0
        %v676 = vadd.f32 %v267, %v675
        %v677 = vpop.f32.mrb[0].mxu0
        %v678 = vpop.f32.mrb[0].mxu0
        %v679 = vadd.f32 %v267, %v678
        %v680 = vpop.f32.mrb[0].mxu0
        %681 = vmatprep.mubr.bf16.mxu0 0
        %682 = vmatmul.mubr.bf16.gmra.mrb[0].mxu0 %v485
        %v683 = vpop.f32.mrb[0].mxu0
        %v684 = vadd.f32 %v267, %v683
        %v685 = vpop.f32.mrb[0].mxu0
        %v686 = vpop.f32.mrb[0].mxu0
        %v687 = vadd.f32 %v267, %v686
        %v688 = vpop.f32.mrb[0].mxu0
        %689 = vmatprep.mubr.bf16.mxu0 0
        %690 = vmatmul.mubr.bf16.gmra.mrb[0].mxu0 %v488
        %v691 = vpop.f32.mrb[0].mxu0
        %v692 = vadd.f32 %v267, %v691
        %v693 = vpop.f32.mrb[0].mxu0
        %v694 = vpop.f32.mrb[0].mxu0
        %v695 = vadd.f32 %v267, %v694
        %v696 = vpop.f32.mrb[0].mxu0
        %697 = vmatprep.mubr.bf16.mxu0 0
        %698 = vmatmul.mubr.bf16.gmra.mrb[0].mxu0 %v491
        %v699 = vpop.f32.mrb[0].mxu0
        %v700 = vadd.f32 %v267, %v699
        %v701 = vpop.f32.mrb[0].mxu0
        %v702 = vpop.f32.mrb[0].mxu0
        %v703 = vadd.f32 %v267, %v702
        %v704 = vpop.f32.mrb[0].mxu0
        %705 = vmatprep.mubr.bf16.mxu0 0
        %706 = vmatmul.mubr.bf16.gmra.mrb[0].mxu0 %v494
        %v707 = vpop.f32.mrb[0].mxu0
        %v708 = vadd.f32 %v267, %v707
        %v709 = vpop.f32.mrb[0].mxu0
        %v710 = vpop.f32.mrb[0].mxu0
        %v711 = vadd.f32 %v267, %v710
        %v712 = vpop.f32.mrb[0].mxu0
        %713 = vmatprep.mubr.bf16.mxu0 0
        %714 = vmatmul.mubr.bf16.gmra.mrb[0].mxu0 %v497
        %v715 = vpop.f32.mrb[0].mxu0
        %v716 = vadd.f32 %v267, %v715
        %v717 = vpop.f32.mrb[0].mxu0
        %v718 = vpop.f32.mrb[0].mxu0
        %v719 = vadd.f32 %v267, %v718
        %v720 = vpop.f32.mrb[0].mxu0
        %721 = vmatprep.mubr.bf16.mxu0 0
        %722 = vmatmul.mubr.bf16.gmra.mrb[0].mxu0 %v500
        %v723 = vpop.f32.mrb[0].mxu0
        %v724 = vadd.f32 %v267, %v723
        %v725 = vpop.f32.mrb[0].mxu0
        %v726 = vpop.f32.mrb[0].mxu0
        %v727 = vadd.f32 %v267, %v726
        %v728 = vpop.f32.mrb[0].mxu0
        %729 = vmatprep.mubr.bf16.mxu0 0
        %730 = vmatmul.mubr.bf16.gmra.mrb[0].mxu0 %v503
        %v731 = vpop.f32.mrb[0].mxu0
        %v732 = vadd.f32 %v267, %v731
        %v733 = vpop.f32.mrb[0].mxu0
        %v734 = vpop.f32.mrb[0].mxu0
        %v735 = vadd.f32 %v267, %v734
        %v736 = vpop.f32.mrb[0].mxu0
        %737 = vmatprep.mubr.bf16.mxu0 0
        %738 = vmatmul.mubr.bf16.gmra.mrb[0].mxu0 %v506
        %v739 = vpop.f32.mrb[0].mxu0
        %v740 = vadd.f32 %v267, %v739
        %v741 = vpop.f32.mrb[0].mxu0
        %v742 = vpop.f32.mrb[0].mxu0
        %v743 = vadd.f32 %v267, %v742
        %v744 = vpop.f32.mrb[0].mxu0
        %745 = vmatprep.mubr.bf16.mxu0 0
        %746 = vmatmul.mubr.bf16.gmra.mrb[0].mxu0 %v509
        %v747 = vpop.f32.mrb[0].mxu0
        %v748 = vadd.f32 %v267, %v747
        %v749 = vpop.f32.mrb[0].mxu0
        %v750 = vpop.f32.mrb[0].mxu0
        %v751 = vadd.f32 %v267, %v750
        %v752 = vpop.f32.mrb[0].mxu0
        %753 = vmatprep.mubr.bf16.mxu0 0
        %754 = vmatmul.mubr.bf16.gmra.mrb[0].mxu0 %v512
        %v755 = vpop.f32.mrb[0].mxu0
        %v756 = vadd.f32 %v267, %v755
        %v757 = vpop.f32.mrb[0].mxu0
        %v758 = vpop.f32.mrb[0].mxu0
        %v759 = vadd.f32 %v267, %v758
        %v760 = vpop.f32.mrb[0].mxu0
        %761 = vmatprep.mubr.bf16.mxu0 0
        %762 = vmatmul.mubr.bf16.gmra.mrb[0].mxu0 %v515
        %v763 = vpop.f32.mrb[0].mxu0
        %v764 = vadd.f32 %v267, %v763
        %v765 = vpop.f32.mrb[0].mxu0
        %v766 = vpop.f32.mrb[0].mxu0
        %v767 = vadd.f32 %v267, %v766
        %v768 = vpop.f32.mrb[0].mxu0
        %769 = vmatprep.mubr.bf16.mxu0 0
        %770 = vmatmul.mubr.bf16.gmra.mrb[0].mxu0 %v518
        %v771 = vpop.f32.mrb[0].mxu0
        %v772 = vadd.f32 %v267, %v771
        %v773 = vpop.f32.mrb[0].mxu0
        %v774 = vpop.f32.mrb[0].mxu0
        %v775 = vadd.f32 %v267, %v774
        %v776 = vpop.f32.mrb[0].mxu0
        %777 = vmatprep.mubr.bf16.mxu0 0
        %778 = vmatmul.mubr.bf16.gmra.mrb[0].mxu0 %v521
        %v779 = vpop.f32.mrb[0].mxu0
        %v780 = vadd.f32 %v267, %v779
        %v781 = vpop.f32.mrb[0].mxu0
        %v782 = vpop.f32.mrb[0].mxu0
        %v783 = vadd.f32 %v267, %v782
        %v784 = vpop.f32.mrb[0].mxu0
        %785 = vmatprep.mubr.bf16.mxu0 0
        %786 = vmatmul.mubr.bf16.gmra.mrb[0].mxu0 %v524
        %v787 = vpop.f32.mrb[0].mxu0
        %v788 = vadd.f32 %v267, %v787
        %v789 = vpop.f32.mrb[0].mxu0
        %v790 = vpop.f32.mrb[0].mxu0
        %v791 = vadd.f32 %v267, %v790
        %v792 = vpop.f32.mrb[0].mxu0
        %793 = vmatprep.mubr.bf16.mxu0 0
        %794 = vmatmul.mubr.bf16.gmra.mrb[0].mxu0 %v527
        %v795 = vpop.f32.mrb[0].mxu0
        %v796 = vadd.f32 %v267, %v795
        %v797 = vpop.f32.mrb[0].mxu0
        %v798 = vpop.f32.mrb[0].mxu0
        %v799 = vadd.f32 %v267, %v798
        %v800 = vpop.f32.mrb[0].mxu0
        %801 = vmatprep.mubr.bf16.mxu0 0
        %802 = vmatmul.mubr.bf16.gmra.mrb[0].mxu0 %v530
        %v803 = vpop.f32.mrb[0].mxu0
        %v804 = vadd.f32 %v267, %v803
        %v805 = vpop.f32.mrb[0].mxu0
        %v806 = vpop.f32.mrb[0].mxu0
        %v807 = vadd.f32 %v267, %v806
        %v808 = vpop.f32.mrb[0].mxu0
        %809 = vmatprep.mubr.bf16.mxu0 0
        %810 = vmatmul.mubr.bf16.gmra.mrb[0].mxu0 %v533
        %v811 = vpop.f32.mrb[0].mxu0
        %v812 = vadd.f32 %v267, %v811
        %v813 = vpop.f32.mrb[0].mxu0
        %v814 = vpop.f32.mrb[0].mxu0
        %v815 = vadd.f32 %v267, %v814
        %v816 = vpop.f32.mrb[0].mxu0
        %817 = vmatprep.mubr.bf16.mxu0 0
        %818 = vmatmul.mubr.bf16.gmra.mrb[0].mxu0 %v536
        %v819 = vpop.f32.mrb[0].mxu0
        %v820 = vadd.f32 %v267, %v819
        %v821 = vpop.f32.mrb[0].mxu0
        %v822 = vpop.f32.mrb[0].mxu0
        %v823 = vadd.f32 %v267, %v822
        %v824 = vpop.f32.mrb[0].mxu0
        %825 = vmatprep.mubr.bf16.mxu0 0
        %826 = vmatmul.mubr.bf16.gmra.mrb[0].mxu0 %v539
        %v827 = vpop.f32.mrb[0].mxu0
        %v828 = vadd.f32 %v267, %v827
        %v829 = vpop.f32.mrb[0].mxu0
        %v830 = vpop.f32.mrb[0].mxu0
        %v831 = vadd.f32 %v267, %v830
        %v832 = vpop.f32.mrb[0].mxu0
        %833 = vdwg.mxu0
        %v834 = vmax.f32 %v580, 0.0
        %v835 = vmax.f32 %v583, 0.0
        %v836 = vmax.f32 %v588, 0.0
        %v837 = vmax.f32 %v591, 0.0
        %v838 = vmax.f32 %v596, 0.0
        %v839 = vmax.f32 %v599, 0.0
        %v840 = vmax.f32 %v604, 0.0
        %v841 = vmax.f32 %v607, 0.0
        %v842 = vmax.f32 %v612, 0.0
        %v843 = vmax.f32 %v615, 0.0
        %v844 = vmax.f32 %v620, 0.0
        %v845 = vmax.f32 %v623, 0.0
        %v846 = vmax.f32 %v628, 0.0
        %v847 = vmax.f32 %v631, 0.0
        %v848 = vmax.f32 %v636, 0.0
        %v849 = vmax.f32 %v639, 0.0
        %v850 = vmax.f32 %v644, 0.0
        %v851 = vmax.f32 %v647, 0.0
        %v852 = vmax.f32 %v652, 0.0
        %v853 = vmax.f32 %v655, 0.0
        %v854 = vmax.f32 %v660, 0.0
        %v855 = vmax.f32 %v663, 0.0
        %v856 = vmax.f32 %v668, 0.0
        %v857 = vmax.f32 %v671, 0.0
        %v858 = vmax.f32 %v676, 0.0
        %v859 = vmax.f32 %v679, 0.0
        %v860 = vmax.f32 %v684, 0.0
        %v861 = vmax.f32 %v687, 0.0
        %v862 = vmax.f32 %v692, 0.0
        %v863 = vmax.f32 %v695, 0.0
        %v864 = vmax.f32 %v700, 0.0
        %v865 = vmax.f32 %v703, 0.0
        %v866 = vmax.f32 %v708, 0.0
        %v867 = vmax.f32 %v711, 0.0
        %v868 = vmax.f32 %v716, 0.0
        %v869 = vmax.f32 %v719, 0.0
        %v870 = vmax.f32 %v724, 0.0
        %v871 = vmax.f32 %v727, 0.0
        %v872 = vmax.f32 %v732, 0.0
        %v873 = vmax.f32 %v735, 0.0
        %v874 = vmax.f32 %v740, 0.0
        %v875 = vmax.f32 %v743, 0.0
        %v876 = vmax.f32 %v748, 0.0
        %v877 = vmax.f32 %v751, 0.0
        %v878 = vmax.f32 %v756, 0.0
        %v879 = vmax.f32 %v759, 0.0
        %v880 = vmax.f32 %v764, 0.0
        %v881 = vmax.f32 %v767, 0.0
        %v882 = vmax.f32 %v772, 0.0
        %v883 = vmax.f32 %v775, 0.0
        %v884 = vmax.f32 %v780, 0.0
        %v885 = vmax.f32 %v783, 0.0
        %v886 = vmax.f32 %v788, 0.0
        %v887 = vmax.f32 %v791, 0.0
        %v888 = vmax.f32 %v796, 0.0
        %v889 = vmax.f32 %v799, 0.0
        %v890 = vmax.f32 %v804, 0.0
        %v891 = vmax.f32 %v807, 0.0
        %v892 = vmax.f32 %v812, 0.0
        %v893 = vmax.f32 %v815, 0.0
        %v894 = vmax.f32 %v820, 0.0
        %v895 = vmax.f32 %v823, 0.0
        %v896 = vmax.f32 %v828, 0.0
        %v897 = vmax.f32 %v831, 0.0
        %v898 = vpack.c.bf16 %v835, %v834
        %v899 = vpack.c.bf16 %v837, %v836
        %v900 = vpack.c.bf16 %v839, %v838
        %v901 = vpack.c.bf16 %v841, %v840
        %v902 = vpack.c.bf16 %v843, %v842
        %v903 = vpack.c.bf16 %v845, %v844
        %v904 = vpack.c.bf16 %v847, %v846
        %v905 = vpack.c.bf16 %v849, %v848
        %v906 = vpack.c.bf16 %v851, %v850
        %v907 = vpack.c.bf16 %v853, %v852
        %v908 = vpack.c.bf16 %v855, %v854
        %v909 = vpack.c.bf16 %v857, %v856
        %v910 = vpack.c.bf16 %v859, %v858
        %v911 = vpack.c.bf16 %v861, %v860
        %v912 = vpack.c.bf16 %v863, %v862
        %v913 = vpack.c.bf16 %v865, %v864
        %v914 = vpack.c.bf16 %v867, %v866
        %v915 = vpack.c.bf16 %v869, %v868
        %v916 = vpack.c.bf16 %v871, %v870
        %v917 = vpack.c.bf16 %v873, %v872
        %v918 = vpack.c.bf16 %v875, %v874
        %v919 = vpack.c.bf16 %v877, %v876
        %v920 = vpack.c.bf16 %v879, %v878
        %v921 = vpack.c.bf16 %v881, %v880
        %v922 = vpack.c.bf16 %v883, %v882
        %v923 = vpack.c.bf16 %v885, %v884
        %v924 = vpack.c.bf16 %v887, %v886
        %v925 = vpack.c.bf16 %v889, %v888
        %v926 = vpack.c.bf16 %v891, %v890
        %v927 = vpack.c.bf16 %v893, %v892
        %v928 = vpack.c.bf16 %v895, %v894
        %v929 = vpack.c.bf16 %v897, %v896
        %v962 = vunpack.c.l.b16 %v898
        %v963 = vunpack.c.h.b16 %v898
        %v964 = vunpack.c.l.b16 %v899
        %v965 = vunpack.c.h.b16 %v899
        %v966 = vunpack.c.l.b16 %v900
        %v967 = vunpack.c.h.b16 %v900
        %v968 = vunpack.c.l.b16 %v901
        %v969 = vunpack.c.h.b16 %v901
        %v970 = vunpack.c.l.b16 %v902
        %v971 = vunpack.c.h.b16 %v902
        %v972 = vunpack.c.l.b16 %v903
        %v973 = vunpack.c.h.b16 %v903
        %v974 = vunpack.c.l.b16 %v904
        %v975 = vunpack.c.h.b16 %v904
        %v976 = vunpack.c.l.b16 %v905
        %v977 = vunpack.c.h.b16 %v905
        %v978 = vunpack.c.l.b16 %v906
        %v979 = vunpack.c.h.b16 %v906
        %v980 = vunpack.c.l.b16 %v907
        %v981 = vunpack.c.h.b16 %v907
        %v982 = vunpack.c.l.b16 %v908
        %v983 = vunpack.c.h.b16 %v908
        %v984 = vunpack.c.l.b16 %v909
        %v985 = vunpack.c.h.b16 %v909
        %v986 = vunpack.c.l.b16 %v910
        %v987 = vunpack.c.h.b16 %v910
        %v988 = vunpack.c.l.b16 %v911
        %v989 = vunpack.c.h.b16 %v911
        %v990 = vunpack.c.l.b16 %v912
        %v991 = vunpack.c.h.b16 %v912
        %v992 = vunpack.c.l.b16 %v913
        %v993 = vunpack.c.h.b16 %v913
        %v994 = vunpack.c.l.b16 %v914
        %v995 = vunpack.c.h.b16 %v914
        %v996 = vunpack.c.l.b16 %v915
        %v997 = vunpack.c.h.b16 %v915
        %v998 = vunpack.c.l.b16 %v916
        %v999 = vunpack.c.h.b16 %v916
        %v1000 = vunpack.c.l.b16 %v917
        %v1001 = vunpack.c.h.b16 %v917
        %v1002 = vunpack.c.l.b16 %v918
        %v1003 = vunpack.c.h.b16 %v918
        %v1004 = vunpack.c.l.b16 %v919
        %v1005 = vunpack.c.h.b16 %v919
        %v1006 = vunpack.c.l.b16 %v920
        %v1007 = vunpack.c.h.b16 %v920
        %v1008 = vunpack.c.l.b16 %v921
        %v1009 = vunpack.c.h.b16 %v921
        %v1010 = vunpack.c.l.b16 %v922
        %v1011 = vunpack.c.h.b16 %v922
        %v1012 = vunpack.c.l.b16 %v923
        %v1013 = vunpack.c.h.b16 %v923
        %v1014 = vunpack.c.l.b16 %v924
        %v1015 = vunpack.c.h.b16 %v924
        %v1016 = vunpack.c.l.b16 %v925
        %v1017 = vunpack.c.h.b16 %v925
        %v1018 = vunpack.c.l.b16 %v926
        %v1019 = vunpack.c.h.b16 %v926
        %v1020 = vunpack.c.l.b16 %v927
        %v1021 = vunpack.c.h.b16 %v927
        %v1022 = vunpack.c.l.b16 %v928
        %v1023 = vunpack.c.h.b16 %v928
        %v1024 = vunpack.c.l.b16 %v929
        %v1025 = vunpack.c.h.b16 %v929
        %v1026 = vpack.c.b16 %v962, %v962
        %v1027 = vpack.c.b16 %v963, %v963
        %v1028 = vpack.c.b16 %v964, %v964
        %v1029 = vpack.c.b16 %v965, %v965
        %v1030 = vpack.c.b16 %v966, %v966
        %v1031 = vpack.c.b16 %v967, %v967
        %v1032 = vpack.c.b16 %v968, %v968
        %v1033 = vpack.c.b16 %v969, %v969
        %v1034 = vpack.c.b16 %v970, %v970
        %v1035 = vpack.c.b16 %v971, %v971
        %v1036 = vpack.c.b16 %v972, %v972
        %v1037 = vpack.c.b16 %v973, %v973
        %v1038 = vpack.c.b16 %v974, %v974
        %v1039 = vpack.c.b16 %v975, %v975
        %v1040 = vpack.c.b16 %v976, %v976
        %v1041 = vpack.c.b16 %v977, %v977
        %v1042 = vpack.c.b16 %v978, %v978
        %v1043 = vpack.c.b16 %v979, %v979
        %v1044 = vpack.c.b16 %v980, %v980
        %v1045 = vpack.c.b16 %v981, %v981
        %v1046 = vpack.c.b16 %v982, %v982
        %v1047 = vpack.c.b16 %v983, %v983
        %v1048 = vpack.c.b16 %v984, %v984
        %v1049 = vpack.c.b16 %v985, %v985
        %v1050 = vpack.c.b16 %v986, %v986
        %v1051 = vpack.c.b16 %v987, %v987
        %v1052 = vpack.c.b16 %v988, %v988
        %v1053 = vpack.c.b16 %v989, %v989
        %v1054 = vpack.c.b16 %v990, %v990
        %v1055 = vpack.c.b16 %v991, %v991
        %v1056 = vpack.c.b16 %v992, %v992
        %v1057 = vpack.c.b16 %v993, %v993
        %v1058 = vpack.c.b16 %v994, %v994
        %v1059 = vpack.c.b16 %v995, %v995
        %v1060 = vpack.c.b16 %v996, %v996
        %v1061 = vpack.c.b16 %v997, %v997
        %v1062 = vpack.c.b16 %v998, %v998
        %v1063 = vpack.c.b16 %v999, %v999
        %v1064 = vpack.c.b16 %v1000, %v1000
        %v1065 = vpack.c.b16 %v1001, %v1001
        %v1066 = vpack.c.b16 %v1002, %v1002
        %v1067 = vpack.c.b16 %v1003, %v1003
        %v1068 = vpack.c.b16 %v1004, %v1004
        %v1069 = vpack.c.b16 %v1005, %v1005
        %v1070 = vpack.c.b16 %v1006, %v1006
        %v1071 = vpack.c.b16 %v1007, %v1007
        %v1072 = vpack.c.b16 %v1008, %v1008
        %v1073 = vpack.c.b16 %v1009, %v1009
        %v1074 = vpack.c.b16 %v1010, %v1010
        %v1075 = vpack.c.b16 %v1011, %v1011
        %v1076 = vpack.c.b16 %v1012, %v1012
        %v1077 = vpack.c.b16 %v1013, %v1013
        %v1078 = vpack.c.b16 %v1014, %v1014
        %v1079 = vpack.c.b16 %v1015, %v1015
        %v1080 = vpack.c.b16 %v1016, %v1016
        %v1081 = vpack.c.b16 %v1017, %v1017
        %v1082 = vpack.c.b16 %v1018, %v1018
        %v1083 = vpack.c.b16 %v1019, %v1019
        %v1084 = vpack.c.b16 %v1020, %v1020
        %v1085 = vpack.c.b16 %v1021, %v1021
        %v1086 = vpack.c.b16 %v1022, %v1022
        %v1087 = vpack.c.b16 %v1023, %v1023
        %v1088 = vpack.c.b16 %v1024, %v1024
        %v1089 = vpack.c.b16 %v1025, %v1025
        %vm1154 = vcmask 257024
        %1155 = vst.msk [vmem:[%s172] sm:$0xf] %vm1154, %v1026
        %1156 = vst.msk [vmem:[%s172 + $0x4] sm:$0xf] %vm1154, %v1027
        %1157 = vst.msk [vmem:[%s172 + $0x8] sm:$0xf] %vm1154, %v1028
        %1158 = vst.msk [vmem:[%s172 + $0xc] sm:$0xf] %vm1154, %v1029
        %1159 = vst.msk [vmem:[%s172 + $0x10] sm:$0xf] %vm1154, %v1030
        %1160 = vst.msk [vmem:[%s172 + $0x14] sm:$0xf] %vm1154, %v1031
        %1161 = vst.msk [vmem:[%s172 + $0x18] sm:$0xf] %vm1154, %v1032
        %1162 = vst.msk [vmem:[%s172 + $0x1c] sm:$0xf] %vm1154, %v1033
        %1163 = vst.msk [vmem:[%s172 + $0x20] sm:$0xf] %vm1154, %v1034
        %1164 = vst.msk [vmem:[%s172 + $0x24] sm:$0xf] %vm1154, %v1035
        %1165 = vst.msk [vmem:[%s172 + $0x28] sm:$0xf] %vm1154, %v1036
        %1166 = vst.msk [vmem:[%s172 + $0x2c] sm:$0xf] %vm1154, %v1037
        %1167 = vst.msk [vmem:[%s172 + $0x30] sm:$0xf] %vm1154, %v1038
        %1168 = vst.msk [vmem:[%s172 + $0x34] sm:$0xf] %vm1154, %v1039
        %1169 = vst.msk [vmem:[%s172 + $0x38] sm:$0xf] %vm1154, %v1040
        %1170 = vst.msk [vmem:[%s172 + $0x3c] sm:$0xf] %vm1154, %v1041
        %1171 = vst.msk [vmem:[%s172 + $0x40] sm:$0xf] %vm1154, %v1042
        %1172 = vst.msk [vmem:[%s172 + $0x44] sm:$0xf] %vm1154, %v1043
        %1173 = vst.msk [vmem:[%s172 + $0x48] sm:$0xf] %vm1154, %v1044
        %1174 = vst.msk [vmem:[%s172 + $0x4c] sm:$0xf] %vm1154, %v1045
        %1175 = vst.msk [vmem:[%s172 + $0x50] sm:$0xf] %vm1154, %v1046
        %1176 = vst.msk [vmem:[%s172 + $0x54] sm:$0xf] %vm1154, %v1047
        %1177 = vst.msk [vmem:[%s172 + $0x58] sm:$0xf] %vm1154, %v1048
        %1178 = vst.msk [vmem:[%s172 + $0x5c] sm:$0xf] %vm1154, %v1049
        %1179 = vst.msk [vmem:[%s172 + $0x60] sm:$0xf] %vm1154, %v1050
        %1180 = vst.msk [vmem:[%s172 + $0x64] sm:$0xf] %vm1154, %v1051
        %1181 = vst.msk [vmem:[%s172 + $0x68] sm:$0xf] %vm1154, %v1052
        %1182 = vst.msk [vmem:[%s172 + $0x6c] sm:$0xf] %vm1154, %v1053
        %1183 = vst.msk [vmem:[%s172 + $0x70] sm:$0xf] %vm1154, %v1054
        %1184 = vst.msk [vmem:[%s172 + $0x74] sm:$0xf] %vm1154, %v1055
        %1185 = vst.msk [vmem:[%s172 + $0x78] sm:$0xf] %vm1154, %v1056
        %1186 = vst.msk [vmem:[%s172 + $0x7c] sm:$0xf] %vm1154, %v1057
        %1187 = vst.msk [vmem:[%s172 + $0x80] sm:$0xf] %vm1154, %v1058
        %1188 = vst.msk [vmem:[%s172 + $0x84] sm:$0xf] %vm1154, %v1059
        %1189 = vst.msk [vmem:[%s172 + $0x88] sm:$0xf] %vm1154, %v1060
        %1190 = vst.msk [vmem:[%s172 + $0x8c] sm:$0xf] %vm1154, %v1061
        %1191 = vst.msk [vmem:[%s172 + $0x90] sm:$0xf] %vm1154, %v1062
        %1192 = vst.msk [vmem:[%s172 + $0x94] sm:$0xf] %vm1154, %v1063
        %1193 = vst.msk [vmem:[%s172 + $0x98] sm:$0xf] %vm1154, %v1064
        %1194 = vst.msk [vmem:[%s172 + $0x9c] sm:$0xf] %vm1154, %v1065
        %1195 = vst.msk [vmem:[%s172 + $0xa0] sm:$0xf] %vm1154, %v1066
        %1196 = vst.msk [vmem:[%s172 + $0xa4] sm:$0xf] %vm1154, %v1067
        %1197 = vst.msk [vmem:[%s172 + $0xa8] sm:$0xf] %vm1154, %v1068
        %1198 = vst.msk [vmem:[%s172 + $0xac] sm:$0xf] %vm1154, %v1069
        %1199 = vst.msk [vmem:[%s172 + $0xb0] sm:$0xf] %vm1154, %v1070
        %1200 = vst.msk [vmem:[%s172 + $0xb4] sm:$0xf] %vm1154, %v1071
        %1201 = vst.msk [vmem:[%s172 + $0xb8] sm:$0xf] %vm1154, %v1072
        %1202 = vst.msk [vmem:[%s172 + $0xbc] sm:$0xf] %vm1154, %v1073
        %1203 = vst.msk [vmem:[%s172 + $0xc0] sm:$0xf] %vm1154, %v1074
        %1204 = vst.msk [vmem:[%s172 + $0xc4] sm:$0xf] %vm1154, %v1075
        %1205 = vst.msk [vmem:[%s172 + $0xc8] sm:$0xf] %vm1154, %v1076
        %1206 = vst.msk [vmem:[%s172 + $0xcc] sm:$0xf] %vm1154, %v1077
        %1207 = vst.msk [vmem:[%s172 + $0xd0] sm:$0xf] %vm1154, %v1078
        %1208 = vst.msk [vmem:[%s172 + $0xd4] sm:$0xf] %vm1154, %v1079
        %1209 = vst.msk [vmem:[%s172 + $0xd8] sm:$0xf] %vm1154, %v1080
        %1210 = vst.msk [vmem:[%s172 + $0xdc] sm:$0xf] %vm1154, %v1081
        %1211 = vst.msk [vmem:[%s172 + $0xe0] sm:$0xf] %vm1154, %v1082
        %1212 = vst.msk [vmem:[%s172 + $0xe4] sm:$0xf] %vm1154, %v1083
        %1213 = vst.msk [vmem:[%s172 + $0xe8] sm:$0xf] %vm1154, %v1084
        %1214 = vst.msk [vmem:[%s172 + $0xec] sm:$0xf] %vm1154, %v1085
        %1215 = vst.msk [vmem:[%s172 + $0xf0] sm:$0xf] %vm1154, %v1086
        %1216 = vst.msk [vmem:[%s172 + $0xf4] sm:$0xf] %vm1154, %v1087
        %1217 = vst.msk [vmem:[%s172 + $0xf8] sm:$0xf] %vm1154, %v1088
        %1218 = vst.msk [vmem:[%s172 + $0xfc] sm:$0xf] %vm1154, %v1089
        %s1219 = sand.u32 %s90, 1
        %s1220 = sand.u32 %s90, 1
        %s1221 = smul.addr %s1220, 256
        %s1222 = scalar_lea.vmem [#allocation2], %s1221
        // Predicated region
        $region33: #{dqn_forward.4} parent=31 // pred_check
          %p1223 = pneg %p100
        $region34: #{dqn_forward.4} parent=31 // pred_check_branch
          %1225 = sbr.rel (%p1223) target = $region36
        $region35: #{dqn_forward.4} parent=31 // pred_region
          %s1226 = smul.u32 64, %s14
          %s1227 = ssub.s32 421, %s1226
          %p1228 = scmp.lt.s32.totalorder %s1227, 64
          %s1229 = scalar_select %p1228, %s1227, 64
          %s1230 = smul.u32 64, %s1229
          %p1231 = scmp.ne.s32.totalorder 0, %s1230
          %s1232 = smul.addr %s1226, 4
          %s1233 = scalar_lea.vmem %s3, %s1232
          // Predicated region
          $region37: #{dqn_forward.4} parent=35 // pred_check
            %p1234 = pneg %p1231
          $region38: #{dqn_forward.4} parent=35 // pred_check_branch
            %1236 = sbr.rel (%p1234) target = $region40
          $region39: #{dqn_forward.4} parent=35 // pred_region
            // Predicated region
            $region41: #{dqn_forward.4} parent=39 // pred_check
              _
            $region42: #{dqn_forward.4} parent=39 // pred_check_branch
              %1238 = sbr.rel target = $region44
            $region43: #{dqn_forward.4} parent=39 // pred_region
              // Predicated region
              $region63: #{dqn_forward.4} parent=43 // pred_check
                _
              $region64: #{dqn_forward.4} parent=43 // pred_check_branch
                %1413 = sbr.rel (0) target = $region66
              $region65: #{dqn_forward.4} parent=43 // pred_region
                %s1415 = sshrl.u32 %s1229, 6
                // While loop
                $region67: #{dqn_forward.4} parent=65 // loop_pre_header
                  _
                $region68: #{dqn_forward.4} parent=65 // loop_header
                  %s1417 = sphi 0, %s1419
                  %p1418 = scmp.ge.s32.totalorder %s1417, %s1415
                  %s1422 = sphi 0, %s1555
                  %s1423 = sphi %s1222, %s1558
                  %s1424 = sphi %s1233, %s1559
                $region69: #{dqn_forward.4} parent=65 // loop_header_branch
                  %1421 = sbr.rel (%p1418) target = $region73
                $region70: #{dqn_forward.4} parent=65 // loop_body
                  %v1425 = vld [vmem:[%s1423] sm:$0xf]
                  %1426 = vst [vmem:[%s1424] sm:$0xf] %v1425
                  %v1427 = vld [vmem:[%s1423 + $0x4] sm:$0xf]
                  %1428 = vst [vmem:[%s1424 + $0x4] sm:$0xf] %v1427
                  %v1429 = vld [vmem:[%s1423 + $0x8] sm:$0xf]
                  %1430 = vst [vmem:[%s1424 + $0x8] sm:$0xf] %v1429
                  %v1431 = vld [vmem:[%s1423 + $0xc] sm:$0xf]
                  %1432 = vst [vmem:[%s1424 + $0xc] sm:$0xf] %v1431
                  %v1433 = vld [vmem:[%s1423 + $0x10] sm:$0xf]
                  %1434 = vst [vmem:[%s1424 + $0x10] sm:$0xf] %v1433
                  %v1435 = vld [vmem:[%s1423 + $0x14] sm:$0xf]
                  %1436 = vst [vmem:[%s1424 + $0x14] sm:$0xf] %v1435
                  %v1437 = vld [vmem:[%s1423 + $0x18] sm:$0xf]
                  %1438 = vst [vmem:[%s1424 + $0x18] sm:$0xf] %v1437
                  %v1439 = vld [vmem:[%s1423 + $0x1c] sm:$0xf]
                  %1440 = vst [vmem:[%s1424 + $0x1c] sm:$0xf] %v1439
                  %v1441 = vld [vmem:[%s1423 + $0x20] sm:$0xf]
                  %1442 = vst [vmem:[%s1424 + $0x20] sm:$0xf] %v1441
                  %v1443 = vld [vmem:[%s1423 + $0x24] sm:$0xf]
                  %1444 = vst [vmem:[%s1424 + $0x24] sm:$0xf] %v1443
                  %v1445 = vld [vmem:[%s1423 + $0x28] sm:$0xf]
                  %1446 = vst [vmem:[%s1424 + $0x28] sm:$0xf] %v1445
                  %v1447 = vld [vmem:[%s1423 + $0x2c] sm:$0xf]
                  %1448 = vst [vmem:[%s1424 + $0x2c] sm:$0xf] %v1447
                  %v1449 = vld [vmem:[%s1423 + $0x30] sm:$0xf]
                  %1450 = vst [vmem:[%s1424 + $0x30] sm:$0xf] %v1449
                  %v1451 = vld [vmem:[%s1423 + $0x34] sm:$0xf]
                  %1452 = vst [vmem:[%s1424 + $0x34] sm:$0xf] %v1451
                  %v1453 = vld [vmem:[%s1423 + $0x38] sm:$0xf]
                  %1454 = vst [vmem:[%s1424 + $0x38] sm:$0xf] %v1453
                  %v1455 = vld [vmem:[%s1423 + $0x3c] sm:$0xf]
                  %1456 = vst [vmem:[%s1424 + $0x3c] sm:$0xf] %v1455
                  %v1457 = vld [vmem:[%s1423 + $0x40] sm:$0xf]
                  %1458 = vst [vmem:[%s1424 + $0x40] sm:$0xf] %v1457
                  %v1459 = vld [vmem:[%s1423 + $0x44] sm:$0xf]
                  %1460 = vst [vmem:[%s1424 + $0x44] sm:$0xf] %v1459
                  %v1461 = vld [vmem:[%s1423 + $0x48] sm:$0xf]
                  %1462 = vst [vmem:[%s1424 + $0x48] sm:$0xf] %v1461
                  %v1463 = vld [vmem:[%s1423 + $0x4c] sm:$0xf]
                  %1464 = vst [vmem:[%s1424 + $0x4c] sm:$0xf] %v1463
                  %v1465 = vld [vmem:[%s1423 + $0x50] sm:$0xf]
                  %1466 = vst [vmem:[%s1424 + $0x50] sm:$0xf] %v1465
                  %v1467 = vld [vmem:[%s1423 + $0x54] sm:$0xf]
                  %1468 = vst [vmem:[%s1424 + $0x54] sm:$0xf] %v1467
                  %v1469 = vld [vmem:[%s1423 + $0x58] sm:$0xf]
                  %1470 = vst [vmem:[%s1424 + $0x58] sm:$0xf] %v1469
                  %v1471 = vld [vmem:[%s1423 + $0x5c] sm:$0xf]
                  %1472 = vst [vmem:[%s1424 + $0x5c] sm:$0xf] %v1471
                  %v1473 = vld [vmem:[%s1423 + $0x60] sm:$0xf]
                  %1474 = vst [vmem:[%s1424 + $0x60] sm:$0xf] %v1473
                  %v1475 = vld [vmem:[%s1423 + $0x64] sm:$0xf]
                  %1476 = vst [vmem:[%s1424 + $0x64] sm:$0xf] %v1475
                  %v1477 = vld [vmem:[%s1423 + $0x68] sm:$0xf]
                  %1478 = vst [vmem:[%s1424 + $0x68] sm:$0xf] %v1477
                  %v1479 = vld [vmem:[%s1423 + $0x6c] sm:$0xf]
                  %1480 = vst [vmem:[%s1424 + $0x6c] sm:$0xf] %v1479
                  %v1481 = vld [vmem:[%s1423 + $0x70] sm:$0xf]
                  %1482 = vst [vmem:[%s1424 + $0x70] sm:$0xf] %v1481
                  %v1483 = vld [vmem:[%s1423 + $0x74] sm:$0xf]
                  %1484 = vst [vmem:[%s1424 + $0x74] sm:$0xf] %v1483
                  %v1485 = vld [vmem:[%s1423 + $0x78] sm:$0xf]
                  %1486 = vst [vmem:[%s1424 + $0x78] sm:$0xf] %v1485
                  %v1487 = vld [vmem:[%s1423 + $0x7c] sm:$0xf]
                  %1488 = vst [vmem:[%s1424 + $0x7c] sm:$0xf] %v1487
                  %v1489 = vld [vmem:[%s1423 + $0x80] sm:$0xf]
                  %1490 = vst [vmem:[%s1424 + $0x80] sm:$0xf] %v1489
                  %v1491 = vld [vmem:[%s1423 + $0x84] sm:$0xf]
                  %1492 = vst [vmem:[%s1424 + $0x84] sm:$0xf] %v1491
                  %v1493 = vld [vmem:[%s1423 + $0x88] sm:$0xf]
                  %1494 = vst [vmem:[%s1424 + $0x88] sm:$0xf] %v1493
                  %v1495 = vld [vmem:[%s1423 + $0x8c] sm:$0xf]
                  %1496 = vst [vmem:[%s1424 + $0x8c] sm:$0xf] %v1495
                  %v1497 = vld [vmem:[%s1423 + $0x90] sm:$0xf]
                  %1498 = vst [vmem:[%s1424 + $0x90] sm:$0xf] %v1497
                  %v1499 = vld [vmem:[%s1423 + $0x94] sm:$0xf]
                  %1500 = vst [vmem:[%s1424 + $0x94] sm:$0xf] %v1499
                  %v1501 = vld [vmem:[%s1423 + $0x98] sm:$0xf]
                  %1502 = vst [vmem:[%s1424 + $0x98] sm:$0xf] %v1501
                  %v1503 = vld [vmem:[%s1423 + $0x9c] sm:$0xf]
                  %1504 = vst [vmem:[%s1424 + $0x9c] sm:$0xf] %v1503
                  %v1505 = vld [vmem:[%s1423 + $0xa0] sm:$0xf]
                  %1506 = vst [vmem:[%s1424 + $0xa0] sm:$0xf] %v1505
                  %v1507 = vld [vmem:[%s1423 + $0xa4] sm:$0xf]
                  %1508 = vst [vmem:[%s1424 + $0xa4] sm:$0xf] %v1507
                  %v1509 = vld [vmem:[%s1423 + $0xa8] sm:$0xf]
                  %1510 = vst [vmem:[%s1424 + $0xa8] sm:$0xf] %v1509
                  %v1511 = vld [vmem:[%s1423 + $0xac] sm:$0xf]
                  %1512 = vst [vmem:[%s1424 + $0xac] sm:$0xf] %v1511
                  %v1513 = vld [vmem:[%s1423 + $0xb0] sm:$0xf]
                  %1514 = vst [vmem:[%s1424 + $0xb0] sm:$0xf] %v1513
                  %v1515 = vld [vmem:[%s1423 + $0xb4] sm:$0xf]
                  %1516 = vst [vmem:[%s1424 + $0xb4] sm:$0xf] %v1515
                  %v1517 = vld [vmem:[%s1423 + $0xb8] sm:$0xf]
                  %1518 = vst [vmem:[%s1424 + $0xb8] sm:$0xf] %v1517
                  %v1519 = vld [vmem:[%s1423 + $0xbc] sm:$0xf]
                  %1520 = vst [vmem:[%s1424 + $0xbc] sm:$0xf] %v1519
                  %v1521 = vld [vmem:[%s1423 + $0xc0] sm:$0xf]
                  %1522 = vst [vmem:[%s1424 + $0xc0] sm:$0xf] %v1521
                  %v1523 = vld [vmem:[%s1423 + $0xc4] sm:$0xf]
                  %1524 = vst [vmem:[%s1424 + $0xc4] sm:$0xf] %v1523
                  %v1525 = vld [vmem:[%s1423 + $0xc8] sm:$0xf]
                  %1526 = vst [vmem:[%s1424 + $0xc8] sm:$0xf] %v1525
                  %v1527 = vld [vmem:[%s1423 + $0xcc] sm:$0xf]
                  %1528 = vst [vmem:[%s1424 + $0xcc] sm:$0xf] %v1527
                  %v1529 = vld [vmem:[%s1423 + $0xd0] sm:$0xf]
                  %1530 = vst [vmem:[%s1424 + $0xd0] sm:$0xf] %v1529
                  %v1531 = vld [vmem:[%s1423 + $0xd4] sm:$0xf]
                  %1532 = vst [vmem:[%s1424 + $0xd4] sm:$0xf] %v1531
                  %v1533 = vld [vmem:[%s1423 + $0xd8] sm:$0xf]
                  %1534 = vst [vmem:[%s1424 + $0xd8] sm:$0xf] %v1533
                  %v1535 = vld [vmem:[%s1423 + $0xdc] sm:$0xf]
                  %1536 = vst [vmem:[%s1424 + $0xdc] sm:$0xf] %v1535
                  %v1537 = vld [vmem:[%s1423 + $0xe0] sm:$0xf]
                  %1538 = vst [vmem:[%s1424 + $0xe0] sm:$0xf] %v1537
                  %v1539 = vld [vmem:[%s1423 + $0xe4] sm:$0xf]
                  %1540 = vst [vmem:[%s1424 + $0xe4] sm:$0xf] %v1539
                  %v1541 = vld [vmem:[%s1423 + $0xe8] sm:$0xf]
                  %1542 = vst [vmem:[%s1424 + $0xe8] sm:$0xf] %v1541
                  %v1543 = vld [vmem:[%s1423 + $0xec] sm:$0xf]
                  %1544 = vst [vmem:[%s1424 + $0xec] sm:$0xf] %v1543
                  %v1545 = vld [vmem:[%s1423 + $0xf0] sm:$0xf]
                  %1546 = vst [vmem:[%s1424 + $0xf0] sm:$0xf] %v1545
                  %v1547 = vld [vmem:[%s1423 + $0xf4] sm:$0xf]
                  %1548 = vst [vmem:[%s1424 + $0xf4] sm:$0xf] %v1547
                  %v1549 = vld [vmem:[%s1423 + $0xf8] sm:$0xf]
                  %1550 = vst [vmem:[%s1424 + $0xf8] sm:$0xf] %v1549
                  %v1551 = vld [vmem:[%s1423 + $0xfc] sm:$0xf]
                  %1552 = vst [vmem:[%s1424 + $0xfc] sm:$0xf] %v1551
                  %s1553 = sadd.s32 1, %s1422
                  %p1554 = scmp.ge.s32.totalorder %s1553, %s1415
                  %s1555 = scalar_select %p1554, 0, %s1553
                  %s1556 = smul.u32 %s1555, 256
                  %s1557 = smul.u32 %s1555, 256
                  %s1558 = scalar_lea.vmem %s1222, %s1556 [#allocation2]
                  %s1559 = scalar_lea.vmem %s1233, %s1557
                $region71: #{dqn_forward.4} parent=65 // loop_footer
                  %s1419 = sadd.s32 %s1417, 1
                $region72: #{dqn_forward.4} parent=65 // loop_footer_branch
                  %1416 = sbr.rel target = $region68
                $region73: #{dqn_forward.4} parent=65 // loop_exit
                  _
                %s1560 = sshrl.u32 %s1229, 6
                %s1561 = sand.u32 %s1229, 63
                %s1562 = smul.u32 %s1560, 64
                %s1563 = smul.u32 4, %s1562
                %s1564 = scalar_lea.vmem %s1222, %s1563 [#allocation2]
                %s1565 = smul.u32 4, %s1562
                %s1566 = scalar_lea.vmem %s1233, %s1565
                // While loop
                $region74: #{dqn_forward.4} parent=65 // loop_pre_header
                  _
                $region75: #{dqn_forward.4} parent=65 // loop_header
                  %s1568 = sphi 0, %s1570
                  %p1569 = scmp.ge.s32.totalorder %s1568, %s1561
                  %s1573 = sphi 0, %s1580
                  %s1574 = sphi %s1564, %s1583
                  %s1575 = sphi %s1566, %s1584
                $region76: #{dqn_forward.4} parent=65 // loop_header_branch
                  %1572 = sbr.rel (%p1569) target = $region80
                $region77: #{dqn_forward.4} parent=65 // loop_body
                  %v1576 = vld [vmem:[%s1574] sm:$0xf]
                  %1577 = vst [vmem:[%s1575] sm:$0xf] %v1576
                  %s1578 = sadd.s32 1, %s1573
                  %p1579 = scmp.ge.s32.totalorder %s1578, %s1561
                  %s1580 = scalar_select %p1579, 0, %s1578
                  %s1581 = smul.u32 %s1580, 4
                  %s1582 = smul.u32 %s1580, 4
                  %s1583 = scalar_lea.vmem %s1564, %s1581 [#allocation2]
                  %s1584 = scalar_lea.vmem %s1566, %s1582
                $region78: #{dqn_forward.4} parent=65 // loop_footer
                  %s1570 = sadd.s32 %s1568, 1
                $region79: #{dqn_forward.4} parent=65 // loop_footer_branch
                  %1567 = sbr.rel target = $region75
                $region80: #{dqn_forward.4} parent=65 // loop_exit
                  _
              $region66: #{dqn_forward.4} parent=43 // pred_fallthru
                _
            $region44: #{dqn_forward.4} parent=39 // pred_fallthru
              _
            // Predicated region
            $region45: #{dqn_forward.4} parent=39 // pred_check
              _
            $region46: #{dqn_forward.4} parent=39 // pred_check_branch
              %1240 = sbr.rel (0) target = $region48
            $region47: #{dqn_forward.4} parent=39 // pred_region
              %s1242 = sshrl.u32 %s1229, 6
              // While loop
              $region49: #{dqn_forward.4} parent=47 // loop_pre_header
                _
              $region50: #{dqn_forward.4} parent=47 // loop_header
                %s1244 = sphi 0, %s1246
                %p1245 = scmp.ge.s32.totalorder %s1244, %s1242
                %s1249 = sphi 0, %s1382
                %s1250 = sphi %s1222, %s1385
                %s1251 = sphi %s1233, %s1386
              $region51: #{dqn_forward.4} parent=47 // loop_header_branch
                %1248 = sbr.rel (%p1245) target = $region55
              $region52: #{dqn_forward.4} parent=47 // loop_body
                %v1252 = vld [vmem:[%s1250] sm:$0xf]
                %1253 = vst [vmem:[%s1251] sm:$0xf] %v1252
                %v1254 = vld [vmem:[%s1250 + $0x4] sm:$0xf]
                %1255 = vst [vmem:[%s1251 + $0x4] sm:$0xf] %v1254
                %v1256 = vld [vmem:[%s1250 + $0x8] sm:$0xf]
                %1257 = vst [vmem:[%s1251 + $0x8] sm:$0xf] %v1256
                %v1258 = vld [vmem:[%s1250 + $0xc] sm:$0xf]
                %1259 = vst [vmem:[%s1251 + $0xc] sm:$0xf] %v1258
                %v1260 = vld [vmem:[%s1250 + $0x10] sm:$0xf]
                %1261 = vst [vmem:[%s1251 + $0x10] sm:$0xf] %v1260
                %v1262 = vld [vmem:[%s1250 + $0x14] sm:$0xf]
                %1263 = vst [vmem:[%s1251 + $0x14] sm:$0xf] %v1262
                %v1264 = vld [vmem:[%s1250 + $0x18] sm:$0xf]
                %1265 = vst [vmem:[%s1251 + $0x18] sm:$0xf] %v1264
                %v1266 = vld [vmem:[%s1250 + $0x1c] sm:$0xf]
                %1267 = vst [vmem:[%s1251 + $0x1c] sm:$0xf] %v1266
                %v1268 = vld [vmem:[%s1250 + $0x20] sm:$0xf]
                %1269 = vst [vmem:[%s1251 + $0x20] sm:$0xf] %v1268
                %v1270 = vld [vmem:[%s1250 + $0x24] sm:$0xf]
                %1271 = vst [vmem:[%s1251 + $0x24] sm:$0xf] %v1270
                %v1272 = vld [vmem:[%s1250 + $0x28] sm:$0xf]
                %1273 = vst [vmem:[%s1251 + $0x28] sm:$0xf] %v1272
                %v1274 = vld [vmem:[%s1250 + $0x2c] sm:$0xf]
                %1275 = vst [vmem:[%s1251 + $0x2c] sm:$0xf] %v1274
                %v1276 = vld [vmem:[%s1250 + $0x30] sm:$0xf]
                %1277 = vst [vmem:[%s1251 + $0x30] sm:$0xf] %v1276
                %v1278 = vld [vmem:[%s1250 + $0x34] sm:$0xf]
                %1279 = vst [vmem:[%s1251 + $0x34] sm:$0xf] %v1278
                %v1280 = vld [vmem:[%s1250 + $0x38] sm:$0xf]
                %1281 = vst [vmem:[%s1251 + $0x38] sm:$0xf] %v1280
                %v1282 = vld [vmem:[%s1250 + $0x3c] sm:$0xf]
                %1283 = vst [vmem:[%s1251 + $0x3c] sm:$0xf] %v1282
                %v1284 = vld [vmem:[%s1250 + $0x40] sm:$0xf]
                %1285 = vst [vmem:[%s1251 + $0x40] sm:$0xf] %v1284
                %v1286 = vld [vmem:[%s1250 + $0x44] sm:$0xf]
                %1287 = vst [vmem:[%s1251 + $0x44] sm:$0xf] %v1286
                %v1288 = vld [vmem:[%s1250 + $0x48] sm:$0xf]
                %1289 = vst [vmem:[%s1251 + $0x48] sm:$0xf] %v1288
                %v1290 = vld [vmem:[%s1250 + $0x4c] sm:$0xf]
                %1291 = vst [vmem:[%s1251 + $0x4c] sm:$0xf] %v1290
                %v1292 = vld [vmem:[%s1250 + $0x50] sm:$0xf]
                %1293 = vst [vmem:[%s1251 + $0x50] sm:$0xf] %v1292
                %v1294 = vld [vmem:[%s1250 + $0x54] sm:$0xf]
                %1295 = vst [vmem:[%s1251 + $0x54] sm:$0xf] %v1294
                %v1296 = vld [vmem:[%s1250 + $0x58] sm:$0xf]
                %1297 = vst [vmem:[%s1251 + $0x58] sm:$0xf] %v1296
                %v1298 = vld [vmem:[%s1250 + $0x5c] sm:$0xf]
                %1299 = vst [vmem:[%s1251 + $0x5c] sm:$0xf] %v1298
                %v1300 = vld [vmem:[%s1250 + $0x60] sm:$0xf]
                %1301 = vst [vmem:[%s1251 + $0x60] sm:$0xf] %v1300
                %v1302 = vld [vmem:[%s1250 + $0x64] sm:$0xf]
                %1303 = vst [vmem:[%s1251 + $0x64] sm:$0xf] %v1302
                %v1304 = vld [vmem:[%s1250 + $0x68] sm:$0xf]
                %1305 = vst [vmem:[%s1251 + $0x68] sm:$0xf] %v1304
                %v1306 = vld [vmem:[%s1250 + $0x6c] sm:$0xf]
                %1307 = vst [vmem:[%s1251 + $0x6c] sm:$0xf] %v1306
                %v1308 = vld [vmem:[%s1250 + $0x70] sm:$0xf]
                %1309 = vst [vmem:[%s1251 + $0x70] sm:$0xf] %v1308
                %v1310 = vld [vmem:[%s1250 + $0x74] sm:$0xf]
                %1311 = vst [vmem:[%s1251 + $0x74] sm:$0xf] %v1310
                %v1312 = vld [vmem:[%s1250 + $0x78] sm:$0xf]
                %1313 = vst [vmem:[%s1251 + $0x78] sm:$0xf] %v1312
                %v1314 = vld [vmem:[%s1250 + $0x7c] sm:$0xf]
                %1315 = vst [vmem:[%s1251 + $0x7c] sm:$0xf] %v1314
                %v1316 = vld [vmem:[%s1250 + $0x80] sm:$0xf]
                %1317 = vst [vmem:[%s1251 + $0x80] sm:$0xf] %v1316
                %v1318 = vld [vmem:[%s1250 + $0x84] sm:$0xf]
                %1319 = vst [vmem:[%s1251 + $0x84] sm:$0xf] %v1318
                %v1320 = vld [vmem:[%s1250 + $0x88] sm:$0xf]
                %1321 = vst [vmem:[%s1251 + $0x88] sm:$0xf] %v1320
                %v1322 = vld [vmem:[%s1250 + $0x8c] sm:$0xf]
                %1323 = vst [vmem:[%s1251 + $0x8c] sm:$0xf] %v1322
                %v1324 = vld [vmem:[%s1250 + $0x90] sm:$0xf]
                %1325 = vst [vmem:[%s1251 + $0x90] sm:$0xf] %v1324
                %v1326 = vld [vmem:[%s1250 + $0x94] sm:$0xf]
                %1327 = vst [vmem:[%s1251 + $0x94] sm:$0xf] %v1326
                %v1328 = vld [vmem:[%s1250 + $0x98] sm:$0xf]
                %1329 = vst [vmem:[%s1251 + $0x98] sm:$0xf] %v1328
                %v1330 = vld [vmem:[%s1250 + $0x9c] sm:$0xf]
                %1331 = vst [vmem:[%s1251 + $0x9c] sm:$0xf] %v1330
                %v1332 = vld [vmem:[%s1250 + $0xa0] sm:$0xf]
                %1333 = vst [vmem:[%s1251 + $0xa0] sm:$0xf] %v1332
                %v1334 = vld [vmem:[%s1250 + $0xa4] sm:$0xf]
                %1335 = vst [vmem:[%s1251 + $0xa4] sm:$0xf] %v1334
                %v1336 = vld [vmem:[%s1250 + $0xa8] sm:$0xf]
                %1337 = vst [vmem:[%s1251 + $0xa8] sm:$0xf] %v1336
                %v1338 = vld [vmem:[%s1250 + $0xac] sm:$0xf]
                %1339 = vst [vmem:[%s1251 + $0xac] sm:$0xf] %v1338
                %v1340 = vld [vmem:[%s1250 + $0xb0] sm:$0xf]
                %1341 = vst [vmem:[%s1251 + $0xb0] sm:$0xf] %v1340
                %v1342 = vld [vmem:[%s1250 + $0xb4] sm:$0xf]
                %1343 = vst [vmem:[%s1251 + $0xb4] sm:$0xf] %v1342
                %v1344 = vld [vmem:[%s1250 + $0xb8] sm:$0xf]
                %1345 = vst [vmem:[%s1251 + $0xb8] sm:$0xf] %v1344
                %v1346 = vld [vmem:[%s1250 + $0xbc] sm:$0xf]
                %1347 = vst [vmem:[%s1251 + $0xbc] sm:$0xf] %v1346
                %v1348 = vld [vmem:[%s1250 + $0xc0] sm:$0xf]
                %1349 = vst [vmem:[%s1251 + $0xc0] sm:$0xf] %v1348
                %v1350 = vld [vmem:[%s1250 + $0xc4] sm:$0xf]
                %1351 = vst [vmem:[%s1251 + $0xc4] sm:$0xf] %v1350
                %v1352 = vld [vmem:[%s1250 + $0xc8] sm:$0xf]
                %1353 = vst [vmem:[%s1251 + $0xc8] sm:$0xf] %v1352
                %v1354 = vld [vmem:[%s1250 + $0xcc] sm:$0xf]
                %1355 = vst [vmem:[%s1251 + $0xcc] sm:$0xf] %v1354
                %v1356 = vld [vmem:[%s1250 + $0xd0] sm:$0xf]
                %1357 = vst [vmem:[%s1251 + $0xd0] sm:$0xf] %v1356
                %v1358 = vld [vmem:[%s1250 + $0xd4] sm:$0xf]
                %1359 = vst [vmem:[%s1251 + $0xd4] sm:$0xf] %v1358
                %v1360 = vld [vmem:[%s1250 + $0xd8] sm:$0xf]
                %1361 = vst [vmem:[%s1251 + $0xd8] sm:$0xf] %v1360
                %v1362 = vld [vmem:[%s1250 + $0xdc] sm:$0xf]
                %1363 = vst [vmem:[%s1251 + $0xdc] sm:$0xf] %v1362
                %v1364 = vld [vmem:[%s1250 + $0xe0] sm:$0xf]
                %1365 = vst [vmem:[%s1251 + $0xe0] sm:$0xf] %v1364
                %v1366 = vld [vmem:[%s1250 + $0xe4] sm:$0xf]
                %1367 = vst [vmem:[%s1251 + $0xe4] sm:$0xf] %v1366
                %v1368 = vld [vmem:[%s1250 + $0xe8] sm:$0xf]
                %1369 = vst [vmem:[%s1251 + $0xe8] sm:$0xf] %v1368
                %v1370 = vld [vmem:[%s1250 + $0xec] sm:$0xf]
                %1371 = vst [vmem:[%s1251 + $0xec] sm:$0xf] %v1370
                %v1372 = vld [vmem:[%s1250 + $0xf0] sm:$0xf]
                %1373 = vst [vmem:[%s1251 + $0xf0] sm:$0xf] %v1372
                %v1374 = vld [vmem:[%s1250 + $0xf4] sm:$0xf]
                %1375 = vst [vmem:[%s1251 + $0xf4] sm:$0xf] %v1374
                %v1376 = vld [vmem:[%s1250 + $0xf8] sm:$0xf]
                %1377 = vst [vmem:[%s1251 + $0xf8] sm:$0xf] %v1376
                %v1378 = vld [vmem:[%s1250 + $0xfc] sm:$0xf]
                %1379 = vst [vmem:[%s1251 + $0xfc] sm:$0xf] %v1378
                %s1380 = sadd.s32 1, %s1249
                %p1381 = scmp.ge.s32.totalorder %s1380, %s1242
                %s1382 = scalar_select %p1381, 0, %s1380
                %s1383 = smul.u32 %s1382, 256
                %s1384 = smul.u32 %s1382, 256
                %s1385 = scalar_lea.vmem %s1222, %s1383 [#allocation2]
                %s1386 = scalar_lea.vmem %s1233, %s1384
              $region53: #{dqn_forward.4} parent=47 // loop_footer
                %s1246 = sadd.s32 %s1244, 1
              $region54: #{dqn_forward.4} parent=47 // loop_footer_branch
                %1243 = sbr.rel target = $region50
              $region55: #{dqn_forward.4} parent=47 // loop_exit
                _
              %s1387 = sshrl.u32 %s1229, 6
              %s1388 = sand.u32 %s1229, 63
              %s1389 = smul.u32 %s1387, 64
              %s1390 = smul.u32 4, %s1389
              %s1391 = scalar_lea.vmem %s1222, %s1390 [#allocation2]
              %s1392 = smul.u32 4, %s1389
              %s1393 = scalar_lea.vmem %s1233, %s1392
              // While loop
              $region56: #{dqn_forward.4} parent=47 // loop_pre_header
                _
              $region57: #{dqn_forward.4} parent=47 // loop_header
                %s1395 = sphi 0, %s1397
                %p1396 = scmp.ge.s32.totalorder %s1395, %s1388
                %s1400 = sphi 0, %s1407
                %s1401 = sphi %s1391, %s1410
                %s1402 = sphi %s1393, %s1411
              $region58: #{dqn_forward.4} parent=47 // loop_header_branch
                %1399 = sbr.rel (%p1396) target = $region62
              $region59: #{dqn_forward.4} parent=47 // loop_body
                %v1403 = vld [vmem:[%s1401] sm:$0xf]
                %1404 = vst [vmem:[%s1402] sm:$0xf] %v1403
                %s1405 = sadd.s32 1, %s1400
                %p1406 = scmp.ge.s32.totalorder %s1405, %s1388
                %s1407 = scalar_select %p1406, 0, %s1405
                %s1408 = smul.u32 %s1407, 4
                %s1409 = smul.u32 %s1407, 4
                %s1410 = scalar_lea.vmem %s1391, %s1408 [#allocation2]
                %s1411 = scalar_lea.vmem %s1393, %s1409
              $region60: #{dqn_forward.4} parent=47 // loop_footer
                %s1397 = sadd.s32 %s1395, 1
              $region61: #{dqn_forward.4} parent=47 // loop_footer_branch
                %1394 = sbr.rel target = $region57
              $region62: #{dqn_forward.4} parent=47 // loop_exit
                _
            $region48: #{dqn_forward.4} parent=39 // pred_fallthru
              _
          $region40: #{dqn_forward.4} parent=35 // pred_fallthru
            _
          %1585 = vnop
        $region36: #{dqn_forward.4} parent=31 // pred_fallthru
          _
      $region32: #{dqn_forward.4} parent=5 // pred_fallthru
        _
      %p1586 = scmp.le.s32.totalorder 2, %s9
      // Predicated region
      $region81: #{dqn_forward.4} parent=5 // pred_check
        %p1587 = pneg %p1586
      $region82: #{dqn_forward.4} parent=5 // pred_check_branch
        %1589 = sbr.rel (%p1587) target = $region84
      $region83: #{dqn_forward.4} parent=5 // pred_region
        %s1590 = ssub.s32 %s9, 2
        // Predicated region
        $region85: #{dqn_forward.4} parent=83 // pred_check
          %p1591 = pneg %p106
        $region86: #{dqn_forward.4} parent=83 // pred_check_branch
          %1593 = sbr.rel (%p1591) target = $region88
        $region87: #{dqn_forward.4} parent=83 // pred_region
          %s1594 = sand.u32 %s91, 1
          %s1595 = sand.u32 %s91, 1
          %s1596 = smul.addr %s1595, 256
          %s1597 = scalar_lea.vmem [#allocation2], %s1596
        $region88: #{dqn_forward.4} parent=83 // pred_fallthru
          _
      $region84: #{dqn_forward.4} parent=5 // pred_fallthru
        _
    $region6: #{dqn_forward.4} parent=1 // loop_footer
      %s13 = sadd.s32 1, %s9
    $region7: #{dqn_forward.4} parent=1 // loop_footer_branch
      %8 = sbr.rel target = $region3
    $region8: #{dqn_forward.4} parent=1 // loop_exit
      _

// kernel: dqn_forward.5
$region0: #{dqn_forward.5}
  #allocation0 [shape = 'u32[]', space=smem, size = 0x4, offset = 0x4, fixed_abs, tag = 'smem constant byte address 0x4 - core index']
  #allocation1 [shape = 'u32[144,128]{1,0:T(1,128)}', space=vmem, size = 0x12000, scoped, tag = 'internal scratch']
  %s0 = inlined_call_operand.vmem [shape: bf16[800,288], index: 0, kind: input, shape index: {}]
  %s1 = inlined_call_operand.vmem [shape: bf16[288,64], index: 1, kind: input, shape index: {}]
  %s2 = inlined_call_operand.vmem [shape: f32[1,64], index: 2, kind: input, shape index: {}]
  %s3 = inlined_call_operand.vmem [shape: bf16[800,64], index: 3, kind: output, shape index: {}]
  %s4 = sld [smem:[#allocation0]]
  $region89: #{dqn_forward.5} parent=0
    _
  %s6 = ssub.s32 1, %s4
  %s7 = scalar_select 0, %s6, %s4
  $region1: #{dqn_forward.5} parent=0
    #allocation2 [shape = 'u8[262144]{0}', space=vmem, size = 0x40000, scoped, tag = 'output window, operand 0']
    loop: start=0, step=1, limit=4
    $region2: #{dqn_forward.5} parent=1 // loop_pre_header
      _
    $region3: #{dqn_forward.5} parent=1 // loop_header
      %s9 = sphi 0, %s13
      %p10 = scmp.ge.s32.totalorder %s9, 4
      %s19 = sphi 0, %s21
      %s22 = sphi 0, %s19
      %s23 = sphi 0, %s22
      %s39 = sphi 0, %s23
      %s43 = sphi 0, %s43
      %s45 = sphi 0, %s43
      %s46 = sphi 0, %s45
      %s60 = sphi 0, %s46
      %s64 = sphi 0, %s64
      %s66 = sphi 0, %s64
      %s67 = sphi 0, %s66
      %s81 = sphi 0, %s67
      %s87 = sphi 0, %s89
      %s90 = sphi 0, %s87
      %s91 = sphi 0, %s90
      %s107 = sphi 0, %s91
    $region4: #{dqn_forward.5} parent=1 // loop_header_branch
      %12 = sbr.rel (%p10) target = $region8
    $region5: #{dqn_forward.5} parent=1 // loop_body
      %s14 = ssub.s32 %s9, 1
      %s15 = ssub.s32 %s9, 2
      %s16 = sadd.s32 %s9, 1
      %s17 = ssub.s32 %s9, %s16
      %p18 = scmp.eq.s32.totalorder %s17, 0
      %s20 = sadd.s32 %s19, 1
      %s21 = scalar_select %p18, %s19, %s20
      %p24 = pneg %p18
      %p25 = scmp.eq.s32.totalorder %s9, 1
      %p26 = por %p24, %p25
      %p27 = scmp.ne.s32.totalorder %s19, %s22
      %p28 = scmp.eq.s32.totalorder %s9, 0
      %p29 = por %p27, %p28
      %p30 = scmp.ne.s32.totalorder %s19, %s22
      %p31 = scmp.eq.s32.totalorder %s14, 1
      %p32 = por %p30, %p31
      %p33 = scmp.ne.s32.totalorder %s22, %s23
      %p34 = scmp.eq.s32.totalorder %s14, 0
      %p35 = por %p33, %p34
      %p36 = scmp.ne.s32.totalorder %s22, %s23
      %p37 = scmp.eq.s32.totalorder %s15, 1
      %p38 = por %p36, %p37
      %p40 = scmp.ne.s32.totalorder %s23, %s39
      %p41 = scmp.eq.s32.totalorder %s15, 0
      %p42 = por %p40, %p41
      %s44 = sadd.s32 %s43, 1
      %p47 = scmp.eq.s32.totalorder %s9, 1
      %p48 = scmp.ne.s32.totalorder %s43, %s45
      %p49 = scmp.eq.s32.totalorder %s9, 0
      %p50 = por %p48, %p49
      %p51 = scmp.ne.s32.totalorder %s43, %s45
      %p52 = scmp.eq.s32.totalorder %s14, 1
      %p53 = por %p51, %p52
      %p54 = scmp.ne.s32.totalorder %s45, %s46
      %p55 = scmp.eq.s32.totalorder %s14, 0
      %p56 = por %p54, %p55
      %p57 = scmp.ne.s32.totalorder %s45, %s46
      %p58 = scmp.eq.s32.totalorder %s15, 1
      %p59 = por %p57, %p58
      %p61 = scmp.ne.s32.totalorder %s46, %s60
      %p62 = scmp.eq.s32.totalorder %s15, 0
      %p63 = por %p61, %p62
      %s65 = sadd.s32 %s64, 1
      %p68 = scmp.eq.s32.totalorder %s9, 1
      %p69 = scmp.ne.s32.totalorder %s64, %s66
      %p70 = scmp.eq.s32.totalorder %s9, 0
      %p71 = por %p69, %p70
      %p72 = scmp.ne.s32.totalorder %s64, %s66
      %p73 = scmp.eq.s32.totalorder %s14, 1
      %p74 = por %p72, %p73
      %p75 = scmp.ne.s32.totalorder %s66, %s67
      %p76 = scmp.eq.s32.totalorder %s14, 0
      %p77 = por %p75, %p76
      %p78 = scmp.ne.s32.totalorder %s66, %s67
      %p79 = scmp.eq.s32.totalorder %s15, 1
      %p80 = por %p78, %p79
      %p82 = scmp.ne.s32.totalorder %s67, %s81
      %p83 = scmp.eq.s32.totalorder %s15, 0
      %p84 = por %p82, %p83
      %s85 = ssub.s32 %s9, %s16
      %p86 = scmp.eq.s32.totalorder %s85, 0
      %s88 = sadd.s32 %s87, 1
      %s89 = scalar_select %p86, %s87, %s88
      %p92 = pneg %p86
      %p93 = scmp.eq.s32.totalorder %s9, 1
      %p94 = por %p92, %p93
      %p95 = scmp.ne.s32.totalorder %s87, %s90
      %p96 = scmp.eq.s32.totalorder %s9, 0
      %p97 = por %p95, %p96
      %p98 = scmp.ne.s32.totalorder %s87, %s90
      %p99 = scmp.eq.s32.totalorder %s14, 1
      %p100 = por %p98, %p99
      %p101 = scmp.ne.s32.totalorder %s90, %s91
      %p102 = scmp.eq.s32.totalorder %s14, 0
      %p103 = por %p101, %p102
      %p104 = scmp.ne.s32.totalorder %s90, %s91
      %p105 = scmp.eq.s32.totalorder %s15, 1
      %p106 = por %p104, %p105
      %p108 = scmp.ne.s32.totalorder %s91, %s107
      %p109 = scmp.eq.s32.totalorder %s15, 0
      %p110 = por %p108, %p109
      %p111 = scmp.le.s32.totalorder 1, %s9
      %p112 = scmp.lt.s32.totalorder %s9, 3
      %p113 = pnand %p111, %p112
      %p114 = pneg %p113
      // Predicated region
      $region9: #{dqn_forward.5} parent=5 // pred_check
        _
      $region10: #{dqn_forward.5} parent=5 // pred_check_branch
        %116 = sbr.rel (%p113) target = $region12
      $region11: #{dqn_forward.5} parent=5 // pred_region
        %s117 = ssub.s32 %s9, 1
        // Predicated region
        $region13: #{dqn_forward.5} parent=11 // pred_check
          %p118 = pneg %p56
        $region14: #{dqn_forward.5} parent=11 // pred_check_branch
          %120 = sbr.rel (%p118) target = $region16
        $region15: #{dqn_forward.5} parent=11 // pred_region
          _
        $region16: #{dqn_forward.5} parent=11 // pred_fallthru
          _
        // Predicated region
        $region17: #{dqn_forward.5} parent=11 // pred_check
          %p121 = pneg %p77
        $region18: #{dqn_forward.5} parent=11 // pred_check_branch
          %123 = sbr.rel (%p121) target = $region20
        $region19: #{dqn_forward.5} parent=11 // pred_region
          _
        $region20: #{dqn_forward.5} parent=11 // pred_fallthru
          _
      $region12: #{dqn_forward.5} parent=5 // pred_fallthru
        _
      %p124 = scmp.lt.s32.totalorder %s9, 2
      // Predicated region
      $region21: #{dqn_forward.5} parent=5 // pred_check
        %p125 = pneg %p124
      $region22: #{dqn_forward.5} parent=5 // pred_check_branch
        %127 = sbr.rel (%p125) target = $region24
      $region23: #{dqn_forward.5} parent=5 // pred_region
        // Predicated region
        $region25: #{dqn_forward.5} parent=23 // pred_check
          %p128 = pneg %p29
        $region26: #{dqn_forward.5} parent=23 // pred_check_branch
          %130 = sbr.rel (%p128) target = $region28
        $region27: #{dqn_forward.5} parent=23 // pred_region
          %s131 = smul.u32 64, %s9
          %s132 = ssub.s32 100, %s131
          %p133 = scmp.lt.s32.totalorder %s132, 64
          %s134 = scalar_select %p133, %s132, 64
          %s135 = smul.u32 64, %s134
          %s136 = smul.u32 %s135, 3
          %p137 = scmp.lt.s32.totalorder %s131, 99
          %s138 = scalar_select %p137, %s131, 99
          %s139 = smul.addr %s138, 3
          %s140 = smul.addr %s139, 4
          %s141 = scalar_lea.vmem %s0, %s140
          %s142 = smul.u32 64, %s9
          %s143 = ssub.s32 100, %s142
          %p144 = scmp.lt.s32.totalorder %s143, 64
          %s145 = scalar_select %p144, %s143, 64
          %s146 = smul.u32 64, %s145
          %s147 = smul.u32 %s146, 3
        $region28: #{dqn_forward.5} parent=23 // pred_fallthru
          _
      $region24: #{dqn_forward.5} parent=5 // pred_fallthru
        _
      %p148 = scmp.le.s32.totalorder 1, %s9
      %p149 = scmp.lt.s32.totalorder %s9, 3
      %p150 = pnand %p148, %p149
      %p151 = pneg %p150
      // Predicated region
      $region29: #{dqn_forward.5} parent=5 // pred_check
        _
      $region30: #{dqn_forward.5} parent=5 // pred_check_branch
        %153 = sbr.rel (%p150) target = $region32
      $region31: #{dqn_forward.5} parent=5 // pred_region
        %s154 = ssub.s32 %s9, 1
        %s155 = smul.u32 64, %s14
        %s156 = ssub.s32 100, %s155
        %p157 = scmp.lt.s32.totalorder %s156, 64
        %s158 = scalar_select %p157, %s156, 64
        %s159 = smul.u32 64, %s158
        %s160 = smul.u32 %s159, 3
        %p161 = scmp.lt.s32.totalorder %s155, 99
        %s162 = scalar_select %p161, %s155, 99
        %s163 = smul.addr %s162, 3
        %s164 = smul.addr %s163, 4
        %s165 = scalar_lea.vmem %s0, %s164
        %p166 = pneg %p35
        %p167 = pneg %p32
        %p168 = pneg %p56
        %p169 = pneg %p53
        %p170 = pneg %p77
        %p171 = pneg %p74
        %p172 = pneg %p103
        %p173 = pneg %p100
        %s174 = sand.u32 %s90, 1
        %s175 = sand.u32 %s90, 1
        %s176 = smul.addr %s175, 256
        %s177 = scalar_lea.vmem [#allocation2], %s176
        %s178 = smul.u32 64, %s14
        %s179 = ssub.s32 100, %s178
        %p180 = scmp.lt.s32.totalorder %s179, 64
        %s181 = scalar_select %p180, %s179, 64
        %s182 = smul.u32 64, %s181
        %s183 = smul.u32 %s182, 3
        %p184 = scmp.lt.s32.totalorder %s178, 99
        %s185 = scalar_select %p184, %s178, 99
        %s186 = smul.addr %s185, 3
        %s187 = smul.addr %s186, 4
        %s188 = scalar_lea.vmem %s0, %s187
        %s189 = smul.u32 64, %s14
        %s190 = ssub.s32 100, %s189
        %p191 = scmp.lt.s32.totalorder %s190, 64
        %s192 = scalar_select %p191, %s190, 64
        %s193 = smul.u32 64, %s192
        %s194 = smul.u32 %s193, 3
        %s195 = smul.u32 64, %s14
        %s196 = ssub.s32 100, %s195
        %p197 = scmp.lt.s32.totalorder %s196, 64
        %s198 = scalar_select %p197, %s196, 64
        %s199 = smul.u32 64, %s198
        %v201 = vld [vmem:[%s188] sm:$0xff]
        %v202 = vld [vmem:[%s188 + $0x8] sm:$0xf]
        %v203 = vld [vmem:[%s188 + $0xc] sm:$0xff]
        %v204 = vld [vmem:[%s188 + $0x14] sm:$0xf]
        %v205 = vld [vmem:[%s188 + $0x18] sm:$0xff]
        %v206 = vld [vmem:[%s188 + $0x20] sm:$0xf]
        %v207 = vld [vmem:[%s188 + $0x24] sm:$0xff]
        %v208 = vld [vmem:[%s188 + $0x2c] sm:$0xf]
        %v209 = vld [vmem:[%s188 + $0x30] sm:$0xff]
        %v210 = vld [vmem:[%s188 + $0x38] sm:$0xf]
        %v211 = vld [vmem:[%s188 + $0x3c] sm:$0xff]
        %v212 = vld [vmem:[%s188 + $0x44] sm:$0xf]
        %v213 = vld [vmem:[%s188 + $0x48] sm:$0xff]
        %v214 = vld [vmem:[%s188 + $0x50] sm:$0xf]
        %v215 = vld [vmem:[%s188 + $0x54] sm:$0xff]
        %v216 = vld [vmem:[%s188 + $0x5c] sm:$0xf]
        %v217 = vld [vmem:[%s188 + $0x60] sm:$0xff]
        %v218 = vld [vmem:[%s188 + $0x68] sm:$0xf]
        %v219 = vld [vmem:[%s188 + $0x6c] sm:$0xff]
        %v220 = vld [vmem:[%s188 + $0x74] sm:$0xf]
        %v221 = vld [vmem:[%s188 + $0x78] sm:$0xff]
        %v222 = vld [vmem:[%s188 + $0x80] sm:$0xf]
        %v223 = vld [vmem:[%s188 + $0x84] sm:$0xff]
        %v224 = vld [vmem:[%s188 + $0x8c] sm:$0xf]
        %v225 = vld [vmem:[%s188 + $0x90] sm:$0xff]
        %v226 = vld [vmem:[%s188 + $0x98] sm:$0xf]
        %v227 = vld [vmem:[%s188 + $0x9c] sm:$0xff]
        %v228 = vld [vmem:[%s188 + $0xa4] sm:$0xf]
        %v229 = vld [vmem:[%s188 + $0xa8] sm:$0xff]
        %v230 = vld [vmem:[%s188 + $0xb0] sm:$0xf]
        %v231 = vld [vmem:[%s188 + $0xb4] sm:$0xff]
        %v232 = vld [vmem:[%s188 + $0xbc] sm:$0xf]
        %v233 = vld [vmem:[%s188 + $0xc0] sm:$0xff]
        %v234 = vld [vmem:[%s188 + $0xc8] sm:$0xf]
        %v235 = vld [vmem:[%s188 + $0xcc] sm:$0xff]
        %v236 = vld [vmem:[%s188 + $0xd4] sm:$0xf]
        %v237 = vld [vmem:[%s188 + $0xd8] sm:$0xff]
        %v238 = vld [vmem:[%s188 + $0xe0] sm:$0xf]
        %v239 = vld [vmem:[%s188 + $0xe4] sm:$0xff]
        %v240 = vld [vmem:[%s188 + $0xec] sm:$0xf]
        %v241 = vld [vmem:[%s188 + $0xf0] sm:$0xff]
        %v242 = vld [vmem:[%s188 + $0xf8] sm:$0xf]
        %v243 = vld [vmem:[%s188 + $0xfc] sm:$0xff]
        %v244 = vld [vmem:[%s188 + $0x104] sm:$0xf]
        %v245 = vld [vmem:[%s188 + $0x108] sm:$0xff]
        %v246 = vld [vmem:[%s188 + $0x110] sm:$0xf]
        %v247 = vld [vmem:[%s188 + $0x114] sm:$0xff]
        %v248 = vld [vmem:[%s188 + $0x11c] sm:$0xf]
        %v249 = vld [vmem:[%s188 + $0x120] sm:$0xff]
        %v250 = vld [vmem:[%s188 + $0x128] sm:$0xf]
        %v251 = vld [vmem:[%s188 + $0x12c] sm:$0xff]
        %v252 = vld [vmem:[%s188 + $0x134] sm:$0xf]
        %v253 = vld [vmem:[%s188 + $0x138] sm:$0xff]
        %v254 = vld [vmem:[%s188 + $0x140] sm:$0xf]
        %v255 = vld [vmem:[%s188 + $0x144] sm:$0xff]
        %v256 = vld [vmem:[%s188 + $0x14c] sm:$0xf]
        %v257 = vld [vmem:[%s188 + $0x150] sm:$0xff]
        %v258 = vld [vmem:[%s188 + $0x158] sm:$0xf]
        %v259 = vld [vmem:[%s188 + $0x15c] sm:$0xff]
        %v260 = vld [vmem:[%s188 + $0x164] sm:$0xf]
        %v261 = vld [vmem:[%s188 + $0x168] sm:$0xff]
        %v262 = vld [vmem:[%s188 + $0x170] sm:$0xf]
        %v263 = vld [vmem:[%s188 + $0x174] sm:$0xff]
        %v264 = vld [vmem:[%s188 + $0x17c] sm:$0xf]
        %v265 = vld [vmem:[%s188 + $0x180] sm:$0xff]
        %v266 = vld [vmem:[%s188 + $0x188] sm:$0xf]
        %v267 = vld [vmem:[%s188 + $0x18c] sm:$0xff]
        %v268 = vld [vmem:[%s188 + $0x194] sm:$0xf]
        %v269 = vld [vmem:[%s188 + $0x198] sm:$0xff]
        %v270 = vld [vmem:[%s188 + $0x1a0] sm:$0xf]
        %v271 = vld [vmem:[%s188 + $0x1a4] sm:$0xff]
        %v272 = vld [vmem:[%s188 + $0x1ac] sm:$0xf]
        %v273 = vld [vmem:[%s188 + $0x1b0] sm:$0xff]
        %v274 = vld [vmem:[%s188 + $0x1b8] sm:$0xf]
        %v275 = vld [vmem:[%s188 + $0x1bc] sm:$0xff]
        %v276 = vld [vmem:[%s188 + $0x1c4] sm:$0xf]
        %v277 = vld [vmem:[%s188 + $0x1c8] sm:$0xff]
        %v278 = vld [vmem:[%s188 + $0x1d0] sm:$0xf]
        %v279 = vld [vmem:[%s188 + $0x1d4] sm:$0xff]
        %v280 = vld [vmem:[%s188 + $0x1dc] sm:$0xf]
        %v281 = vld [vmem:[%s188 + $0x1e0] sm:$0xff]
        %v282 = vld [vmem:[%s188 + $0x1e8] sm:$0xf]
        %v283 = vld [vmem:[%s188 + $0x1ec] sm:$0xff]
        %v284 = vld [vmem:[%s188 + $0x1f4] sm:$0xf]
        %v285 = vld [vmem:[%s188 + $0x1f8] sm:$0xff]
        %v286 = vld [vmem:[%s188 + $0x200] sm:$0xf]
        %v287 = vld [vmem:[%s188 + $0x204] sm:$0xff]
        %v288 = vld [vmem:[%s188 + $0x20c] sm:$0xf]
        %v289 = vld [vmem:[%s188 + $0x210] sm:$0xff]
        %v290 = vld [vmem:[%s188 + $0x218] sm:$0xf]
        %v291 = vld [vmem:[%s188 + $0x21c] sm:$0xff]
        %v292 = vld [vmem:[%s188 + $0x224] sm:$0xf]
        %v293 = vld [vmem:[%s188 + $0x228] sm:$0xff]
        %v294 = vld [vmem:[%s188 + $0x230] sm:$0xf]
        %v295 = vld [vmem:[%s188 + $0x234] sm:$0xff]
        %v296 = vld [vmem:[%s188 + $0x23c] sm:$0xf]
        %v297 = vld [vmem:[%s188 + $0x240] sm:$0xff]
        %v298 = vld [vmem:[%s188 + $0x248] sm:$0xf]
        %v299 = vld [vmem:[%s188 + $0x24c] sm:$0xff]
        %v300 = vld [vmem:[%s188 + $0x254] sm:$0xf]
        %v301 = vld [vmem:[%s188 + $0x258] sm:$0xff]
        %v302 = vld [vmem:[%s188 + $0x260] sm:$0xf]
        %v303 = vld [vmem:[%s188 + $0x264] sm:$0xff]
        %v304 = vld [vmem:[%s188 + $0x26c] sm:$0xf]
        %v305 = vld [vmem:[%s188 + $0x270] sm:$0xff]
        %v306 = vld [vmem:[%s188 + $0x278] sm:$0xf]
        %v307 = vld [vmem:[%s188 + $0x27c] sm:$0xff]
        %v308 = vld [vmem:[%s188 + $0x284] sm:$0xf]
        %v309 = vld [vmem:[%s188 + $0x288] sm:$0xff]
        %v310 = vld [vmem:[%s188 + $0x290] sm:$0xf]
        %v311 = vld [vmem:[%s188 + $0x294] sm:$0xff]
        %v312 = vld [vmem:[%s188 + $0x29c] sm:$0xf]
        %v313 = vld [vmem:[%s188 + $0x2a0] sm:$0xff]
        %v314 = vld [vmem:[%s188 + $0x2a8] sm:$0xf]
        %v315 = vld [vmem:[%s188 + $0x2ac] sm:$0xff]
        %v316 = vld [vmem:[%s188 + $0x2b4] sm:$0xf]
        %v317 = vld [vmem:[%s188 + $0x2b8] sm:$0xff]
        %v318 = vld [vmem:[%s188 + $0x2c0] sm:$0xf]
        %v319 = vld [vmem:[%s188 + $0x2c4] sm:$0xff]
        %v320 = vld [vmem:[%s188 + $0x2cc] sm:$0xf]
        %v321 = vld [vmem:[%s188 + $0x2d0] sm:$0xff]
        %v322 = vld [vmem:[%s188 + $0x2d8] sm:$0xf]
        %v323 = vld [vmem:[%s188 + $0x2dc] sm:$0xff]
        %v324 = vld [vmem:[%s188 + $0x2e4] sm:$0xf]
        %v325 = vld [vmem:[%s188 + $0x2e8] sm:$0xff]
        %v326 = vld [vmem:[%s188 + $0x2f0] sm:$0xf]
        %v327 = vld [vmem:[%s188 + $0x2f4] sm:$0xff]
        %v328 = vld [vmem:[%s188 + $0x2fc] sm:$0xf]
        %v329 = vld [vmem:[%s1] sm:$0xf]
        %v330 = vld [vmem:[%s1 + $0x4] sm:$0xf]
        %v331 = vld [vmem:[%s1 + $0x8] sm:$0xf]
        %v332 = vld [vmem:[%s1 + $0xc] sm:$0xf]
        %v333 = vld [vmem:[%s1 + $0x10] sm:$0xf]
        %v334 = vld [vmem:[%s1 + $0x14] sm:$0xf]
        %v335 = vld [vmem:[%s1 + $0x18] sm:$0xf]
        %v336 = vld [vmem:[%s1 + $0x1c] sm:$0xf]
        %v337 = vld [vmem:[%s1 + $0x20] sm:$0xf]
        %v338 = vld [vmem:[%s1 + $0x24] sm:$0xf]
        %v339 = vld [vmem:[%s1 + $0x28] sm:$0xf]
        %v340 = vld [vmem:[%s1 + $0x2c] sm:$0xf]
        %v341 = vld [vmem:[%s1 + $0x30] sm:$0xf]
        %v342 = vld [vmem:[%s1 + $0x34] sm:$0xf]
        %v343 = vld [vmem:[%s1 + $0x38] sm:$0xf]
        %v344 = vld [vmem:[%s1 + $0x3c] sm:$0xf]
        %v345 = vld [vmem:[%s1 + $0x40] sm:$0xf]
        %v346 = vld [vmem:[%s1 + $0x44] sm:$0xf]
        %v347 = vld [vmem:[%s1 + $0x48] sm:$0xf]
        %v348 = vld [vmem:[%s1 + $0x4c] sm:$0xf]
        %v349 = vld [vmem:[%s1 + $0x50] sm:$0xf]
        %v350 = vld [vmem:[%s1 + $0x54] sm:$0xf]
        %v351 = vld [vmem:[%s1 + $0x58] sm:$0xf]
        %v352 = vld [vmem:[%s1 + $0x5c] sm:$0xf]
        %v353 = vld [vmem:[%s1 + $0x60] sm:$0xf]
        %v354 = vld [vmem:[%s1 + $0x64] sm:$0xf]
        %v355 = vld [vmem:[%s1 + $0x68] sm:$0xf]
        %v356 = vld [vmem:[%s1 + $0x6c] sm:$0xf]
        %v357 = vld [vmem:[%s1 + $0x70] sm:$0xf]
        %v358 = vld [vmem:[%s1 + $0x74] sm:$0xf]
        %v359 = vld [vmem:[%s1 + $0x78] sm:$0xf]
        %v360 = vld [vmem:[%s1 + $0x7c] sm:$0xf]
        %v361 = vld [vmem:[%s1 + $0x80] sm:$0xf]
        %v362 = vld [vmem:[%s1 + $0x84] sm:$0xf]
        %v363 = vld [vmem:[%s1 + $0x88] sm:$0xf]
        %v364 = vld [vmem:[%s1 + $0x8c] sm:$0xf]
        %v365 = vld [vmem:[%s2] sm:$0x1]
        %v367 = vlaneseq
        %v368 = vshrl.u32 %v367, 7
        %v369 = vsub.s32 0, %v368
        %v370 = vrot.slane %v365, %v369
        %v500 = vunpack.c.l.b16 %v201
        %v501 = vunpack.c.h.b16 %v201
        %v502 = vunpack.c.l.b16 %v202
        %v503 = vunpack.c.l.b16 %v203
        %v504 = vunpack.c.h.b16 %v203
        %v505 = vunpack.c.l.b16 %v204
        %v506 = vunpack.c.l.b16 %v205
        %v507 = vunpack.c.h.b16 %v205
        %v508 = vunpack.c.l.b16 %v206
        %v509 = vunpack.c.l.b16 %v207
        %v510 = vunpack.c.h.b16 %v207
        %v511 = vunpack.c.l.b16 %v208
        %v512 = vunpack.c.l.b16 %v209
        %v513 = vunpack.c.h.b16 %v209
        %v514 = vunpack.c.l.b16 %v210
        %v515 = vunpack.c.l.b16 %v211
        %v516 = vunpack.c.h.b16 %v211
        %v517 = vunpack.c.l.b16 %v212
        %v518 = vunpack.c.l.b16 %v213
        %v519 = vunpack.c.h.b16 %v213
        %v520 = vunpack.c.l.b16 %v214
        %v521 = vunpack.c.l.b16 %v215
        %v522 = vunpack.c.h.b16 %v215
        %v523 = vunpack.c.l.b16 %v216
        %v524 = vunpack.c.l.b16 %v217
        %v525 = vunpack.c.h.b16 %v217
        %v526 = vunpack.c.l.b16 %v218
        %v527 = vunpack.c.l.b16 %v219
        %v528 = vunpack.c.h.b16 %v219
        %v529 = vunpack.c.l.b16 %v220
        %v530 = vunpack.c.l.b16 %v221
        %v531 = vunpack.c.h.b16 %v221
        %v532 = vunpack.c.l.b16 %v222
        %v533 = vunpack.c.l.b16 %v223
        %v534 = vunpack.c.h.b16 %v223
        %v535 = vunpack.c.l.b16 %v224
        %v536 = vunpack.c.l.b16 %v225
        %v537 = vunpack.c.h.b16 %v225
        %v538 = vunpack.c.l.b16 %v226
        %v539 = vunpack.c.l.b16 %v227
        %v540 = vunpack.c.h.b16 %v227
        %v541 = vunpack.c.l.b16 %v228
        %v542 = vunpack.c.l.b16 %v229
        %v543 = vunpack.c.h.b16 %v229
        %v544 = vunpack.c.l.b16 %v230
        %v545 = vunpack.c.l.b16 %v231
        %v546 = vunpack.c.h.b16 %v231
        %v547 = vunpack.c.l.b16 %v232
        %v548 = vunpack.c.l.b16 %v233
        %v549 = vunpack.c.h.b16 %v233
        %v550 = vunpack.c.l.b16 %v234
        %v551 = vunpack.c.l.b16 %v235
        %v552 = vunpack.c.h.b16 %v235
        %v553 = vunpack.c.l.b16 %v236
        %v554 = vunpack.c.l.b16 %v237
        %v555 = vunpack.c.h.b16 %v237
        %v556 = vunpack.c.l.b16 %v238
        %v557 = vunpack.c.l.b16 %v239
        %v558 = vunpack.c.h.b16 %v239
        %v559 = vunpack.c.l.b16 %v240
        %v560 = vunpack.c.l.b16 %v241
        %v561 = vunpack.c.h.b16 %v241
        %v562 = vunpack.c.l.b16 %v242
        %v563 = vunpack.c.l.b16 %v243
        %v564 = vunpack.c.h.b16 %v243
        %v565 = vunpack.c.l.b16 %v244
        %v566 = vunpack.c.l.b16 %v245
        %v567 = vunpack.c.h.b16 %v245
        %v568 = vunpack.c.l.b16 %v246
        %v569 = vunpack.c.l.b16 %v247
        %v570 = vunpack.c.h.b16 %v247
        %v571 = vunpack.c.l.b16 %v248
        %v572 = vunpack.c.l.b16 %v249
        %v573 = vunpack.c.h.b16 %v249
        %v574 = vunpack.c.l.b16 %v250
        %v575 = vunpack.c.l.b16 %v251
        %v576 = vunpack.c.h.b16 %v251
        %v577 = vunpack.c.l.b16 %v252
        %v578 = vunpack.c.l.b16 %v253
        %v579 = vunpack.c.h.b16 %v253
        %v580 = vunpack.c.l.b16 %v254
        %v581 = vunpack.c.l.b16 %v255
        %v582 = vunpack.c.h.b16 %v255
        %v583 = vunpack.c.l.b16 %v256
        %v584 = vunpack.c.l.b16 %v257
        %v585 = vunpack.c.h.b16 %v257
        %v586 = vunpack.c.l.b16 %v258
        %v587 = vunpack.c.l.b16 %v259
        %v588 = vunpack.c.h.b16 %v259
        %v589 = vunpack.c.l.b16 %v260
        %v590 = vunpack.c.l.b16 %v261
        %v591 = vunpack.c.h.b16 %v261
        %v592 = vunpack.c.l.b16 %v262
        %v593 = vunpack.c.l.b16 %v263
        %v594 = vunpack.c.h.b16 %v263
        %v595 = vunpack.c.l.b16 %v264
        %v596 = vunpack.c.l.b16 %v265
        %v597 = vunpack.c.h.b16 %v265
        %v598 = vunpack.c.l.b16 %v266
        %v599 = vunpack.c.l.b16 %v267
        %v600 = vunpack.c.h.b16 %v267
        %v601 = vunpack.c.l.b16 %v268
        %v602 = vunpack.c.l.b16 %v269
        %v603 = vunpack.c.h.b16 %v269
        %v604 = vunpack.c.l.b16 %v270
        %v605 = vunpack.c.l.b16 %v271
        %v606 = vunpack.c.h.b16 %v271
        %v607 = vunpack.c.l.b16 %v272
        %v608 = vunpack.c.l.b16 %v273
        %v609 = vunpack.c.h.b16 %v273
        %v610 = vunpack.c.l.b16 %v274
        %v611 = vunpack.c.l.b16 %v275
        %v612 = vunpack.c.h.b16 %v275
        %v613 = vunpack.c.l.b16 %v276
        %v614 = vunpack.c.l.b16 %v277
        %v615 = vunpack.c.h.b16 %v277
        %v616 = vunpack.c.l.b16 %v278
        %v617 = vunpack.c.l.b16 %v279
        %v618 = vunpack.c.h.b16 %v279
        %v619 = vunpack.c.l.b16 %v280
        %v620 = vunpack.c.l.b16 %v281
        %v621 = vunpack.c.h.b16 %v281
        %v622 = vunpack.c.l.b16 %v282
        %v623 = vunpack.c.l.b16 %v283
        %v624 = vunpack.c.h.b16 %v283
        %v625 = vunpack.c.l.b16 %v284
        %v626 = vunpack.c.l.b16 %v285
        %v627 = vunpack.c.h.b16 %v285
        %v628 = vunpack.c.l.b16 %v286
        %v629 = vunpack.c.l.b16 %v287
        %v630 = vunpack.c.h.b16 %v287
        %v631 = vunpack.c.l.b16 %v288
        %v632 = vunpack.c.l.b16 %v289
        %v633 = vunpack.c.h.b16 %v289
        %v634 = vunpack.c.l.b16 %v290
        %v635 = vunpack.c.l.b16 %v291
        %v636 = vunpack.c.h.b16 %v291
        %v637 = vunpack.c.l.b16 %v292
        %v638 = vunpack.c.l.b16 %v293
        %v639 = vunpack.c.h.b16 %v293
        %v640 = vunpack.c.l.b16 %v294
        %v641 = vunpack.c.l.b16 %v295
        %v642 = vunpack.c.h.b16 %v295
        %v643 = vunpack.c.l.b16 %v296
        %v644 = vunpack.c.l.b16 %v297
        %v645 = vunpack.c.h.b16 %v297
        %v646 = vunpack.c.l.b16 %v298
        %v647 = vunpack.c.l.b16 %v299
        %v648 = vunpack.c.h.b16 %v299
        %v649 = vunpack.c.l.b16 %v300
        %v650 = vunpack.c.l.b16 %v301
        %v651 = vunpack.c.h.b16 %v301
        %v652 = vunpack.c.l.b16 %v302
        %v653 = vunpack.c.l.b16 %v303
        %v654 = vunpack.c.h.b16 %v303
        %v655 = vunpack.c.l.b16 %v304
        %v656 = vunpack.c.l.b16 %v305
        %v657 = vunpack.c.h.b16 %v305
        %v658 = vunpack.c.l.b16 %v306
        %v659 = vunpack.c.l.b16 %v307
        %v660 = vunpack.c.h.b16 %v307
        %v661 = vunpack.c.l.b16 %v308
        %v662 = vunpack.c.l.b16 %v309
        %v663 = vunpack.c.h.b16 %v309
        %v664 = vunpack.c.l.b16 %v310
        %v665 = vunpack.c.l.b16 %v311
        %v666 = vunpack.c.h.b16 %v311
        %v667 = vunpack.c.l.b16 %v312
        %v668 = vunpack.c.l.b16 %v313
        %v669 = vunpack.c.h.b16 %v313
        %v670 = vunpack.c.l.b16 %v314
        %v671 = vunpack.c.l.b16 %v315
        %v672 = vunpack.c.h.b16 %v315
        %v673 = vunpack.c.l.b16 %v316
        %v674 = vunpack.c.l.b16 %v317
        %v675 = vunpack.c.h.b16 %v317
        %v676 = vunpack.c.l.b16 %v318
        %v677 = vunpack.c.l.b16 %v319
        %v678 = vunpack.c.h.b16 %v319
        %v679 = vunpack.c.l.b16 %v320
        %v680 = vunpack.c.l.b16 %v321
        %v681 = vunpack.c.h.b16 %v321
        %v682 = vunpack.c.l.b16 %v322
        %v683 = vunpack.c.l.b16 %v323
        %v684 = vunpack.c.h.b16 %v323
        %v685 = vunpack.c.l.b16 %v324
        %v686 = vunpack.c.l.b16 %v325
        %v687 = vunpack.c.h.b16 %v325
        %v688 = vunpack.c.l.b16 %v326
        %v689 = vunpack.c.l.b16 %v327
        %v690 = vunpack.c.h.b16 %v327
        %v691 = vunpack.c.l.b16 %v328
        %v692 = vpack.c.b16 %v503, %v500
        %v693 = vpack.c.b16 %v504, %v501
        %v694 = vpack.c.b16 %v505, %v502
        %v695 = vpack.c.b16 %v509, %v506
        %v696 = vpack.c.b16 %v510, %v507
        %v697 = vpack.c.b16 %v511, %v508
        %v698 = vpack.c.b16 %v515, %v512
        %v699 = vpack.c.b16 %v516, %v513
        %v700 = vpack.c.b16 %v517, %v514
        %v701 = vpack.c.b16 %v521, %v518
        %v702 = vpack.c.b16 %v522, %v519
        %v703 = vpack.c.b16 %v523, %v520
        %v704 = vpack.c.b16 %v527, %v524
        %v705 = vpack.c.b16 %v528, %v525
        %v706 = vpack.c.b16 %v529, %v526
        %v707 = vpack.c.b16 %v533, %v530
        %v708 = vpack.c.b16 %v534, %v531
        %v709 = vpack.c.b16 %v535, %v532
        %v710 = vpack.c.b16 %v539, %v536
        %v711 = vpack.c.b16 %v540, %v537
        %v712 = vpack.c.b16 %v541, %v538
        %v713 = vpack.c.b16 %v545, %v542
        %v714 = vpack.c.b16 %v546, %v543
        %v715 = vpack.c.b16 %v547, %v544
        %v716 = vpack.c.b16 %v551, %v548
        %v717 = vpack.c.b16 %v552, %v549
        %v718 = vpack.c.b16 %v553, %v550
        %v719 = vpack.c.b16 %v557, %v554
        %v720 = vpack.c.b16 %v558, %v555
        %v721 = vpack.c.b16 %v559, %v556
        %v722 = vpack.c.b16 %v563, %v560
        %v723 = vpack.c.b16 %v564, %v561
        %v724 = vpack.c.b16 %v565, %v562
        %v725 = vpack.c.b16 %v569, %v566
        %v726 = vpack.c.b16 %v570, %v567
        %v727 = vpack.c.b16 %v571, %v568
        %v728 = vpack.c.b16 %v575, %v572
        %v729 = vpack.c.b16 %v576, %v573
        %v730 = vpack.c.b16 %v577, %v574
        %v731 = vpack.c.b16 %v581, %v578
        %v732 = vpack.c.b16 %v582, %v579
        %v733 = vpack.c.b16 %v583, %v580
        %v734 = vpack.c.b16 %v587, %v584
        %v735 = vpack.c.b16 %v588, %v585
        %v736 = vpack.c.b16 %v589, %v586
        %v737 = vpack.c.b16 %v593, %v590
        %v738 = vpack.c.b16 %v594, %v591
        %v739 = vpack.c.b16 %v595, %v592
        %v740 = vpack.c.b16 %v599, %v596
        %v741 = vpack.c.b16 %v600, %v597
        %v742 = vpack.c.b16 %v601, %v598
        %v743 = vpack.c.b16 %v605, %v602
        %v744 = vpack.c.b16 %v606, %v603
        %v745 = vpack.c.b16 %v607, %v604
        %v746 = vpack.c.b16 %v611, %v608
        %v747 = vpack.c.b16 %v612, %v609
        %v748 = vpack.c.b16 %v613, %v610
        %v749 = vpack.c.b16 %v617, %v614
        %v750 = vpack.c.b16 %v618, %v615
        %v751 = vpack.c.b16 %v619, %v616
        %v752 = vpack.c.b16 %v623, %v620
        %v753 = vpack.c.b16 %v624, %v621
        %v754 = vpack.c.b16 %v625, %v622
        %v755 = vpack.c.b16 %v629, %v626
        %v756 = vpack.c.b16 %v630, %v627
        %v757 = vpack.c.b16 %v631, %v628
        %v758 = vpack.c.b16 %v635, %v632
        %v759 = vpack.c.b16 %v636, %v633
        %v760 = vpack.c.b16 %v637, %v634
        %v761 = vpack.c.b16 %v641, %v638
        %v762 = vpack.c.b16 %v642, %v639
        %v763 = vpack.c.b16 %v643, %v640
        %v764 = vpack.c.b16 %v647, %v644
        %v765 = vpack.c.b16 %v648, %v645
        %v766 = vpack.c.b16 %v649, %v646
        %v767 = vpack.c.b16 %v653, %v650
        %v768 = vpack.c.b16 %v654, %v651
        %v769 = vpack.c.b16 %v655, %v652
        %v770 = vpack.c.b16 %v659, %v656
        %v771 = vpack.c.b16 %v660, %v657
        %v772 = vpack.c.b16 %v661, %v658
        %v773 = vpack.c.b16 %v665, %v662
        %v774 = vpack.c.b16 %v666, %v663
        %v775 = vpack.c.b16 %v667, %v664
        %v776 = vpack.c.b16 %v671, %v668
        %v777 = vpack.c.b16 %v672, %v669
        %v778 = vpack.c.b16 %v673, %v670
        %v779 = vpack.c.b16 %v677, %v674
        %v780 = vpack.c.b16 %v678, %v675
        %v781 = vpack.c.b16 %v679, %v676
        %v782 = vpack.c.b16 %v683, %v680
        %v783 = vpack.c.b16 %v684, %v681
        %v784 = vpack.c.b16 %v685, %v682
        %v785 = vpack.c.b16 %v689, %v686
        %v786 = vpack.c.b16 %v690, %v687
        %v787 = vpack.c.b16 %v691, %v688
        %v888 = vunpack.c.l.b16 %v329
        %v889 = vunpack.c.l.b16 %v330
        %v890 = vunpack.c.l.b16 %v331
        %v891 = vunpack.c.l.b16 %v332
        %v892 = vunpack.c.l.b16 %v333
        %v893 = vunpack.c.l.b16 %v334
        %v894 = vunpack.c.l.b16 %v335
        %v895 = vunpack.c.l.b16 %v336
        %v896 = vunpack.c.l.b16 %v337
        %v897 = vunpack.c.l.b16 %v338
        %v898 = vunpack.c.l.b16 %v339
        %v899 = vunpack.c.l.b16 %v340
        %v900 = vunpack.c.l.b16 %v341
        %v901 = vunpack.c.l.b16 %v342
        %v902 = vunpack.c.l.b16 %v343
        %v903 = vunpack.c.l.b16 %v344
        %v904 = vunpack.c.l.b16 %v345
        %v905 = vunpack.c.l.b16 %v346
        %v906 = vunpack.c.l.b16 %v347
        %v907 = vunpack.c.l.b16 %v348
        %v908 = vunpack.c.l.b16 %v349
        %v909 = vunpack.c.l.b16 %v350
        %v910 = vunpack.c.l.b16 %v351
        %v911 = vunpack.c.l.b16 %v352
        %v912 = vunpack.c.l.b16 %v353
        %v913 = vunpack.c.l.b16 %v354
        %v914 = vunpack.c.l.b16 %v355
        %v915 = vunpack.c.l.b16 %v356
        %v916 = vunpack.c.l.b16 %v357
        %v917 = vunpack.c.l.b16 %v358
        %v918 = vunpack.c.l.b16 %v359
        %v919 = vunpack.c.l.b16 %v360
        %v920 = vunpack.c.l.b16 %v361
        %v921 = vunpack.c.l.b16 %v362
        %v922 = vunpack.c.l.b16 %v363
        %v923 = vunpack.c.l.b16 %v364
        %v924 = vpack.c.b16 %v889, %v888
        %v925 = vpack.c.b16 %v891, %v890
        %v926 = vpack.c.b16 %v893, %v892
        %v927 = vpack.c.b16 %v895, %v894
        %v928 = vpack.c.b16 %v897, %v896
        %v929 = vpack.c.b16 %v899, %v898
        %v930 = vpack.c.b16 %v901, %v900
        %v931 = vpack.c.b16 %v903, %v902
        %v932 = vpack.c.b16 %v905, %v904
        %v933 = vpack.c.b16 %v907, %v906
        %v934 = vpack.c.b16 %v909, %v908
        %v935 = vpack.c.b16 %v911, %v910
        %v936 = vpack.c.b16 %v913, %v912
        %v937 = vpack.c.b16 %v915, %v914
        %v938 = vpack.c.b16 %v917, %v916
        %v939 = vpack.c.b16 %v919, %v918
        %v940 = vpack.c.b16 %v921, %v920
        %v941 = vpack.c.b16 %v923, %v922
        %vm960 = vcmask 261120
        %v962 = vsel %vm960, %v694, 0
        %v965 = vsel %vm960, %v697, 0
        %v968 = vsel %vm960, %v700, 0
        %v971 = vsel %vm960, %v703, 0
        %v974 = vsel %vm960, %v706, 0
        %v977 = vsel %vm960, %v709, 0
        %v980 = vsel %vm960, %v712, 0
        %v983 = vsel %vm960, %v715, 0
        %v986 = vsel %vm960, %v718, 0
        %v989 = vsel %vm960, %v721, 0
        %v992 = vsel %vm960, %v724, 0
        %v995 = vsel %vm960, %v727, 0
        %v998 = vsel %vm960, %v730, 0
        %v1001 = vsel %vm960, %v733, 0
        %v1004 = vsel %vm960, %v736, 0
        %v1007 = vsel %vm960, %v739, 0
        %v1010 = vsel %vm960, %v742, 0
        %v1013 = vsel %vm960, %v745, 0
        %v1016 = vsel %vm960, %v748, 0
        %v1019 = vsel %vm960, %v751, 0
        %v1022 = vsel %vm960, %v754, 0
        %v1025 = vsel %vm960, %v757, 0
        %v1028 = vsel %vm960, %v760, 0
        %v1031 = vsel %vm960, %v763, 0
        %v1034 = vsel %vm960, %v766, 0
        %v1037 = vsel %vm960, %v769, 0
        %v1040 = vsel %vm960, %v772, 0
        %v1043 = vsel %vm960, %v775, 0
        %v1046 = vsel %vm960, %v778, 0
        %v1049 = vsel %vm960, %v781, 0
        %v1052 = vsel %vm960, %v784, 0
        %v1055 = vsel %vm960, %v787, 0
        %1057 = vmatprep.subr.bf16.mxu0 0
        %1058 = vmatpush1.bf16.msra.mxu0 %v924
        %1059 = vmatprep.subr.bf16.mxu0 0
        %1060 = vmatpush1.bf16.msra.mxu0 %v925
        %1061 = vmatprep.subr.bf16.mxu0 0
        %1062 = vmatpush1.bf16.msra.mxu0 %v926
        %1063 = vmatprep.subr.bf16.mxu0 0
        %1064 = vmatpush1.bf16.msra.mxu0 %v927
        %1065 = vmatprep.subr.bf16.mxu0 0
        %1066 = vmatpush1.bf16.msra.mxu0 %v928
        %1067 = vmatprep.subr.bf16.mxu0 0
        %1068 = vmatpush1.bf16.msra.mxu0 %v929
        %1069 = vmatprep.subr.bf16.mxu0 0
        %1070 = vmatpush1.bf16.msra.mxu0 %v930
        %1071 = vmatprep.subr.bf16.mxu0 0
        %1072 = vmatpush1.bf16.msra.mxu0 %v931
        %1073 = vmatprep.subr.bf16.mxu0 0
        %1074 = vmatpush1.bf16.msra.mxu0 %v932
        %1075 = vmatprep.subr.bf16.mxu0 0
        %1076 = vmatpush1.bf16.msra.mxu0 %v933
        %1077 = vmatprep.subr.bf16.mxu0 0
        %1078 = vmatpush1.bf16.msra.mxu0 %v934
        %1079 = vmatprep.subr.bf16.mxu0 0
        %1080 = vmatpush1.bf16.msra.mxu0 %v935
        %1081 = vmatprep.subr.bf16.mxu0 0
        %1082 = vmatpush1.bf16.msra.mxu0 %v936
        %1083 = vmatprep.subr.bf16.mxu0 0
        %1084 = vmatpush1.bf16.msra.mxu0 %v937
        %1085 = vmatprep.subr.bf16.mxu0 0
        %1086 = vmatpush1.bf16.msra.mxu0 %v938
        %1087 = vmatprep.subr.bf16.mxu0 0
        %1088 = vmatpush1.bf16.msra.mxu0 %v939
        %1089 = vmatprep.mubr.bf16.mxu0 %v693
        %1090 = vmatmul.mubr.bf16.gmra.mrb[0].mxu0 %v692
        %v1091 = vpop.f32.mrb[0].mxu0
        %v1092 = vadd.f32 %v370, %v1091
        %v1093 = vpop.f32.mrb[0].mxu0
        %v1094 = vpop.f32.mrb[0].mxu0
        %v1095 = vadd.f32 %v370, %v1094
        %v1096 = vpop.f32.mrb[0].mxu0
        %1097 = vmatprep.mubr.bf16.mxu0 %v696
        %1098 = vmatmul.mubr.bf16.gmra.mrb[0].mxu0 %v695
        %v1099 = vpop.f32.mrb[0].mxu0
        %v1100 = vadd.f32 %v370, %v1099
        %v1101 = vpop.f32.mrb[0].mxu0
        %v1102 = vpop.f32.mrb[0].mxu0
        %v1103 = vadd.f32 %v370, %v1102
        %v1104 = vpop.f32.mrb[0].mxu0
        %1105 = vmatprep.mubr.bf16.mxu0 %v699
        %1106 = vmatmul.mubr.bf16.gmra.mrb[0].mxu0 %v698
        %v1107 = vpop.f32.mrb[0].mxu0
        %v1108 = vadd.f32 %v370, %v1107
        %v1109 = vpop.f32.mrb[0].mxu0
        %v1110 = vpop.f32.mrb[0].mxu0
        %v1111 = vadd.f32 %v370, %v1110
        %v1112 = vpop.f32.mrb[0].mxu0
        %1113 = vmatprep.mubr.bf16.mxu0 %v702
        %1114 = vmatmul.mubr.bf16.gmra.mrb[0].mxu0 %v701
        %v1115 = vpop.f32.mrb[0].mxu0
        %v1116 = vadd.f32 %v370, %v1115
        %v1117 = vpop.f32.mrb[0].mxu0
        %v1118 = vpop.f32.mrb[0].mxu0
        %v1119 = vadd.f32 %v370, %v1118
        %v1120 = vpop.f32.mrb[0].mxu0
        %1121 = vmatprep.mubr.bf16.mxu0 %v705
        %1122 = vmatmul.mubr.bf16.gmra.mrb[0].mxu0 %v704
        %v1123 = vpop.f32.mrb[0].mxu0
        %v1124 = vadd.f32 %v370, %v1123
        %v1125 = vpop.f32.mrb[0].mxu0
        %v1126 = vpop.f32.mrb[0].mxu0
        %v1127 = vadd.f32 %v370, %v1126
        %v1128 = vpop.f32.mrb[0].mxu0
        %1129 = vmatprep.mubr.bf16.mxu0 %v708
        %1130 = vmatmul.mubr.bf16.gmra.mrb[0].mxu0 %v707
        %v1131 = vpop.f32.mrb[0].mxu0
        %v1132 = vadd.f32 %v370, %v1131
        %v1133 = vpop.f32.mrb[0].mxu0
        %v1134 = vpop.f32.mrb[0].mxu0
        %v1135 = vadd.f32 %v370, %v1134
        %v1136 = vpop.f32.mrb[0].mxu0
        %1137 = vmatprep.mubr.bf16.mxu0 %v711
        %1138 = vmatmul.mubr.bf16.gmra.mrb[0].mxu0 %v710
        %v1139 = vpop.f32.mrb[0].mxu0
        %v1140 = vadd.f32 %v370, %v1139
        %v1141 = vpop.f32.mrb[0].mxu0
        %v1142 = vpop.f32.mrb[0].mxu0
        %v1143 = vadd.f32 %v370, %v1142
        %v1144 = vpop.f32.mrb[0].mxu0
        %1145 = vmatprep.mubr.bf16.mxu0 %v714
        %1146 = vmatmul.mubr.bf16.gmra.mrb[0].mxu0 %v713
        %v1147 = vpop.f32.mrb[0].mxu0
        %v1148 = vadd.f32 %v370, %v1147
        %v1149 = vpop.f32.mrb[0].mxu0
        %v1150 = vpop.f32.mrb[0].mxu0
        %v1151 = vadd.f32 %v370, %v1150
        %v1152 = vpop.f32.mrb[0].mxu0
        %1153 = vmatprep.mubr.bf16.mxu0 %v717
        %1154 = vmatmul.mubr.bf16.gmra.mrb[0].mxu0 %v716
        %v1155 = vpop.f32.mrb[0].mxu0
        %v1156 = vadd.f32 %v370, %v1155
        %v1157 = vpop.f32.mrb[0].mxu0
        %v1158 = vpop.f32.mrb[0].mxu0
        %v1159 = vadd.f32 %v370, %v1158
        %v1160 = vpop.f32.mrb[0].mxu0
        %1161 = vmatprep.mubr.bf16.mxu0 %v720
        %1162 = vmatmul.mubr.bf16.gmra.mrb[0].mxu0 %v719
        %v1163 = vpop.f32.mrb[0].mxu0
        %v1164 = vadd.f32 %v370, %v1163
        %v1165 = vpop.f32.mrb[0].mxu0
        %v1166 = vpop.f32.mrb[0].mxu0
        %v1167 = vadd.f32 %v370, %v1166
        %v1168 = vpop.f32.mrb[0].mxu0
        %1169 = vmatprep.mubr.bf16.mxu0 %v723
        %1170 = vmatmul.mubr.bf16.gmra.mrb[0].mxu0 %v722
        %v1171 = vpop.f32.mrb[0].mxu0
        %v1172 = vadd.f32 %v370, %v1171
        %v1173 = vpop.f32.mrb[0].mxu0
        %v1174 = vpop.f32.mrb[0].mxu0
        %v1175 = vadd.f32 %v370, %v1174
        %v1176 = vpop.f32.mrb[0].mxu0
        %1177 = vmatprep.mubr.bf16.mxu0 %v726
        %1178 = vmatmul.mubr.bf16.gmra.mrb[0].mxu0 %v725
        %v1179 = vpop.f32.mrb[0].mxu0
        %v1180 = vadd.f32 %v370, %v1179
        %v1181 = vpop.f32.mrb[0].mxu0
        %v1182 = vpop.f32.mrb[0].mxu0
        %v1183 = vadd.f32 %v370, %v1182
        %v1184 = vpop.f32.mrb[0].mxu0
        %1185 = vmatprep.mubr.bf16.mxu0 %v729
        %1186 = vmatmul.mubr.bf16.gmra.mrb[0].mxu0 %v728
        %v1187 = vpop.f32.mrb[0].mxu0
        %v1188 = vadd.f32 %v370, %v1187
        %v1189 = vpop.f32.mrb[0].mxu0
        %v1190 = vpop.f32.mrb[0].mxu0
        %v1191 = vadd.f32 %v370, %v1190
        %v1192 = vpop.f32.mrb[0].mxu0
        %1193 = vmatprep.mubr.bf16.mxu0 %v732
        %1194 = vmatmul.mubr.bf16.gmra.mrb[0].mxu0 %v731
        %v1195 = vpop.f32.mrb[0].mxu0
        %v1196 = vadd.f32 %v370, %v1195
        %v1197 = vpop.f32.mrb[0].mxu0
        %v1198 = vpop.f32.mrb[0].mxu0
        %v1199 = vadd.f32 %v370, %v1198
        %v1200 = vpop.f32.mrb[0].mxu0
        %1201 = vmatprep.mubr.bf16.mxu0 %v735
        %1202 = vmatmul.mubr.bf16.gmra.mrb[0].mxu0 %v734
        %v1203 = vpop.f32.mrb[0].mxu0
        %v1204 = vadd.f32 %v370, %v1203
        %v1205 = vpop.f32.mrb[0].mxu0
        %v1206 = vpop.f32.mrb[0].mxu0
        %v1207 = vadd.f32 %v370, %v1206
        %v1208 = vpop.f32.mrb[0].mxu0
        %1209 = vmatprep.mubr.bf16.mxu0 %v738
        %1210 = vmatmul.mubr.bf16.gmra.mrb[0].mxu0 %v737
        %v1211 = vpop.f32.mrb[0].mxu0
        %v1212 = vadd.f32 %v370, %v1211
        %v1213 = vpop.f32.mrb[0].mxu0
        %v1214 = vpop.f32.mrb[0].mxu0
        %v1215 = vadd.f32 %v370, %v1214
        %v1216 = vpop.f32.mrb[0].mxu0
        %1217 = vmatprep.mubr.bf16.mxu0 %v741
        %1218 = vmatmul.mubr.bf16.gmra.mrb[0].mxu0 %v740
        %v1219 = vpop.f32.mrb[0].mxu0
        %v1220 = vadd.f32 %v370, %v1219
        %v1221 = vpop.f32.mrb[0].mxu0
        %v1222 = vpop.f32.mrb[0].mxu0
        %v1223 = vadd.f32 %v370, %v1222
        %v1224 = vpop.f32.mrb[0].mxu0
        %1225 = vmatprep.mubr.bf16.mxu0 %v744
        %1226 = vmatmul.mubr.bf16.gmra.mrb[0].mxu0 %v743
        %v1227 = vpop.f32.mrb[0].mxu0
        %v1228 = vadd.f32 %v370, %v1227
        %v1229 = vpop.f32.mrb[0].mxu0
        %v1230 = vpop.f32.mrb[0].mxu0
        %v1231 = vadd.f32 %v370, %v1230
        %v1232 = vpop.f32.mrb[0].mxu0
        %1233 = vmatprep.mubr.bf16.mxu0 %v747
        %1234 = vmatmul.mubr.bf16.gmra.mrb[0].mxu0 %v746
        %v1235 = vpop.f32.mrb[0].mxu0
        %v1236 = vadd.f32 %v370, %v1235
        %v1237 = vpop.f32.mrb[0].mxu0
        %v1238 = vpop.f32.mrb[0].mxu0
        %v1239 = vadd.f32 %v370, %v1238
        %v1240 = vpop.f32.mrb[0].mxu0
        %1241 = vmatprep.mubr.bf16.mxu0 %v750
        %1242 = vmatmul.mubr.bf16.gmra.mrb[0].mxu0 %v749
        %v1243 = vpop.f32.mrb[0].mxu0
        %v1244 = vadd.f32 %v370, %v1243
        %v1245 = vpop.f32.mrb[0].mxu0
        %v1246 = vpop.f32.mrb[0].mxu0
        %v1247 = vadd.f32 %v370, %v1246
        %v1248 = vpop.f32.mrb[0].mxu0
        %1249 = vmatprep.mubr.bf16.mxu0 %v753
        %1250 = vmatmul.mubr.bf16.gmra.mrb[0].mxu0 %v752
        %v1251 = vpop.f32.mrb[0].mxu0
        %v1252 = vadd.f32 %v370, %v1251
        %v1253 = vpop.f32.mrb[0].mxu0
        %v1254 = vpop.f32.mrb[0].mxu0
        %v1255 = vadd.f32 %v370, %v1254
        %v1256 = vpop.f32.mrb[0].mxu0
        %1257 = vmatprep.mubr.bf16.mxu0 %v756
        %1258 = vmatmul.mubr.bf16.gmra.mrb[0].mxu0 %v755
        %v1259 = vpop.f32.mrb[0].mxu0
        %v1260 = vadd.f32 %v370, %v1259
        %v1261 = vpop.f32.mrb[0].mxu0
        %v1262 = vpop.f32.mrb[0].mxu0
        %v1263 = vadd.f32 %v370, %v1262
        %v1264 = vpop.f32.mrb[0].mxu0
        %1265 = vmatprep.mubr.bf16.mxu0 %v759
        %1266 = vmatmul.mubr.bf16.gmra.mrb[0].mxu0 %v758
        %v1267 = vpop.f32.mrb[0].mxu0
        %v1268 = vadd.f32 %v370, %v1267
        %v1269 = vpop.f32.mrb[0].mxu0
        %v1270 = vpop.f32.mrb[0].mxu0
        %v1271 = vadd.f32 %v370, %v1270
        %v1272 = vpop.f32.mrb[0].mxu0
        %1273 = vmatprep.mubr.bf16.mxu0 %v762
        %1274 = vmatmul.mubr.bf16.gmra.mrb[0].mxu0 %v761
        %v1275 = vpop.f32.mrb[0].mxu0
        %v1276 = vadd.f32 %v370, %v1275
        %v1277 = vpop.f32.mrb[0].mxu0
        %v1278 = vpop.f32.mrb[0].mxu0
        %v1279 = vadd.f32 %v370, %v1278
        %v1280 = vpop.f32.mrb[0].mxu0
        %1281 = vmatprep.mubr.bf16.mxu0 %v765
        %1282 = vmatmul.mubr.bf16.gmra.mrb[0].mxu0 %v764
        %v1283 = vpop.f32.mrb[0].mxu0
        %v1284 = vadd.f32 %v370, %v1283
        %v1285 = vpop.f32.mrb[0].mxu0
        %v1286 = vpop.f32.mrb[0].mxu0
        %v1287 = vadd.f32 %v370, %v1286
        %v1288 = vpop.f32.mrb[0].mxu0
        %1289 = vmatprep.mubr.bf16.mxu0 %v768
        %1290 = vmatmul.mubr.bf16.gmra.mrb[0].mxu0 %v767
        %v1291 = vpop.f32.mrb[0].mxu0
        %v1292 = vadd.f32 %v370, %v1291
        %v1293 = vpop.f32.mrb[0].mxu0
        %v1294 = vpop.f32.mrb[0].mxu0
        %v1295 = vadd.f32 %v370, %v1294
        %v1296 = vpop.f32.mrb[0].mxu0
        %1297 = vmatprep.mubr.bf16.mxu0 %v771
        %1298 = vmatmul.mubr.bf16.gmra.mrb[0].mxu0 %v770
        %v1299 = vpop.f32.mrb[0].mxu0
        %v1300 = vadd.f32 %v370, %v1299
        %v1301 = vpop.f32.mrb[0].mxu0
        %v1302 = vpop.f32.mrb[0].mxu0
        %v1303 = vadd.f32 %v370, %v1302
        %v1304 = vpop.f32.mrb[0].mxu0
        %1305 = vmatprep.mubr.bf16.mxu0 %v774
        %1306 = vmatmul.mubr.bf16.gmra.mrb[0].mxu0 %v773
        %v1307 = vpop.f32.mrb[0].mxu0
        %v1308 = vadd.f32 %v370, %v1307
        %v1309 = vpop.f32.mrb[0].mxu0
        %v1310 = vpop.f32.mrb[0].mxu0
        %v1311 = vadd.f32 %v370, %v1310
        %v1312 = vpop.f32.mrb[0].mxu0
        %1313 = vmatprep.mubr.bf16.mxu0 %v777
        %1314 = vmatmul.mubr.bf16.gmra.mrb[0].mxu0 %v776
        %v1315 = vpop.f32.mrb[0].mxu0
        %v1316 = vadd.f32 %v370, %v1315
        %v1317 = vpop.f32.mrb[0].mxu0
        %v1318 = vpop.f32.mrb[0].mxu0
        %v1319 = vadd.f32 %v370, %v1318
        %v1320 = vpop.f32.mrb[0].mxu0
        %1321 = vmatprep.mubr.bf16.mxu0 %v780
        %1322 = vmatmul.mubr.bf16.gmra.mrb[0].mxu0 %v779
        %v1323 = vpop.f32.mrb[0].mxu0
        %v1324 = vadd.f32 %v370, %v1323
        %v1325 = vpop.f32.mrb[0].mxu0
        %v1326 = vpop.f32.mrb[0].mxu0
        %v1327 = vadd.f32 %v370, %v1326
        %v1328 = vpop.f32.mrb[0].mxu0
        %1329 = vmatprep.mubr.bf16.mxu0 %v783
        %1330 = vmatmul.mubr.bf16.gmra.mrb[0].mxu0 %v782
        %v1331 = vpop.f32.mrb[0].mxu0
        %v1332 = vadd.f32 %v370, %v1331
        %v1333 = vpop.f32.mrb[0].mxu0
        %v1334 = vpop.f32.mrb[0].mxu0
        %v1335 = vadd.f32 %v370, %v1334
        %v1336 = vpop.f32.mrb[0].mxu0
        %1337 = vmatprep.mubr.bf16.mxu0 %v786
        %1338 = vmatmul.mubr.bf16.gmra.mrb[0].mxu0 %v785
        %v1339 = vpop.f32.mrb[0].mxu0
        %v1340 = vadd.f32 %v370, %v1339
        %v1341 = vpop.f32.mrb[0].mxu0
        %v1342 = vpop.f32.mrb[0].mxu0
        %v1343 = vadd.f32 %v370, %v1342
        %v1344 = vpop.f32.mrb[0].mxu0
        %1345 = vdwg.mxu0
        %1346 = vmatprep.subr.bf16.mxu0 0
        %1347 = vmatpush1.bf16.msra.mxu0 %v940
        %1348 = vmatprep.subr.bf16.mxu0 0
        %1349 = vmatpush1.bf16.msra.mxu0 %v941
        %1350 = vmatprep.subr.bf16.mxu0 0
        %1351 = vmatpush1.bf16.msra.mxu0 0
        %1352 = vmatprep.subr.bf16.mxu0 0
        %1353 = vmatpush1.bf16.msra.mxu0 0
        %1354 = vmatprep.subr.bf16.mxu0 0
        %1355 = vmatpush1.bf16.msra.mxu0 0
        %1356 = vmatprep.subr.bf16.mxu0 0
        %1357 = vmatpush1.bf16.msra.mxu0 0
        %1358 = vmatprep.subr.bf16.mxu0 0
        %1359 = vmatpush1.bf16.msra.mxu0 0
        %1360 = vmatprep.subr.bf16.mxu0 0
        %1361 = vmatpush1.bf16.msra.mxu0 0
        %1362 = vmatprep.subr.bf16.mxu0 0
        %1363 = vmatpush1.bf16.msra.mxu0 0
        %1364 = vmatprep.subr.bf16.mxu0 0
        %1365 = vmatpush1.bf16.msra.mxu0 0
        %1366 = vmatprep.subr.bf16.mxu0 0
        %1367 = vmatpush1.bf16.msra.mxu0 0
        %1368 = vmatprep.subr.bf16.mxu0 0
        %1369 = vmatpush1.bf16.msra.mxu0 0
        %1370 = vmatprep.subr.bf16.mxu0 0
        %1371 = vmatpush1.bf16.msra.mxu0 0
        %1372 = vmatprep.subr.bf16.mxu0 0
        %1373 = vmatpush1.bf16.msra.mxu0 0
        %1374 = vmatprep.subr.bf16.mxu0 0
        %1375 = vmatpush1.bf16.msra.mxu0 0
        %1376 = vmatprep.subr.bf16.mxu0 0
        %1377 = vmatpush1.bf16.msra.mxu0 0
        %1378 = vmatprep.mubr.bf16.mxu0 0
        %1379 = vmatmul.mubr.bf16.gmra.mrb[0].mxu0 %v962
        %v1380 = vpop.f32.mrb[0].mxu0
        %v1381 = vadd.f32 %v1092, %v1380
        %v1382 = vpop.f32.mrb[0].mxu0
        %v1383 = vpop.f32.mrb[0].mxu0
        %v1384 = vadd.f32 %v1095, %v1383
        %v1385 = vpop.f32.mrb[0].mxu0
        %1386 = vmatprep.mubr.bf16.mxu0 0
        %1387 = vmatmul.mubr.bf16.gmra.mrb[0].mxu0 %v965
        %v1388 = vpop.f32.mrb[0].mxu0
        %v1389 = vadd.f32 %v1100, %v1388
        %v1390 = vpop.f32.mrb[0].mxu0
        %v1391 = vpop.f32.mrb[0].mxu0
        %v1392 = vadd.f32 %v1103, %v1391
        %v1393 = vpop.f32.mrb[0].mxu0
        %1394 = vmatprep.mubr.bf16.mxu0 0
        %1395 = vmatmul.mubr.bf16.gmra.mrb[0].mxu0 %v968
        %v1396 = vpop.f32.mrb[0].mxu0
        %v1397 = vadd.f32 %v1108, %v1396
        %v1398 = vpop.f32.mrb[0].mxu0
        %v1399 = vpop.f32.mrb[0].mxu0
        %v1400 = vadd.f32 %v1111, %v1399
        %v1401 = vpop.f32.mrb[0].mxu0
        %1402 = vmatprep.mubr.bf16.mxu0 0
        %1403 = vmatmul.mubr.bf16.gmra.mrb[0].mxu0 %v971
        %v1404 = vpop.f32.mrb[0].mxu0
        %v1405 = vadd.f32 %v1116, %v1404
        %v1406 = vpop.f32.mrb[0].mxu0
        %v1407 = vpop.f32.mrb[0].mxu0
        %v1408 = vadd.f32 %v1119, %v1407
        %v1409 = vpop.f32.mrb[0].mxu0
        %1410 = vmatprep.mubr.bf16.mxu0 0
        %1411 = vmatmul.mubr.bf16.gmra.mrb[0].mxu0 %v974
        %v1412 = vpop.f32.mrb[0].mxu0
        %v1413 = vadd.f32 %v1124, %v1412
        %v1414 = vpop.f32.mrb[0].mxu0
        %v1415 = vpop.f32.mrb[0].mxu0
        %v1416 = vadd.f32 %v1127, %v1415
        %v1417 = vpop.f32.mrb[0].mxu0
        %1418 = vmatprep.mubr.bf16.mxu0 0
        %1419 = vmatmul.mubr.bf16.gmra.mrb[0].mxu0 %v977
        %v1420 = vpop.f32.mrb[0].mxu0
        %v1421 = vadd.f32 %v1132, %v1420
        %v1422 = vpop.f32.mrb[0].mxu0
        %v1423 = vpop.f32.mrb[0].mxu0
        %v1424 = vadd.f32 %v1135, %v1423
        %v1425 = vpop.f32.mrb[0].mxu0
        %1426 = vmatprep.mubr.bf16.mxu0 0
        %1427 = vmatmul.mubr.bf16.gmra.mrb[0].mxu0 %v980
        %v1428 = vpop.f32.mrb[0].mxu0
        %v1429 = vadd.f32 %v1140, %v1428
        %v1430 = vpop.f32.mrb[0].mxu0
        %v1431 = vpop.f32.mrb[0].mxu0
        %v1432 = vadd.f32 %v1143, %v1431
        %v1433 = vpop.f32.mrb[0].mxu0
        %1434 = vmatprep.mubr.bf16.mxu0 0
        %1435 = vmatmul.mubr.bf16.gmra.mrb[0].mxu0 %v983
        %v1436 = vpop.f32.mrb[0].mxu0
        %v1437 = vadd.f32 %v1148, %v1436
        %v1438 = vpop.f32.mrb[0].mxu0
        %v1439 = vpop.f32.mrb[0].mxu0
        %v1440 = vadd.f32 %v1151, %v1439
        %v1441 = vpop.f32.mrb[0].mxu0
        %1442 = vmatprep.mubr.bf16.mxu0 0
        %1443 = vmatmul.mubr.bf16.gmra.mrb[0].mxu0 %v986
        %v1444 = vpop.f32.mrb[0].mxu0
        %v1445 = vadd.f32 %v1156, %v1444
        %v1446 = vpop.f32.mrb[0].mxu0
        %v1447 = vpop.f32.mrb[0].mxu0
        %v1448 = vadd.f32 %v1159, %v1447
        %v1449 = vpop.f32.mrb[0].mxu0
        %1450 = vmatprep.mubr.bf16.mxu0 0
        %1451 = vmatmul.mubr.bf16.gmra.mrb[0].mxu0 %v989
        %v1452 = vpop.f32.mrb[0].mxu0
        %v1453 = vadd.f32 %v1164, %v1452
        %v1454 = vpop.f32.mrb[0].mxu0
        %v1455 = vpop.f32.mrb[0].mxu0
        %v1456 = vadd.f32 %v1167, %v1455
        %v1457 = vpop.f32.mrb[0].mxu0
        %1458 = vmatprep.mubr.bf16.mxu0 0
        %1459 = vmatmul.mubr.bf16.gmra.mrb[0].mxu0 %v992
        %v1460 = vpop.f32.mrb[0].mxu0
        %v1461 = vadd.f32 %v1172, %v1460
        %v1462 = vpop.f32.mrb[0].mxu0
        %v1463 = vpop.f32.mrb[0].mxu0
        %v1464 = vadd.f32 %v1175, %v1463
        %v1465 = vpop.f32.mrb[0].mxu0
        %1466 = vmatprep.mubr.bf16.mxu0 0
        %1467 = vmatmul.mubr.bf16.gmra.mrb[0].mxu0 %v995
        %v1468 = vpop.f32.mrb[0].mxu0
        %v1469 = vadd.f32 %v1180, %v1468
        %v1470 = vpop.f32.mrb[0].mxu0
        %v1471 = vpop.f32.mrb[0].mxu0
        %v1472 = vadd.f32 %v1183, %v1471
        %v1473 = vpop.f32.mrb[0].mxu0
        %1474 = vmatprep.mubr.bf16.mxu0 0
        %1475 = vmatmul.mubr.bf16.gmra.mrb[0].mxu0 %v998
        %v1476 = vpop.f32.mrb[0].mxu0
        %v1477 = vadd.f32 %v1188, %v1476
        %v1478 = vpop.f32.mrb[0].mxu0
        %v1479 = vpop.f32.mrb[0].mxu0
        %v1480 = vadd.f32 %v1191, %v1479
        %v1481 = vpop.f32.mrb[0].mxu0
        %1482 = vmatprep.mubr.bf16.mxu0 0
        %1483 = vmatmul.mubr.bf16.gmra.mrb[0].mxu0 %v1001
        %v1484 = vpop.f32.mrb[0].mxu0
        %v1485 = vadd.f32 %v1196, %v1484
        %v1486 = vpop.f32.mrb[0].mxu0
        %v1487 = vpop.f32.mrb[0].mxu0
        %v1488 = vadd.f32 %v1199, %v1487
        %v1489 = vpop.f32.mrb[0].mxu0
        %1490 = vmatprep.mubr.bf16.mxu0 0
        %1491 = vmatmul.mubr.bf16.gmra.mrb[0].mxu0 %v1004
        %v1492 = vpop.f32.mrb[0].mxu0
        %v1493 = vadd.f32 %v1204, %v1492
        %v1494 = vpop.f32.mrb[0].mxu0
        %v1495 = vpop.f32.mrb[0].mxu0
        %v1496 = vadd.f32 %v1207, %v1495
        %v1497 = vpop.f32.mrb[0].mxu0
        %1498 = vmatprep.mubr.bf16.mxu0 0
        %1499 = vmatmul.mubr.bf16.gmra.mrb[0].mxu0 %v1007
        %v1500 = vpop.f32.mrb[0].mxu0
        %v1501 = vadd.f32 %v1212, %v1500
        %v1502 = vpop.f32.mrb[0].mxu0
        %v1503 = vpop.f32.mrb[0].mxu0
        %v1504 = vadd.f32 %v1215, %v1503
        %v1505 = vpop.f32.mrb[0].mxu0
        %1506 = vmatprep.mubr.bf16.mxu0 0
        %1507 = vmatmul.mubr.bf16.gmra.mrb[0].mxu0 %v1010
        %v1508 = vpop.f32.mrb[0].mxu0
        %v1509 = vadd.f32 %v1220, %v1508
        %v1510 = vpop.f32.mrb[0].mxu0
        %v1511 = vpop.f32.mrb[0].mxu0
        %v1512 = vadd.f32 %v1223, %v1511
        %v1513 = vpop.f32.mrb[0].mxu0
        %1514 = vmatprep.mubr.bf16.mxu0 0
        %1515 = vmatmul.mubr.bf16.gmra.mrb[0].mxu0 %v1013
        %v1516 = vpop.f32.mrb[0].mxu0
        %v1517 = vadd.f32 %v1228, %v1516
        %v1518 = vpop.f32.mrb[0].mxu0
        %v1519 = vpop.f32.mrb[0].mxu0
        %v1520 = vadd.f32 %v1231, %v1519
        %v1521 = vpop.f32.mrb[0].mxu0
        %1522 = vmatprep.mubr.bf16.mxu0 0
        %1523 = vmatmul.mubr.bf16.gmra.mrb[0].mxu0 %v1016
        %v1524 = vpop.f32.mrb[0].mxu0
        %v1525 = vadd.f32 %v1236, %v1524
        %v1526 = vpop.f32.mrb[0].mxu0
        %v1527 = vpop.f32.mrb[0].mxu0
        %v1528 = vadd.f32 %v1239, %v1527
        %v1529 = vpop.f32.mrb[0].mxu0
        %1530 = vmatprep.mubr.bf16.mxu0 0
        %1531 = vmatmul.mubr.bf16.gmra.mrb[0].mxu0 %v1019
        %v1532 = vpop.f32.mrb[0].mxu0
        %v1533 = vadd.f32 %v1244, %v1532
        %v1534 = vpop.f32.mrb[0].mxu0
        %v1535 = vpop.f32.mrb[0].mxu0
        %v1536 = vadd.f32 %v1247, %v1535
        %v1537 = vpop.f32.mrb[0].mxu0
        %1538 = vmatprep.mubr.bf16.mxu0 0
        %1539 = vmatmul.mubr.bf16.gmra.mrb[0].mxu0 %v1022
        %v1540 = vpop.f32.mrb[0].mxu0
        %v1541 = vadd.f32 %v1252, %v1540
        %v1542 = vpop.f32.mrb[0].mxu0
        %v1543 = vpop.f32.mrb[0].mxu0
        %v1544 = vadd.f32 %v1255, %v1543
        %v1545 = vpop.f32.mrb[0].mxu0
        %1546 = vmatprep.mubr.bf16.mxu0 0
        %1547 = vmatmul.mubr.bf16.gmra.mrb[0].mxu0 %v1025
        %v1548 = vpop.f32.mrb[0].mxu0
        %v1549 = vadd.f32 %v1260, %v1548
        %v1550 = vpop.f32.mrb[0].mxu0
        %v1551 = vpop.f32.mrb[0].mxu0
        %v1552 = vadd.f32 %v1263, %v1551
        %v1553 = vpop.f32.mrb[0].mxu0
        %1554 = vmatprep.mubr.bf16.mxu0 0
        %1555 = vmatmul.mubr.bf16.gmra.mrb[0].mxu0 %v1028
        %v1556 = vpop.f32.mrb[0].mxu0
        %v1557 = vadd.f32 %v1268, %v1556
        %v1558 = vpop.f32.mrb[0].mxu0
        %v1559 = vpop.f32.mrb[0].mxu0
        %v1560 = vadd.f32 %v1271, %v1559
        %v1561 = vpop.f32.mrb[0].mxu0
        %1562 = vmatprep.mubr.bf16.mxu0 0
        %1563 = vmatmul.mubr.bf16.gmra.mrb[0].mxu0 %v1031
        %v1564 = vpop.f32.mrb[0].mxu0
        %v1565 = vadd.f32 %v1276, %v1564
        %v1566 = vpop.f32.mrb[0].mxu0
        %v1567 = vpop.f32.mrb[0].mxu0
        %v1568 = vadd.f32 %v1279, %v1567
        %v1569 = vpop.f32.mrb[0].mxu0
        %1570 = vmatprep.mubr.bf16.mxu0 0
        %1571 = vmatmul.mubr.bf16.gmra.mrb[0].mxu0 %v1034
        %v1572 = vpop.f32.mrb[0].mxu0
        %v1573 = vadd.f32 %v1284, %v1572
        %v1574 = vpop.f32.mrb[0].mxu0
        %v1575 = vpop.f32.mrb[0].mxu0
        %v1576 = vadd.f32 %v1287, %v1575
        %v1577 = vpop.f32.mrb[0].mxu0
        %1578 = vmatprep.mubr.bf16.mxu0 0
        %1579 = vmatmul.mubr.bf16.gmra.mrb[0].mxu0 %v1037
        %v1580 = vpop.f32.mrb[0].mxu0
        %v1581 = vadd.f32 %v1292, %v1580
        %v1582 = vpop.f32.mrb[0].mxu0
        %v1583 = vpop.f32.mrb[0].mxu0
        %v1584 = vadd.f32 %v1295, %v1583
        %v1585 = vpop.f32.mrb[0].mxu0
        %1586 = vmatprep.mubr.bf16.mxu0 0
        %1587 = vmatmul.mubr.bf16.gmra.mrb[0].mxu0 %v1040
        %v1588 = vpop.f32.mrb[0].mxu0
        %v1589 = vadd.f32 %v1300, %v1588
        %v1590 = vpop.f32.mrb[0].mxu0
        %v1591 = vpop.f32.mrb[0].mxu0
        %v1592 = vadd.f32 %v1303, %v1591
        %v1593 = vpop.f32.mrb[0].mxu0
        %1594 = vmatprep.mubr.bf16.mxu0 0
        %1595 = vmatmul.mubr.bf16.gmra.mrb[0].mxu0 %v1043
        %v1596 = vpop.f32.mrb[0].mxu0
        %v1597 = vadd.f32 %v1308, %v1596
        %v1598 = vpop.f32.mrb[0].mxu0
        %v1599 = vpop.f32.mrb[0].mxu0
        %v1600 = vadd.f32 %v1311, %v1599
        %v1601 = vpop.f32.mrb[0].mxu0
        %1602 = vmatprep.mubr.bf16.mxu0 0
        %1603 = vmatmul.mubr.bf16.gmra.mrb[0].mxu0 %v1046
        %v1604 = vpop.f32.mrb[0].mxu0
        %v1605 = vadd.f32 %v1316, %v1604
        %v1606 = vpop.f32.mrb[0].mxu0
        %v1607 = vpop.f32.mrb[0].mxu0
        %v1608 = vadd.f32 %v1319, %v1607
        %v1609 = vpop.f32.mrb[0].mxu0
        %1610 = vmatprep.mubr.bf16.mxu0 0
        %1611 = vmatmul.mubr.bf16.gmra.mrb[0].mxu0 %v1049
        %v1612 = vpop.f32.mrb[0].mxu0
        %v1613 = vadd.f32 %v1324, %v1612
        %v1614 = vpop.f32.mrb[0].mxu0
        %v1615 = vpop.f32.mrb[0].mxu0
        %v1616 = vadd.f32 %v1327, %v1615
        %v1617 = vpop.f32.mrb[0].mxu0
        %1618 = vmatprep.mubr.bf16.mxu0 0
        %1619 = vmatmul.mubr.bf16.gmra.mrb[0].mxu0 %v1052
        %v1620 = vpop.f32.mrb[0].mxu0
        %v1621 = vadd.f32 %v1332, %v1620
        %v1622 = vpop.f32.mrb[0].mxu0
        %v1623 = vpop.f32.mrb[0].mxu0
        %v1624 = vadd.f32 %v1335, %v1623
        %v1625 = vpop.f32.mrb[0].mxu0
        %1626 = vmatprep.mubr.bf16.mxu0 0
        %1627 = vmatmul.mubr.bf16.gmra.mrb[0].mxu0 %v1055
        %v1628 = vpop.f32.mrb[0].mxu0
        %v1629 = vadd.f32 %v1340, %v1628
        %v1630 = vpop.f32.mrb[0].mxu0
        %v1631 = vpop.f32.mrb[0].mxu0
        %v1632 = vadd.f32 %v1343, %v1631
        %v1633 = vpop.f32.mrb[0].mxu0
        %1634 = vdwg.mxu0
        %v1635 = vmax.f32 %v1381, 0.0
        %v1636 = vmax.f32 %v1384, 0.0
        %v1637 = vmax.f32 %v1389, 0.0
        %v1638 = vmax.f32 %v1392, 0.0
        %v1639 = vmax.f32 %v1397, 0.0
        %v1640 = vmax.f32 %v1400, 0.0
        %v1641 = vmax.f32 %v1405, 0.0
        %v1642 = vmax.f32 %v1408, 0.0
        %v1643 = vmax.f32 %v1413, 0.0
        %v1644 = vmax.f32 %v1416, 0.0
        %v1645 = vmax.f32 %v1421, 0.0
        %v1646 = vmax.f32 %v1424, 0.0
        %v1647 = vmax.f32 %v1429, 0.0
        %v1648 = vmax.f32 %v1432, 0.0
        %v1649 = vmax.f32 %v1437, 0.0
        %v1650 = vmax.f32 %v1440, 0.0
        %v1651 = vmax.f32 %v1445, 0.0
        %v1652 = vmax.f32 %v1448, 0.0
        %v1653 = vmax.f32 %v1453, 0.0
        %v1654 = vmax.f32 %v1456, 0.0
        %v1655 = vmax.f32 %v1461, 0.0
        %v1656 = vmax.f32 %v1464, 0.0
        %v1657 = vmax.f32 %v1469, 0.0
        %v1658 = vmax.f32 %v1472, 0.0
        %v1659 = vmax.f32 %v1477, 0.0
        %v1660 = vmax.f32 %v1480, 0.0
        %v1661 = vmax.f32 %v1485, 0.0
        %v1662 = vmax.f32 %v1488, 0.0
        %v1663 = vmax.f32 %v1493, 0.0
        %v1664 = vmax.f32 %v1496, 0.0
        %v1665 = vmax.f32 %v1501, 0.0
        %v1666 = vmax.f32 %v1504, 0.0
        %v1667 = vmax.f32 %v1509, 0.0
        %v1668 = vmax.f32 %v1512, 0.0
        %v1669 = vmax.f32 %v1517, 0.0
        %v1670 = vmax.f32 %v1520, 0.0
        %v1671 = vmax.f32 %v1525, 0.0
        %v1672 = vmax.f32 %v1528, 0.0
        %v1673 = vmax.f32 %v1533, 0.0
        %v1674 = vmax.f32 %v1536, 0.0
        %v1675 = vmax.f32 %v1541, 0.0
        %v1676 = vmax.f32 %v1544, 0.0
        %v1677 = vmax.f32 %v1549, 0.0
        %v1678 = vmax.f32 %v1552, 0.0
        %v1679 = vmax.f32 %v1557, 0.0
        %v1680 = vmax.f32 %v1560, 0.0
        %v1681 = vmax.f32 %v1565, 0.0
        %v1682 = vmax.f32 %v1568, 0.0
        %v1683 = vmax.f32 %v1573, 0.0
        %v1684 = vmax.f32 %v1576, 0.0
        %v1685 = vmax.f32 %v1581, 0.0
        %v1686 = vmax.f32 %v1584, 0.0
        %v1687 = vmax.f32 %v1589, 0.0
        %v1688 = vmax.f32 %v1592, 0.0
        %v1689 = vmax.f32 %v1597, 0.0
        %v1690 = vmax.f32 %v1600, 0.0
        %v1691 = vmax.f32 %v1605, 0.0
        %v1692 = vmax.f32 %v1608, 0.0
        %v1693 = vmax.f32 %v1613, 0.0
        %v1694 = vmax.f32 %v1616, 0.0
        %v1695 = vmax.f32 %v1621, 0.0
        %v1696 = vmax.f32 %v1624, 0.0
        %v1697 = vmax.f32 %v1629, 0.0
        %v1698 = vmax.f32 %v1632, 0.0
        %v1699 = vpack.c.bf16 %v1636, %v1635
        %v1700 = vpack.c.bf16 %v1638, %v1637
        %v1701 = vpack.c.bf16 %v1640, %v1639
        %v1702 = vpack.c.bf16 %v1642, %v1641
        %v1703 = vpack.c.bf16 %v1644, %v1643
        %v1704 = vpack.c.bf16 %v1646, %v1645
        %v1705 = vpack.c.bf16 %v1648, %v1647
        %v1706 = vpack.c.bf16 %v1650, %v1649
        %v1707 = vpack.c.bf16 %v1652, %v1651
        %v1708 = vpack.c.bf16 %v1654, %v1653
        %v1709 = vpack.c.bf16 %v1656, %v1655
        %v1710 = vpack.c.bf16 %v1658, %v1657
        %v1711 = vpack.c.bf16 %v1660, %v1659
        %v1712 = vpack.c.bf16 %v1662, %v1661
        %v1713 = vpack.c.bf16 %v1664, %v1663
        %v1714 = vpack.c.bf16 %v1666, %v1665
        %v1715 = vpack.c.bf16 %v1668, %v1667
        %v1716 = vpack.c.bf16 %v1670, %v1669
        %v1717 = vpack.c.bf16 %v1672, %v1671
        %v1718 = vpack.c.bf16 %v1674, %v1673
        %v1719 = vpack.c.bf16 %v1676, %v1675
        %v1720 = vpack.c.bf16 %v1678, %v1677
        %v1721 = vpack.c.bf16 %v1680, %v1679
        %v1722 = vpack.c.bf16 %v1682, %v1681
        %v1723 = vpack.c.bf16 %v1684, %v1683
        %v1724 = vpack.c.bf16 %v1686, %v1685
        %v1725 = vpack.c.bf16 %v1688, %v1687
        %v1726 = vpack.c.bf16 %v1690, %v1689
        %v1727 = vpack.c.bf16 %v1692, %v1691
        %v1728 = vpack.c.bf16 %v1694, %v1693
        %v1729 = vpack.c.bf16 %v1696, %v1695
        %v1730 = vpack.c.bf16 %v1698, %v1697
        %v1763 = vunpack.c.l.b16 %v1699
        %v1764 = vunpack.c.h.b16 %v1699
        %v1765 = vunpack.c.l.b16 %v1700
        %v1766 = vunpack.c.h.b16 %v1700
        %v1767 = vunpack.c.l.b16 %v1701
        %v1768 = vunpack.c.h.b16 %v1701
        %v1769 = vunpack.c.l.b16 %v1702
        %v1770 = vunpack.c.h.b16 %v1702
        %v1771 = vunpack.c.l.b16 %v1703
        %v1772 = vunpack.c.h.b16 %v1703
        %v1773 = vunpack.c.l.b16 %v1704
        %v1774 = vunpack.c.h.b16 %v1704
        %v1775 = vunpack.c.l.b16 %v1705
        %v1776 = vunpack.c.h.b16 %v1705
        %v1777 = vunpack.c.l.b16 %v1706
        %v1778 = vunpack.c.h.b16 %v1706
        %v1779 = vunpack.c.l.b16 %v1707
        %v1780 = vunpack.c.h.b16 %v1707
        %v1781 = vunpack.c.l.b16 %v1708
        %v1782 = vunpack.c.h.b16 %v1708
        %v1783 = vunpack.c.l.b16 %v1709
        %v1784 = vunpack.c.h.b16 %v1709
        %v1785 = vunpack.c.l.b16 %v1710
        %v1786 = vunpack.c.h.b16 %v1710
        %v1787 = vunpack.c.l.b16 %v1711
        %v1788 = vunpack.c.h.b16 %v1711
        %v1789 = vunpack.c.l.b16 %v1712
        %v1790 = vunpack.c.h.b16 %v1712
        %v1791 = vunpack.c.l.b16 %v1713
        %v1792 = vunpack.c.h.b16 %v1713
        %v1793 = vunpack.c.l.b16 %v1714
        %v1794 = vunpack.c.h.b16 %v1714
        %v1795 = vunpack.c.l.b16 %v1715
        %v1796 = vunpack.c.h.b16 %v1715
        %v1797 = vunpack.c.l.b16 %v1716
        %v1798 = vunpack.c.h.b16 %v1716
        %v1799 = vunpack.c.l.b16 %v1717
        %v1800 = vunpack.c.h.b16 %v1717
        %v1801 = vunpack.c.l.b16 %v1718
        %v1802 = vunpack.c.h.b16 %v1718
        %v1803 = vunpack.c.l.b16 %v1719
        %v1804 = vunpack.c.h.b16 %v1719
        %v1805 = vunpack.c.l.b16 %v1720
        %v1806 = vunpack.c.h.b16 %v1720
        %v1807 = vunpack.c.l.b16 %v1721
        %v1808 = vunpack.c.h.b16 %v1721
        %v1809 = vunpack.c.l.b16 %v1722
        %v1810 = vunpack.c.h.b16 %v1722
        %v1811 = vunpack.c.l.b16 %v1723
        %v1812 = vunpack.c.h.b16 %v1723
        %v1813 = vunpack.c.l.b16 %v1724
        %v1814 = vunpack.c.h.b16 %v1724
        %v1815 = vunpack.c.l.b16 %v1725
        %v1816 = vunpack.c.h.b16 %v1725
        %v1817 = vunpack.c.l.b16 %v1726
        %v1818 = vunpack.c.h.b16 %v1726
        %v1819 = vunpack.c.l.b16 %v1727
        %v1820 = vunpack.c.h.b16 %v1727
        %v1821 = vunpack.c.l.b16 %v1728
        %v1822 = vunpack.c.h.b16 %v1728
        %v1823 = vunpack.c.l.b16 %v1729
        %v1824 = vunpack.c.h.b16 %v1729
        %v1825 = vunpack.c.l.b16 %v1730
        %v1826 = vunpack.c.h.b16 %v1730
        %v1827 = vpack.c.b16 %v1763, %v1763
        %v1828 = vpack.c.b16 %v1764, %v1764
        %v1829 = vpack.c.b16 %v1765, %v1765
        %v1830 = vpack.c.b16 %v1766, %v1766
        %v1831 = vpack.c.b16 %v1767, %v1767
        %v1832 = vpack.c.b16 %v1768, %v1768
        %v1833 = vpack.c.b16 %v1769, %v1769
        %v1834 = vpack.c.b16 %v1770, %v1770
        %v1835 = vpack.c.b16 %v1771, %v1771
        %v1836 = vpack.c.b16 %v1772, %v1772
        %v1837 = vpack.c.b16 %v1773, %v1773
        %v1838 = vpack.c.b16 %v1774, %v1774
        %v1839 = vpack.c.b16 %v1775, %v1775
        %v1840 = vpack.c.b16 %v1776, %v1776
        %v1841 = vpack.c.b16 %v1777, %v1777
        %v1842 = vpack.c.b16 %v1778, %v1778
        %v1843 = vpack.c.b16 %v1779, %v1779
        %v1844 = vpack.c.b16 %v1780, %v1780
        %v1845 = vpack.c.b16 %v1781, %v1781
        %v1846 = vpack.c.b16 %v1782, %v1782
        %v1847 = vpack.c.b16 %v1783, %v1783
        %v1848 = vpack.c.b16 %v1784, %v1784
        %v1849 = vpack.c.b16 %v1785, %v1785
        %v1850 = vpack.c.b16 %v1786, %v1786
        %v1851 = vpack.c.b16 %v1787, %v1787
        %v1852 = vpack.c.b16 %v1788, %v1788
        %v1853 = vpack.c.b16 %v1789, %v1789
        %v1854 = vpack.c.b16 %v1790, %v1790
        %v1855 = vpack.c.b16 %v1791, %v1791
        %v1856 = vpack.c.b16 %v1792, %v1792
        %v1857 = vpack.c.b16 %v1793, %v1793
        %v1858 = vpack.c.b16 %v1794, %v1794
        %v1859 = vpack.c.b16 %v1795, %v1795
        %v1860 = vpack.c.b16 %v1796, %v1796
        %v1861 = vpack.c.b16 %v1797, %v1797
        %v1862 = vpack.c.b16 %v1798, %v1798
        %v1863 = vpack.c.b16 %v1799, %v1799
        %v1864 = vpack.c.b16 %v1800, %v1800
        %v1865 = vpack.c.b16 %v1801, %v1801
        %v1866 = vpack.c.b16 %v1802, %v1802
        %v1867 = vpack.c.b16 %v1803, %v1803
        %v1868 = vpack.c.b16 %v1804, %v1804
        %v1869 = vpack.c.b16 %v1805, %v1805
        %v1870 = vpack.c.b16 %v1806, %v1806
        %v1871 = vpack.c.b16 %v1807, %v1807
        %v1872 = vpack.c.b16 %v1808, %v1808
        %v1873 = vpack.c.b16 %v1809, %v1809
        %v1874 = vpack.c.b16 %v1810, %v1810
        %v1875 = vpack.c.b16 %v1811, %v1811
        %v1876 = vpack.c.b16 %v1812, %v1812
        %v1877 = vpack.c.b16 %v1813, %v1813
        %v1878 = vpack.c.b16 %v1814, %v1814
        %v1879 = vpack.c.b16 %v1815, %v1815
        %v1880 = vpack.c.b16 %v1816, %v1816
        %v1881 = vpack.c.b16 %v1817, %v1817
        %v1882 = vpack.c.b16 %v1818, %v1818
        %v1883 = vpack.c.b16 %v1819, %v1819
        %v1884 = vpack.c.b16 %v1820, %v1820
        %v1885 = vpack.c.b16 %v1821, %v1821
        %v1886 = vpack.c.b16 %v1822, %v1822
        %v1887 = vpack.c.b16 %v1823, %v1823
        %v1888 = vpack.c.b16 %v1824, %v1824
        %v1889 = vpack.c.b16 %v1825, %v1825
        %v1890 = vpack.c.b16 %v1826, %v1826
        %vm1955 = vcmask 519168
        %1956 = vst.msk [vmem:[%s177] sm:$0xf] %vm1955, %v1827
        %1957 = vst.msk [vmem:[%s177 + $0x4] sm:$0xf] %vm1955, %v1828
        %1958 = vst.msk [vmem:[%s177 + $0x8] sm:$0xf] %vm1955, %v1829
        %1959 = vst.msk [vmem:[%s177 + $0xc] sm:$0xf] %vm1955, %v1830
        %1960 = vst.msk [vmem:[%s177 + $0x10] sm:$0xf] %vm1955, %v1831
        %1961 = vst.msk [vmem:[%s177 + $0x14] sm:$0xf] %vm1955, %v1832
        %1962 = vst.msk [vmem:[%s177 + $0x18] sm:$0xf] %vm1955, %v1833
        %1963 = vst.msk [vmem:[%s177 + $0x1c] sm:$0xf] %vm1955, %v1834
        %1964 = vst.msk [vmem:[%s177 + $0x20] sm:$0xf] %vm1955, %v1835
        %1965 = vst.msk [vmem:[%s177 + $0x24] sm:$0xf] %vm1955, %v1836
        %1966 = vst.msk [vmem:[%s177 + $0x28] sm:$0xf] %vm1955, %v1837
        %1967 = vst.msk [vmem:[%s177 + $0x2c] sm:$0xf] %vm1955, %v1838
        %1968 = vst.msk [vmem:[%s177 + $0x30] sm:$0xf] %vm1955, %v1839
        %1969 = vst.msk [vmem:[%s177 + $0x34] sm:$0xf] %vm1955, %v1840
        %1970 = vst.msk [vmem:[%s177 + $0x38] sm:$0xf] %vm1955, %v1841
        %1971 = vst.msk [vmem:[%s177 + $0x3c] sm:$0xf] %vm1955, %v1842
        %1972 = vst.msk [vmem:[%s177 + $0x40] sm:$0xf] %vm1955, %v1843
        %1973 = vst.msk [vmem:[%s177 + $0x44] sm:$0xf] %vm1955, %v1844
        %1974 = vst.msk [vmem:[%s177 + $0x48] sm:$0xf] %vm1955, %v1845
        %1975 = vst.msk [vmem:[%s177 + $0x4c] sm:$0xf] %vm1955, %v1846
        %1976 = vst.msk [vmem:[%s177 + $0x50] sm:$0xf] %vm1955, %v1847
        %1977 = vst.msk [vmem:[%s177 + $0x54] sm:$0xf] %vm1955, %v1848
        %1978 = vst.msk [vmem:[%s177 + $0x58] sm:$0xf] %vm1955, %v1849
        %1979 = vst.msk [vmem:[%s177 + $0x5c] sm:$0xf] %vm1955, %v1850
        %1980 = vst.msk [vmem:[%s177 + $0x60] sm:$0xf] %vm1955, %v1851
        %1981 = vst.msk [vmem:[%s177 + $0x64] sm:$0xf] %vm1955, %v1852
        %1982 = vst.msk [vmem:[%s177 + $0x68] sm:$0xf] %vm1955, %v1853
        %1983 = vst.msk [vmem:[%s177 + $0x6c] sm:$0xf] %vm1955, %v1854
        %1984 = vst.msk [vmem:[%s177 + $0x70] sm:$0xf] %vm1955, %v1855
        %1985 = vst.msk [vmem:[%s177 + $0x74] sm:$0xf] %vm1955, %v1856
        %1986 = vst.msk [vmem:[%s177 + $0x78] sm:$0xf] %vm1955, %v1857
        %1987 = vst.msk [vmem:[%s177 + $0x7c] sm:$0xf] %vm1955, %v1858
        %1988 = vst.msk [vmem:[%s177 + $0x80] sm:$0xf] %vm1955, %v1859
        %1989 = vst.msk [vmem:[%s177 + $0x84] sm:$0xf] %vm1955, %v1860
        %1990 = vst.msk [vmem:[%s177 + $0x88] sm:$0xf] %vm1955, %v1861
        %1991 = vst.msk [vmem:[%s177 + $0x8c] sm:$0xf] %vm1955, %v1862
        %1992 = vst.msk [vmem:[%s177 + $0x90] sm:$0xf] %vm1955, %v1863
        %1993 = vst.msk [vmem:[%s177 + $0x94] sm:$0xf] %vm1955, %v1864
        %1994 = vst.msk [vmem:[%s177 + $0x98] sm:$0xf] %vm1955, %v1865
        %1995 = vst.msk [vmem:[%s177 + $0x9c] sm:$0xf] %vm1955, %v1866
        %1996 = vst.msk [vmem:[%s177 + $0xa0] sm:$0xf] %vm1955, %v1867
        %1997 = vst.msk [vmem:[%s177 + $0xa4] sm:$0xf] %vm1955, %v1868
        %1998 = vst.msk [vmem:[%s177 + $0xa8] sm:$0xf] %vm1955, %v1869
        %1999 = vst.msk [vmem:[%s177 + $0xac] sm:$0xf] %vm1955, %v1870
        %2000 = vst.msk [vmem:[%s177 + $0xb0] sm:$0xf] %vm1955, %v1871
        %2001 = vst.msk [vmem:[%s177 + $0xb4] sm:$0xf] %vm1955, %v1872
        %2002 = vst.msk [vmem:[%s177 + $0xb8] sm:$0xf] %vm1955, %v1873
        %2003 = vst.msk [vmem:[%s177 + $0xbc] sm:$0xf] %vm1955, %v1874
        %2004 = vst.msk [vmem:[%s177 + $0xc0] sm:$0xf] %vm1955, %v1875
        %2005 = vst.msk [vmem:[%s177 + $0xc4] sm:$0xf] %vm1955, %v1876
        %2006 = vst.msk [vmem:[%s177 + $0xc8] sm:$0xf] %vm1955, %v1877
        %2007 = vst.msk [vmem:[%s177 + $0xcc] sm:$0xf] %vm1955, %v1878
        %2008 = vst.msk [vmem:[%s177 + $0xd0] sm:$0xf] %vm1955, %v1879
        %2009 = vst.msk [vmem:[%s177 + $0xd4] sm:$0xf] %vm1955, %v1880
        %2010 = vst.msk [vmem:[%s177 + $0xd8] sm:$0xf] %vm1955, %v1881
        %2011 = vst.msk [vmem:[%s177 + $0xdc] sm:$0xf] %vm1955, %v1882
        %2012 = vst.msk [vmem:[%s177 + $0xe0] sm:$0xf] %vm1955, %v1883
        %2013 = vst.msk [vmem:[%s177 + $0xe4] sm:$0xf] %vm1955, %v1884
        %2014 = vst.msk [vmem:[%s177 + $0xe8] sm:$0xf] %vm1955, %v1885
        %2015 = vst.msk [vmem:[%s177 + $0xec] sm:$0xf] %vm1955, %v1886
        %2016 = vst.msk [vmem:[%s177 + $0xf0] sm:$0xf] %vm1955, %v1887
        %2017 = vst.msk [vmem:[%s177 + $0xf4] sm:$0xf] %vm1955, %v1888
        %2018 = vst.msk [vmem:[%s177 + $0xf8] sm:$0xf] %vm1955, %v1889
        %2019 = vst.msk [vmem:[%s177 + $0xfc] sm:$0xf] %vm1955, %v1890
        %s2020 = sand.u32 %s90, 1
        %s2021 = sand.u32 %s90, 1
        %s2022 = smul.addr %s2021, 256
        %s2023 = scalar_lea.vmem [#allocation2], %s2022
        // Predicated region
        $region33: #{dqn_forward.5} parent=31 // pred_check
          %p2024 = pneg %p100
        $region34: #{dqn_forward.5} parent=31 // pred_check_branch
          %2026 = sbr.rel (%p2024) target = $region36
        $region35: #{dqn_forward.5} parent=31 // pred_region
          %s2027 = smul.u32 64, %s14
          %s2028 = ssub.s32 100, %s2027
          %p2029 = scmp.lt.s32.totalorder %s2028, 64
          %s2030 = scalar_select %p2029, %s2028, 64
          %s2031 = smul.u32 64, %s2030
          %p2032 = scmp.ne.s32.totalorder 0, %s2031
          %s2033 = smul.addr %s2027, 4
          %s2034 = scalar_lea.vmem %s3, %s2033
          // Predicated region
          $region37: #{dqn_forward.5} parent=35 // pred_check
            %p2035 = pneg %p2032
          $region38: #{dqn_forward.5} parent=35 // pred_check_branch
            %2037 = sbr.rel (%p2035) target = $region40
          $region39: #{dqn_forward.5} parent=35 // pred_region
            // Predicated region
            $region41: #{dqn_forward.5} parent=39 // pred_check
              _
            $region42: #{dqn_forward.5} parent=39 // pred_check_branch
              %2039 = sbr.rel target = $region44
            $region43: #{dqn_forward.5} parent=39 // pred_region
              // Predicated region
              $region63: #{dqn_forward.5} parent=43 // pred_check
                _
              $region64: #{dqn_forward.5} parent=43 // pred_check_branch
                %2214 = sbr.rel (0) target = $region66
              $region65: #{dqn_forward.5} parent=43 // pred_region
                %s2216 = sshrl.u32 %s2030, 6
                // While loop
                $region67: #{dqn_forward.5} parent=65 // loop_pre_header
                  _
                $region68: #{dqn_forward.5} parent=65 // loop_header
                  %s2218 = sphi 0, %s2220
                  %p2219 = scmp.ge.s32.totalorder %s2218, %s2216
                  %s2223 = sphi 0, %s2356
                  %s2224 = sphi %s2023, %s2359
                  %s2225 = sphi %s2034, %s2360
                $region69: #{dqn_forward.5} parent=65 // loop_header_branch
                  %2222 = sbr.rel (%p2219) target = $region73
                $region70: #{dqn_forward.5} parent=65 // loop_body
                  %v2226 = vld [vmem:[%s2224] sm:$0xf]
                  %2227 = vst [vmem:[%s2225] sm:$0xf] %v2226
                  %v2228 = vld [vmem:[%s2224 + $0x4] sm:$0xf]
                  %2229 = vst [vmem:[%s2225 + $0x4] sm:$0xf] %v2228
                  %v2230 = vld [vmem:[%s2224 + $0x8] sm:$0xf]
                  %2231 = vst [vmem:[%s2225 + $0x8] sm:$0xf] %v2230
                  %v2232 = vld [vmem:[%s2224 + $0xc] sm:$0xf]
                  %2233 = vst [vmem:[%s2225 + $0xc] sm:$0xf] %v2232
                  %v2234 = vld [vmem:[%s2224 + $0x10] sm:$0xf]
                  %2235 = vst [vmem:[%s2225 + $0x10] sm:$0xf] %v2234
                  %v2236 = vld [vmem:[%s2224 + $0x14] sm:$0xf]
                  %2237 = vst [vmem:[%s2225 + $0x14] sm:$0xf] %v2236
                  %v2238 = vld [vmem:[%s2224 + $0x18] sm:$0xf]
                  %2239 = vst [vmem:[%s2225 + $0x18] sm:$0xf] %v2238
                  %v2240 = vld [vmem:[%s2224 + $0x1c] sm:$0xf]
                  %2241 = vst [vmem:[%s2225 + $0x1c] sm:$0xf] %v2240
                  %v2242 = vld [vmem:[%s2224 + $0x20] sm:$0xf]
                  %2243 = vst [vmem:[%s2225 + $0x20] sm:$0xf] %v2242
                  %v2244 = vld [vmem:[%s2224 + $0x24] sm:$0xf]
                  %2245 = vst [vmem:[%s2225 + $0x24] sm:$0xf] %v2244
                  %v2246 = vld [vmem:[%s2224 + $0x28] sm:$0xf]
                  %2247 = vst [vmem:[%s2225 + $0x28] sm:$0xf] %v2246
                  %v2248 = vld [vmem:[%s2224 + $0x2c] sm:$0xf]
                  %2249 = vst [vmem:[%s2225 + $0x2c] sm:$0xf] %v2248
                  %v2250 = vld [vmem:[%s2224 + $0x30] sm:$0xf]
                  %2251 = vst [vmem:[%s2225 + $0x30] sm:$0xf] %v2250
                  %v2252 = vld [vmem:[%s2224 + $0x34] sm:$0xf]
                  %2253 = vst [vmem:[%s2225 + $0x34] sm:$0xf] %v2252
                  %v2254 = vld [vmem:[%s2224 + $0x38] sm:$0xf]
                  %2255 = vst [vmem:[%s2225 + $0x38] sm:$0xf] %v2254
                  %v2256 = vld [vmem:[%s2224 + $0x3c] sm:$0xf]
                  %2257 = vst [vmem:[%s2225 + $0x3c] sm:$0xf] %v2256
                  %v2258 = vld [vmem:[%s2224 + $0x40] sm:$0xf]
                  %2259 = vst [vmem:[%s2225 + $0x40] sm:$0xf] %v2258
                  %v2260 = vld [vmem:[%s2224 + $0x44] sm:$0xf]
                  %2261 = vst [vmem:[%s2225 + $0x44] sm:$0xf] %v2260
                  %v2262 = vld [vmem:[%s2224 + $0x48] sm:$0xf]
                  %2263 = vst [vmem:[%s2225 + $0x48] sm:$0xf] %v2262
                  %v2264 = vld [vmem:[%s2224 + $0x4c] sm:$0xf]
                  %2265 = vst [vmem:[%s2225 + $0x4c] sm:$0xf] %v2264
                  %v2266 = vld [vmem:[%s2224 + $0x50] sm:$0xf]
                  %2267 = vst [vmem:[%s2225 + $0x50] sm:$0xf] %v2266
                  %v2268 = vld [vmem:[%s2224 + $0x54] sm:$0xf]
                  %2269 = vst [vmem:[%s2225 + $0x54] sm:$0xf] %v2268
                  %v2270 = vld [vmem:[%s2224 + $0x58] sm:$0xf]
                  %2271 = vst [vmem:[%s2225 + $0x58] sm:$0xf] %v2270
                  %v2272 = vld [vmem:[%s2224 + $0x5c] sm:$0xf]
                  %2273 = vst [vmem:[%s2225 + $0x5c] sm:$0xf] %v2272
                  %v2274 = vld [vmem:[%s2224 + $0x60] sm:$0xf]
                  %2275 = vst [vmem:[%s2225 + $0x60] sm:$0xf] %v2274
                  %v2276 = vld [vmem:[%s2224 + $0x64] sm:$0xf]
                  %2277 = vst [vmem:[%s2225 + $0x64] sm:$0xf] %v2276
                  %v2278 = vld [vmem:[%s2224 + $0x68] sm:$0xf]
                  %2279 = vst [vmem:[%s2225 + $0x68] sm:$0xf] %v2278
                  %v2280 = vld [vmem:[%s2224 + $0x6c] sm:$0xf]
                  %2281 = vst [vmem:[%s2225 + $0x6c] sm:$0xf] %v2280
                  %v2282 = vld [vmem:[%s2224 + $0x70] sm:$0xf]
                  %2283 = vst [vmem:[%s2225 + $0x70] sm:$0xf] %v2282
                  %v2284 = vld [vmem:[%s2224 + $0x74] sm:$0xf]
                  %2285 = vst [vmem:[%s2225 + $0x74] sm:$0xf] %v2284
                  %v2286 = vld [vmem:[%s2224 + $0x78] sm:$0xf]
                  %2287 = vst [vmem:[%s2225 + $0x78] sm:$0xf] %v2286
                  %v2288 = vld [vmem:[%s2224 + $0x7c] sm:$0xf]
                  %2289 = vst [vmem:[%s2225 + $0x7c] sm:$0xf] %v2288
                  %v2290 = vld [vmem:[%s2224 + $0x80] sm:$0xf]
                  %2291 = vst [vmem:[%s2225 + $0x80] sm:$0xf] %v2290
                  %v2292 = vld [vmem:[%s2224 + $0x84] sm:$0xf]
                  %2293 = vst [vmem:[%s2225 + $0x84] sm:$0xf] %v2292
                  %v2294 = vld [vmem:[%s2224 + $0x88] sm:$0xf]
                  %2295 = vst [vmem:[%s2225 + $0x88] sm:$0xf] %v2294
                  %v2296 = vld [vmem:[%s2224 + $0x8c] sm:$0xf]
                  %2297 = vst [vmem:[%s2225 + $0x8c] sm:$0xf] %v2296
                  %v2298 = vld [vmem:[%s2224 + $0x90] sm:$0xf]
                  %2299 = vst [vmem:[%s2225 + $0x90] sm:$0xf] %v2298
                  %v2300 = vld [vmem:[%s2224 + $0x94] sm:$0xf]
                  %2301 = vst [vmem:[%s2225 + $0x94] sm:$0xf] %v2300
                  %v2302 = vld [vmem:[%s2224 + $0x98] sm:$0xf]
                  %2303 = vst [vmem:[%s2225 + $0x98] sm:$0xf] %v2302
                  %v2304 = vld [vmem:[%s2224 + $0x9c] sm:$0xf]
                  %2305 = vst [vmem:[%s2225 + $0x9c] sm:$0xf] %v2304
                  %v2306 = vld [vmem:[%s2224 + $0xa0] sm:$0xf]
                  %2307 = vst [vmem:[%s2225 + $0xa0] sm:$0xf] %v2306
                  %v2308 = vld [vmem:[%s2224 + $0xa4] sm:$0xf]
                  %2309 = vst [vmem:[%s2225 + $0xa4] sm:$0xf] %v2308
                  %v2310 = vld [vmem:[%s2224 + $0xa8] sm:$0xf]
                  %2311 = vst [vmem:[%s2225 + $0xa8] sm:$0xf] %v2310
                  %v2312 = vld [vmem:[%s2224 + $0xac] sm:$0xf]
                  %2313 = vst [vmem:[%s2225 + $0xac] sm:$0xf] %v2312
                  %v2314 = vld [vmem:[%s2224 + $0xb0] sm:$0xf]
                  %2315 = vst [vmem:[%s2225 + $0xb0] sm:$0xf] %v2314
                  %v2316 = vld [vmem:[%s2224 + $0xb4] sm:$0xf]
                  %2317 = vst [vmem:[%s2225 + $0xb4] sm:$0xf] %v2316
                  %v2318 = vld [vmem:[%s2224 + $0xb8] sm:$0xf]
                  %2319 = vst [vmem:[%s2225 + $0xb8] sm:$0xf] %v2318
                  %v2320 = vld [vmem:[%s2224 + $0xbc] sm:$0xf]
                  %2321 = vst [vmem:[%s2225 + $0xbc] sm:$0xf] %v2320
                  %v2322 = vld [vmem:[%s2224 + $0xc0] sm:$0xf]
                  %2323 = vst [vmem:[%s2225 + $0xc0] sm:$0xf] %v2322
                  %v2324 = vld [vmem:[%s2224 + $0xc4] sm:$0xf]
                  %2325 = vst [vmem:[%s2225 + $0xc4] sm:$0xf] %v2324
                  %v2326 = vld [vmem:[%s2224 + $0xc8] sm:$0xf]
                  %2327 = vst [vmem:[%s2225 + $0xc8] sm:$0xf] %v2326
                  %v2328 = vld [vmem:[%s2224 + $0xcc] sm:$0xf]
                  %2329 = vst [vmem:[%s2225 + $0xcc] sm:$0xf] %v2328
                  %v2330 = vld [vmem:[%s2224 + $0xd0] sm:$0xf]
                  %2331 = vst [vmem:[%s2225 + $0xd0] sm:$0xf] %v2330
                  %v2332 = vld [vmem:[%s2224 + $0xd4] sm:$0xf]
                  %2333 = vst [vmem:[%s2225 + $0xd4] sm:$0xf] %v2332
                  %v2334 = vld [vmem:[%s2224 + $0xd8] sm:$0xf]
                  %2335 = vst [vmem:[%s2225 + $0xd8] sm:$0xf] %v2334
                  %v2336 = vld [vmem:[%s2224 + $0xdc] sm:$0xf]
                  %2337 = vst [vmem:[%s2225 + $0xdc] sm:$0xf] %v2336
                  %v2338 = vld [vmem:[%s2224 + $0xe0] sm:$0xf]
                  %2339 = vst [vmem:[%s2225 + $0xe0] sm:$0xf] %v2338
                  %v2340 = vld [vmem:[%s2224 + $0xe4] sm:$0xf]
                  %2341 = vst [vmem:[%s2225 + $0xe4] sm:$0xf] %v2340
                  %v2342 = vld [vmem:[%s2224 + $0xe8] sm:$0xf]
                  %2343 = vst [vmem:[%s2225 + $0xe8] sm:$0xf] %v2342
                  %v2344 = vld [vmem:[%s2224 + $0xec] sm:$0xf]
                  %2345 = vst [vmem:[%s2225 + $0xec] sm:$0xf] %v2344
                  %v2346 = vld [vmem:[%s2224 + $0xf0] sm:$0xf]
                  %2347 = vst [vmem:[%s2225 + $0xf0] sm:$0xf] %v2346
                  %v2348 = vld [vmem:[%s2224 + $0xf4] sm:$0xf]
                  %2349 = vst [vmem:[%s2225 + $0xf4] sm:$0xf] %v2348
                  %v2350 = vld [vmem:[%s2224 + $0xf8] sm:$0xf]
                  %2351 = vst [vmem:[%s2225 + $0xf8] sm:$0xf] %v2350
                  %v2352 = vld [vmem:[%s2224 + $0xfc] sm:$0xf]
                  %2353 = vst [vmem:[%s2225 + $0xfc] sm:$0xf] %v2352
                  %s2354 = sadd.s32 1, %s2223
                  %p2355 = scmp.ge.s32.totalorder %s2354, %s2216
                  %s2356 = scalar_select %p2355, 0, %s2354
                  %s2357 = smul.u32 %s2356, 256
                  %s2358 = smul.u32 %s2356, 256
                  %s2359 = scalar_lea.vmem %s2023, %s2357 [#allocation2]
                  %s2360 = scalar_lea.vmem %s2034, %s2358
                $region71: #{dqn_forward.5} parent=65 // loop_footer
                  %s2220 = sadd.s32 %s2218, 1
                $region72: #{dqn_forward.5} parent=65 // loop_footer_branch
                  %2217 = sbr.rel target = $region68
                $region73: #{dqn_forward.5} parent=65 // loop_exit
                  _
                %s2361 = sshrl.u32 %s2030, 6
                %s2362 = sand.u32 %s2030, 63
                %s2363 = smul.u32 %s2361, 64
                %s2364 = smul.u32 4, %s2363
                %s2365 = scalar_lea.vmem %s2023, %s2364 [#allocation2]
                %s2366 = smul.u32 4, %s2363
                %s2367 = scalar_lea.vmem %s2034, %s2366
                // While loop
                $region74: #{dqn_forward.5} parent=65 // loop_pre_header
                  _
                $region75: #{dqn_forward.5} parent=65 // loop_header
                  %s2369 = sphi 0, %s2371
                  %p2370 = scmp.ge.s32.totalorder %s2369, %s2362
                  %s2374 = sphi 0, %s2381
                  %s2375 = sphi %s2365, %s2384
                  %s2376 = sphi %s2367, %s2385
                $region76: #{dqn_forward.5} parent=65 // loop_header_branch
                  %2373 = sbr.rel (%p2370) target = $region80
                $region77: #{dqn_forward.5} parent=65 // loop_body
                  %v2377 = vld [vmem:[%s2375] sm:$0xf]
                  %2378 = vst [vmem:[%s2376] sm:$0xf] %v2377
                  %s2379 = sadd.s32 1, %s2374
                  %p2380 = scmp.ge.s32.totalorder %s2379, %s2362
                  %s2381 = scalar_select %p2380, 0, %s2379
                  %s2382 = smul.u32 %s2381, 4
                  %s2383 = smul.u32 %s2381, 4
                  %s2384 = scalar_lea.vmem %s2365, %s2382 [#allocation2]
                  %s2385 = scalar_lea.vmem %s2367, %s2383
                $region78: #{dqn_forward.5} parent=65 // loop_footer
                  %s2371 = sadd.s32 %s2369, 1
                $region79: #{dqn_forward.5} parent=65 // loop_footer_branch
                  %2368 = sbr.rel target = $region75
                $region80: #{dqn_forward.5} parent=65 // loop_exit
                  _
              $region66: #{dqn_forward.5} parent=43 // pred_fallthru
                _
            $region44: #{dqn_forward.5} parent=39 // pred_fallthru
              _
            // Predicated region
            $region45: #{dqn_forward.5} parent=39 // pred_check
              _
            $region46: #{dqn_forward.5} parent=39 // pred_check_branch
              %2041 = sbr.rel (0) target = $region48
            $region47: #{dqn_forward.5} parent=39 // pred_region
              %s2043 = sshrl.u32 %s2030, 6
              // While loop
              $region49: #{dqn_forward.5} parent=47 // loop_pre_header
                _
              $region50: #{dqn_forward.5} parent=47 // loop_header
                %s2045 = sphi 0, %s2047
                %p2046 = scmp.ge.s32.totalorder %s2045, %s2043
                %s2050 = sphi 0, %s2183
                %s2051 = sphi %s2023, %s2186
                %s2052 = sphi %s2034, %s2187
              $region51: #{dqn_forward.5} parent=47 // loop_header_branch
                %2049 = sbr.rel (%p2046) target = $region55
              $region52: #{dqn_forward.5} parent=47 // loop_body
                %v2053 = vld [vmem:[%s2051] sm:$0xf]
                %2054 = vst [vmem:[%s2052] sm:$0xf] %v2053
                %v2055 = vld [vmem:[%s2051 + $0x4] sm:$0xf]
                %2056 = vst [vmem:[%s2052 + $0x4] sm:$0xf] %v2055
                %v2057 = vld [vmem:[%s2051 + $0x8] sm:$0xf]
                %2058 = vst [vmem:[%s2052 + $0x8] sm:$0xf] %v2057
                %v2059 = vld [vmem:[%s2051 + $0xc] sm:$0xf]
                %2060 = vst [vmem:[%s2052 + $0xc] sm:$0xf] %v2059
                %v2061 = vld [vmem:[%s2051 + $0x10] sm:$0xf]
                %2062 = vst [vmem:[%s2052 + $0x10] sm:$0xf] %v2061
                %v2063 = vld [vmem:[%s2051 + $0x14] sm:$0xf]
                %2064 = vst [vmem:[%s2052 + $0x14] sm:$0xf] %v2063
                %v2065 = vld [vmem:[%s2051 + $0x18] sm:$0xf]
                %2066 = vst [vmem:[%s2052 + $0x18] sm:$0xf] %v2065
                %v2067 = vld [vmem:[%s2051 + $0x1c] sm:$0xf]
                %2068 = vst [vmem:[%s2052 + $0x1c] sm:$0xf] %v2067
                %v2069 = vld [vmem:[%s2051 + $0x20] sm:$0xf]
                %2070 = vst [vmem:[%s2052 + $0x20] sm:$0xf] %v2069
                %v2071 = vld [vmem:[%s2051 + $0x24] sm:$0xf]
                %2072 = vst [vmem:[%s2052 + $0x24] sm:$0xf] %v2071
                %v2073 = vld [vmem:[%s2051 + $0x28] sm:$0xf]
                %2074 = vst [vmem:[%s2052 + $0x28] sm:$0xf] %v2073
                %v2075 = vld [vmem:[%s2051 + $0x2c] sm:$0xf]
                %2076 = vst [vmem:[%s2052 + $0x2c] sm:$0xf] %v2075
                %v2077 = vld [vmem:[%s2051 + $0x30] sm:$0xf]
                %2078 = vst [vmem:[%s2052 + $0x30] sm:$0xf] %v2077
                %v2079 = vld [vmem:[%s2051 + $0x34] sm:$0xf]
                %2080 = vst [vmem:[%s2052 + $0x34] sm:$0xf] %v2079
                %v2081 = vld [vmem:[%s2051 + $0x38] sm:$0xf]
                %2082 = vst [vmem:[%s2052 + $0x38] sm:$0xf] %v2081
                %v2083 = vld [vmem:[%s2051 + $0x3c] sm:$0xf]
                %2084 = vst [vmem:[%s2052 + $0x3c] sm:$0xf] %v2083
                %v2085 = vld [vmem:[%s2051 + $0x40] sm:$0xf]
                %2086 = vst [vmem:[%s2052 + $0x40] sm:$0xf] %v2085
                %v2087 = vld [vmem:[%s2051 + $0x44] sm:$0xf]
                %2088 = vst [vmem:[%s2052 + $0x44] sm:$0xf] %v2087
                %v2089 = vld [vmem:[%s2051 + $0x48] sm:$0xf]
                %2090 = vst [vmem:[%s2052 + $0x48] sm:$0xf] %v2089
                %v2091 = vld [vmem:[%s2051 + $0x4c] sm:$0xf]
                %2092 = vst [vmem:[%s2052 + $0x4c] sm:$0xf] %v2091
                %v2093 = vld [vmem:[%s2051 + $0x50] sm:$0xf]
                %2094 = vst [vmem:[%s2052 + $0x50] sm:$0xf] %v2093
                %v2095 = vld [vmem:[%s2051 + $0x54] sm:$0xf]
                %2096 = vst [vmem:[%s2052 + $0x54] sm:$0xf] %v2095
                %v2097 = vld [vmem:[%s2051 + $0x58] sm:$0xf]
                %2098 = vst [vmem:[%s2052 + $0x58] sm:$0xf] %v2097
                %v2099 = vld [vmem:[%s2051 + $0x5c] sm:$0xf]
                %2100 = vst [vmem:[%s2052 + $0x5c] sm:$0xf] %v2099
                %v2101 = vld [vmem:[%s2051 + $0x60] sm:$0xf]
                %2102 = vst [vmem:[%s2052 + $0x60] sm:$0xf] %v2101
                %v2103 = vld [vmem:[%s2051 + $0x64] sm:$0xf]
                %2104 = vst [vmem:[%s2052 + $0x64] sm:$0xf] %v2103
                %v2105 = vld [vmem:[%s2051 + $0x68] sm:$0xf]
                %2106 = vst [vmem:[%s2052 + $0x68] sm:$0xf] %v2105
                %v2107 = vld [vmem:[%s2051 + $0x6c] sm:$0xf]
                %2108 = vst [vmem:[%s2052 + $0x6c] sm:$0xf] %v2107
                %v2109 = vld [vmem:[%s2051 + $0x70] sm:$0xf]
                %2110 = vst [vmem:[%s2052 + $0x70] sm:$0xf] %v2109
                %v2111 = vld [vmem:[%s2051 + $0x74] sm:$0xf]
                %2112 = vst [vmem:[%s2052 + $0x74] sm:$0xf] %v2111
                %v2113 = vld [vmem:[%s2051 + $0x78] sm:$0xf]
                %2114 = vst [vmem:[%s2052 + $0x78] sm:$0xf] %v2113
                %v2115 = vld [vmem:[%s2051 + $0x7c] sm:$0xf]
                %2116 = vst [vmem:[%s2052 + $0x7c] sm:$0xf] %v2115
                %v2117 = vld [vmem:[%s2051 + $0x80] sm:$0xf]
                %2118 = vst [vmem:[%s2052 + $0x80] sm:$0xf] %v2117
                %v2119 = vld [vmem:[%s2051 + $0x84] sm:$0xf]
                %2120 = vst [vmem:[%s2052 + $0x84] sm:$0xf] %v2119
                %v2121 = vld [vmem:[%s2051 + $0x88] sm:$0xf]
                %2122 = vst [vmem:[%s2052 + $0x88] sm:$0xf] %v2121
                %v2123 = vld [vmem:[%s2051 + $0x8c] sm:$0xf]
                %2124 = vst [vmem:[%s2052 + $0x8c] sm:$0xf] %v2123
                %v2125 = vld [vmem:[%s2051 + $0x90] sm:$0xf]
                %2126 = vst [vmem:[%s2052 + $0x90] sm:$0xf] %v2125
                %v2127 = vld [vmem:[%s2051 + $0x94] sm:$0xf]
                %2128 = vst [vmem:[%s2052 + $0x94] sm:$0xf] %v2127
                %v2129 = vld [vmem:[%s2051 + $0x98] sm:$0xf]
                %2130 = vst [vmem:[%s2052 + $0x98] sm:$0xf] %v2129
                %v2131 = vld [vmem:[%s2051 + $0x9c] sm:$0xf]
                %2132 = vst [vmem:[%s2052 + $0x9c] sm:$0xf] %v2131
                %v2133 = vld [vmem:[%s2051 + $0xa0] sm:$0xf]
                %2134 = vst [vmem:[%s2052 + $0xa0] sm:$0xf] %v2133
                %v2135 = vld [vmem:[%s2051 + $0xa4] sm:$0xf]
                %2136 = vst [vmem:[%s2052 + $0xa4] sm:$0xf] %v2135
                %v2137 = vld [vmem:[%s2051 + $0xa8] sm:$0xf]
                %2138 = vst [vmem:[%s2052 + $0xa8] sm:$0xf] %v2137
                %v2139 = vld [vmem:[%s2051 + $0xac] sm:$0xf]
                %2140 = vst [vmem:[%s2052 + $0xac] sm:$0xf] %v2139
                %v2141 = vld [vmem:[%s2051 + $0xb0] sm:$0xf]
                %2142 = vst [vmem:[%s2052 + $0xb0] sm:$0xf] %v2141
                %v2143 = vld [vmem:[%s2051 + $0xb4] sm:$0xf]
                %2144 = vst [vmem:[%s2052 + $0xb4] sm:$0xf] %v2143
                %v2145 = vld [vmem:[%s2051 + $0xb8] sm:$0xf]
                %2146 = vst [vmem:[%s2052 + $0xb8] sm:$0xf] %v2145
                %v2147 = vld [vmem:[%s2051 + $0xbc] sm:$0xf]
                %2148 = vst [vmem:[%s2052 + $0xbc] sm:$0xf] %v2147
                %v2149 = vld [vmem:[%s2051 + $0xc0] sm:$0xf]
                %2150 = vst [vmem:[%s2052 + $0xc0] sm:$0xf] %v2149
                %v2151 = vld [vmem:[%s2051 + $0xc4] sm:$0xf]
                %2152 = vst [vmem:[%s2052 + $0xc4] sm:$0xf] %v2151
                %v2153 = vld [vmem:[%s2051 + $0xc8] sm:$0xf]
                %2154 = vst [vmem:[%s2052 + $0xc8] sm:$0xf] %v2153
                %v2155 = vld [vmem:[%s2051 + $0xcc] sm:$0xf]
                %2156 = vst [vmem:[%s2052 + $0xcc] sm:$0xf] %v2155
                %v2157 = vld [vmem:[%s2051 + $0xd0] sm:$0xf]
                %2158 = vst [vmem:[%s2052 + $0xd0] sm:$0xf] %v2157
                %v2159 = vld [vmem:[%s2051 + $0xd4] sm:$0xf]
                %2160 = vst [vmem:[%s2052 + $0xd4] sm:$0xf] %v2159
                %v2161 = vld [vmem:[%s2051 + $0xd8] sm:$0xf]
                %2162 = vst [vmem:[%s2052 + $0xd8] sm:$0xf] %v2161
                %v2163 = vld [vmem:[%s2051 + $0xdc] sm:$0xf]
                %2164 = vst [vmem:[%s2052 + $0xdc] sm:$0xf] %v2163
                %v2165 = vld [vmem:[%s2051 + $0xe0] sm:$0xf]
                %2166 = vst [vmem:[%s2052 + $0xe0] sm:$0xf] %v2165
                %v2167 = vld [vmem:[%s2051 + $0xe4] sm:$0xf]
                %2168 = vst [vmem:[%s2052 + $0xe4] sm:$0xf] %v2167
                %v2169 = vld [vmem:[%s2051 + $0xe8] sm:$0xf]
                %2170 = vst [vmem:[%s2052 + $0xe8] sm:$0xf] %v2169
                %v2171 = vld [vmem:[%s2051 + $0xec] sm:$0xf]
                %2172 = vst [vmem:[%s2052 + $0xec] sm:$0xf] %v2171
                %v2173 = vld [vmem:[%s2051 + $0xf0] sm:$0xf]
                %2174 = vst [vmem:[%s2052 + $0xf0] sm:$0xf] %v2173
                %v2175 = vld [vmem:[%s2051 + $0xf4] sm:$0xf]
                %2176 = vst [vmem:[%s2052 + $0xf4] sm:$0xf] %v2175
                %v2177 = vld [vmem:[%s2051 + $0xf8] sm:$0xf]
                %2178 = vst [vmem:[%s2052 + $0xf8] sm:$0xf] %v2177
                %v2179 = vld [vmem:[%s2051 + $0xfc] sm:$0xf]
                %2180 = vst [vmem:[%s2052 + $0xfc] sm:$0xf] %v2179
                %s2181 = sadd.s32 1, %s2050
                %p2182 = scmp.ge.s32.totalorder %s2181, %s2043
                %s2183 = scalar_select %p2182, 0, %s2181
                %s2184 = smul.u32 %s2183, 256
                %s2185 = smul.u32 %s2183, 256
                %s2186 = scalar_lea.vmem %s2023, %s2184 [#allocation2]
                %s2187 = scalar_lea.vmem %s2034, %s2185
              $region53: #{dqn_forward.5} parent=47 // loop_footer
                %s2047 = sadd.s32 %s2045, 1
              $region54: #{dqn_forward.5} parent=47 // loop_footer_branch
                %2044 = sbr.rel target = $region50
              $region55: #{dqn_forward.5} parent=47 // loop_exit
                _
              %s2188 = sshrl.u32 %s2030, 6
              %s2189 = sand.u32 %s2030, 63
              %s2190 = smul.u32 %s2188, 64
              %s2191 = smul.u32 4, %s2190
              %s2192 = scalar_lea.vmem %s2023, %s2191 [#allocation2]
              %s2193 = smul.u32 4, %s2190
              %s2194 = scalar_lea.vmem %s2034, %s2193
              // While loop
              $region56: #{dqn_forward.5} parent=47 // loop_pre_header
                _
              $region57: #{dqn_forward.5} parent=47 // loop_header
                %s2196 = sphi 0, %s2198
                %p2197 = scmp.ge.s32.totalorder %s2196, %s2189
                %s2201 = sphi 0, %s2208
                %s2202 = sphi %s2192, %s2211
                %s2203 = sphi %s2194, %s2212
              $region58: #{dqn_forward.5} parent=47 // loop_header_branch
                %2200 = sbr.rel (%p2197) target = $region62
              $region59: #{dqn_forward.5} parent=47 // loop_body
                %v2204 = vld [vmem:[%s2202] sm:$0xf]
                %2205 = vst [vmem:[%s2203] sm:$0xf] %v2204
                %s2206 = sadd.s32 1, %s2201
                %p2207 = scmp.ge.s32.totalorder %s2206, %s2189
                %s2208 = scalar_select %p2207, 0, %s2206
                %s2209 = smul.u32 %s2208, 4
                %s2210 = smul.u32 %s2208, 4
                %s2211 = scalar_lea.vmem %s2192, %s2209 [#allocation2]
                %s2212 = scalar_lea.vmem %s2194, %s2210
              $region60: #{dqn_forward.5} parent=47 // loop_footer
                %s2198 = sadd.s32 %s2196, 1
              $region61: #{dqn_forward.5} parent=47 // loop_footer_branch
                %2195 = sbr.rel target = $region57
              $region62: #{dqn_forward.5} parent=47 // loop_exit
                _
            $region48: #{dqn_forward.5} parent=39 // pred_fallthru
              _
          $region40: #{dqn_forward.5} parent=35 // pred_fallthru
            _
          %2386 = vnop
        $region36: #{dqn_forward.5} parent=31 // pred_fallthru
          _
      $region32: #{dqn_forward.5} parent=5 // pred_fallthru
        _
      %p2387 = scmp.le.s32.totalorder 2, %s9
      // Predicated region
      $region81: #{dqn_forward.5} parent=5 // pred_check
        %p2388 = pneg %p2387
      $region82: #{dqn_forward.5} parent=5 // pred_check_branch
        %2390 = sbr.rel (%p2388) target = $region84
      $region83: #{dqn_forward.5} parent=5 // pred_region
        %s2391 = ssub.s32 %s9, 2
        // Predicated region
        $region85: #{dqn_forward.5} parent=83 // pred_check
          %p2392 = pneg %p106
        $region86: #{dqn_forward.5} parent=83 // pred_check_branch
          %2394 = sbr.rel (%p2392) target = $region88
        $region87: #{dqn_forward.5} parent=83 // pred_region
          %s2395 = sand.u32 %s91, 1
          %s2396 = sand.u32 %s91, 1
          %s2397 = smul.addr %s2396, 256
          %s2398 = scalar_lea.vmem [#allocation2], %s2397
        $region88: #{dqn_forward.5} parent=83 // pred_fallthru
          _
      $region84: #{dqn_forward.5} parent=5 // pred_fallthru
        _
    $region6: #{dqn_forward.5} parent=1 // loop_footer
      %s13 = sadd.s32 1, %s9
    $region7: #{dqn_forward.5} parent=1 // loop_footer_branch
      %8 = sbr.rel target = $region3
    $region8: #{dqn_forward.5} parent=1 // loop_exit
      _

// kernel: dqn_forward.6
$region0: #{dqn_forward.6}
  #allocation0 [shape = 'u32[]', space=smem, size = 0x4, offset = 0x4, fixed_abs, tag = 'smem constant byte address 0x4 - core index']
  #allocation1 [shape = 'u32[144,128]{1,0:T(1,128)}', space=vmem, size = 0x12000, scoped, tag = 'internal scratch']
  %s0 = inlined_call_operand.vmem [shape: bf16[162,576], index: 0, kind: input, shape index: {}]
  %s1 = inlined_call_operand.vmem [shape: bf16[576,64], index: 1, kind: input, shape index: {}]
  %s2 = inlined_call_operand.vmem [shape: f32[1,64], index: 2, kind: input, shape index: {}]
  %s3 = inlined_call_operand.vmem [shape: bf16[162,64], index: 3, kind: output, shape index: {}]
  %s4 = sld [smem:[#allocation0]]
  $region22: #{dqn_forward.6} parent=0
    _
  %s6 = ssub.s32 1, %s4
  %s7 = scalar_select 0, %s6, %s4
  // Predicated region
  $region2: #{dqn_forward.6} parent=0 // pred_check
    _
  $region3: #{dqn_forward.6} parent=0 // pred_check_branch
    %9 = sbr.rel (0) target = $region5
  $region4: #{dqn_forward.6} parent=0 // pred_region
    _
  $region5: #{dqn_forward.6} parent=0 // pred_fallthru
    _
  // Predicated region
  $region6: #{dqn_forward.6} parent=0 // pred_check
    _
  $region7: #{dqn_forward.6} parent=0 // pred_check_branch
    %11 = sbr.rel (0) target = $region9
  $region8: #{dqn_forward.6} parent=0 // pred_region
    _
  $region9: #{dqn_forward.6} parent=0 // pred_fallthru
    _
  // Predicated region
  $region10: #{dqn_forward.6} parent=0 // pred_check
    _
  $region11: #{dqn_forward.6} parent=0 // pred_check_branch
    %13 = sbr.rel (0) target = $region13
  $region12: #{dqn_forward.6} parent=0 // pred_region
    _
  $region13: #{dqn_forward.6} parent=0 // pred_fallthru
    _
  %v15 = vld [vmem:[%s0] sm:$0xff]
  %v16 = vld [vmem:[%s0 + $0x8] sm:$0xff]
  %v17 = vld [vmem:[%s0 + $0x10] sm:$0xf]
  %v18 = vld [vmem:[%s0 + $0x14] sm:$0xff]
  %v19 = vld [vmem:[%s0 + $0x1c] sm:$0xff]
  %v20 = vld [vmem:[%s0 + $0x24] sm:$0xf]
  %v21 = vld [vmem:[%s0 + $0x28] sm:$0xff]
  %v22 = vld [vmem:[%s0 + $0x30] sm:$0xff]
  %v23 = vld [vmem:[%s0 + $0x38] sm:$0xf]
  %v24 = vld [vmem:[%s0 + $0x3c] sm:$0xff]
  %v25 = vld [vmem:[%s0 + $0x44] sm:$0xff]
  %v26 = vld [vmem:[%s0 + $0x4c] sm:$0xf]
  %v27 = vld [vmem:[%s0 + $0x50] sm:$0xff]
  %v28 = vld [vmem:[%s0 + $0x58] sm:$0xff]
  %v29 = vld [vmem:[%s0 + $0x60] sm:$0xf]
  %v30 = vld [vmem:[%s0 + $0x64] sm:$0xff]
  %v31 = vld [vmem:[%s0 + $0x6c] sm:$0xff]
  %v32 = vld [vmem:[%s0 + $0x74] sm:$0xf]
  %v33 = vld [vmem:[%s0 + $0x78] sm:$0xff]
  %v34 = vld [vmem:[%s0 + $0x80] sm:$0xff]
  %v35 = vld [vmem:[%s0 + $0x88] sm:$0xf]
  %v36 = vld [vmem:[%s0 + $0x8c] sm:$0xff]
  %v37 = vld [vmem:[%s0 + $0x94] sm:$0xff]
  %v38 = vld [vmem:[%s0 + $0x9c] sm:$0xf]
  %v39 = vld [vmem:[%s0 + $0xa0] sm:$0xff]
  %v40 = vld [vmem:[%s0 + $0xa8] sm:$0xff]
  %v41 = vld [vmem:[%s0 + $0xb0] sm:$0xf]
  %v42 = vld [vmem:[%s0 + $0xb4] sm:$0xff]
  %v43 = vld [vmem:[%s0 + $0xbc] sm:$0xff]
  %v44 = vld [vmem:[%s0 + $0xc4] sm:$0xf]
  %v45 = vld [vmem:[%s0 + $0xc8] sm:$0xff]
  %v46 = vld [vmem:[%s0 + $0xd0] sm:$0xff]
  %v47 = vld [vmem:[%s0 + $0xd8] sm:$0xf]
  %v48 = vld [vmem:[%s0 + $0xdc] sm:$0xff]
  %v49 = vld [vmem:[%s0 + $0xe4] sm:$0xff]
  %v50 = vld [vmem:[%s0 + $0xec] sm:$0xf]
  %v51 = vld [vmem:[%s0 + $0xf0] sm:$0xff]
  %v52 = vld [vmem:[%s0 + $0xf8] sm:$0xff]
  %v53 = vld [vmem:[%s0 + $0x100] sm:$0xf]
  %v54 = vld [vmem:[%s0 + $0x104] sm:$0xff]
  %v55 = vld [vmem:[%s0 + $0x10c] sm:$0xff]
  %v56 = vld [vmem:[%s0 + $0x114] sm:$0xf]
  %v57 = vld [vmem:[%s0 + $0x118] sm:$0xff]
  %v58 = vld [vmem:[%s0 + $0x120] sm:$0xff]
  %v59 = vld [vmem:[%s0 + $0x128] sm:$0xf]
  %v60 = vld [vmem:[%s0 + $0x12c] sm:$0xff]
  %v61 = vld [vmem:[%s0 + $0x134] sm:$0xff]
  %v62 = vld [vmem:[%s0 + $0x13c] sm:$0xf]
  %v63 = vld [vmem:[%s0 + $0x140] sm:$0xff]
  %v64 = vld [vmem:[%s0 + $0x148] sm:$0xff]
  %v65 = vld [vmem:[%s0 + $0x150] sm:$0xf]
  %v66 = vld [vmem:[%s0 + $0x154] sm:$0xff]
  %v67 = vld [vmem:[%s0 + $0x15c] sm:$0xff]
  %v68 = vld [vmem:[%s0 + $0x164] sm:$0xf]
  %v69 = vld [vmem:[%s0 + $0x168] sm:$0xff]
  %v70 = vld [vmem:[%s0 + $0x170] sm:$0xff]
  %v71 = vld [vmem:[%s0 + $0x178] sm:$0xf]
  %v72 = vld [vmem:[%s0 + $0x17c] sm:$0xff]
  %v73 = vld [vmem:[%s0 + $0x184] sm:$0xff]
  %v74 = vld [vmem:[%s0 + $0x18c] sm:$0xf]
  %v75 = vld [vmem:[%s0 + $0x190] sm:$0x11]
  %v76 = vld [vmem:[%s0 + $0x198] sm:$0x11]
  %v77 = vld [vmem:[%s0 + $0x1a0] sm:$0x1]
  %v78 = vld [vmem:[%s1] sm:$0xf]
  %v79 = vld [vmem:[%s1 + $0x4] sm:$0xf]
  %v80 = vld [vmem:[%s1 + $0x8] sm:$0xf]
  %v81 = vld [vmem:[%s1 + $0xc] sm:$0xf]
  %v82 = vld [vmem:[%s1 + $0x10] sm:$0xf]
  %v83 = vld [vmem:[%s1 + $0x14] sm:$0xf]
  %v84 = vld [vmem:[%s1 + $0x18] sm:$0xf]
  %v85 = vld [vmem:[%s1 + $0x1c] sm:$0xf]
  %v86 = vld [vmem:[%s1 + $0x20] sm:$0xf]
  %v87 = vld [vmem:[%s1 + $0x24] sm:$0xf]
  %v88 = vld [vmem:[%s1 + $0x28] sm:$0xf]
  %v89 = vld [vmem:[%s1 + $0x2c] sm:$0xf]
  %v90 = vld [vmem:[%s1 + $0x30] sm:$0xf]
  %v91 = vld [vmem:[%s1 + $0x34] sm:$0xf]
  %v92 = vld [vmem:[%s1 + $0x38] sm:$0xf]
  %v93 = vld [vmem:[%s1 + $0x3c] sm:$0xf]
  %v94 = vld [vmem:[%s1 + $0x40] sm:$0xf]
  %v95 = vld [vmem:[%s1 + $0x44] sm:$0xf]
  %v96 = vld [vmem:[%s1 + $0x48] sm:$0xf]
  %v97 = vld [vmem:[%s1 + $0x4c] sm:$0xf]
  %v98 = vld [vmem:[%s1 + $0x50] sm:$0xf]
  %v99 = vld [vmem:[%s1 + $0x54] sm:$0xf]
  %v100 = vld [vmem:[%s1 + $0x58] sm:$0xf]
  %v101 = vld [vmem:[%s1 + $0x5c] sm:$0xf]
  %v102 = vld [vmem:[%s1 + $0x60] sm:$0xf]
  %v103 = vld [vmem:[%s1 + $0x64] sm:$0xf]
  %v104 = vld [vmem:[%s1 + $0x68] sm:$0xf]
  %v105 = vld [vmem:[%s1 + $0x6c] sm:$0xf]
  %v106 = vld [vmem:[%s1 + $0x70] sm:$0xf]
  %v107 = vld [vmem:[%s1 + $0x74] sm:$0xf]
  %v108 = vld [vmem:[%s1 + $0x78] sm:$0xf]
  %v109 = vld [vmem:[%s1 + $0x7c] sm:$0xf]
  %v110 = vld [vmem:[%s1 + $0x80] sm:$0xf]
  %v111 = vld [vmem:[%s1 + $0x84] sm:$0xf]
  %v112 = vld [vmem:[%s1 + $0x88] sm:$0xf]
  %v113 = vld [vmem:[%s1 + $0x8c] sm:$0xf]
  %v114 = vld [vmem:[%s1 + $0x90] sm:$0xf]
  %v115 = vld [vmem:[%s1 + $0x94] sm:$0xf]
  %v116 = vld [vmem:[%s1 + $0x98] sm:$0xf]
  %v117 = vld [vmem:[%s1 + $0x9c] sm:$0xf]
  %v118 = vld [vmem:[%s1 + $0xa0] sm:$0xf]
  %v119 = vld [vmem:[%s1 + $0xa4] sm:$0xf]
  %v120 = vld [vmem:[%s1 + $0xa8] sm:$0xf]
  %v121 = vld [vmem:[%s1 + $0xac] sm:$0xf]
  %v122 = vld [vmem:[%s1 + $0xb0] sm:$0xf]
  %v123 = vld [vmem:[%s1 + $0xb4] sm:$0xf]
  %v124 = vld [vmem:[%s1 + $0xb8] sm:$0xf]
  %v125 = vld [vmem:[%s1 + $0xbc] sm:$0xf]
  %v126 = vld [vmem:[%s1 + $0xc0] sm:$0xf]
  %v127 = vld [vmem:[%s1 + $0xc4] sm:$0xf]
  %v128 = vld [vmem:[%s1 + $0xc8] sm:$0xf]
  %v129 = vld [vmem:[%s1 + $0xcc] sm:$0xf]
  %v130 = vld [vmem:[%s1 + $0xd0] sm:$0xf]
  %v131 = vld [vmem:[%s1 + $0xd4] sm:$0xf]
  %v132 = vld [vmem:[%s1 + $0xd8] sm:$0xf]
  %v133 = vld [vmem:[%s1 + $0xdc] sm:$0xf]
  %v134 = vld [vmem:[%s1 + $0xe0] sm:$0xf]
  %v135 = vld [vmem:[%s1 + $0xe4] sm:$0xf]
  %v136 = vld [vmem:[%s1 + $0xe8] sm:$0xf]
  %v137 = vld [vmem:[%s1 + $0xec] sm:$0xf]
  %v138 = vld [vmem:[%s1 + $0xf0] sm:$0xf]
  %v139 = vld [vmem:[%s1 + $0xf4] sm:$0xf]
  %v140 = vld [vmem:[%s1 + $0xf8] sm:$0xf]
  %v141 = vld [vmem:[%s1 + $0xfc] sm:$0xf]
  %v142 = vld [vmem:[%s1 + $0x100] sm:$0xf]
  %v143 = vld [vmem:[%s1 + $0x104] sm:$0xf]
  %v144 = vld [vmem:[%s1 + $0x108] sm:$0xf]
  %v145 = vld [vmem:[%s1 + $0x10c] sm:$0xf]
  %v146 = vld [vmem:[%s1 + $0x110] sm:$0xf]
  %v147 = vld [vmem:[%s1 + $0x114] sm:$0xf]
  %v148 = vld [vmem:[%s1 + $0x118] sm:$0xf]
  %v149 = vld [vmem:[%s1 + $0x11c] sm:$0xf]
  %v150 = vld [vmem:[%s2] sm:$0x1]
  %v152 = vlaneseq
  %v153 = vshrl.u32 %v152, 7
  %v154 = vsub.s32 0, %v153
  %v155 = vrot.slane %v150, %v154
  %v220 = vunpack.c.l.b16 %v15
  %v221 = vunpack.c.h.b16 %v15
  %v222 = vunpack.c.l.b16 %v16
  %v223 = vunpack.c.h.b16 %v16
  %v224 = vunpack.c.l.b16 %v17
  %v225 = vunpack.c.l.b16 %v18
  %v226 = vunpack.c.h.b16 %v18
  %v227 = vunpack.c.l.b16 %v19
  %v228 = vunpack.c.h.b16 %v19
  %v229 = vunpack.c.l.b16 %v20
  %v230 = vunpack.c.l.b16 %v21
  %v231 = vunpack.c.h.b16 %v21
  %v232 = vunpack.c.l.b16 %v22
  %v233 = vunpack.c.h.b16 %v22
  %v234 = vunpack.c.l.b16 %v23
  %v235 = vunpack.c.l.b16 %v24
  %v236 = vunpack.c.h.b16 %v24
  %v237 = vunpack.c.l.b16 %v25
  %v238 = vunpack.c.h.b16 %v25
  %v239 = vunpack.c.l.b16 %v26
  %v240 = vunpack.c.l.b16 %v27
  %v241 = vunpack.c.h.b16 %v27
  %v242 = vunpack.c.l.b16 %v28
  %v243 = vunpack.c.h.b16 %v28
  %v244 = vunpack.c.l.b16 %v29
  %v245 = vunpack.c.l.b16 %v30
  %v246 = vunpack.c.h.b16 %v30
  %v247 = vunpack.c.l.b16 %v31
  %v248 = vunpack.c.h.b16 %v31
  %v249 = vunpack.c.l.b16 %v32
  %v250 = vunpack.c.l.b16 %v33
  %v251 = vunpack.c.h.b16 %v33
  %v252 = vunpack.c.l.b16 %v34
  %v253 = vunpack.c.h.b16 %v34
  %v254 = vunpack.c.l.b16 %v35
  %v255 = vunpack.c.l.b16 %v36
  %v256 = vunpack.c.h.b16 %v36
  %v257 = vunpack.c.l.b16 %v37
  %v258 = vunpack.c.h.b16 %v37
  %v259 = vunpack.c.l.b16 %v38
  %v260 = vunpack.c.l.b16 %v39
  %v261 = vunpack.c.h.b16 %v39
  %v262 = vunpack.c.l.b16 %v40
  %v263 = vunpack.c.h.b16 %v40
  %v264 = vunpack.c.l.b16 %v41
  %v265 = vunpack.c.l.b16 %v42
  %v266 = vunpack.c.h.b16 %v42
  %v267 = vunpack.c.l.b16 %v43
  %v268 = vunpack.c.h.b16 %v43
  %v269 = vunpack.c.l.b16 %v44
  %v270 = vunpack.c.l.b16 %v45
  %v271 = vunpack.c.h.b16 %v45
  %v272 = vunpack.c.l.b16 %v46
  %v273 = vunpack.c.h.b16 %v46
  %v274 = vunpack.c.l.b16 %v47
  %v275 = vunpack.c.l.b16 %v48
  %v276 = vunpack.c.h.b16 %v48
  %v277 = vunpack.c.l.b16 %v49
  %v278 = vunpack.c.h.b16 %v49
  %v279 = vunpack.c.l.b16 %v50
  %v280 = vunpack.c.l.b16 %v51
  %v281 = vunpack.c.h.b16 %v51
  %v282 = vunpack.c.l.b16 %v52
  %v283 = vunpack.c.h.b16 %v52
  %v284 = vunpack.c.l.b16 %v53
  %v285 = vunpack.c.l.b16 %v54
  %v286 = vunpack.c.h.b16 %v54
  %v287 = vunpack.c.l.b16 %v55
  %v288 = vunpack.c.h.b16 %v55
  %v289 = vunpack.c.l.b16 %v56
  %v290 = vunpack.c.l.b16 %v57
  %v291 = vunpack.c.h.b16 %v57
  %v292 = vunpack.c.l.b16 %v58
  %v293 = vunpack.c.h.b16 %v58
  %v294 = vunpack.c.l.b16 %v59
  %v295 = vunpack.c.l.b16 %v60
  %v296 = vunpack.c.h.b16 %v60
  %v297 = vunpack.c.l.b16 %v61
  %v298 = vunpack.c.h.b16 %v61
  %v299 = vunpack.c.l.b16 %v62
  %v300 = vunpack.c.l.b16 %v63
  %v301 = vunpack.c.h.b16 %v63
  %v302 = vunpack.c.l.b16 %v64
  %v303 = vunpack.c.h.b16 %v64
  %v304 = vunpack.c.l.b16 %v65
  %v305 = vunpack.c.l.b16 %v66
  %v306 = vunpack.c.h.b16 %v66
  %v307 = vunpack.c.l.b16 %v67
  %v308 = vunpack.c.h.b16 %v67
  %v309 = vunpack.c.l.b16 %v68
  %v310 = vunpack.c.l.b16 %v69
  %v311 = vunpack.c.h.b16 %v69
  %v312 = vunpack.c.l.b16 %v70
  %v313 = vunpack.c.h.b16 %v70
  %v314 = vunpack.c.l.b16 %v71
  %v315 = vunpack.c.l.b16 %v72
  %v316 = vunpack.c.h.b16 %v72
  %v317 = vunpack.c.l.b16 %v73
  %v318 = vunpack.c.h.b16 %v73
  %v319 = vunpack.c.l.b16 %v74
  %v320 = vunpack.c.l.b16 %v75
  %v321 = vunpack.c.h.b16 %v75
  %v322 = vunpack.c.l.b16 %v76
  %v323 = vunpack.c.h.b16 %v76
  %v324 = vunpack.c.l.b16 %v77
  %v325 = vpack.c.b16 %v225, %v220
  %v326 = vpack.c.b16 %v226, %v221
  %v327 = vpack.c.b16 %v227, %v222
  %v328 = vpack.c.b16 %v228, %v223
  %v329 = vpack.c.b16 %v229, %v224
  %v330 = vpack.c.b16 %v235, %v230
  %v331 = vpack.c.b16 %v236, %v231
  %v332 = vpack.c.b16 %v237, %v232
  %v333 = vpack.c.b16 %v238, %v233
  %v334 = vpack.c.b16 %v239, %v234
  %v335 = vpack.c.b16 %v245, %v240
  %v336 = vpack.c.b16 %v246, %v241
  %v337 = vpack.c.b16 %v247, %v242
  %v338 = vpack.c.b16 %v248, %v243
  %v339 = vpack.c.b16 %v249, %v244
  %v340 = vpack.c.b16 %v255, %v250
  %v341 = vpack.c.b16 %v256, %v251
  %v342 = vpack.c.b16 %v257, %v252
  %v343 = vpack.c.b16 %v258, %v253
  %v344 = vpack.c.b16 %v259, %v254
  %v345 = vpack.c.b16 %v265, %v260
  %v346 = vpack.c.b16 %v266, %v261
  %v347 = vpack.c.b16 %v267, %v262
  %v348 = vpack.c.b16 %v268, %v263
  %v349 = vpack.c.b16 %v269, %v264
  %v350 = vpack.c.b16 %v275, %v270
  %v351 = vpack.c.b16 %v276, %v271
  %v352 = vpack.c.b16 %v277, %v272
  %v353 = vpack.c.b16 %v278, %v273
  %v354 = vpack.c.b16 %v279, %v274
  %v355 = vpack.c.b16 %v285, %v280
  %v356 = vpack.c.b16 %v286, %v281
  %v357 = vpack.c.b16 %v287, %v282
  %v358 = vpack.c.b16 %v288, %v283
  %v359 = vpack.c.b16 %v289, %v284
  %v360 = vpack.c.b16 %v295, %v290
  %v361 = vpack.c.b16 %v296, %v291
  %v362 = vpack.c.b16 %v297, %v292
  %v363 = vpack.c.b16 %v298, %v293
  %v364 = vpack.c.b16 %v299, %v294
  %v365 = vpack.c.b16 %v305, %v300
  %v366 = vpack.c.b16 %v306, %v301
  %v367 = vpack.c.b16 %v307, %v302
  %v368 = vpack.c.b16 %v308, %v303
  %v369 = vpack.c.b16 %v309, %v304
  %v370 = vpack.c.b16 %v315, %v310
  %v371 = vpack.c.b16 %v316, %v311
  %v372 = vpack.c.b16 %v317, %v312
  %v373 = vpack.c.b16 %v318, %v313
  %v374 = vpack.c.b16 %v319, %v314
  %v375 = vpack.c.b16 %v320, %v320
  %v376 = vpack.c.b16 %v321, %v321
  %v377 = vpack.c.b16 %v322, %v322
  %v378 = vpack.c.b16 %v323, %v323
  %v379 = vpack.c.b16 %v324, %v324
  %v496 = vunpack.c.l.b16 %v78
  %v497 = vunpack.c.l.b16 %v79
  %v498 = vunpack.c.l.b16 %v80
  %v499 = vunpack.c.l.b16 %v81
  %v500 = vunpack.c.l.b16 %v82
  %v501 = vunpack.c.l.b16 %v83
  %v502 = vunpack.c.l.b16 %v84
  %v503 = vunpack.c.l.b16 %v85
  %v504 = vunpack.c.l.b16 %v86
  %v505 = vunpack.c.l.b16 %v87
  %v506 = vunpack.c.l.b16 %v88
  %v507 = vunpack.c.l.b16 %v89
  %v508 = vunpack.c.l.b16 %v90
  %v509 = vunpack.c.l.b16 %v91
  %v510 = vunpack.c.l.b16 %v92
  %v511 = vunpack.c.l.b16 %v93
  %v512 = vunpack.c.l.b16 %v94
  %v513 = vunpack.c.l.b16 %v95
  %v514 = vunpack.c.l.b16 %v96
  %v515 = vunpack.c.l.b16 %v97
  %v516 = vunpack.c.l.b16 %v98
  %v517 = vunpack.c.l.b16 %v99
  %v518 = vunpack.c.l.b16 %v100
  %v519 = vunpack.c.l.b16 %v101
  %v520 = vunpack.c.l.b16 %v102
  %v521 = vunpack.c.l.b16 %v103
  %v522 = vunpack.c.l.b16 %v104
  %v523 = vunpack.c.l.b16 %v105
  %v524 = vunpack.c.l.b16 %v106
  %v525 = vunpack.c.l.b16 %v107
  %v526 = vunpack.c.l.b16 %v108
  %v527 = vunpack.c.l.b16 %v109
  %v528 = vunpack.c.l.b16 %v110
  %v529 = vunpack.c.l.b16 %v111
  %v530 = vunpack.c.l.b16 %v112
  %v531 = vunpack.c.l.b16 %v113
  %v532 = vunpack.c.l.b16 %v114
  %v533 = vunpack.c.l.b16 %v115
  %v534 = vunpack.c.l.b16 %v116
  %v535 = vunpack.c.l.b16 %v117
  %v536 = vunpack.c.l.b16 %v118
  %v537 = vunpack.c.l.b16 %v119
  %v538 = vunpack.c.l.b16 %v120
  %v539 = vunpack.c.l.b16 %v121
  %v540 = vunpack.c.l.b16 %v122
  %v541 = vunpack.c.l.b16 %v123
  %v542 = vunpack.c.l.b16 %v124
  %v543 = vunpack.c.l.b16 %v125
  %v544 = vunpack.c.l.b16 %v126
  %v545 = vunpack.c.l.b16 %v127
  %v546 = vunpack.c.l.b16 %v128
  %v547 = vunpack.c.l.b16 %v129
  %v548 = vunpack.c.l.b16 %v130
  %v549 = vunpack.c.l.b16 %v131
  %v550 = vunpack.c.l.b16 %v132
  %v551 = vunpack.c.l.b16 %v133
  %v552 = vunpack.c.l.b16 %v134
  %v553 = vunpack.c.l.b16 %v135
  %v554 = vunpack.c.l.b16 %v136
  %v555 = vunpack.c.l.b16 %v137
  %v556 = vunpack.c.l.b16 %v138
  %v557 = vunpack.c.l.b16 %v139
  %v558 = vunpack.c.l.b16 %v140
  %v559 = vunpack.c.l.b16 %v141
  %v560 = vunpack.c.l.b16 %v142
  %v561 = vunpack.c.l.b16 %v143
  %v562 = vunpack.c.l.b16 %v144
  %v563 = vunpack.c.l.b16 %v145
  %v564 = vunpack.c.l.b16 %v146
  %v565 = vunpack.c.l.b16 %v147
  %v566 = vunpack.c.l.b16 %v148
  %v567 = vunpack.c.l.b16 %v149
  %v568 = vpack.c.b16 %v497, %v496
  %v569 = vpack.c.b16 %v499, %v498
  %v570 = vpack.c.b16 %v501, %v500
  %v571 = vpack.c.b16 %v503, %v502
  %v572 = vpack.c.b16 %v505, %v504
  %v573 = vpack.c.b16 %v507, %v506
  %v574 = vpack.c.b16 %v509, %v508
  %v575 = vpack.c.b16 %v511, %v510
  %v576 = vpack.c.b16 %v513, %v512
  %v577 = vpack.c.b16 %v515, %v514
  %v578 = vpack.c.b16 %v517, %v516
  %v579 = vpack.c.b16 %v519, %v518
  %v580 = vpack.c.b16 %v521, %v520
  %v581 = vpack.c.b16 %v523, %v522
  %v582 = vpack.c.b16 %v525, %v524
  %v583 = vpack.c.b16 %v527, %v526
  %v584 = vpack.c.b16 %v529, %v528
  %v585 = vpack.c.b16 %v531, %v530
  %v586 = vpack.c.b16 %v533, %v532
  %v587 = vpack.c.b16 %v535, %v534
  %v588 = vpack.c.b16 %v537, %v536
  %v589 = vpack.c.b16 %v539, %v538
  %v590 = vpack.c.b16 %v541, %v540
  %v591 = vpack.c.b16 %v543, %v542
  %v592 = vpack.c.b16 %v545, %v544
  %v593 = vpack.c.b16 %v547, %v546
  %v594 = vpack.c.b16 %v549, %v548
  %v595 = vpack.c.b16 %v551, %v550
  %v596 = vpack.c.b16 %v553, %v552
  %v597 = vpack.c.b16 %v555, %v554
  %v598 = vpack.c.b16 %v557, %v556
  %v599 = vpack.c.b16 %v559, %v558
  %v600 = vpack.c.b16 %v561, %v560
  %v601 = vpack.c.b16 %v563, %v562
  %v602 = vpack.c.b16 %v565, %v564
  %v603 = vpack.c.b16 %v567, %v566
  %vm640 = vcmask 523264
  %v642 = vsel %vm640, %v329, 0
  %v645 = vsel %vm640, %v334, 0
  %v648 = vsel %vm640, %v339, 0
  %v651 = vsel %vm640, %v344, 0
  %v654 = vsel %vm640, %v349, 0
  %v657 = vsel %vm640, %v354, 0
  %v660 = vsel %vm640, %v359, 0
  %v663 = vsel %vm640, %v364, 0
  %v666 = vsel %vm640, %v369, 0
  %v669 = vsel %vm640, %v374, 0
  %v672 = vsel %vm640, %v379, 0
  %674 = vmatprep.subr.bf16.mxu0 0
  %675 = vmatpush1.bf16.msra.mxu0 %v568
  %676 = vmatprep.subr.bf16.mxu0 0
  %677 = vmatpush1.bf16.msra.mxu0 %v569
  %678 = vmatprep.subr.bf16.mxu0 0
  %679 = vmatpush1.bf16.msra.mxu0 %v570
  %680 = vmatprep.subr.bf16.mxu0 0
  %681 = vmatpush1.bf16.msra.mxu0 %v571
  %682 = vmatprep.subr.bf16.mxu0 0
  %683 = vmatpush1.bf16.msra.mxu0 %v572
  %684 = vmatprep.subr.bf16.mxu0 0
  %685 = vmatpush1.bf16.msra.mxu0 %v573
  %686 = vmatprep.subr.bf16.mxu0 0
  %687 = vmatpush1.bf16.msra.mxu0 %v574
  %688 = vmatprep.subr.bf16.mxu0 0
  %689 = vmatpush1.bf16.msra.mxu0 %v575
  %690 = vmatprep.subr.bf16.mxu0 0
  %691 = vmatpush1.bf16.msra.mxu0 %v576
  %692 = vmatprep.subr.bf16.mxu0 0
  %693 = vmatpush1.bf16.msra.mxu0 %v577
  %694 = vmatprep.subr.bf16.mxu0 0
  %695 = vmatpush1.bf16.msra.mxu0 %v578
  %696 = vmatprep.subr.bf16.mxu0 0
  %697 = vmatpush1.bf16.msra.mxu0 %v579
  %698 = vmatprep.subr.bf16.mxu0 0
  %699 = vmatpush1.bf16.msra.mxu0 %v580
  %700 = vmatprep.subr.bf16.mxu0 0
  %701 = vmatpush1.bf16.msra.mxu0 %v581
  %702 = vmatprep.subr.bf16.mxu0 0
  %703 = vmatpush1.bf16.msra.mxu0 %v582
  %704 = vmatprep.subr.bf16.mxu0 0
  %705 = vmatpush1.bf16.msra.mxu0 %v583
  %706 = vmatprep.mubr.bf16.mxu0 %v326
  %707 = vmatmul.mubr.bf16.gmra.mrb[0].mxu0 %v325
  %v708 = vpop.f32.mrb[0].mxu0
  %v709 = vadd.f32 %v155, %v708
  %v710 = vpop.f32.mrb[0].mxu0
  %v711 = vpop.f32.mrb[0].mxu0
  %v712 = vadd.f32 %v155, %v711
  %v713 = vpop.f32.mrb[0].mxu0
  %714 = vmatprep.mubr.bf16.mxu0 %v331
  %715 = vmatmul.mubr.bf16.gmra.mrb[0].mxu0 %v330
  %v716 = vpop.f32.mrb[0].mxu0
  %v717 = vadd.f32 %v155, %v716
  %v718 = vpop.f32.mrb[0].mxu0
  %v719 = vpop.f32.mrb[0].mxu0
  %v720 = vadd.f32 %v155, %v719
  %v721 = vpop.f32.mrb[0].mxu0
  %722 = vmatprep.mubr.bf16.mxu0 %v336
  %723 = vmatmul.mubr.bf16.gmra.mrb[0].mxu0 %v335
  %v724 = vpop.f32.mrb[0].mxu0
  %v725 = vadd.f32 %v155, %v724
  %v726 = vpop.f32.mrb[0].mxu0
  %v727 = vpop.f32.mrb[0].mxu0
  %v728 = vadd.f32 %v155, %v727
  %v729 = vpop.f32.mrb[0].mxu0
  %730 = vmatprep.mubr.bf16.mxu0 %v341
  %731 = vmatmul.mubr.bf16.gmra.mrb[0].mxu0 %v340
  %v732 = vpop.f32.mrb[0].mxu0
  %v733 = vadd.f32 %v155, %v732
  %v734 = vpop.f32.mrb[0].mxu0
  %v735 = vpop.f32.mrb[0].mxu0
  %v736 = vadd.f32 %v155, %v735
  %v737 = vpop.f32.mrb[0].mxu0
  %738 = vmatprep.mubr.bf16.mxu0 %v346
  %739 = vmatmul.mubr.bf16.gmra.mrb[0].mxu0 %v345
  %v740 = vpop.f32.mrb[0].mxu0
  %v741 = vadd.f32 %v155, %v740
  %v742 = vpop.f32.mrb[0].mxu0
  %v743 = vpop.f32.mrb[0].mxu0
  %v744 = vadd.f32 %v155, %v743
  %v745 = vpop.f32.mrb[0].mxu0
  %746 = vmatprep.mubr.bf16.mxu0 %v351
  %747 = vmatmul.mubr.bf16.gmra.mrb[0].mxu0 %v350
  %v748 = vpop.f32.mrb[0].mxu0
  %v749 = vadd.f32 %v155, %v748
  %v750 = vpop.f32.mrb[0].mxu0
  %v751 = vpop.f32.mrb[0].mxu0
  %v752 = vadd.f32 %v155, %v751
  %v753 = vpop.f32.mrb[0].mxu0
  %754 = vmatprep.mubr.bf16.mxu0 %v356
  %755 = vmatmul.mubr.bf16.gmra.mrb[0].mxu0 %v355
  %v756 = vpop.f32.mrb[0].mxu0
  %v757 = vadd.f32 %v155, %v756
  %v758 = vpop.f32.mrb[0].mxu0
  %v759 = vpop.f32.mrb[0].mxu0
  %v760 = vadd.f32 %v155, %v759
  %v761 = vpop.f32.mrb[0].mxu0
  %762 = vmatprep.mubr.bf16.mxu0 %v361
  %763 = vmatmul.mubr.bf16.gmra.mrb[0].mxu0 %v360
  %v764 = vpop.f32.mrb[0].mxu0
  %v765 = vadd.f32 %v155, %v764
  %v766 = vpop.f32.mrb[0].mxu0
  %v767 = vpop.f32.mrb[0].mxu0
  %v768 = vadd.f32 %v155, %v767
  %v769 = vpop.f32.mrb[0].mxu0
  %770 = vmatprep.mubr.bf16.mxu0 %v366
  %771 = vmatmul.mubr.bf16.gmra.mrb[0].mxu0 %v365
  %v772 = vpop.f32.mrb[0].mxu0
  %v773 = vadd.f32 %v155, %v772
  %v774 = vpop.f32.mrb[0].mxu0
  %v775 = vpop.f32.mrb[0].mxu0
  %v776 = vadd.f32 %v155, %v775
  %v777 = vpop.f32.mrb[0].mxu0
  %778 = vmatprep.mubr.bf16.mxu0 %v371
  %779 = vmatmul.mubr.bf16.gmra.mrb[0].mxu0 %v370
  %v780 = vpop.f32.mrb[0].mxu0
  %v781 = vadd.f32 %v155, %v780
  %v782 = vpop.f32.mrb[0].mxu0
  %v783 = vpop.f32.mrb[0].mxu0
  %v784 = vadd.f32 %v155, %v783
  %v785 = vpop.f32.mrb[0].mxu0
  %786 = vmatprep.mubr.bf16.mxu0 %v376
  %787 = vmatmul.mubr.bf16.gmra.mrb[0].mxu0 %v375
  %v788 = vpop.f32.mrb[0].mxu0
  %v789 = vadd.f32 %v155, %v788
  %v790 = vpop.f32.mrb[0].mxu0
  %v791 = vpop.f32.mrb[0].mxu0
  %v792 = vpop.f32.mrb[0].mxu0
  %793 = vdwg.mxu0
  %794 = vmatprep.subr.bf16.mxu0 0
  %795 = vmatpush1.bf16.msra.mxu0 %v584
  %796 = vmatprep.subr.bf16.mxu0 0
  %797 = vmatpush1.bf16.msra.mxu0 %v585
  %798 = vmatprep.subr.bf16.mxu0 0
  %799 = vmatpush1.bf16.msra.mxu0 %v586
  %800 = vmatprep.subr.bf16.mxu0 0
  %801 = vmatpush1.bf16.msra.mxu0 %v587
  %802 = vmatprep.subr.bf16.mxu0 0
  %803 = vmatpush1.bf16.msra.mxu0 %v588
  %804 = vmatprep.subr.bf16.mxu0 0
  %805 = vmatpush1.bf16.msra.mxu0 %v589
  %806 = vmatprep.subr.bf16.mxu0 0
  %807 = vmatpush1.bf16.msra.mxu0 %v590
  %808 = vmatprep.subr.bf16.mxu0 0
  %809 = vmatpush1.bf16.msra.mxu0 %v591
  %810 = vmatprep.subr.bf16.mxu0 0
  %811 = vmatpush1.bf16.msra.mxu0 %v592
  %812 = vmatprep.subr.bf16.mxu0 0
  %813 = vmatpush1.bf16.msra.mxu0 %v593
  %814 = vmatprep.subr.bf16.mxu0 0
  %815 = vmatpush1.bf16.msra.mxu0 %v594
  %816 = vmatprep.subr.bf16.mxu0 0
  %817 = vmatpush1.bf16.msra.mxu0 %v595
  %818 = vmatprep.subr.bf16.mxu0 0
  %819 = vmatpush1.bf16.msra.mxu0 %v596
  %820 = vmatprep.subr.bf16.mxu0 0
  %821 = vmatpush1.bf16.msra.mxu0 %v597
  %822 = vmatprep.subr.bf16.mxu0 0
  %823 = vmatpush1.bf16.msra.mxu0 %v598
  %824 = vmatprep.subr.bf16.mxu0 0
  %825 = vmatpush1.bf16.msra.mxu0 %v599
  %826 = vmatprep.mubr.bf16.mxu0 %v328
  %827 = vmatmul.mubr.bf16.gmra.mrb[0].mxu0 %v327
  %v828 = vpop.f32.mrb[0].mxu0
  %v829 = vadd.f32 %v709, %v828
  %v830 = vpop.f32.mrb[0].mxu0
  %v831 = vpop.f32.mrb[0].mxu0
  %v832 = vadd.f32 %v712, %v831
  %v833 = vpop.f32.mrb[0].mxu0
  %834 = vmatprep.mubr.bf16.mxu0 %v333
  %835 = vmatmul.mubr.bf16.gmra.mrb[0].mxu0 %v332
  %v836 = vpop.f32.mrb[0].mxu0
  %v837 = vadd.f32 %v717, %v836
  %v838 = vpop.f32.mrb[0].mxu0
  %v839 = vpop.f32.mrb[0].mxu0
  %v840 = vadd.f32 %v720, %v839
  %v841 = vpop.f32.mrb[0].mxu0
  %842 = vmatprep.mubr.bf16.mxu0 %v338
  %843 = vmatmul.mubr.bf16.gmra.mrb[0].mxu0 %v337
  %v844 = vpop.f32.mrb[0].mxu0
  %v845 = vadd.f32 %v725, %v844
  %v846 = vpop.f32.mrb[0].mxu0
  %v847 = vpop.f32.mrb[0].mxu0
  %v848 = vadd.f32 %v728, %v847
  %v849 = vpop.f32.mrb[0].mxu0
  %850 = vmatprep.mubr.bf16.mxu0 %v343
  %851 = vmatmul.mubr.bf16.gmra.mrb[0].mxu0 %v342
  %v852 = vpop.f32.mrb[0].mxu0
  %v853 = vadd.f32 %v733, %v852
  %v854 = vpop.f32.mrb[0].mxu0
  %v855 = vpop.f32.mrb[0].mxu0
  %v856 = vadd.f32 %v736, %v855
  %v857 = vpop.f32.mrb[0].mxu0
  %858 = vmatprep.mubr.bf16.mxu0 %v348
  %859 = vmatmul.mubr.bf16.gmra.mrb[0].mxu0 %v347
  %v860 = vpop.f32.mrb[0].mxu0
  %v861 = vadd.f32 %v741, %v860
  %v862 = vpop.f32.mrb[0].mxu0
  %v863 = vpop.f32.mrb[0].mxu0
  %v864 = vadd.f32 %v744, %v863
  %v865 = vpop.f32.mrb[0].mxu0
  %866 = vmatprep.mubr.bf16.mxu0 %v353
  %867 = vmatmul.mubr.bf16.gmra.mrb[0].mxu0 %v352
  %v868 = vpop.f32.mrb[0].mxu0
  %v869 = vadd.f32 %v749, %v868
  %v870 = vpop.f32.mrb[0].mxu0
  %v871 = vpop.f32.mrb[0].mxu0
  %v872 = vadd.f32 %v752, %v871
  %v873 = vpop.f32.mrb[0].mxu0
  %874 = vmatprep.mubr.bf16.mxu0 %v358
  %875 = vmatmul.mubr.bf16.gmra.mrb[0].mxu0 %v357
  %v876 = vpop.f32.mrb[0].mxu0
  %v877 = vadd.f32 %v757, %v876
  %v878 = vpop.f32.mrb[0].mxu0
  %v879 = vpop.f32.mrb[0].mxu0
  %v880 = vadd.f32 %v760, %v879
  %v881 = vpop.f32.mrb[0].mxu0
  %882 = vmatprep.mubr.bf16.mxu0 %v363
  %883 = vmatmul.mubr.bf16.gmra.mrb[0].mxu0 %v362
  %v884 = vpop.f32.mrb[0].mxu0
  %v885 = vadd.f32 %v765, %v884
  %v886 = vpop.f32.mrb[0].mxu0
  %v887 = vpop.f32.mrb[0].mxu0
  %v888 = vadd.f32 %v768, %v887
  %v889 = vpop.f32.mrb[0].mxu0
  %890 = vmatprep.mubr.bf16.mxu0 %v368
  %891 = vmatmul.mubr.bf16.gmra.mrb[0].mxu0 %v367
  %v892 = vpop.f32.mrb[0].mxu0
  %v893 = vadd.f32 %v773, %v892
  %v894 = vpop.f32.mrb[0].mxu0
  %v895 = vpop.f32.mrb[0].mxu0
  %v896 = vadd.f32 %v776, %v895
  %v897 = vpop.f32.mrb[0].mxu0
  %898 = vmatprep.mubr.bf16.mxu0 %v373
  %899 = vmatmul.mubr.bf16.gmra.mrb[0].mxu0 %v372
  %v900 = vpop.f32.mrb[0].mxu0
  %v901 = vadd.f32 %v781, %v900
  %v902 = vpop.f32.mrb[0].mxu0
  %v903 = vpop.f32.mrb[0].mxu0
  %v904 = vadd.f32 %v784, %v903
  %v905 = vpop.f32.mrb[0].mxu0
  %906 = vmatprep.mubr.bf16.mxu0 %v378
  %907 = vmatmul.mubr.bf16.gmra.mrb[0].mxu0 %v377
  %v908 = vpop.f32.mrb[0].mxu0
  %v909 = vadd.f32 %v789, %v908
  %v910 = vpop.f32.mrb[0].mxu0
  %v911 = vpop.f32.mrb[0].mxu0
  %v912 = vpop.f32.mrb[0].mxu0
  %913 = vdwg.mxu0
  %914 = vmatprep.subr.bf16.mxu0 0
  %915 = vmatpush1.bf16.msra.mxu0 %v600
  %916 = vmatprep.subr.bf16.mxu0 0
  %917 = vmatpush1.bf16.msra.mxu0 %v601
  %918 = vmatprep.subr.bf16.mxu0 0
  %919 = vmatpush1.bf16.msra.mxu0 %v602
  %920 = vmatprep.subr.bf16.mxu0 0
  %921 = vmatpush1.bf16.msra.mxu0 %v603
  %922 = vmatprep.subr.bf16.mxu0 0
  %923 = vmatpush1.bf16.msra.mxu0 0
  %924 = vmatprep.subr.bf16.mxu0 0
  %925 = vmatpush1.bf16.msra.mxu0 0
  %926 = vmatprep.subr.bf16.mxu0 0
  %927 = vmatpush1.bf16.msra.mxu0 0
  %928 = vmatprep.subr.bf16.mxu0 0
  %929 = vmatpush1.bf16.msra.mxu0 0
  %930 = vmatprep.subr.bf16.mxu0 0
  %931 = vmatpush1.bf16.msra.mxu0 0
  %932 = vmatprep.subr.bf16.mxu0 0
  %933 = vmatpush1.bf16.msra.mxu0 0
  %934 = vmatprep.subr.bf16.mxu0 0
  %935 = vmatpush1.bf16.msra.mxu0 0
  %936 = vmatprep.subr.bf16.mxu0 0
  %937 = vmatpush1.bf16.msra.mxu0 0
  %938 = vmatprep.subr.bf16.mxu0 0
  %939 = vmatpush1.bf16.msra.mxu0 0
  %940 = vmatprep.subr.bf16.mxu0 0
  %941 = vmatpush1.bf16.msra.mxu0 0
  %942 = vmatprep.subr.bf16.mxu0 0
  %943 = vmatpush1.bf16.msra.mxu0 0
  %944 = vmatprep.subr.bf16.mxu0 0
  %945 = vmatpush1.bf16.msra.mxu0 0
  %946 = vmatprep.mubr.bf16.mxu0 0
  %947 = vmatmul.mubr.bf16.gmra.mrb[0].mxu0 %v642
  %v948 = vpop.f32.mrb[0].mxu0
  %v949 = vadd.f32 %v829, %v948
  %v950 = vpop.f32.mrb[0].mxu0
  %v951 = vpop.f32.mrb[0].mxu0
  %v952 = vadd.f32 %v832, %v951
  %v953 = vpop.f32.mrb[0].mxu0
  %954 = vmatprep.mubr.bf16.mxu0 0
  %955 = vmatmul.mubr.bf16.gmra.mrb[0].mxu0 %v645
  %v956 = vpop.f32.mrb[0].mxu0
  %v957 = vadd.f32 %v837, %v956
  %v958 = vpop.f32.mrb[0].mxu0
  %v959 = vpop.f32.mrb[0].mxu0
  %v960 = vadd.f32 %v840, %v959
  %v961 = vpop.f32.mrb[0].mxu0
  %962 = vmatprep.mubr.bf16.mxu0 0
  %963 = vmatmul.mubr.bf16.gmra.mrb[0].mxu0 %v648
  %v964 = vpop.f32.mrb[0].mxu0
  %v965 = vadd.f32 %v845, %v964
  %v966 = vpop.f32.mrb[0].mxu0
  %v967 = vpop.f32.mrb[0].mxu0
  %v968 = vadd.f32 %v848, %v967
  %v969 = vpop.f32.mrb[0].mxu0
  %970 = vmatprep.mubr.bf16.mxu0 0
  %971 = vmatmul.mubr.bf16.gmra.mrb[0].mxu0 %v651
  %v972 = vpop.f32.mrb[0].mxu0
  %v973 = vadd.f32 %v853, %v972
  %v974 = vpop.f32.mrb[0].mxu0
  %v975 = vpop.f32.mrb[0].mxu0
  %v976 = vadd.f32 %v856, %v975
  %v977 = vpop.f32.mrb[0].mxu0
  %978 = vmatprep.mubr.bf16.mxu0 0
  %979 = vmatmul.mubr.bf16.gmra.mrb[0].mxu0 %v654
  %v980 = vpop.f32.mrb[0].mxu0
  %v981 = vadd.f32 %v861, %v980
  %v982 = vpop.f32.mrb[0].mxu0
  %v983 = vpop.f32.mrb[0].mxu0
  %v984 = vadd.f32 %v864, %v983
  %v985 = vpop.f32.mrb[0].mxu0
  %986 = vmatprep.mubr.bf16.mxu0 0
  %987 = vmatmul.mubr.bf16.gmra.mrb[0].mxu0 %v657
  %v988 = vpop.f32.mrb[0].mxu0
  %v989 = vadd.f32 %v869, %v988
  %v990 = vpop.f32.mrb[0].mxu0
  %v991 = vpop.f32.mrb[0].mxu0
  %v992 = vadd.f32 %v872, %v991
  %v993 = vpop.f32.mrb[0].mxu0
  %994 = vmatprep.mubr.bf16.mxu0 0
  %995 = vmatmul.mubr.bf16.gmra.mrb[0].mxu0 %v660
  %v996 = vpop.f32.mrb[0].mxu0
  %v997 = vadd.f32 %v877, %v996
  %v998 = vpop.f32.mrb[0].mxu0
  %v999 = vpop.f32.mrb[0].mxu0
  %v1000 = vadd.f32 %v880, %v999
  %v1001 = vpop.f32.mrb[0].mxu0
  %1002 = vmatprep.mubr.bf16.mxu0 0
  %1003 = vmatmul.mubr.bf16.gmra.mrb[0].mxu0 %v663
  %v1004 = vpop.f32.mrb[0].mxu0
  %v1005 = vadd.f32 %v885, %v1004
  %v1006 = vpop.f32.mrb[0].mxu0
  %v1007 = vpop.f32.mrb[0].mxu0
  %v1008 = vadd.f32 %v888, %v1007
  %v1009 = vpop.f32.mrb[0].mxu0
  %1010 = vmatprep.mubr.bf16.mxu0 0
  %1011 = vmatmul.mubr.bf16.gmra.mrb[0].mxu0 %v666
  %v1012 = vpop.f32.mrb[0].mxu0
  %v1013 = vadd.f32 %v893, %v1012
  %v1014 = vpop.f32.mrb[0].mxu0
  %v1015 = vpop.f32.mrb[0].mxu0
  %v1016 = vadd.f32 %v896, %v1015
  %v1017 = vpop.f32.mrb[0].mxu0
  %1018 = vmatprep.mubr.bf16.mxu0 0
  %1019 = vmatmul.mubr.bf16.gmra.mrb[0].mxu0 %v669
  %v1020 = vpop.f32.mrb[0].mxu0
  %v1021 = vadd.f32 %v901, %v1020
  %v1022 = vpop.f32.mrb[0].mxu0
  %v1023 = vpop.f32.mrb[0].mxu0
  %v1024 = vadd.f32 %v904, %v1023
  %v1025 = vpop.f32.mrb[0].mxu0
  %1026 = vmatprep.mubr.bf16.mxu0 0
  %1027 = vmatmul.mubr.bf16.gmra.mrb[0].mxu0 %v672
  %v1028 = vpop.f32.mrb[0].mxu0
  %v1029 = vadd.f32 %v909, %v1028
  %v1030 = vpop.f32.mrb[0].mxu0
  %v1031 = vpop.f32.mrb[0].mxu0
  %v1032 = vpop.f32.mrb[0].mxu0
  %1033 = vdwg.mxu0
  %v1034 = vmax.f32 %v949, 0.0
  %v1035 = vmax.f32 %v952, 0.0
  %v1036 = vmax.f32 %v957, 0.0
  %v1037 = vmax.f32 %v960, 0.0
  %v1038 = vmax.f32 %v965, 0.0
  %v1039 = vmax.f32 %v968, 0.0
  %v1040 = vmax.f32 %v973, 0.0
  %v1041 = vmax.f32 %v976, 0.0
  %v1042 = vmax.f32 %v981, 0.0
  %v1043 = vmax.f32 %v984, 0.0
  %v1044 = vmax.f32 %v989, 0.0
  %v1045 = vmax.f32 %v992, 0.0
  %v1046 = vmax.f32 %v997, 0.0
  %v1047 = vmax.f32 %v1000, 0.0
  %v1048 = vmax.f32 %v1005, 0.0
  %v1049 = vmax.f32 %v1008, 0.0
  %v1050 = vmax.f32 %v1013, 0.0
  %v1051 = vmax.f32 %v1016, 0.0
  %v1052 = vmax.f32 %v1021, 0.0
  %v1053 = vmax.f32 %v1024, 0.0
  %v1054 = vmax.f32 %v1029, 0.0
  %v1055 = vpack.c.bf16 %v1035, %v1034
  %v1056 = vpack.c.bf16 %v1037, %v1036
  %v1057 = vpack.c.bf16 %v1039, %v1038
  %v1058 = vpack.c.bf16 %v1041, %v1040
  %v1059 = vpack.c.bf16 %v1043, %v1042
  %v1060 = vpack.c.bf16 %v1045, %v1044
  %v1061 = vpack.c.bf16 %v1047, %v1046
  %v1062 = vpack.c.bf16 %v1049, %v1048
  %v1063 = vpack.c.bf16 %v1051, %v1050
  %v1064 = vpack.c.bf16 %v1053, %v1052
  %v1065 = vpack.c.bf16 %v1054, %v1054
  %v1077 = vunpack.c.l.b16 %v1055
  %v1078 = vunpack.c.h.b16 %v1055
  %v1079 = vunpack.c.l.b16 %v1056
  %v1080 = vunpack.c.h.b16 %v1056
  %v1081 = vunpack.c.l.b16 %v1057
  %v1082 = vunpack.c.h.b16 %v1057
  %v1083 = vunpack.c.l.b16 %v1058
  %v1084 = vunpack.c.h.b16 %v1058
  %v1085 = vunpack.c.l.b16 %v1059
  %v1086 = vunpack.c.h.b16 %v1059
  %v1087 = vunpack.c.l.b16 %v1060
  %v1088 = vunpack.c.h.b16 %v1060
  %v1089 = vunpack.c.l.b16 %v1061
  %v1090 = vunpack.c.h.b16 %v1061
  %v1091 = vunpack.c.l.b16 %v1062
  %v1092 = vunpack.c.h.b16 %v1062
  %v1093 = vunpack.c.l.b16 %v1063
  %v1094 = vunpack.c.h.b16 %v1063
  %v1095 = vunpack.c.l.b16 %v1064
  %v1096 = vunpack.c.h.b16 %v1064
  %v1097 = vunpack.c.l.b16 %v1065
  %v1098 = vpack.c.b16 %v1077, %v1077
  %v1099 = vpack.c.b16 %v1078, %v1078
  %v1100 = vpack.c.b16 %v1079, %v1079
  %v1101 = vpack.c.b16 %v1080, %v1080
  %v1102 = vpack.c.b16 %v1081, %v1081
  %v1103 = vpack.c.b16 %v1082, %v1082
  %v1104 = vpack.c.b16 %v1083, %v1083
  %v1105 = vpack.c.b16 %v1084, %v1084
  %v1106 = vpack.c.b16 %v1085, %v1085
  %v1107 = vpack.c.b16 %v1086, %v1086
  %v1108 = vpack.c.b16 %v1087, %v1087
  %v1109 = vpack.c.b16 %v1088, %v1088
  %v1110 = vpack.c.b16 %v1089, %v1089
  %v1111 = vpack.c.b16 %v1090, %v1090
  %v1112 = vpack.c.b16 %v1091, %v1091
  %v1113 = vpack.c.b16 %v1092, %v1092
  %v1114 = vpack.c.b16 %v1093, %v1093
  %v1115 = vpack.c.b16 %v1094, %v1094
  %v1116 = vpack.c.b16 %v1095, %v1095
  %v1117 = vpack.c.b16 %v1096, %v1096
  %v1118 = vpack.c.b16 %v1097, %v1097
  %vm1140 = vcmask 519168
  %1141 = vst.msk [vmem:[%s3] sm:$0xf] %vm1140, %v1098
  %1142 = vst.msk [vmem:[%s3 + $0x4] sm:$0xf] %vm1140, %v1099
  %1143 = vst.msk [vmem:[%s3 + $0x8] sm:$0xf] %vm1140, %v1100
  %1144 = vst.msk [vmem:[%s3 + $0xc] sm:$0xf] %vm1140, %v1101
  %1145 = vst.msk [vmem:[%s3 + $0x10] sm:$0xf] %vm1140, %v1102
  %1146 = vst.msk [vmem:[%s3 + $0x14] sm:$0xf] %vm1140, %v1103
  %1147 = vst.msk [vmem:[%s3 + $0x18] sm:$0xf] %vm1140, %v1104
  %1148 = vst.msk [vmem:[%s3 + $0x1c] sm:$0xf] %vm1140, %v1105
  %1149 = vst.msk [vmem:[%s3 + $0x20] sm:$0xf] %vm1140, %v1106
  %1150 = vst.msk [vmem:[%s3 + $0x24] sm:$0xf] %vm1140, %v1107
  %1151 = vst.msk [vmem:[%s3 + $0x28] sm:$0xf] %vm1140, %v1108
  %1152 = vst.msk [vmem:[%s3 + $0x2c] sm:$0xf] %vm1140, %v1109
  %1153 = vst.msk [vmem:[%s3 + $0x30] sm:$0xf] %vm1140, %v1110
  %1154 = vst.msk [vmem:[%s3 + $0x34] sm:$0xf] %vm1140, %v1111
  %1155 = vst.msk [vmem:[%s3 + $0x38] sm:$0xf] %vm1140, %v1112
  %1156 = vst.msk [vmem:[%s3 + $0x3c] sm:$0xf] %vm1140, %v1113
  %1157 = vst.msk [vmem:[%s3 + $0x40] sm:$0xf] %vm1140, %v1114
  %1158 = vst.msk [vmem:[%s3 + $0x44] sm:$0xf] %vm1140, %v1115
  %1159 = vst.msk [vmem:[%s3 + $0x48] sm:$0xf] %vm1140, %v1116
  %1160 = vst.msk [vmem:[%s3 + $0x4c] sm:$0xf] %vm1140, %v1117
  %vm1161 = vcmask 516096
  %1162 = vst.msk [vmem:[%s3 + $0x50] sm:$0x1] %vm1161, %v1118
  // Predicated region
  $region14: #{dqn_forward.6} parent=0 // pred_check
    _
  $region15: #{dqn_forward.6} parent=0 // pred_check_branch
    %1164 = sbr.rel (0) target = $region17
  $region16: #{dqn_forward.6} parent=0 // pred_region
    _
  $region17: #{dqn_forward.6} parent=0 // pred_fallthru
    _
  // Predicated region
  $region18: #{dqn_forward.6} parent=0 // pred_check
    _
  $region19: #{dqn_forward.6} parent=0 // pred_check_branch
    %1166 = sbr.rel (0) target = $region21
  $region20: #{dqn_forward.6} parent=0 // pred_region
    _
  $region21: #{dqn_forward.6} parent=0 // pred_fallthru
    _

// kernel: dqn_forward.7
$region0: #{dqn_forward.7}
  #allocation0 [shape = 'u32[]', space=smem, size = 0x4, offset = 0x4, fixed_abs, tag = 'smem constant byte address 0x4 - core index']
  #allocation1 [shape = 'u32[144,128]{1,0:T(1,128)}', space=vmem, size = 0x12000, scoped, tag = 'internal scratch']
  %s0 = inlined_call_operand.vmem [shape: bf16[2,5184], index: 0, kind: input, shape index: {}]
  %s1 = inlined_call_operand.vmem [shape: bf16[5184,256], index: 1, kind: input, shape index: {}]
  %s2 = inlined_call_operand.vmem [shape: f32[1,256], index: 2, kind: input, shape index: {}]
  %s3 = inlined_call_operand.vmem [shape: bf16[256,6], index: 3, kind: input, shape index: {}]
  %s4 = inlined_call_operand.vmem [shape: f32[1,6], index: 4, kind: input, shape index: {}]
  %s5 = inlined_call_operand.hbm [shape: f32[2,6], index: 5, kind: output, shape index: {}]
  %s6 = sld [smem:[#allocation0]]
  $region30: #{dqn_forward.7} parent=0
    _
  %s8 = ssub.s32 1, %s6
  %s9 = scalar_select 0, %s8, %s6
  $region1: #{dqn_forward.7} parent=0
    #allocation2 [shape = 'u8[1024]{0}', space=vmem, size = 0x400, scoped, tag = 'output window, operand 0, single buffered']
    #allocation3 [shape = 's32[1]{0}', space=sflag, size = 0x4, scoped, tag = 'scoped memory for dqn_forward.7']
    %10 = vsyncpa [#allocation3], 0
    // Predicated region
    $region2: #{dqn_forward.7} parent=1 // pred_check
      _
    $region3: #{dqn_forward.7} parent=1 // pred_check_branch
      %12 = sbr.rel (0) target = $region5
    $region4: #{dqn_forward.7} parent=1 // pred_region
      _
    $region5: #{dqn_forward.7} parent=1 // pred_fallthru
      _
    // Predicated region
    $region6: #{dqn_forward.7} parent=1 // pred_check
      _
    $region7: #{dqn_forward.7} parent=1 // pred_check_branch
      %14 = sbr.rel (0) target = $region9
    $region8: #{dqn_forward.7} parent=1 // pred_region
      _
    $region9: #{dqn_forward.7} parent=1 // pred_fallthru
      _
    // Predicated region
    $region10: #{dqn_forward.7} parent=1 // pred_check
      _
    $region11: #{dqn_forward.7} parent=1 // pred_check_branch
      %16 = sbr.rel (0) target = $region13
    $region12: #{dqn_forward.7} parent=1 // pred_region
      _
    $region13: #{dqn_forward.7} parent=1 // pred_fallthru
      _
    // Predicated region
    $region14: #{dqn_forward.7} parent=1 // pred_check
      _
    $region15: #{dqn_forward.7} parent=1 // pred_check_branch
      %18 = sbr.rel (0) target = $region17
    $region16: #{dqn_forward.7} parent=1 // pred_region
      _
    $region17: #{dqn_forward.7} parent=1 // pred_fallthru
      _
    // Predicated region
    $region18: #{dqn_forward.7} parent=1 // pred_check
      _
    $region19: #{dqn_forward.7} parent=1 // pred_check_branch
      %20 = sbr.rel (0) target = $region21
    $region20: #{dqn_forward.7} parent=1 // pred_region
      _
    $region21: #{dqn_forward.7} parent=1 // pred_fallthru
      _
    %v22 = vld [vmem:[%s0] sm:$0xff]
    %v23 = vld [vmem:[%s0 + $0x8] sm:$0xff]
    %v24 = vld [vmem:[%s0 + $0x10] sm:$0xff]
    %v25 = vld [vmem:[%s0 + $0x18] sm:$0xff]
    %v26 = vld [vmem:[%s0 + $0x20] sm:$0xff]
    %v27 = vld [vmem:[%s0 + $0x28] sm:$0x1]
    %v28 = vld [vmem:[%s1] sm:$0xff]
    %v29 = vld [vmem:[%s1 + $0x8] sm:$0xff]
    %v30 = vld [vmem:[%s1 + $0x10] sm:$0xff]
    %v31 = vld [vmem:[%s1 + $0x18] sm:$0xff]
    %v32 = vld [vmem:[%s1 + $0x20] sm:$0xff]
    %v33 = vld [vmem:[%s1 + $0x28] sm:$0xff]
    %v34 = vld [vmem:[%s1 + $0x30] sm:$0xff]
    %v35 = vld [vmem:[%s1 + $0x38] sm:$0xff]
    %v36 = vld [vmem:[%s1 + $0x40] sm:$0xff]
    %v37 = vld [vmem:[%s1 + $0x48] sm:$0xff]
    %v38 = vld [vmem:[%s1 + $0x50] sm:$0xff]
    %v39 = vld [vmem:[%s1 + $0x58] sm:$0xff]
    %v40 = vld [vmem:[%s1 + $0x60] sm:$0xff]
    %v41 = vld [vmem:[%s1 + $0x68] sm:$0xff]
    %v42 = vld [vmem:[%s1 + $0x70] sm:$0xff]
    %v43 = vld [vmem:[%s1 + $0x78] sm:$0xff]
    %v44 = vld [vmem:[%s1 + $0x80] sm:$0xff]
    %v45 = vld [vmem:[%s1 + $0x88] sm:$0xff]
    %v46 = vld [vmem:[%s1 + $0x90] sm:$0xff]
    %v47 = vld [vmem:[%s1 + $0x98] sm:$0xff]
    %v48 = vld [vmem:[%s1 + $0xa0] sm:$0xff]
    %v49 = vld [vmem:[%s1 + $0xa8] sm:$0xff]
    %v50 = vld [vmem:[%s1 + $0xb0] sm:$0xff]
    %v51 = vld [vmem:[%s1 + $0xb8] sm:$0xff]
    %v52 = vld [vmem:[%s1 + $0xc0] sm:$0xff]
    %v53 = vld [vmem:[%s1 + $0xc8] sm:$0xff]
    %v54 = vld [vmem:[%s1 + $0xd0] sm:$0xff]
    %v55 = vld [vmem:[%s1 + $0xd8] sm:$0xff]
    %v56 = vld [vmem:[%s1 + $0xe0] sm:$0xff]
    %v57 = vld [vmem:[%s1 + $0xe8] sm:$0xff]
    %v58 = vld [vmem:[%s1 + $0xf0] sm:$0xff]
    %v59 = vld [vmem:[%s1 + $0xf8] sm:$0xff]
    %v60 = vld [vmem:[%s1 + $0x100] sm:$0xff]
    %v61 = vld [vmem:[%s1 + $0x108] sm:$0xff]
    %v62 = vld [vmem:[%s1 + $0x110] sm:$0xff]
    %v63 = vld [vmem:[%s1 + $0x118] sm:$0xff]
    %v64 = vld [vmem:[%s1 + $0x120] sm:$0xff]
    %v65 = vld [vmem:[%s1 + $0x128] sm:$0xff]
    %v66 = vld [vmem:[%s1 + $0x130] sm:$0xff]
    %v67 = vld [vmem:[%s1 + $0x138] sm:$0xff]
    %v68 = vld [vmem:[%s1 + $0x140] sm:$0xff]
    %v69 = vld [vmem:[%s1 + $0x148] sm:$0xff]
    %v70 = vld [vmem:[%s1 + $0x150] sm:$0xff]
    %v71 = vld [vmem:[%s1 + $0x158] sm:$0xff]
    %v72 = vld [vmem:[%s1 + $0x160] sm:$0xff]
    %v73 = vld [vmem:[%s1 + $0x168] sm:$0xff]
    %v74 = vld [vmem:[%s1 + $0x170] sm:$0xff]
    %v75 = vld [vmem:[%s1 + $0x178] sm:$0xff]
    %v76 = vld [vmem:[%s1 + $0x180] sm:$0xff]
    %v77 = vld [vmem:[%s1 + $0x188] sm:$0xff]
    %v78 = vld [vmem:[%s1 + $0x190] sm:$0xff]
    %v79 = vld [vmem:[%s1 + $0x198] sm:$0xff]
    %v80 = vld [vmem:[%s1 + $0x1a0] sm:$0xff]
    %v81 = vld [vmem:[%s1 + $0x1a8] sm:$0xff]
    %v82 = vld [vmem:[%s1 + $0x1b0] sm:$0xff]
    %v83 = vld [vmem:[%s1 + $0x1b8] sm:$0xff]
    %v84 = vld [vmem:[%s1 + $0x1c0] sm:$0xff]
    %v85 = vld [vmem:[%s1 + $0x1c8] sm:$0xff]
    %v86 = vld [vmem:[%s1 + $0x1d0] sm:$0xff]
    %v87 = vld [vmem:[%s1 + $0x1d8] sm:$0xff]
    %v88 = vld [vmem:[%s1 + $0x1e0] sm:$0xff]
    %v89 = vld [vmem:[%s1 + $0x1e8] sm:$0xff]
    %v90 = vld [vmem:[%s1 + $0x1f0] sm:$0xff]
    %v91 = vld [vmem:[%s1 + $0x1f8] sm:$0xff]
    %v92 = vld [vmem:[%s1 + $0x200] sm:$0xff]
    %v93 = vld [vmem:[%s1 + $0x208] sm:$0xff]
    %v94 = vld [vmem:[%s1 + $0x210] sm:$0xff]
    %v95 = vld [vmem:[%s1 + $0x218] sm:$0xff]
    %v96 = vld [vmem:[%s1 + $0x220] sm:$0xff]
    %v97 = vld [vmem:[%s1 + $0x228] sm:$0xff]
    %v98 = vld [vmem:[%s1 + $0x230] sm:$0xff]
    %v99 = vld [vmem:[%s1 + $0x238] sm:$0xff]
    %v100 = vld [vmem:[%s1 + $0x240] sm:$0xff]
    %v101 = vld [vmem:[%s1 + $0x248] sm:$0xff]
    %v102 = vld [vmem:[%s1 + $0x250] sm:$0xff]
    %v103 = vld [vmem:[%s1 + $0x258] sm:$0xff]
    %v104 = vld [vmem:[%s1 + $0x260] sm:$0xff]
    %v105 = vld [vmem:[%s1 + $0x268] sm:$0xff]
    %v106 = vld [vmem:[%s1 + $0x270] sm:$0xff]
    %v107 = vld [vmem:[%s1 + $0x278] sm:$0xff]
    %v108 = vld [vmem:[%s1 + $0x280] sm:$0xff]
    %v109 = vld [vmem:[%s1 + $0x288] sm:$0xff]
    %v110 = vld [vmem:[%s1 + $0x290] sm:$0xff]
    %v111 = vld [vmem:[%s1 + $0x298] sm:$0xff]
    %v112 = vld [vmem:[%s1 + $0x2a0] sm:$0xff]
    %v113 = vld [vmem:[%s1 + $0x2a8] sm:$0xff]
    %v114 = vld [vmem:[%s1 + $0x2b0] sm:$0xff]
    %v115 = vld [vmem:[%s1 + $0x2b8] sm:$0xff]
    %v116 = vld [vmem:[%s1 + $0x2c0] sm:$0xff]
    %v117 = vld [vmem:[%s1 + $0x2c8] sm:$0xff]
    %v118 = vld [vmem:[%s1 + $0x2d0] sm:$0xff]
    %v119 = vld [vmem:[%s1 + $0x2d8] sm:$0xff]
    %v120 = vld [vmem:[%s1 + $0x2e0] sm:$0xff]
    %v121 = vld [vmem:[%s1 + $0x2e8] sm:$0xff]
    %v122 = vld [vmem:[%s1 + $0x2f0] sm:$0xff]
    %v123 = vld [vmem:[%s1 + $0x2f8] sm:$0xff]
    %v124 = vld [vmem:[%s1 + $0x300] sm:$0xff]
    %v125 = vld [vmem:[%s1 + $0x308] sm:$0xff]
    %v126 = vld [vmem:[%s1 + $0x310] sm:$0xff]
    %v127 = vld [vmem:[%s1 + $0x318] sm:$0xff]
    %v128 = vld [vmem:[%s1 + $0x320] sm:$0xff]
    %v129 = vld [vmem:[%s1 + $0x328] sm:$0xff]
    %v130 = vld [vmem:[%s1 + $0x330] sm:$0xff]
    %v131 = vld [vmem:[%s1 + $0x338] sm:$0xff]
    %v132 = vld [vmem:[%s1 + $0x340] sm:$0xff]
    %v133 = vld [vmem:[%s1 + $0x348] sm:$0xff]
    %v134 = vld [vmem:[%s1 + $0x350] sm:$0xff]
    %v135 = vld [vmem:[%s1 + $0x358] sm:$0xff]
    %v136 = vld [vmem:[%s1 + $0x360] sm:$0xff]
    %v137 = vld [vmem:[%s1 + $0x368] sm:$0xff]
    %v138 = vld [vmem:[%s1 + $0x370] sm:$0xff]
    %v139 = vld [vmem:[%s1 + $0x378] sm:$0xff]
    %v140 = vld [vmem:[%s1 + $0x380] sm:$0xff]
    %v141 = vld [vmem:[%s1 + $0x388] sm:$0xff]
    %v142 = vld [vmem:[%s1 + $0x390] sm:$0xff]
    %v143 = vld [vmem:[%s1 + $0x398] sm:$0xff]
    %v144 = vld [vmem:[%s1 + $0x3a0] sm:$0xff]
    %v145 = vld [vmem:[%s1 + $0x3a8] sm:$0xff]
    %v146 = vld [vmem:[%s1 + $0x3b0] sm:$0xff]
    %v147 = vld [vmem:[%s1 + $0x3b8] sm:$0xff]
    %v148 = vld [vmem:[%s1 + $0x3c0] sm:$0xff]
    %v149 = vld [vmem:[%s1 + $0x3c8] sm:$0xff]
    %v150 = vld [vmem:[%s1 + $0x3d0] sm:$0xff]
    %v151 = vld [vmem:[%s1 + $0x3d8] sm:$0xff]
    %v152 = vld [vmem:[%s1 + $0x3e0] sm:$0xff]
    %v153 = vld [vmem:[%s1 + $0x3e8] sm:$0xff]
    %v154 = vld [vmem:[%s1 + $0x3f0] sm:$0xff]
    %v155 = vld [vmem:[%s1 + $0x3f8] sm:$0xff]
    %v156 = vld [vmem:[%s1 + $0x400] sm:$0xff]
    %v157 = vld [vmem:[%s1 + $0x408] sm:$0xff]
    %v158 = vld [vmem:[%s1 + $0x410] sm:$0xff]
    %v159 = vld [vmem:[%s1 + $0x418] sm:$0xff]
    %v160 = vld [vmem:[%s1 + $0x420] sm:$0xff]
    %v161 = vld [vmem:[%s1 + $0x428] sm:$0xff]
    %v162 = vld [vmem:[%s1 + $0x430] sm:$0xff]
    %v163 = vld [vmem:[%s1 + $0x438] sm:$0xff]
    %v164 = vld [vmem:[%s1 + $0x440] sm:$0xff]
    %v165 = vld [vmem:[%s1 + $0x448] sm:$0xff]
    %v166 = vld [vmem:[%s1 + $0x450] sm:$0xff]
    %v167 = vld [vmem:[%s1 + $0x458] sm:$0xff]
    %v168 = vld [vmem:[%s1 + $0x460] sm:$0xff]
    %v169 = vld [vmem:[%s1 + $0x468] sm:$0xff]
    %v170 = vld [vmem:[%s1 + $0x470] sm:$0xff]
    %v171 = vld [vmem:[%s1 + $0x478] sm:$0xff]
    %v172 = vld [vmem:[%s1 + $0x480] sm:$0xff]
    %v173 = vld [vmem:[%s1 + $0x488] sm:$0xff]
    %v174 = vld [vmem:[%s1 + $0x490] sm:$0xff]
    %v175 = vld [vmem:[%s1 + $0x498] sm:$0xff]
    %v176 = vld [vmem:[%s1 + $0x4a0] sm:$0xff]
    %v177 = vld [vmem:[%s1 + $0x4a8] sm:$0xff]
    %v178 = vld [vmem:[%s1 + $0x4b0] sm:$0xff]
    %v179 = vld [vmem:[%s1 + $0x4b8] sm:$0xff]
    %v180 = vld [vmem:[%s1 + $0x4c0] sm:$0xff]
    %v181 = vld [vmem:[%s1 + $0x4c8] sm:$0xff]
    %v182 = vld [vmem:[%s1 + $0x4d0] sm:$0xff]
    %v183 = vld [vmem:[%s1 + $0x4d8] sm:$0xff]
    %v184 = vld [vmem:[%s1 + $0x4e0] sm:$0xff]
    %v185 = vld [vmem:[%s1 + $0x4e8] sm:$0xff]
    %v186 = vld [vmem:[%s1 + $0x4f0] sm:$0xff]
    %v187 = vld [vmem:[%s1 + $0x4f8] sm:$0xff]
    %v188 = vld [vmem:[%s1 + $0x500] sm:$0xff]
    %v189 = vld [vmem:[%s1 + $0x508] sm:$0xff]
    %v190 = vld [vmem:[%s1 + $0x510] sm:$0xff]
    %v191 = vld [vmem:[%s1 + $0x518] sm:$0xff]
    %v192 = vld [vmem:[%s1 + $0x520] sm:$0xff]
    %v193 = vld [vmem:[%s1 + $0x528] sm:$0xff]
    %v194 = vld [vmem:[%s1 + $0x530] sm:$0xff]
    %v195 = vld [vmem:[%s1 + $0x538] sm:$0xff]
    %v196 = vld [vmem:[%s1 + $0x540] sm:$0xff]
    %v197 = vld [vmem:[%s1 + $0x548] sm:$0xff]
    %v198 = vld [vmem:[%s1 + $0x550] sm:$0xff]
    %v199 = vld [vmem:[%s1 + $0x558] sm:$0xff]
    %v200 = vld [vmem:[%s1 + $0x560] sm:$0xff]
    %v201 = vld [vmem:[%s1 + $0x568] sm:$0xff]
    %v202 = vld [vmem:[%s1 + $0x570] sm:$0xff]
    %v203 = vld [vmem:[%s1 + $0x578] sm:$0xff]
    %v204 = vld [vmem:[%s1 + $0x580] sm:$0xff]
    %v205 = vld [vmem:[%s1 + $0x588] sm:$0xff]
    %v206 = vld [vmem:[%s1 + $0x590] sm:$0xff]
    %v207 = vld [vmem:[%s1 + $0x598] sm:$0xff]
    %v208 = vld [vmem:[%s1 + $0x5a0] sm:$0xff]
    %v209 = vld [vmem:[%s1 + $0x5a8] sm:$0xff]
    %v210 = vld [vmem:[%s1 + $0x5b0] sm:$0xff]
    %v211 = vld [vmem:[%s1 + $0x5b8] sm:$0xff]
    %v212 = vld [vmem:[%s1 + $0x5c0] sm:$0xff]
    %v213 = vld [vmem:[%s1 + $0x5c8] sm:$0xff]
    %v214 = vld [vmem:[%s1 + $0x5d0] sm:$0xff]
    %v215 = vld [vmem:[%s1 + $0x5d8] sm:$0xff]
    %v216 = vld [vmem:[%s1 + $0x5e0] sm:$0xff]
    %v217 = vld [vmem:[%s1 + $0x5e8] sm:$0xff]
    %v218 = vld [vmem:[%s1 + $0x5f0] sm:$0xff]
    %v219 = vld [vmem:[%s1 + $0x5f8] sm:$0xff]
    %v220 = vld [vmem:[%s1 + $0x600] sm:$0xff]
    %v221 = vld [vmem:[%s1 + $0x608] sm:$0xff]
    %v222 = vld [vmem:[%s1 + $0x610] sm:$0xff]
    %v223 = vld [vmem:[%s1 + $0x618] sm:$0xff]
    %v224 = vld [vmem:[%s1 + $0x620] sm:$0xff]
    %v225 = vld [vmem:[%s1 + $0x628] sm:$0xff]
    %v226 = vld [vmem:[%s1 + $0x630] sm:$0xff]
    %v227 = vld [vmem:[%s1 + $0x638] sm:$0xff]
    %v228 = vld [vmem:[%s1 + $0x640] sm:$0xff]
    %v229 = vld [vmem:[%s1 + $0x648] sm:$0xff]
    %v230 = vld [vmem:[%s1 + $0x650] sm:$0xff]
    %v231 = vld [vmem:[%s1 + $0x658] sm:$0xff]
    %v232 = vld [vmem:[%s1 + $0x660] sm:$0xff]
    %v233 = vld [vmem:[%s1 + $0x668] sm:$0xff]
    %v234 = vld [vmem:[%s1 + $0x670] sm:$0xff]
    %v235 = vld [vmem:[%s1 + $0x678] sm:$0xff]
    %v236 = vld [vmem:[%s1 + $0x680] sm:$0xff]
    %v237 = vld [vmem:[%s1 + $0x688] sm:$0xff]
    %v238 = vld [vmem:[%s1 + $0x690] sm:$0xff]
    %v239 = vld [vmem:[%s1 + $0x698] sm:$0xff]
    %v240 = vld [vmem:[%s1 + $0x6a0] sm:$0xff]
    %v241 = vld [vmem:[%s1 + $0x6a8] sm:$0xff]
    %v242 = vld [vmem:[%s1 + $0x6b0] sm:$0xff]
    %v243 = vld [vmem:[%s1 + $0x6b8] sm:$0xff]
    %v244 = vld [vmem:[%s1 + $0x6c0] sm:$0xff]
    %v245 = vld [vmem:[%s1 + $0x6c8] sm:$0xff]
    %v246 = vld [vmem:[%s1 + $0x6d0] sm:$0xff]
    %v247 = vld [vmem:[%s1 + $0x6d8] sm:$0xff]
    %v248 = vld [vmem:[%s1 + $0x6e0] sm:$0xff]
    %v249 = vld [vmem:[%s1 + $0x6e8] sm:$0xff]
    %v250 = vld [vmem:[%s1 + $0x6f0] sm:$0xff]
    %v251 = vld [vmem:[%s1 + $0x6f8] sm:$0xff]
    %v252 = vld [vmem:[%s1 + $0x700] sm:$0xff]
    %v253 = vld [vmem:[%s1 + $0x708] sm:$0xff]
    %v254 = vld [vmem:[%s1 + $0x710] sm:$0xff]
    %v255 = vld [vmem:[%s1 + $0x718] sm:$0xff]
    %v256 = vld [vmem:[%s1 + $0x720] sm:$0xff]
    %v257 = vld [vmem:[%s1 + $0x728] sm:$0xff]
    %v258 = vld [vmem:[%s1 + $0x730] sm:$0xff]
    %v259 = vld [vmem:[%s1 + $0x738] sm:$0xff]
    %v260 = vld [vmem:[%s1 + $0x740] sm:$0xff]
    %v261 = vld [vmem:[%s1 + $0x748] sm:$0xff]
    %v262 = vld [vmem:[%s1 + $0x750] sm:$0xff]
    %v263 = vld [vmem:[%s1 + $0x758] sm:$0xff]
    %v264 = vld [vmem:[%s1 + $0x760] sm:$0xff]
    %v265 = vld [vmem:[%s1 + $0x768] sm:$0xff]
    %v266 = vld [vmem:[%s1 + $0x770] sm:$0xff]
    %v267 = vld [vmem:[%s1 + $0x778] sm:$0xff]
    %v268 = vld [vmem:[%s1 + $0x780] sm:$0xff]
    %v269 = vld [vmem:[%s1 + $0x788] sm:$0xff]
    %v270 = vld [vmem:[%s1 + $0x790] sm:$0xff]
    %v271 = vld [vmem:[%s1 + $0x798] sm:$0xff]
    %v272 = vld [vmem:[%s1 + $0x7a0] sm:$0xff]
    %v273 = vld [vmem:[%s1 + $0x7a8] sm:$0xff]
    %v274 = vld [vmem:[%s1 + $0x7b0] sm:$0xff]
    %v275 = vld [vmem:[%s1 + $0x7b8] sm:$0xff]
    %v276 = vld [vmem:[%s1 + $0x7c0] sm:$0xff]
    %v277 = vld [vmem:[%s1 + $0x7c8] sm:$0xff]
    %v278 = vld [vmem:[%s1 + $0x7d0] sm:$0xff]
    %v279 = vld [vmem:[%s1 + $0x7d8] sm:$0xff]
    %v280 = vld [vmem:[%s1 + $0x7e0] sm:$0xff]
    %v281 = vld [vmem:[%s1 + $0x7e8] sm:$0xff]
    %v282 = vld [vmem:[%s1 + $0x7f0] sm:$0xff]
    %v283 = vld [vmem:[%s1 + $0x7f8] sm:$0xff]
    %v284 = vld [vmem:[%s1 + $0x800] sm:$0xff]
    %v285 = vld [vmem:[%s1 + $0x808] sm:$0xff]
    %v286 = vld [vmem:[%s1 + $0x810] sm:$0xff]
    %v287 = vld [vmem:[%s1 + $0x818] sm:$0xff]
    %v288 = vld [vmem:[%s1 + $0x820] sm:$0xff]
    %v289 = vld [vmem:[%s1 + $0x828] sm:$0xff]
    %v290 = vld [vmem:[%s1 + $0x830] sm:$0xff]
    %v291 = vld [vmem:[%s1 + $0x838] sm:$0xff]
    %v292 = vld [vmem:[%s1 + $0x840] sm:$0xff]
    %v293 = vld [vmem:[%s1 + $0x848] sm:$0xff]
    %v294 = vld [vmem:[%s1 + $0x850] sm:$0xff]
    %v295 = vld [vmem:[%s1 + $0x858] sm:$0xff]
    %v296 = vld [vmem:[%s1 + $0x860] sm:$0xff]
    %v297 = vld [vmem:[%s1 + $0x868] sm:$0xff]
    %v298 = vld [vmem:[%s1 + $0x870] sm:$0xff]
    %v299 = vld [vmem:[%s1 + $0x878] sm:$0xff]
    %v300 = vld [vmem:[%s1 + $0x880] sm:$0xff]
    %v301 = vld [vmem:[%s1 + $0x888] sm:$0xff]
    %v302 = vld [vmem:[%s1 + $0x890] sm:$0xff]
    %v303 = vld [vmem:[%s1 + $0x898] sm:$0xff]
    %v304 = vld [vmem:[%s1 + $0x8a0] sm:$0xff]
    %v305 = vld [vmem:[%s1 + $0x8a8] sm:$0xff]
    %v306 = vld [vmem:[%s1 + $0x8b0] sm:$0xff]
    %v307 = vld [vmem:[%s1 + $0x8b8] sm:$0xff]
    %v308 = vld [vmem:[%s1 + $0x8c0] sm:$0xff]
    %v309 = vld [vmem:[%s1 + $0x8c8] sm:$0xff]
    %v310 = vld [vmem:[%s1 + $0x8d0] sm:$0xff]
    %v311 = vld [vmem:[%s1 + $0x8d8] sm:$0xff]
    %v312 = vld [vmem:[%s1 + $0x8e0] sm:$0xff]
    %v313 = vld [vmem:[%s1 + $0x8e8] sm:$0xff]
    %v314 = vld [vmem:[%s1 + $0x8f0] sm:$0xff]
    %v315 = vld [vmem:[%s1 + $0x8f8] sm:$0xff]
    %v316 = vld [vmem:[%s1 + $0x900] sm:$0xff]
    %v317 = vld [vmem:[%s1 + $0x908] sm:$0xff]
    %v318 = vld [vmem:[%s1 + $0x910] sm:$0xff]
    %v319 = vld [vmem:[%s1 + $0x918] sm:$0xff]
    %v320 = vld [vmem:[%s1 + $0x920] sm:$0xff]
    %v321 = vld [vmem:[%s1 + $0x928] sm:$0xff]
    %v322 = vld [vmem:[%s1 + $0x930] sm:$0xff]
    %v323 = vld [vmem:[%s1 + $0x938] sm:$0xff]
    %v324 = vld [vmem:[%s1 + $0x940] sm:$0xff]
    %v325 = vld [vmem:[%s1 + $0x948] sm:$0xff]
    %v326 = vld [vmem:[%s1 + $0x950] sm:$0xff]
    %v327 = vld [vmem:[%s1 + $0x958] sm:$0xff]
    %v328 = vld [vmem:[%s1 + $0x960] sm:$0xff]
    %v329 = vld [vmem:[%s1 + $0x968] sm:$0xff]
    %v330 = vld [vmem:[%s1 + $0x970] sm:$0xff]
    %v331 = vld [vmem:[%s1 + $0x978] sm:$0xff]
    %v332 = vld [vmem:[%s1 + $0x980] sm:$0xff]
    %v333 = vld [vmem:[%s1 + $0x988] sm:$0xff]
    %v334 = vld [vmem:[%s1 + $0x990] sm:$0xff]
    %v335 = vld [vmem:[%s1 + $0x998] sm:$0xff]
    %v336 = vld [vmem:[%s1 + $0x9a0] sm:$0xff]
    %v337 = vld [vmem:[%s1 + $0x9a8] sm:$0xff]
    %v338 = vld [vmem:[%s1 + $0x9b0] sm:$0xff]
    %v339 = vld [vmem:[%s1 + $0x9b8] sm:$0xff]
    %v340 = vld [vmem:[%s1 + $0x9c0] sm:$0xff]
    %v341 = vld [vmem:[%s1 + $0x9c8] sm:$0xff]
    %v342 = vld [vmem:[%s1 + $0x9d0] sm:$0xff]
    %v343 = vld [vmem:[%s1 + $0x9d8] sm:$0xff]
    %v344 = vld [vmem:[%s1 + $0x9e0] sm:$0xff]
    %v345 = vld [vmem:[%s1 + $0x9e8] sm:$0xff]
    %v346 = vld [vmem:[%s1 + $0x9f0] sm:$0xff]
    %v347 = vld [vmem:[%s1 + $0x9f8] sm:$0xff]
    %v348 = vld [vmem:[%s1 + $0xa00] sm:$0xff]
    %v349 = vld [vmem:[%s1 + $0xa08] sm:$0xff]
    %v350 = vld [vmem:[%s1 + $0xa10] sm:$0xff]
    %v351 = vld [vmem:[%s1 + $0xa18] sm:$0xff]
    %v352 = vld [vmem:[%s1 + $0xa20] sm:$0xff]
    %v353 = vld [vmem:[%s1 + $0xa28] sm:$0xff]
    %v354 = vld [vmem:[%s1 + $0xa30] sm:$0xff]
    %v355 = vld [vmem:[%s1 + $0xa38] sm:$0xff]
    %v356 = vld [vmem:[%s1 + $0xa40] sm:$0xff]
    %v357 = vld [vmem:[%s1 + $0xa48] sm:$0xff]
    %v358 = vld [vmem:[%s1 + $0xa50] sm:$0xff]
    %v359 = vld [vmem:[%s1 + $0xa58] sm:$0xff]
    %v360 = vld [vmem:[%s1 + $0xa60] sm:$0xff]
    %v361 = vld [vmem:[%s1 + $0xa68] sm:$0xff]
    %v362 = vld [vmem:[%s1 + $0xa70] sm:$0xff]
    %v363 = vld [vmem:[%s1 + $0xa78] sm:$0xff]
    %v364 = vld [vmem:[%s1 + $0xa80] sm:$0xff]
    %v365 = vld [vmem:[%s1 + $0xa88] sm:$0xff]
    %v366 = vld [vmem:[%s1 + $0xa90] sm:$0xff]
    %v367 = vld [vmem:[%s1 + $0xa98] sm:$0xff]
    %v368 = vld [vmem:[%s1 + $0xaa0] sm:$0xff]
    %v369 = vld [vmem:[%s1 + $0xaa8] sm:$0xff]
    %v370 = vld [vmem:[%s1 + $0xab0] sm:$0xff]
    %v371 = vld [vmem:[%s1 + $0xab8] sm:$0xff]
    %v372 = vld [vmem:[%s1 + $0xac0] sm:$0xff]
    %v373 = vld [vmem:[%s1 + $0xac8] sm:$0xff]
    %v374 = vld [vmem:[%s1 + $0xad0] sm:$0xff]
    %v375 = vld [vmem:[%s1 + $0xad8] sm:$0xff]
    %v376 = vld [vmem:[%s1 + $0xae0] sm:$0xff]
    %v377 = vld [vmem:[%s1 + $0xae8] sm:$0xff]
    %v378 = vld [vmem:[%s1 + $0xaf0] sm:$0xff]
    %v379 = vld [vmem:[%s1 + $0xaf8] sm:$0xff]
    %v380 = vld [vmem:[%s1 + $0xb00] sm:$0xff]
    %v381 = vld [vmem:[%s1 + $0xb08] sm:$0xff]
    %v382 = vld [vmem:[%s1 + $0xb10] sm:$0xff]
    %v383 = vld [vmem:[%s1 + $0xb18] sm:$0xff]
    %v384 = vld [vmem:[%s1 + $0xb20] sm:$0xff]
    %v385 = vld [vmem:[%s1 + $0xb28] sm:$0xff]
    %v386 = vld [vmem:[%s1 + $0xb30] sm:$0xff]
    %v387 = vld [vmem:[%s1 + $0xb38] sm:$0xff]
    %v388 = vld [vmem:[%s1 + $0xb40] sm:$0xff]
    %v389 = vld [vmem:[%s1 + $0xb48] sm:$0xff]
    %v390 = vld [vmem:[%s1 + $0xb50] sm:$0xff]
    %v391 = vld [vmem:[%s1 + $0xb58] sm:$0xff]
    %v392 = vld [vmem:[%s1 + $0xb60] sm:$0xff]
    %v393 = vld [vmem:[%s1 + $0xb68] sm:$0xff]
    %v394 = vld [vmem:[%s1 + $0xb70] sm:$0xff]
    %v395 = vld [vmem:[%s1 + $0xb78] sm:$0xff]
    %v396 = vld [vmem:[%s1 + $0xb80] sm:$0xff]
    %v397 = vld [vmem:[%s1 + $0xb88] sm:$0xff]
    %v398 = vld [vmem:[%s1 + $0xb90] sm:$0xff]
    %v399 = vld [vmem:[%s1 + $0xb98] sm:$0xff]
    %v400 = vld [vmem:[%s1 + $0xba0] sm:$0xff]
    %v401 = vld [vmem:[%s1 + $0xba8] sm:$0xff]
    %v402 = vld [vmem:[%s1 + $0xbb0] sm:$0xff]
    %v403 = vld [vmem:[%s1 + $0xbb8] sm:$0xff]
    %v404 = vld [vmem:[%s1 + $0xbc0] sm:$0xff]
    %v405 = vld [vmem:[%s1 + $0xbc8] sm:$0xff]
    %v406 = vld [vmem:[%s1 + $0xbd0] sm:$0xff]
    %v407 = vld [vmem:[%s1 + $0xbd8] sm:$0xff]
    %v408 = vld [vmem:[%s1 + $0xbe0] sm:$0xff]
    %v409 = vld [vmem:[%s1 + $0xbe8] sm:$0xff]
    %v410 = vld [vmem:[%s1 + $0xbf0] sm:$0xff]
    %v411 = vld [vmem:[%s1 + $0xbf8] sm:$0xff]
    %v412 = vld [vmem:[%s1 + $0xc00] sm:$0xff]
    %v413 = vld [vmem:[%s1 + $0xc08] sm:$0xff]
    %v414 = vld [vmem:[%s1 + $0xc10] sm:$0xff]
    %v415 = vld [vmem:[%s1 + $0xc18] sm:$0xff]
    %v416 = vld [vmem:[%s1 + $0xc20] sm:$0xff]
    %v417 = vld [vmem:[%s1 + $0xc28] sm:$0xff]
    %v418 = vld [vmem:[%s1 + $0xc30] sm:$0xff]
    %v419 = vld [vmem:[%s1 + $0xc38] sm:$0xff]
    %v420 = vld [vmem:[%s1 + $0xc40] sm:$0xff]
    %v421 = vld [vmem:[%s1 + $0xc48] sm:$0xff]
    %v422 = vld [vmem:[%s1 + $0xc50] sm:$0xff]
    %v423 = vld [vmem:[%s1 + $0xc58] sm:$0xff]
    %v424 = vld [vmem:[%s1 + $0xc60] sm:$0xff]
    %v425 = vld [vmem:[%s1 + $0xc68] sm:$0xff]
    %v426 = vld [vmem:[%s1 + $0xc70] sm:$0xff]
    %v427 = vld [vmem:[%s1 + $0xc78] sm:$0xff]
    %v428 = vld [vmem:[%s1 + $0xc80] sm:$0xff]
    %v429 = vld [vmem:[%s1 + $0xc88] sm:$0xff]
    %v430 = vld [vmem:[%s1 + $0xc90] sm:$0xff]
    %v431 = vld [vmem:[%s1 + $0xc98] sm:$0xff]
    %v432 = vld [vmem:[%s1 + $0xca0] sm:$0xff]
    %v433 = vld [vmem:[%s1 + $0xca8] sm:$0xff]
    %v434 = vld [vmem:[%s1 + $0xcb0] sm:$0xff]
    %v435 = vld [vmem:[%s1 + $0xcb8] sm:$0xff]
    %v436 = vld [vmem:[%s1 + $0xcc0] sm:$0xff]
    %v437 = vld [vmem:[%s1 + $0xcc8] sm:$0xff]
    %v438 = vld [vmem:[%s1 + $0xcd0] sm:$0xff]
    %v439 = vld [vmem:[%s1 + $0xcd8] sm:$0xff]
    %v440 = vld [vmem:[%s1 + $0xce0] sm:$0xff]
    %v441 = vld [vmem:[%s1 + $0xce8] sm:$0xff]
    %v442 = vld [vmem:[%s1 + $0xcf0] sm:$0xff]
    %v443 = vld [vmem:[%s1 + $0xcf8] sm:$0xff]
    %v444 = vld [vmem:[%s1 + $0xd00] sm:$0xff]
    %v445 = vld [vmem:[%s1 + $0xd08] sm:$0xff]
    %v446 = vld [vmem:[%s1 + $0xd10] sm:$0xff]
    %v447 = vld [vmem:[%s1 + $0xd18] sm:$0xff]
    %v448 = vld [vmem:[%s1 + $0xd20] sm:$0xff]
    %v449 = vld [vmem:[%s1 + $0xd28] sm:$0xff]
    %v450 = vld [vmem:[%s1 + $0xd30] sm:$0xff]
    %v451 = vld [vmem:[%s1 + $0xd38] sm:$0xff]
    %v452 = vld [vmem:[%s1 + $0xd40] sm:$0xff]
    %v453 = vld [vmem:[%s1 + $0xd48] sm:$0xff]
    %v454 = vld [vmem:[%s1 + $0xd50] sm:$0xff]
    %v455 = vld [vmem:[%s1 + $0xd58] sm:$0xff]
    %v456 = vld [vmem:[%s1 + $0xd60] sm:$0xff]
    %v457 = vld [vmem:[%s1 + $0xd68] sm:$0xff]
    %v458 = vld [vmem:[%s1 + $0xd70] sm:$0xff]
    %v459 = vld [vmem:[%s1 + $0xd78] sm:$0xff]
    %v460 = vld [vmem:[%s1 + $0xd80] sm:$0xff]
    %v461 = vld [vmem:[%s1 + $0xd88] sm:$0xff]
    %v462 = vld [vmem:[%s1 + $0xd90] sm:$0xff]
    %v463 = vld [vmem:[%s1 + $0xd98] sm:$0xff]
    %v464 = vld [vmem:[%s1 + $0xda0] sm:$0xff]
    %v465 = vld [vmem:[%s1 + $0xda8] sm:$0xff]
    %v466 = vld [vmem:[%s1 + $0xdb0] sm:$0xff]
    %v467 = vld [vmem:[%s1 + $0xdb8] sm:$0xff]
    %v468 = vld [vmem:[%s1 + $0xdc0] sm:$0xff]
    %v469 = vld [vmem:[%s1 + $0xdc8] sm:$0xff]
    %v470 = vld [vmem:[%s1 + $0xdd0] sm:$0xff]
    %v471 = vld [vmem:[%s1 + $0xdd8] sm:$0xff]
    %v472 = vld [vmem:[%s1 + $0xde0] sm:$0xff]
    %v473 = vld [vmem:[%s1 + $0xde8] sm:$0xff]
    %v474 = vld [vmem:[%s1 + $0xdf0] sm:$0xff]
    %v475 = vld [vmem:[%s1 + $0xdf8] sm:$0xff]
    %v476 = vld [vmem:[%s1 + $0xe00] sm:$0xff]
    %v477 = vld [vmem:[%s1 + $0xe08] sm:$0xff]
    %v478 = vld [vmem:[%s1 + $0xe10] sm:$0xff]
    %v479 = vld [vmem:[%s1 + $0xe18] sm:$0xff]
    %v480 = vld [vmem:[%s1 + $0xe20] sm:$0xff]
    %v481 = vld [vmem:[%s1 + $0xe28] sm:$0xff]
    %v482 = vld [vmem:[%s1 + $0xe30] sm:$0xff]
    %v483 = vld [vmem:[%s1 + $0xe38] sm:$0xff]
    %v484 = vld [vmem:[%s1 + $0xe40] sm:$0xff]
    %v485 = vld [vmem:[%s1 + $0xe48] sm:$0xff]
    %v486 = vld [vmem:[%s1 + $0xe50] sm:$0xff]
    %v487 = vld [vmem:[%s1 + $0xe58] sm:$0xff]
    %v488 = vld [vmem:[%s1 + $0xe60] sm:$0xff]
    %v489 = vld [vmem:[%s1 + $0xe68] sm:$0xff]
    %v490 = vld [vmem:[%s1 + $0xe70] sm:$0xff]
    %v491 = vld [vmem:[%s1 + $0xe78] sm:$0xff]
    %v492 = vld [vmem:[%s1 + $0xe80] sm:$0xff]
    %v493 = vld [vmem:[%s1 + $0xe88] sm:$0xff]
    %v494 = vld [vmem:[%s1 + $0xe90] sm:$0xff]
    %v495 = vld [vmem:[%s1 + $0xe98] sm:$0xff]
    %v496 = vld [vmem:[%s1 + $0xea0] sm:$0xff]
    %v497 = vld [vmem:[%s1 + $0xea8] sm:$0xff]
    %v498 = vld [vmem:[%s1 + $0xeb0] sm:$0xff]
    %v499 = vld [vmem:[%s1 + $0xeb8] sm:$0xff]
    %v500 = vld [vmem:[%s1 + $0xec0] sm:$0xff]
    %v501 = vld [vmem:[%s1 + $0xec8] sm:$0xff]
    %v502 = vld [vmem:[%s1 + $0xed0] sm:$0xff]
    %v503 = vld [vmem:[%s1 + $0xed8] sm:$0xff]
    %v504 = vld [vmem:[%s1 + $0xee0] sm:$0xff]
    %v505 = vld [vmem:[%s1 + $0xee8] sm:$0xff]
    %v506 = vld [vmem:[%s1 + $0xef0] sm:$0xff]
    %v507 = vld [vmem:[%s1 + $0xef8] sm:$0xff]
    %v508 = vld [vmem:[%s1 + $0xf00] sm:$0xff]
    %v509 = vld [vmem:[%s1 + $0xf08] sm:$0xff]
    %v510 = vld [vmem:[%s1 + $0xf10] sm:$0xff]
    %v511 = vld [vmem:[%s1 + $0xf18] sm:$0xff]
    %v512 = vld [vmem:[%s1 + $0xf20] sm:$0xff]
    %v513 = vld [vmem:[%s1 + $0xf28] sm:$0xff]
    %v514 = vld [vmem:[%s1 + $0xf30] sm:$0xff]
    %v515 = vld [vmem:[%s1 + $0xf38] sm:$0xff]
    %v516 = vld [vmem:[%s1 + $0xf40] sm:$0xff]
    %v517 = vld [vmem:[%s1 + $0xf48] sm:$0xff]
    %v518 = vld [vmem:[%s1 + $0xf50] sm:$0xff]
    %v519 = vld [vmem:[%s1 + $0xf58] sm:$0xff]
    %v520 = vld [vmem:[%s1 + $0xf60] sm:$0xff]
    %v521 = vld [vmem:[%s1 + $0xf68] sm:$0xff]
    %v522 = vld [vmem:[%s1 + $0xf70] sm:$0xff]
    %v523 = vld [vmem:[%s1 + $0xf78] sm:$0xff]
    %v524 = vld [vmem:[%s1 + $0xf80] sm:$0xff]
    %v525 = vld [vmem:[%s1 + $0xf88] sm:$0xff]
    %v526 = vld [vmem:[%s1 + $0xf90] sm:$0xff]
    %v527 = vld [vmem:[%s1 + $0xf98] sm:$0xff]
    %v528 = vld [vmem:[%s1 + $0xfa0] sm:$0xff]
    %v529 = vld [vmem:[%s1 + $0xfa8] sm:$0xff]
    %v530 = vld [vmem:[%s1 + $0xfb0] sm:$0xff]
    %v531 = vld [vmem:[%s1 + $0xfb8] sm:$0xff]
    %v532 = vld [vmem:[%s1 + $0xfc0] sm:$0xff]
    %v533 = vld [vmem:[%s1 + $0xfc8] sm:$0xff]
    %v534 = vld [vmem:[%s1 + $0xfd0] sm:$0xff]
    %v535 = vld [vmem:[%s1 + $0xfd8] sm:$0xff]
    %v536 = vld [vmem:[%s1 + $0xfe0] sm:$0xff]
    %v537 = vld [vmem:[%s1 + $0xfe8] sm:$0xff]
    %v538 = vld [vmem:[%s1 + $0xff0] sm:$0xff]
    %v539 = vld [vmem:[%s1 + $0xff8] sm:$0xff]
    %v540 = vld [vmem:[%s1 + $0x1000] sm:$0xff]
    %v541 = vld [vmem:[%s1 + $0x1008] sm:$0xff]
    %v542 = vld [vmem:[%s1 + $0x1010] sm:$0xff]
    %v543 = vld [vmem:[%s1 + $0x1018] sm:$0xff]
    %v544 = vld [vmem:[%s1 + $0x1020] sm:$0xff]
    %v545 = vld [vmem:[%s1 + $0x1028] sm:$0xff]
    %v546 = vld [vmem:[%s1 + $0x1030] sm:$0xff]
    %v547 = vld [vmem:[%s1 + $0x1038] sm:$0xff]
    %v548 = vld [vmem:[%s1 + $0x1040] sm:$0xff]
    %v549 = vld [vmem:[%s1 + $0x1048] sm:$0xff]
    %v550 = vld [vmem:[%s1 + $0x1050] sm:$0xff]
    %v551 = vld [vmem:[%s1 + $0x1058] sm:$0xff]
    %v552 = vld [vmem:[%s1 + $0x1060] sm:$0xff]
    %v553 = vld [vmem:[%s1 + $0x1068] sm:$0xff]
    %v554 = vld [vmem:[%s1 + $0x1070] sm:$0xff]
    %v555 = vld [vmem:[%s1 + $0x1078] sm:$0xff]
    %v556 = vld [vmem:[%s1 + $0x1080] sm:$0xff]
    %v557 = vld [vmem:[%s1 + $0x1088] sm:$0xff]
    %v558 = vld [vmem:[%s1 + $0x1090] sm:$0xff]
    %v559 = vld [vmem:[%s1 + $0x1098] sm:$0xff]
    %v560 = vld [vmem:[%s1 + $0x10a0] sm:$0xff]
    %v561 = vld [vmem:[%s1 + $0x10a8] sm:$0xff]
    %v562 = vld [vmem:[%s1 + $0x10b0] sm:$0xff]
    %v563 = vld [vmem:[%s1 + $0x10b8] sm:$0xff]
    %v564 = vld [vmem:[%s1 + $0x10c0] sm:$0xff]
    %v565 = vld [vmem:[%s1 + $0x10c8] sm:$0xff]
    %v566 = vld [vmem:[%s1 + $0x10d0] sm:$0xff]
    %v567 = vld [vmem:[%s1 + $0x10d8] sm:$0xff]
    %v568 = vld [vmem:[%s1 + $0x10e0] sm:$0xff]
    %v569 = vld [vmem:[%s1 + $0x10e8] sm:$0xff]
    %v570 = vld [vmem:[%s1 + $0x10f0] sm:$0xff]
    %v571 = vld [vmem:[%s1 + $0x10f8] sm:$0xff]
    %v572 = vld [vmem:[%s1 + $0x1100] sm:$0xff]
    %v573 = vld [vmem:[%s1 + $0x1108] sm:$0xff]
    %v574 = vld [vmem:[%s1 + $0x1110] sm:$0xff]
    %v575 = vld [vmem:[%s1 + $0x1118] sm:$0xff]
    %v576 = vld [vmem:[%s1 + $0x1120] sm:$0xff]
    %v577 = vld [vmem:[%s1 + $0x1128] sm:$0xff]
    %v578 = vld [vmem:[%s1 + $0x1130] sm:$0xff]
    %v579 = vld [vmem:[%s1 + $0x1138] sm:$0xff]
    %v580 = vld [vmem:[%s1 + $0x1140] sm:$0xff]
    %v581 = vld [vmem:[%s1 + $0x1148] sm:$0xff]
    %v582 = vld [vmem:[%s1 + $0x1150] sm:$0xff]
    %v583 = vld [vmem:[%s1 + $0x1158] sm:$0xff]
    %v584 = vld [vmem:[%s1 + $0x1160] sm:$0xff]
    %v585 = vld [vmem:[%s1 + $0x1168] sm:$0xff]
    %v586 = vld [vmem:[%s1 + $0x1170] sm:$0xff]
    %v587 = vld [vmem:[%s1 + $0x1178] sm:$0xff]
    %v588 = vld [vmem:[%s1 + $0x1180] sm:$0xff]
    %v589 = vld [vmem:[%s1 + $0x1188] sm:$0xff]
    %v590 = vld [vmem:[%s1 + $0x1190] sm:$0xff]
    %v591 = vld [vmem:[%s1 + $0x1198] sm:$0xff]
    %v592 = vld [vmem:[%s1 + $0x11a0] sm:$0xff]
    %v593 = vld [vmem:[%s1 + $0x11a8] sm:$0xff]
    %v594 = vld [vmem:[%s1 + $0x11b0] sm:$0xff]
    %v595 = vld [vmem:[%s1 + $0x11b8] sm:$0xff]
    %v596 = vld [vmem:[%s1 + $0x11c0] sm:$0xff]
    %v597 = vld [vmem:[%s1 + $0x11c8] sm:$0xff]
    %v598 = vld [vmem:[%s1 + $0x11d0] sm:$0xff]
    %v599 = vld [vmem:[%s1 + $0x11d8] sm:$0xff]
    %v600 = vld [vmem:[%s1 + $0x11e0] sm:$0xff]
    %v601 = vld [vmem:[%s1 + $0x11e8] sm:$0xff]
    %v602 = vld [vmem:[%s1 + $0x11f0] sm:$0xff]
    %v603 = vld [vmem:[%s1 + $0x11f8] sm:$0xff]
    %v604 = vld [vmem:[%s1 + $0x1200] sm:$0xff]
    %v605 = vld [vmem:[%s1 + $0x1208] sm:$0xff]
    %v606 = vld [vmem:[%s1 + $0x1210] sm:$0xff]
    %v607 = vld [vmem:[%s1 + $0x1218] sm:$0xff]
    %v608 = vld [vmem:[%s1 + $0x1220] sm:$0xff]
    %v609 = vld [vmem:[%s1 + $0x1228] sm:$0xff]
    %v610 = vld [vmem:[%s1 + $0x1230] sm:$0xff]
    %v611 = vld [vmem:[%s1 + $0x1238] sm:$0xff]
    %v612 = vld [vmem:[%s1 + $0x1240] sm:$0xff]
    %v613 = vld [vmem:[%s1 + $0x1248] sm:$0xff]
    %v614 = vld [vmem:[%s1 + $0x1250] sm:$0xff]
    %v615 = vld [vmem:[%s1 + $0x1258] sm:$0xff]
    %v616 = vld [vmem:[%s1 + $0x1260] sm:$0xff]
    %v617 = vld [vmem:[%s1 + $0x1268] sm:$0xff]
    %v618 = vld [vmem:[%s1 + $0x1270] sm:$0xff]
    %v619 = vld [vmem:[%s1 + $0x1278] sm:$0xff]
    %v620 = vld [vmem:[%s1 + $0x1280] sm:$0xff]
    %v621 = vld [vmem:[%s1 + $0x1288] sm:$0xff]
    %v622 = vld [vmem:[%s1 + $0x1290] sm:$0xff]
    %v623 = vld [vmem:[%s1 + $0x1298] sm:$0xff]
    %v624 = vld [vmem:[%s1 + $0x12a0] sm:$0xff]
    %v625 = vld [vmem:[%s1 + $0x12a8] sm:$0xff]
    %v626 = vld [vmem:[%s1 + $0x12b0] sm:$0xff]
    %v627 = vld [vmem:[%s1 + $0x12b8] sm:$0xff]
    %v628 = vld [vmem:[%s1 + $0x12c0] sm:$0xff]
    %v629 = vld [vmem:[%s1 + $0x12c8] sm:$0xff]
    %v630 = vld [vmem:[%s1 + $0x12d0] sm:$0xff]
    %v631 = vld [vmem:[%s1 + $0x12d8] sm:$0xff]
    %v632 = vld [vmem:[%s1 + $0x12e0] sm:$0xff]
    %v633 = vld [vmem:[%s1 + $0x12e8] sm:$0xff]
    %v634 = vld [vmem:[%s1 + $0x12f0] sm:$0xff]
    %v635 = vld [vmem:[%s1 + $0x12f8] sm:$0xff]
    %v636 = vld [vmem:[%s1 + $0x1300] sm:$0xff]
    %v637 = vld [vmem:[%s1 + $0x1308] sm:$0xff]
    %v638 = vld [vmem:[%s1 + $0x1310] sm:$0xff]
    %v639 = vld [vmem:[%s1 + $0x1318] sm:$0xff]
    %v640 = vld [vmem:[%s1 + $0x1320] sm:$0xff]
    %v641 = vld [vmem:[%s1 + $0x1328] sm:$0xff]
    %v642 = vld [vmem:[%s1 + $0x1330] sm:$0xff]
    %v643 = vld [vmem:[%s1 + $0x1338] sm:$0xff]
    %v644 = vld [vmem:[%s1 + $0x1340] sm:$0xff]
    %v645 = vld [vmem:[%s1 + $0x1348] sm:$0xff]
    %v646 = vld [vmem:[%s1 + $0x1350] sm:$0xff]
    %v647 = vld [vmem:[%s1 + $0x1358] sm:$0xff]
    %v648 = vld [vmem:[%s1 + $0x1360] sm:$0xff]
    %v649 = vld [vmem:[%s1 + $0x1368] sm:$0xff]
    %v650 = vld [vmem:[%s1 + $0x1370] sm:$0xff]
    %v651 = vld [vmem:[%s1 + $0x1378] sm:$0xff]
    %v652 = vld [vmem:[%s1 + $0x1380] sm:$0xff]
    %v653 = vld [vmem:[%s1 + $0x1388] sm:$0xff]
    %v654 = vld [vmem:[%s1 + $0x1390] sm:$0xff]
    %v655 = vld [vmem:[%s1 + $0x1398] sm:$0xff]
    %v656 = vld [vmem:[%s1 + $0x13a0] sm:$0xff]
    %v657 = vld [vmem:[%s1 + $0x13a8] sm:$0xff]
    %v658 = vld [vmem:[%s1 + $0x13b0] sm:$0xff]
    %v659 = vld [vmem:[%s1 + $0x13b8] sm:$0xff]
    %v660 = vld [vmem:[%s1 + $0x13c0] sm:$0xff]
    %v661 = vld [vmem:[%s1 + $0x13c8] sm:$0xff]
    %v662 = vld [vmem:[%s1 + $0x13d0] sm:$0xff]
    %v663 = vld [vmem:[%s1 + $0x13d8] sm:$0xff]
    %v664 = vld [vmem:[%s1 + $0x13e0] sm:$0xff]
    %v665 = vld [vmem:[%s1 + $0x13e8] sm:$0xff]
    %v666 = vld [vmem:[%s1 + $0x13f0] sm:$0xff]
    %v667 = vld [vmem:[%s1 + $0x13f8] sm:$0xff]
    %v668 = vld [vmem:[%s1 + $0x1400] sm:$0xff]
    %v669 = vld [vmem:[%s1 + $0x1408] sm:$0xff]
    %v670 = vld [vmem:[%s1 + $0x1410] sm:$0xff]
    %v671 = vld [vmem:[%s1 + $0x1418] sm:$0xff]
    %v672 = vld [vmem:[%s1 + $0x1420] sm:$0xff]
    %v673 = vld [vmem:[%s1 + $0x1428] sm:$0xff]
    %v674 = vld [vmem:[%s1 + $0x1430] sm:$0xff]
    %v675 = vld [vmem:[%s1 + $0x1438] sm:$0xff]
    %v676 = vld [vmem:[%s2] sm:$0x3]
    %v678 = vlaneseq
    %v679 = vshrl.u32 %v678, 7
    %v680 = vsub.s32 0, %v679
    %v681 = vrot.slane %v676, %v680
    %v682 = vlaneseq
    %v683 = vshrl.u32 %v682, 7
    %v684 = vsub.s32 1, %v683
    %v685 = vrot.slane %v676, %v684
    %v694 = vcombine.high %v22, %v22
    %v696 = vunpack.c.l.s4 1966171168
    %v697 = vunpack.c.0.s8 %v696
    %v698 = vlaneseq
    %v699 = vshrl.u32 %v698, 7
    %v700 = vsub.s32 %v697, %v699
    %v701 = vrot.slane %v22, %v700
    %v703 = vunpack.c.l.s4 1966171168
    %v704 = vunpack.c.0.s8 %v703
    %v705 = vlaneseq
    %v706 = vshrl.u32 %v705, 7
    %v707 = vsub.s32 %v704, %v706
    %v708 = vrot.slane %v694, %v707
    %v709 = vcombine.high %v701, %v701
    %v710 = vcombine.high %v708, %v708
    %v712 = vunpack.c.l.s4 1966171168
    %v713 = vunpack.c.0.s8 %v712
    %v714 = vlaneseq
    %v715 = vshrl.u32 %v714, 7
    %v716 = vsub.s32 %v713, %v715
    %v717 = vrot.slane %v701, %v716
    %v719 = vunpack.c.l.s4 1966171168
    %v720 = vunpack.c.0.s8 %v719
    %v721 = vlaneseq
    %v722 = vshrl.u32 %v721, 7
    %v723 = vsub.s32 %v720, %v722
    %v724 = vrot.slane %v708, %v723
    %v726 = vunpack.c.l.s4 1966171168
    %v727 = vunpack.c.0.s8 %v726
    %v728 = vlaneseq
    %v729 = vshrl.u32 %v728, 7
    %v730 = vsub.s32 %v727, %v729
    %v731 = vrot.slane %v709, %v730
    %v733 = vunpack.c.l.s4 1966171168
    %v734 = vunpack.c.0.s8 %v733
    %v735 = vlaneseq
    %v736 = vshrl.u32 %v735, 7
    %v737 = vsub.s32 %v734, %v736
    %v738 = vrot.slane %v710, %v737
    %v739 = vcombine.high %v717, %v717
    %v740 = vcombine.high %v724, %v724
    %v741 = vcombine.high %v731, %v731
    %v742 = vcombine.high %v738, %v738
    %v743 = vcombine.high %v23, %v23
    %v745 = vunpack.c.l.s4 1966171168
    %v746 = vunpack.c.0.s8 %v745
    %v747 = vlaneseq
    %v748 = vshrl.u32 %v747, 7
    %v749 = vsub.s32 %v746, %v748
    %v750 = vrot.slane %v23, %v749
    %v752 = vunpack.c.l.s4 1966171168
    %v753 = vunpack.c.0.s8 %v752
    %v754 = vlaneseq
    %v755 = vshrl.u32 %v754, 7
    %v756 = vsub.s32 %v753, %v755
    %v757 = vrot.slane %v743, %v756
    %v758 = vcombine.high %v750, %v750
    %v759 = vcombine.high %v757, %v757
    %v761 = vunpack.c.l.s4 1966171168
    %v762 = vunpack.c.0.s8 %v761
    %v763 = vlaneseq
    %v764 = vshrl.u32 %v763, 7
    %v765 = vsub.s32 %v762, %v764
    %v766 = vrot.slane %v750, %v765
    %v768 = vunpack.c.l.s4 1966171168
    %v769 = vunpack.c.0.s8 %v768
    %v770 = vlaneseq
    %v771 = vshrl.u32 %v770, 7
    %v772 = vsub.s32 %v769, %v771
    %v773 = vrot.slane %v757, %v772
    %v775 = vunpack.c.l.s4 1966171168
    %v776 = vunpack.c.0.s8 %v775
    %v777 = vlaneseq
    %v778 = vshrl.u32 %v777, 7
    %v779 = vsub.s32 %v776, %v778
    %v780 = vrot.slane %v758, %v779
    %v782 = vunpack.c.l.s4 1966171168
    %v783 = vunpack.c.0.s8 %v782
    %v784 = vlaneseq
    %v785 = vshrl.u32 %v784, 7
    %v786 = vsub.s32 %v783, %v785
    %v787 = vrot.slane %v759, %v786
    %v788 = vcombine.high %v766, %v766
    %v789 = vcombine.high %v773, %v773
    %v790 = vcombine.high %v780, %v780
    %v791 = vcombine.high %v787, %v787
    %v792 = vcombine.high %v24, %v24
    %v794 = vunpack.c.l.s4 1966171168
    %v795 = vunpack.c.0.s8 %v794
    %v796 = vlaneseq
    %v797 = vshrl.u32 %v796, 7
    %v798 = vsub.s32 %v795, %v797
    %v799 = vrot.slane %v24, %v798
    %v801 = vunpack.c.l.s4 1966171168
    %v802 = vunpack.c.0.s8 %v801
    %v803 = vlaneseq
    %v804 = vshrl.u32 %v803, 7
    %v805 = vsub.s32 %v802, %v804
    %v806 = vrot.slane %v792, %v805
    %v807 = vcombine.high %v799, %v799
    %v808 = vcombine.high %v806, %v806
    %v810 = vunpack.c.l.s4 1966171168
    %v811 = vunpack.c.0.s8 %v810
    %v812 = vlaneseq
    %v813 = vshrl.u32 %v812, 7
    %v814 = vsub.s32 %v811, %v813
    %v815 = vrot.slane %v799, %v814
    %v817 = vunpack.c.l.s4 1966171168
    %v818 = vunpack.c.0.s8 %v817
    %v819 = vlaneseq
    %v820 = vshrl.u32 %v819, 7
    %v821 = vsub.s32 %v818, %v820
    %v822 = vrot.slane %v806, %v821
    %v824 = vunpack.c.l.s4 1966171168
    %v825 = vunpack.c.0.s8 %v824
    %v826 = vlaneseq
    %v827 = vshrl.u32 %v826, 7
    %v828 = vsub.s32 %v825, %v827
    %v829 = vrot.slane %v807, %v828
    %v831 = vunpack.c.l.s4 1966171168
    %v832 = vunpack.c.0.s8 %v831
    %v833 = vlaneseq
    %v834 = vshrl.u32 %v833, 7
    %v835 = vsub.s32 %v832, %v834
    %v836 = vrot.slane %v808, %v835
    %v837 = vcombine.high %v815, %v815
    %v838 = vcombine.high %v822, %v822
    %v839 = vcombine.high %v829, %v829
    %v840 = vcombine.high %v836, %v836
    %v841 = vcombine.high %v25, %v25
    %v843 = vunpack.c.l.s4 1966171168
    %v844 = vunpack.c.0.s8 %v843
    %v845 = vlaneseq
    %v846 = vshrl.u32 %v845, 7
    %v847 = vsub.s32 %v844, %v846
    %v848 = vrot.slane %v25, %v847
    %v850 = vunpack.c.l.s4 1966171168
    %v851 = vunpack.c.0.s8 %v850
    %v852 = vlaneseq
    %v853 = vshrl.u32 %v852, 7
    %v854 = vsub.s32 %v851, %v853
    %v855 = vrot.slane %v841, %v854
    %v856 = vcombine.high %v848, %v848
    %v857 = vcombine.high %v855, %v855
    %v859 = vunpack.c.l.s4 1966171168
    %v860 = vunpack.c.0.s8 %v859
    %v861 = vlaneseq
    %v862 = vshrl.u32 %v861, 7
    %v863 = vsub.s32 %v860, %v862
    %v864 = vrot.slane %v848, %v863
    %v866 = vunpack.c.l.s4 1966171168
    %v867 = vunpack.c.0.s8 %v866
    %v868 = vlaneseq
    %v869 = vshrl.u32 %v868, 7
    %v870 = vsub.s32 %v867, %v869
    %v871 = vrot.slane %v855, %v870
    %v873 = vunpack.c.l.s4 1966171168
    %v874 = vunpack.c.0.s8 %v873
    %v875 = vlaneseq
    %v876 = vshrl.u32 %v875, 7
    %v877 = vsub.s32 %v874, %v876
    %v878 = vrot.slane %v856, %v877
    %v880 = vunpack.c.l.s4 1966171168
    %v881 = vunpack.c.0.s8 %v880
    %v882 = vlaneseq
    %v883 = vshrl.u32 %v882, 7
    %v884 = vsub.s32 %v881, %v883
    %v885 = vrot.slane %v857, %v884
    %v886 = vcombine.high %v864, %v864
    %v887 = vcombine.high %v871, %v871
    %v888 = vcombine.high %v878, %v878
    %v889 = vcombine.high %v885, %v885
    %v890 = vcombine.high %v26, %v26
    %v892 = vunpack.c.l.s4 1966171168
    %v893 = vunpack.c.0.s8 %v892
    %v894 = vlaneseq
    %v895 = vshrl.u32 %v894, 7
    %v896 = vsub.s32 %v893, %v895
    %v897 = vrot.slane %v26, %v896
    %v899 = vunpack.c.l.s4 1966171168
    %v900 = vunpack.c.0.s8 %v899
    %v901 = vlaneseq
    %v902 = vshrl.u32 %v901, 7
    %v903 = vsub.s32 %v900, %v902
    %v904 = vrot.slane %v890, %v903
    %v905 = vcombine.high %v897, %v897
    %v906 = vcombine.high %v904, %v904
    %v908 = vunpack.c.l.s4 1966171168
    %v909 = vunpack.c.0.s8 %v908
    %v910 = vlaneseq
    %v911 = vshrl.u32 %v910, 7
    %v912 = vsub.s32 %v909, %v911
    %v913 = vrot.slane %v897, %v912
    %v915 = vunpack.c.l.s4 1966171168
    %v916 = vunpack.c.0.s8 %v915
    %v917 = vlaneseq
    %v918 = vshrl.u32 %v917, 7
    %v919 = vsub.s32 %v916, %v918
    %v920 = vrot.slane %v904, %v919
    %v922 = vunpack.c.l.s4 1966171168
    %v923 = vunpack.c.0.s8 %v922
    %v924 = vlaneseq
    %v925 = vshrl.u32 %v924, 7
    %v926 = vsub.s32 %v923, %v925
    %v927 = vrot.slane %v905, %v926
    %v929 = vunpack.c.l.s4 1966171168
    %v930 = vunpack.c.0.s8 %v929
    %v931 = vlaneseq
    %v932 = vshrl.u32 %v931, 7
    %v933 = vsub.s32 %v930, %v932
    %v934 = vrot.slane %v906, %v933
    %v935 = vcombine.high %v913, %v913
    %v936 = vcombine.high %v920, %v920
    %v937 = vcombine.high %v927, %v927
    %v938 = vcombine.high %v934, %v934
    %v940 = vunpack.c.l.s4 1966171168
    %v941 = vunpack.c.0.s8 %v940
    %v942 = vlaneseq
    %v943 = vshrl.u32 %v942, 7
    %v944 = vsub.s32 %v941, %v943
    %v945 = vrot.slane %v27, %v944
    %v947 = vunpack.c.l.s4 1966171168
    %v948 = vunpack.c.0.s8 %v947
    %v949 = vlaneseq
    %v950 = vshrl.u32 %v949, 7
    %v951 = vsub.s32 %v948, %v950
    %v952 = vrot.slane %v945, %v951
    %v1641 = vunpack.c.l.b16 %v28
    %v1642 = vunpack.c.h.b16 %v28
    %v1643 = vunpack.c.l.b16 %v29
    %v1644 = vunpack.c.h.b16 %v29
    %v1645 = vunpack.c.l.b16 %v30
    %v1646 = vunpack.c.h.b16 %v30
    %v1647 = vunpack.c.l.b16 %v31
    %v1648 = vunpack.c.h.b16 %v31
    %v1649 = vunpack.c.l.b16 %v32
    %v1650 = vunpack.c.h.b16 %v32
    %v1651 = vunpack.c.l.b16 %v33
    %v1652 = vunpack.c.h.b16 %v33
    %v1653 = vunpack.c.l.b16 %v34
    %v1654 = vunpack.c.h.b16 %v34
    %v1655 = vunpack.c.l.b16 %v35
    %v1656 = vunpack.c.h.b16 %v35
    %v1657 = vunpack.c.l.b16 %v36
    %v1658 = vunpack.c.h.b16 %v36
    %v1659 = vunpack.c.l.b16 %v37
    %v1660 = vunpack.c.h.b16 %v37
    %v1661 = vunpack.c.l.b16 %v38
    %v1662 = vunpack.c.h.b16 %v38
    %v1663 = vunpack.c.l.b16 %v39
    %v1664 = vunpack.c.h.b16 %v39
    %v1665 = vunpack.c.l.b16 %v40
    %v1666 = vunpack.c.h.b16 %v40
    %v1667 = vunpack.c.l.b16 %v41
    %v1668 = vunpack.c.h.b16 %v41
    %v1669 = vunpack.c.l.b16 %v42
    %v1670 = vunpack.c.h.b16 %v42
    %v1671 = vunpack.c.l.b16 %v43
    %v1672 = vunpack.c.h.b16 %v43
    %v1673 = vunpack.c.l.b16 %v44
    %v1674 = vunpack.c.h.b16 %v44
    %v1675 = vunpack.c.l.b16 %v45
    %v1676 = vunpack.c.h.b16 %v45
    %v1677 = vunpack.c.l.b16 %v46
    %v1678 = vunpack.c.h.b16 %v46
    %v1679 = vunpack.c.l.b16 %v47
    %v1680 = vunpack.c.h.b16 %v47
    %v1681 = vunpack.c.l.b16 %v48
    %v1682 = vunpack.c.h.b16 %v48
    %v1683 = vunpack.c.l.b16 %v49
    %v1684 = vunpack.c.h.b16 %v49
    %v1685 = vunpack.c.l.b16 %v50
    %v1686 = vunpack.c.h.b16 %v50
    %v1687 = vunpack.c.l.b16 %v51
    %v1688 = vunpack.c.h.b16 %v51
    %v1689 = vunpack.c.l.b16 %v52
    %v1690 = vunpack.c.h.b16 %v52
    %v1691 = vunpack.c.l.b16 %v53
    %v1692 = vunpack.c.h.b16 %v53
    %v1693 = vunpack.c.l.b16 %v54
    %v1694 = vunpack.c.h.b16 %v54
    %v1695 = vunpack.c.l.b16 %v55
    %v1696 = vunpack.c.h.b16 %v55
    %v1697 = vunpack.c.l.b16 %v56
    %v1698 = vunpack.c.h.b16 %v56
    %v1699 = vunpack.c.l.b16 %v57
    %v1700 = vunpack.c.h.b16 %v57
    %v1701 = vunpack.c.l.b16 %v58
    %v1702 = vunpack.c.h.b16 %v58
    %v1703 = vunpack.c.l.b16 %v59
    %v1704 = vunpack.c.h.b16 %v59
    %v1705 = vunpack.c.l.b16 %v60
    %v1706 = vunpack.c.h.b16 %v60
    %v1707 = vunpack.c.l.b16 %v61
    %v1708 = vunpack.c.h.b16 %v61
    %v1709 = vunpack.c.l.b16 %v62
    %v1710 = vunpack.c.h.b16 %v62
    %v1711 = vunpack.c.l.b16 %v63
    %v1712 = vunpack.c.h.b16 %v63
    %v1713 = vunpack.c.l.b16 %v64
    %v1714 = vunpack.c.h.b16 %v64
    %v1715 = vunpack.c.l.b16 %v65
    %v1716 = vunpack.c.h.b16 %v65
    %v1717 = vunpack.c.l.b16 %v66
    %v1718 = vunpack.c.h.b16 %v66
    %v1719 = vunpack.c.l.b16 %v67
    %v1720 = vunpack.c.h.b16 %v67
    %v1721 = vunpack.c.l.b16 %v68
    %v1722 = vunpack.c.h.b16 %v68
    %v1723 = vunpack.c.l.b16 %v69
    %v1724 = vunpack.c.h.b16 %v69
    %v1725 = vunpack.c.l.b16 %v70
    %v1726 = vunpack.c.h.b16 %v70
    %v1727 = vunpack.c.l.b16 %v71
    %v1728 = vunpack.c.h.b16 %v71
    %v1729 = vunpack.c.l.b16 %v72
    %v1730 = vunpack.c.h.b16 %v72
    %v1731 = vunpack.c.l.b16 %v73
    %v1732 = vunpack.c.h.b16 %v73
    %v1733 = vunpack.c.l.b16 %v74
    %v1734 = vunpack.c.h.b16 %v74
    %v1735 = vunpack.c.l.b16 %v75
    %v1736 = vunpack.c.h.b16 %v75
    %v1737 = vunpack.c.l.b16 %v76
    %v1738 = vunpack.c.h.b16 %v76
    %v1739 = vunpack.c.l.b16 %v77
    %v1740 = vunpack.c.h.b16 %v77
    %v1741 = vunpack.c.l.b16 %v78
    %v1742 = vunpack.c.h.b16 %v78
    %v1743 = vunpack.c.l.b16 %v79
    %v1744 = vunpack.c.h.b16 %v79
    %v1745 = vunpack.c.l.b16 %v80
    %v1746 = vunpack.c.h.b16 %v80
    %v1747 = vunpack.c.l.b16 %v81
    %v1748 = vunpack.c.h.b16 %v81
    %v1749 = vunpack.c.l.b16 %v82
    %v1750 = vunpack.c.h.b16 %v82
    %v1751 = vunpack.c.l.b16 %v83
    %v1752 = vunpack.c.h.b16 %v83
    %v1753 = vunpack.c.l.b16 %v84
    %v1754 = vunpack.c.h.b16 %v84
    %v1755 = vunpack.c.l.b16 %v85
    %v1756 = vunpack.c.h.b16 %v85
    %v1757 = vunpack.c.l.b16 %v86
    %v1758 = vunpack.c.h.b16 %v86
    %v1759 = vunpack.c.l.b16 %v87
    %v1760 = vunpack.c.h.b16 %v87
    %v1761 = vunpack.c.l.b16 %v88
    %v1762 = vunpack.c.h.b16 %v88
    %v1763 = vunpack.c.l.b16 %v89
    %v1764 = vunpack.c.h.b16 %v89
    %v1765 = vunpack.c.l.b16 %v90
    %v1766 = vunpack.c.h.b16 %v90
    %v1767 = vunpack.c.l.b16 %v91
    %v1768 = vunpack.c.h.b16 %v91
    %v1769 = vunpack.c.l.b16 %v92
    %v1770 = vunpack.c.h.b16 %v92
    %v1771 = vunpack.c.l.b16 %v93
    %v1772 = vunpack.c.h.b16 %v93
    %v1773 = vunpack.c.l.b16 %v94
    %v1774 = vunpack.c.h.b16 %v94
    %v1775 = vunpack.c.l.b16 %v95
    %v1776 = vunpack.c.h.b16 %v95
    %v1777 = vunpack.c.l.b16 %v96
    %v1778 = vunpack.c.h.b16 %v96
    %v1779 = vunpack.c.l.b16 %v97
    %v1780 = vunpack.c.h.b16 %v97
    %v1781 = vunpack.c.l.b16 %v98
    %v1782 = vunpack.c.h.b16 %v98
    %v1783 = vunpack.c.l.b16 %v99
    %v1784 = vunpack.c.h.b16 %v99
    %v1785 = vunpack.c.l.b16 %v100
    %v1786 = vunpack.c.h.b16 %v100
    %v1787 = vunpack.c.l.b16 %v101
    %v1788 = vunpack.c.h.b16 %v101
    %v1789 = vunpack.c.l.b16 %v102
    %v1790 = vunpack.c.h.b16 %v102
    %v1791 = vunpack.c.l.b16 %v103
    %v1792 = vunpack.c.h.b16 %v103
    %v1793 = vunpack.c.l.b16 %v104
    %v1794 = vunpack.c.h.b16 %v104
    %v1795 = vunpack.c.l.b16 %v105
    %v1796 = vunpack.c.h.b16 %v105
    %v1797 = vunpack.c.l.b16 %v106
    %v1798 = vunpack.c.h.b16 %v106
    %v1799 = vunpack.c.l.b16 %v107
    %v1800 = vunpack.c.h.b16 %v107
    %v1801 = vunpack.c.l.b16 %v108
    %v1802 = vunpack.c.h.b16 %v108
    %v1803 = vunpack.c.l.b16 %v109
    %v1804 = vunpack.c.h.b16 %v109
    %v1805 = vunpack.c.l.b16 %v110
    %v1806 = vunpack.c.h.b16 %v110
    %v1807 = vunpack.c.l.b16 %v111
    %v1808 = vunpack.c.h.b16 %v111
    %v1809 = vunpack.c.l.b16 %v112
    %v1810 = vunpack.c.h.b16 %v112
    %v1811 = vunpack.c.l.b16 %v113
    %v1812 = vunpack.c.h.b16 %v113
    %v1813 = vunpack.c.l.b16 %v114
    %v1814 = vunpack.c.h.b16 %v114
    %v1815 = vunpack.c.l.b16 %v115
    %v1816 = vunpack.c.h.b16 %v115
    %v1817 = vunpack.c.l.b16 %v116
    %v1818 = vunpack.c.h.b16 %v116
    %v1819 = vunpack.c.l.b16 %v117
    %v1820 = vunpack.c.h.b16 %v117
    %v1821 = vunpack.c.l.b16 %v118
    %v1822 = vunpack.c.h.b16 %v118
    %v1823 = vunpack.c.l.b16 %v119
    %v1824 = vunpack.c.h.b16 %v119
    %v1825 = vunpack.c.l.b16 %v120
    %v1826 = vunpack.c.h.b16 %v120
    %v1827 = vunpack.c.l.b16 %v121
    %v1828 = vunpack.c.h.b16 %v121
    %v1829 = vunpack.c.l.b16 %v122
    %v1830 = vunpack.c.h.b16 %v122
    %v1831 = vunpack.c.l.b16 %v123
    %v1832 = vunpack.c.h.b16 %v123
    %v1833 = vunpack.c.l.b16 %v124
    %v1834 = vunpack.c.h.b16 %v124
    %v1835 = vunpack.c.l.b16 %v125
    %v1836 = vunpack.c.h.b16 %v125
    %v1837 = vunpack.c.l.b16 %v126
    %v1838 = vunpack.c.h.b16 %v126
    %v1839 = vunpack.c.l.b16 %v127
    %v1840 = vunpack.c.h.b16 %v127
    %v1841 = vunpack.c.l.b16 %v128
    %v1842 = vunpack.c.h.b16 %v128
    %v1843 = vunpack.c.l.b16 %v129
    %v1844 = vunpack.c.h.b16 %v129
    %v1845 = vunpack.c.l.b16 %v130
    %v1846 = vunpack.c.h.b16 %v130
    %v1847 = vunpack.c.l.b16 %v131
    %v1848 = vunpack.c.h.b16 %v131
    %v1849 = vunpack.c.l.b16 %v132
    %v1850 = vunpack.c.h.b16 %v132
    %v1851 = vunpack.c.l.b16 %v133
    %v1852 = vunpack.c.h.b16 %v133
    %v1853 = vunpack.c.l.b16 %v134
    %v1854 = vunpack.c.h.b16 %v134
    %v1855 = vunpack.c.l.b16 %v135
    %v1856 = vunpack.c.h.b16 %v135
    %v1857 = vunpack.c.l.b16 %v136
    %v1858 = vunpack.c.h.b16 %v136
    %v1859 = vunpack.c.l.b16 %v137
    %v1860 = vunpack.c.h.b16 %v137
    %v1861 = vunpack.c.l.b16 %v138
    %v1862 = vunpack.c.h.b16 %v138
    %v1863 = vunpack.c.l.b16 %v139
    %v1864 = vunpack.c.h.b16 %v139
    %v1865 = vunpack.c.l.b16 %v140
    %v1866 = vunpack.c.h.b16 %v140
    %v1867 = vunpack.c.l.b16 %v141
    %v1868 = vunpack.c.h.b16 %v141
    %v1869 = vunpack.c.l.b16 %v142
    %v1870 = vunpack.c.h.b16 %v142
    %v1871 = vunpack.c.l.b16 %v143
    %v1872 = vunpack.c.h.b16 %v143
    %v1873 = vunpack.c.l.b16 %v144
    %v1874 = vunpack.c.h.b16 %v144
    %v1875 = vunpack.c.l.b16 %v145
    %v1876 = vunpack.c.h.b16 %v145
    %v1877 = vunpack.c.l.b16 %v146
    %v1878 = vunpack.c.h.b16 %v146
    %v1879 = vunpack.c.l.b16 %v147
    %v1880 = vunpack.c.h.b16 %v147
    %v1881 = vunpack.c.l.b16 %v148
    %v1882 = vunpack.c.h.b16 %v148
    %v1883 = vunpack.c.l.b16 %v149
    %v1884 = vunpack.c.h.b16 %v149
    %v1885 = vunpack.c.l.b16 %v150
    %v1886 = vunpack.c.h.b16 %v150
    %v1887 = vunpack.c.l.b16 %v151
    %v1888 = vunpack.c.h.b16 %v151
    %v1889 = vunpack.c.l.b16 %v152
    %v1890 = vunpack.c.h.b16 %v152
    %v1891 = vunpack.c.l.b16 %v153
    %v1892 = vunpack.c.h.b16 %v153
    %v1893 = vunpack.c.l.b16 %v154
    %v1894 = vunpack.c.h.b16 %v154
    %v1895 = vunpack.c.l.b16 %v155
    %v1896 = vunpack.c.h.b16 %v155
    %v1897 = vunpack.c.l.b16 %v156
    %v1898 = vunpack.c.h.b16 %v156
    %v1899 = vunpack.c.l.b16 %v157
    %v1900 = vunpack.c.h.b16 %v157
    %v1901 = vunpack.c.l.b16 %v158
    %v1902 = vunpack.c.h.b16 %v158
    %v1903 = vunpack.c.l.b16 %v159
    %v1904 = vunpack.c.h.b16 %v159
    %v1905 = vunpack.c.l.b16 %v160
    %v1906 = vunpack.c.h.b16 %v160
    %v1907 = vunpack.c.l.b16 %v161
    %v1908 = vunpack.c.h.b16 %v161
    %v1909 = vunpack.c.l.b16 %v162
    %v1910 = vunpack.c.h.b16 %v162
    %v1911 = vunpack.c.l.b16 %v163
    %v1912 = vunpack.c.h.b16 %v163
    %v1913 = vunpack.c.l.b16 %v164
    %v1914 = vunpack.c.h.b16 %v164
    %v1915 = vunpack.c.l.b16 %v165
    %v1916 = vunpack.c.h.b16 %v165
    %v1917 = vunpack.c.l.b16 %v166
    %v1918 = vunpack.c.h.b16 %v166
    %v1919 = vunpack.c.l.b16 %v167
    %v1920 = vunpack.c.h.b16 %v167
    %v1921 = vunpack.c.l.b16 %v168
    %v1922 = vunpack.c.h.b16 %v168
    %v1923 = vunpack.c.l.b16 %v169
    %v1924 = vunpack.c.h.b16 %v169
    %v1925 = vunpack.c.l.b16 %v170
    %v1926 = vunpack.c.h.b16 %v170
    %v1927 = vunpack.c.l.b16 %v171
    %v1928 = vunpack.c.h.b16 %v171
    %v1929 = vunpack.c.l.b16 %v172
    %v1930 = vunpack.c.h.b16 %v172
    %v1931 = vunpack.c.l.b16 %v173
    %v1932 = vunpack.c.h.b16 %v173
    %v1933 = vunpack.c.l.b16 %v174
    %v1934 = vunpack.c.h.b16 %v174
    %v1935 = vunpack.c.l.b16 %v175
    %v1936 = vunpack.c.h.b16 %v175
    %v1937 = vunpack.c.l.b16 %v176
    %v1938 = vunpack.c.h.b16 %v176
    %v1939 = vunpack.c.l.b16 %v177
    %v1940 = vunpack.c.h.b16 %v177
    %v1941 = vunpack.c.l.b16 %v178
    %v1942 = vunpack.c.h.b16 %v178
    %v1943 = vunpack.c.l.b16 %v179
    %v1944 = vunpack.c.h.b16 %v179
    %v1945 = vunpack.c.l.b16 %v180
    %v1946 = vunpack.c.h.b16 %v180
    %v1947 = vunpack.c.l.b16 %v181
    %v1948 = vunpack.c.h.b16 %v181
    %v1949 = vunpack.c.l.b16 %v182
    %v1950 = vunpack.c.h.b16 %v182
    %v1951 = vunpack.c.l.b16 %v183
    %v1952 = vunpack.c.h.b16 %v183
    %v1953 = vunpack.c.l.b16 %v184
    %v1954 = vunpack.c.h.b16 %v184
    %v1955 = vunpack.c.l.b16 %v185
    %v1956 = vunpack.c.h.b16 %v185
    %v1957 = vunpack.c.l.b16 %v186
    %v1958 = vunpack.c.h.b16 %v186
    %v1959 = vunpack.c.l.b16 %v187
    %v1960 = vunpack.c.h.b16 %v187
    %v1961 = vunpack.c.l.b16 %v188
    %v1962 = vunpack.c.h.b16 %v188
    %v1963 = vunpack.c.l.b16 %v189
    %v1964 = vunpack.c.h.b16 %v189
    %v1965 = vunpack.c.l.b16 %v190
    %v1966 = vunpack.c.h.b16 %v190
    %v1967 = vunpack.c.l.b16 %v191
    %v1968 = vunpack.c.h.b16 %v191
    %v1969 = vunpack.c.l.b16 %v192
    %v1970 = vunpack.c.h.b16 %v192
    %v1971 = vunpack.c.l.b16 %v193
    %v1972 = vunpack.c.h.b16 %v193
    %v1973 = vunpack.c.l.b16 %v194
    %v1974 = vunpack.c.h.b16 %v194
    %v1975 = vunpack.c.l.b16 %v195
    %v1976 = vunpack.c.h.b16 %v195
    %v1977 = vunpack.c.l.b16 %v196
    %v1978 = vunpack.c.h.b16 %v196
    %v1979 = vunpack.c.l.b16 %v197
    %v1980 = vunpack.c.h.b16 %v197
    %v1981 = vunpack.c.l.b16 %v198
    %v1982 = vunpack.c.h.b16 %v198
    %v1983 = vunpack.c.l.b16 %v199
    %v1984 = vunpack.c.h.b16 %v199
    %v1985 = vunpack.c.l.b16 %v200
    %v1986 = vunpack.c.h.b16 %v200
    %v1987 = vunpack.c.l.b16 %v201
    %v1988 = vunpack.c.h.b16 %v201
    %v1989 = vunpack.c.l.b16 %v202
    %v1990 = vunpack.c.h.b16 %v202
    %v1991 = vunpack.c.l.b16 %v203
    %v1992 = vunpack.c.h.b16 %v203
    %v1993 = vunpack.c.l.b16 %v204
    %v1994 = vunpack.c.h.b16 %v204
    %v1995 = vunpack.c.l.b16 %v205
    %v1996 = vunpack.c.h.b16 %v205
    %v1997 = vunpack.c.l.b16 %v206
    %v1998 = vunpack.c.h.b16 %v206
    %v1999 = vunpack.c.l.b16 %v207
    %v2000 = vunpack.c.h.b16 %v207
    %v2001 = vunpack.c.l.b16 %v208
    %v2002 = vunpack.c.h.b16 %v208
    %v2003 = vunpack.c.l.b16 %v209
    %v2004 = vunpack.c.h.b16 %v209
    %v2005 = vunpack.c.l.b16 %v210
    %v2006 = vunpack.c.h.b16 %v210
    %v2007 = vunpack.c.l.b16 %v211
    %v2008 = vunpack.c.h.b16 %v211
    %v2009 = vunpack.c.l.b16 %v212
    %v2010 = vunpack.c.h.b16 %v212
    %v2011 = vunpack.c.l.b16 %v213
    %v2012 = vunpack.c.h.b16 %v213
    %v2013 = vunpack.c.l.b16 %v214
    %v2014 = vunpack.c.h.b16 %v214
    %v2015 = vunpack.c.l.b16 %v215
    %v2016 = vunpack.c.h.b16 %v215
    %v2017 = vunpack.c.l.b16 %v216
    %v2018 = vunpack.c.h.b16 %v216
    %v2019 = vunpack.c.l.b16 %v217
    %v2020 = vunpack.c.h.b16 %v217
    %v2021 = vunpack.c.l.b16 %v218
    %v2022 = vunpack.c.h.b16 %v218
    %v2023 = vunpack.c.l.b16 %v219
    %v2024 = vunpack.c.h.b16 %v219
    %v2025 = vunpack.c.l.b16 %v220
    %v2026 = vunpack.c.h.b16 %v220
    %v2027 = vunpack.c.l.b16 %v221
    %v2028 = vunpack.c.h.b16 %v221
    %v2029 = vunpack.c.l.b16 %v222
    %v2030 = vunpack.c.h.b16 %v222
    %v2031 = vunpack.c.l.b16 %v223
    %v2032 = vunpack.c.h.b16 %v223
    %v2033 = vunpack.c.l.b16 %v224
    %v2034 = vunpack.c.h.b16 %v224
    %v2035 = vunpack.c.l.b16 %v225
    %v2036 = vunpack.c.h.b16 %v225
    %v2037 = vunpack.c.l.b16 %v226
    %v2038 = vunpack.c.h.b16 %v226
    %v2039 = vunpack.c.l.b16 %v227
    %v2040 = vunpack.c.h.b16 %v227
    %v2041 = vunpack.c.l.b16 %v228
    %v2042 = vunpack.c.h.b16 %v228
    %v2043 = vunpack.c.l.b16 %v229
    %v2044 = vunpack.c.h.b16 %v229
    %v2045 = vunpack.c.l.b16 %v230
    %v2046 = vunpack.c.h.b16 %v230
    %v2047 = vunpack.c.l.b16 %v231
    %v2048 = vunpack.c.h.b16 %v231
    %v2049 = vunpack.c.l.b16 %v232
    %v2050 = vunpack.c.h.b16 %v232
    %v2051 = vunpack.c.l.b16 %v233
    %v2052 = vunpack.c.h.b16 %v233
    %v2053 = vunpack.c.l.b16 %v234
    %v2054 = vunpack.c.h.b16 %v234
    %v2055 = vunpack.c.l.b16 %v235
    %v2056 = vunpack.c.h.b16 %v235
    %v2057 = vunpack.c.l.b16 %v236
    %v2058 = vunpack.c.h.b16 %v236
    %v2059 = vunpack.c.l.b16 %v237
    %v2060 = vunpack.c.h.b16 %v237
    %v2061 = vunpack.c.l.b16 %v238
    %v2062 = vunpack.c.h.b16 %v238
    %v2063 = vunpack.c.l.b16 %v239
    %v2064 = vunpack.c.h.b16 %v239
    %v2065 = vunpack.c.l.b16 %v240
    %v2066 = vunpack.c.h.b16 %v240
    %v2067 = vunpack.c.l.b16 %v241
    %v2068 = vunpack.c.h.b16 %v241
    %v2069 = vunpack.c.l.b16 %v242
    %v2070 = vunpack.c.h.b16 %v242
    %v2071 = vunpack.c.l.b16 %v243
    %v2072 = vunpack.c.h.b16 %v243
    %v2073 = vunpack.c.l.b16 %v244
    %v2074 = vunpack.c.h.b16 %v244
    %v2075 = vunpack.c.l.b16 %v245
    %v2076 = vunpack.c.h.b16 %v245
    %v2077 = vunpack.c.l.b16 %v246
    %v2078 = vunpack.c.h.b16 %v246
    %v2079 = vunpack.c.l.b16 %v247
    %v2080 = vunpack.c.h.b16 %v247
    %v2081 = vunpack.c.l.b16 %v248
    %v2082 = vunpack.c.h.b16 %v248
    %v2083 = vunpack.c.l.b16 %v249
    %v2084 = vunpack.c.h.b16 %v249
    %v2085 = vunpack.c.l.b16 %v250
    %v2086 = vunpack.c.h.b16 %v250
    %v2087 = vunpack.c.l.b16 %v251
    %v2088 = vunpack.c.h.b16 %v251
    %v2089 = vunpack.c.l.b16 %v252
    %v2090 = vunpack.c.h.b16 %v252
    %v2091 = vunpack.c.l.b16 %v253
    %v2092 = vunpack.c.h.b16 %v253
    %v2093 = vunpack.c.l.b16 %v254
    %v2094 = vunpack.c.h.b16 %v254
    %v2095 = vunpack.c.l.b16 %v255
    %v2096 = vunpack.c.h.b16 %v255
    %v2097 = vunpack.c.l.b16 %v256
    %v2098 = vunpack.c.h.b16 %v256
    %v2099 = vunpack.c.l.b16 %v257
    %v2100 = vunpack.c.h.b16 %v257
    %v2101 = vunpack.c.l.b16 %v258
    %v2102 = vunpack.c.h.b16 %v258
    %v2103 = vunpack.c.l.b16 %v259
    %v2104 = vunpack.c.h.b16 %v259
    %v2105 = vunpack.c.l.b16 %v260
    %v2106 = vunpack.c.h.b16 %v260
    %v2107 = vunpack.c.l.b16 %v261
    %v2108 = vunpack.c.h.b16 %v261
    %v2109 = vunpack.c.l.b16 %v262
    %v2110 = vunpack.c.h.b16 %v262
    %v2111 = vunpack.c.l.b16 %v263
    %v2112 = vunpack.c.h.b16 %v263
    %v2113 = vunpack.c.l.b16 %v264
    %v2114 = vunpack.c.h.b16 %v264
    %v2115 = vunpack.c.l.b16 %v265
    %v2116 = vunpack.c.h.b16 %v265
    %v2117 = vunpack.c.l.b16 %v266
    %v2118 = vunpack.c.h.b16 %v266
    %v2119 = vunpack.c.l.b16 %v267
    %v2120 = vunpack.c.h.b16 %v267
    %v2121 = vunpack.c.l.b16 %v268
    %v2122 = vunpack.c.h.b16 %v268
    %v2123 = vunpack.c.l.b16 %v269
    %v2124 = vunpack.c.h.b16 %v269
    %v2125 = vunpack.c.l.b16 %v270
    %v2126 = vunpack.c.h.b16 %v270
    %v2127 = vunpack.c.l.b16 %v271
    %v2128 = vunpack.c.h.b16 %v271
    %v2129 = vunpack.c.l.b16 %v272
    %v2130 = vunpack.c.h.b16 %v272
    %v2131 = vunpack.c.l.b16 %v273
    %v2132 = vunpack.c.h.b16 %v273
    %v2133 = vunpack.c.l.b16 %v274
    %v2134 = vunpack.c.h.b16 %v274
    %v2135 = vunpack.c.l.b16 %v275
    %v2136 = vunpack.c.h.b16 %v275
    %v2137 = vunpack.c.l.b16 %v276
    %v2138 = vunpack.c.h.b16 %v276
    %v2139 = vunpack.c.l.b16 %v277
    %v2140 = vunpack.c.h.b16 %v277
    %v2141 = vunpack.c.l.b16 %v278
    %v2142 = vunpack.c.h.b16 %v278
    %v2143 = vunpack.c.l.b16 %v279
    %v2144 = vunpack.c.h.b16 %v279
    %v2145 = vunpack.c.l.b16 %v280
    %v2146 = vunpack.c.h.b16 %v280
    %v2147 = vunpack.c.l.b16 %v281
    %v2148 = vunpack.c.h.b16 %v281
    %v2149 = vunpack.c.l.b16 %v282
    %v2150 = vunpack.c.h.b16 %v282
    %v2151 = vunpack.c.l.b16 %v283
    %v2152 = vunpack.c.h.b16 %v283
    %v2153 = vunpack.c.l.b16 %v284
    %v2154 = vunpack.c.h.b16 %v284
    %v2155 = vunpack.c.l.b16 %v285
    %v2156 = vunpack.c.h.b16 %v285
    %v2157 = vunpack.c.l.b16 %v286
    %v2158 = vunpack.c.h.b16 %v286
    %v2159 = vunpack.c.l.b16 %v287
    %v2160 = vunpack.c.h.b16 %v287
    %v2161 = vunpack.c.l.b16 %v288
    %v2162 = vunpack.c.h.b16 %v288
    %v2163 = vunpack.c.l.b16 %v289
    %v2164 = vunpack.c.h.b16 %v289
    %v2165 = vunpack.c.l.b16 %v290
    %v2166 = vunpack.c.h.b16 %v290
    %v2167 = vunpack.c.l.b16 %v291
    %v2168 = vunpack.c.h.b16 %v291
    %v2169 = vunpack.c.l.b16 %v292
    %v2170 = vunpack.c.h.b16 %v292
    %v2171 = vunpack.c.l.b16 %v293
    %v2172 = vunpack.c.h.b16 %v293
    %v2173 = vunpack.c.l.b16 %v294
    %v2174 = vunpack.c.h.b16 %v294
    %v2175 = vunpack.c.l.b16 %v295
    %v2176 = vunpack.c.h.b16 %v295
    %v2177 = vunpack.c.l.b16 %v296
    %v2178 = vunpack.c.h.b16 %v296
    %v2179 = vunpack.c.l.b16 %v297
    %v2180 = vunpack.c.h.b16 %v297
    %v2181 = vunpack.c.l.b16 %v298
    %v2182 = vunpack.c.h.b16 %v298
    %v2183 = vunpack.c.l.b16 %v299
    %v2184 = vunpack.c.h.b16 %v299
    %v2185 = vunpack.c.l.b16 %v300
    %v2186 = vunpack.c.h.b16 %v300
    %v2187 = vunpack.c.l.b16 %v301
    %v2188 = vunpack.c.h.b16 %v301
    %v2189 = vunpack.c.l.b16 %v302
    %v2190 = vunpack.c.h.b16 %v302
    %v2191 = vunpack.c.l.b16 %v303
    %v2192 = vunpack.c.h.b16 %v303
    %v2193 = vunpack.c.l.b16 %v304
    %v2194 = vunpack.c.h.b16 %v304
    %v2195 = vunpack.c.l.b16 %v305
    %v2196 = vunpack.c.h.b16 %v305
    %v2197 = vunpack.c.l.b16 %v306
    %v2198 = vunpack.c.h.b16 %v306
    %v2199 = vunpack.c.l.b16 %v307
    %v2200 = vunpack.c.h.b16 %v307
    %v2201 = vunpack.c.l.b16 %v308
    %v2202 = vunpack.c.h.b16 %v308
    %v2203 = vunpack.c.l.b16 %v309
    %v2204 = vunpack.c.h.b16 %v309
    %v2205 = vunpack.c.l.b16 %v310
    %v2206 = vunpack.c.h.b16 %v310
    %v2207 = vunpack.c.l.b16 %v311
    %v2208 = vunpack.c.h.b16 %v311
    %v2209 = vunpack.c.l.b16 %v312
    %v2210 = vunpack.c.h.b16 %v312
    %v2211 = vunpack.c.l.b16 %v313
    %v2212 = vunpack.c.h.b16 %v313
    %v2213 = vunpack.c.l.b16 %v314
    %v2214 = vunpack.c.h.b16 %v314
    %v2215 = vunpack.c.l.b16 %v315
    %v2216 = vunpack.c.h.b16 %v315
    %v2217 = vunpack.c.l.b16 %v316
    %v2218 = vunpack.c.h.b16 %v316
    %v2219 = vunpack.c.l.b16 %v317
    %v2220 = vunpack.c.h.b16 %v317
    %v2221 = vunpack.c.l.b16 %v318
    %v2222 = vunpack.c.h.b16 %v318
    %v2223 = vunpack.c.l.b16 %v319
    %v2224 = vunpack.c.h.b16 %v319
    %v2225 = vunpack.c.l.b16 %v320
    %v2226 = vunpack.c.h.b16 %v320
    %v2227 = vunpack.c.l.b16 %v321
    %v2228 = vunpack.c.h.b16 %v321
    %v2229 = vunpack.c.l.b16 %v322
    %v2230 = vunpack.c.h.b16 %v322
    %v2231 = vunpack.c.l.b16 %v323
    %v2232 = vunpack.c.h.b16 %v323
    %v2233 = vunpack.c.l.b16 %v324
    %v2234 = vunpack.c.h.b16 %v324
    %v2235 = vunpack.c.l.b16 %v325
    %v2236 = vunpack.c.h.b16 %v325
    %v2237 = vunpack.c.l.b16 %v326
    %v2238 = vunpack.c.h.b16 %v326
    %v2239 = vunpack.c.l.b16 %v327
    %v2240 = vunpack.c.h.b16 %v327
    %v2241 = vunpack.c.l.b16 %v328
    %v2242 = vunpack.c.h.b16 %v328
    %v2243 = vunpack.c.l.b16 %v329
    %v2244 = vunpack.c.h.b16 %v329
    %v2245 = vunpack.c.l.b16 %v330
    %v2246 = vunpack.c.h.b16 %v330
    %v2247 = vunpack.c.l.b16 %v331
    %v2248 = vunpack.c.h.b16 %v331
    %v2249 = vunpack.c.l.b16 %v332
    %v2250 = vunpack.c.h.b16 %v332
    %v2251 = vunpack.c.l.b16 %v333
    %v2252 = vunpack.c.h.b16 %v333
    %v2253 = vunpack.c.l.b16 %v334
    %v2254 = vunpack.c.h.b16 %v334
    %v2255 = vunpack.c.l.b16 %v335
    %v2256 = vunpack.c.h.b16 %v335
    %v2257 = vunpack.c.l.b16 %v336
    %v2258 = vunpack.c.h.b16 %v336
    %v2259 = vunpack.c.l.b16 %v337
    %v2260 = vunpack.c.h.b16 %v337
    %v2261 = vunpack.c.l.b16 %v338
    %v2262 = vunpack.c.h.b16 %v338
    %v2263 = vunpack.c.l.b16 %v339
    %v2264 = vunpack.c.h.b16 %v339
    %v2265 = vunpack.c.l.b16 %v340
    %v2266 = vunpack.c.h.b16 %v340
    %v2267 = vunpack.c.l.b16 %v341
    %v2268 = vunpack.c.h.b16 %v341
    %v2269 = vunpack.c.l.b16 %v342
    %v2270 = vunpack.c.h.b16 %v342
    %v2271 = vunpack.c.l.b16 %v343
    %v2272 = vunpack.c.h.b16 %v343
    %v2273 = vunpack.c.l.b16 %v344
    %v2274 = vunpack.c.h.b16 %v344
    %v2275 = vunpack.c.l.b16 %v345
    %v2276 = vunpack.c.h.b16 %v345
    %v2277 = vunpack.c.l.b16 %v346
    %v2278 = vunpack.c.h.b16 %v346
    %v2279 = vunpack.c.l.b16 %v347
    %v2280 = vunpack.c.h.b16 %v347
    %v2281 = vunpack.c.l.b16 %v348
    %v2282 = vunpack.c.h.b16 %v348
    %v2283 = vunpack.c.l.b16 %v349
    %v2284 = vunpack.c.h.b16 %v349
    %v2285 = vunpack.c.l.b16 %v350
    %v2286 = vunpack.c.h.b16 %v350
    %v2287 = vunpack.c.l.b16 %v351
    %v2288 = vunpack.c.h.b16 %v351
    %v2289 = vunpack.c.l.b16 %v352
    %v2290 = vunpack.c.h.b16 %v352
    %v2291 = vunpack.c.l.b16 %v353
    %v2292 = vunpack.c.h.b16 %v353
    %v2293 = vunpack.c.l.b16 %v354
    %v2294 = vunpack.c.h.b16 %v354
    %v2295 = vunpack.c.l.b16 %v355
    %v2296 = vunpack.c.h.b16 %v355
    %v2297 = vunpack.c.l.b16 %v356
    %v2298 = vunpack.c.h.b16 %v356
    %v2299 = vunpack.c.l.b16 %v357
    %v2300 = vunpack.c.h.b16 %v357
    %v2301 = vunpack.c.l.b16 %v358
    %v2302 = vunpack.c.h.b16 %v358
    %v2303 = vunpack.c.l.b16 %v359
    %v2304 = vunpack.c.h.b16 %v359
    %v2305 = vunpack.c.l.b16 %v360
    %v2306 = vunpack.c.h.b16 %v360
    %v2307 = vunpack.c.l.b16 %v361
    %v2308 = vunpack.c.h.b16 %v361
    %v2309 = vunpack.c.l.b16 %v362
    %v2310 = vunpack.c.h.b16 %v362
    %v2311 = vunpack.c.l.b16 %v363
    %v2312 = vunpack.c.h.b16 %v363
    %v2313 = vunpack.c.l.b16 %v364
    %v2314 = vunpack.c.h.b16 %v364
    %v2315 = vunpack.c.l.b16 %v365
    %v2316 = vunpack.c.h.b16 %v365
    %v2317 = vunpack.c.l.b16 %v366
    %v2318 = vunpack.c.h.b16 %v366
    %v2319 = vunpack.c.l.b16 %v367
    %v2320 = vunpack.c.h.b16 %v367
    %v2321 = vunpack.c.l.b16 %v368
    %v2322 = vunpack.c.h.b16 %v368
    %v2323 = vunpack.c.l.b16 %v369
    %v2324 = vunpack.c.h.b16 %v369
    %v2325 = vunpack.c.l.b16 %v370
    %v2326 = vunpack.c.h.b16 %v370
    %v2327 = vunpack.c.l.b16 %v371
    %v2328 = vunpack.c.h.b16 %v371
    %v2329 = vunpack.c.l.b16 %v372
    %v2330 = vunpack.c.h.b16 %v372
    %v2331 = vunpack.c.l.b16 %v373
    %v2332 = vunpack.c.h.b16 %v373
    %v2333 = vunpack.c.l.b16 %v374
    %v2334 = vunpack.c.h.b16 %v374
    %v2335 = vunpack.c.l.b16 %v375
    %v2336 = vunpack.c.h.b16 %v375
    %v2337 = vunpack.c.l.b16 %v376
    %v2338 = vunpack.c.h.b16 %v376
    %v2339 = vunpack.c.l.b16 %v377
    %v2340 = vunpack.c.h.b16 %v377
    %v2341 = vunpack.c.l.b16 %v378
    %v2342 = vunpack.c.h.b16 %v378
    %v2343 = vunpack.c.l.b16 %v379
    %v2344 = vunpack.c.h.b16 %v379
    %v2345 = vunpack.c.l.b16 %v380
    %v2346 = vunpack.c.h.b16 %v380
    %v2347 = vunpack.c.l.b16 %v381
    %v2348 = vunpack.c.h.b16 %v381
    %v2349 = vunpack.c.l.b16 %v382
    %v2350 = vunpack.c.h.b16 %v382
    %v2351 = vunpack.c.l.b16 %v383
    %v2352 = vunpack.c.h.b16 %v383
    %v2353 = vunpack.c.l.b16 %v384
    %v2354 = vunpack.c.h.b16 %v384
    %v2355 = vunpack.c.l.b16 %v385
    %v2356 = vunpack.c.h.b16 %v385
    %v2357 = vunpack.c.l.b16 %v386
    %v2358 = vunpack.c.h.b16 %v386
    %v2359 = vunpack.c.l.b16 %v387
    %v2360 = vunpack.c.h.b16 %v387
    %v2361 = vunpack.c.l.b16 %v388
    %v2362 = vunpack.c.h.b16 %v388
    %v2363 = vunpack.c.l.b16 %v389
    %v2364 = vunpack.c.h.b16 %v389
    %v2365 = vunpack.c.l.b16 %v390
    %v2366 = vunpack.c.h.b16 %v390
    %v2367 = vunpack.c.l.b16 %v391
    %v2368 = vunpack.c.h.b16 %v391
    %v2369 = vunpack.c.l.b16 %v392
    %v2370 = vunpack.c.h.b16 %v392
    %v2371 = vunpack.c.l.b16 %v393
    %v2372 = vunpack.c.h.b16 %v393
    %v2373 = vunpack.c.l.b16 %v394
    %v2374 = vunpack.c.h.b16 %v394
    %v2375 = vunpack.c.l.b16 %v395
    %v2376 = vunpack.c.h.b16 %v395
    %v2377 = vunpack.c.l.b16 %v396
    %v2378 = vunpack.c.h.b16 %v396
    %v2379 = vunpack.c.l.b16 %v397
    %v2380 = vunpack.c.h.b16 %v397
    %v2381 = vunpack.c.l.b16 %v398
    %v2382 = vunpack.c.h.b16 %v398
    %v2383 = vunpack.c.l.b16 %v399
    %v2384 = vunpack.c.h.b16 %v399
    %v2385 = vunpack.c.l.b16 %v400
    %v2386 = vunpack.c.h.b16 %v400
    %v2387 = vunpack.c.l.b16 %v401
    %v2388 = vunpack.c.h.b16 %v401
    %v2389 = vunpack.c.l.b16 %v402
    %v2390 = vunpack.c.h.b16 %v402
    %v2391 = vunpack.c.l.b16 %v403
    %v2392 = vunpack.c.h.b16 %v403
    %v2393 = vunpack.c.l.b16 %v404
    %v2394 = vunpack.c.h.b16 %v404
    %v2395 = vunpack.c.l.b16 %v405
    %v2396 = vunpack.c.h.b16 %v405
    %v2397 = vunpack.c.l.b16 %v406
    %v2398 = vunpack.c.h.b16 %v406
    %v2399 = vunpack.c.l.b16 %v407
    %v2400 = vunpack.c.h.b16 %v407
    %v2401 = vunpack.c.l.b16 %v408
    %v2402 = vunpack.c.h.b16 %v408
    %v2403 = vunpack.c.l.b16 %v409
    %v2404 = vunpack.c.h.b16 %v409
    %v2405 = vunpack.c.l.b16 %v410
    %v2406 = vunpack.c.h.b16 %v410
    %v2407 = vunpack.c.l.b16 %v411
    %v2408 = vunpack.c.h.b16 %v411
    %v2409 = vunpack.c.l.b16 %v412
    %v2410 = vunpack.c.h.b16 %v412
    %v2411 = vunpack.c.l.b16 %v413
    %v2412 = vunpack.c.h.b16 %v413
    %v2413 = vunpack.c.l.b16 %v414
    %v2414 = vunpack.c.h.b16 %v414
    %v2415 = vunpack.c.l.b16 %v415
    %v2416 = vunpack.c.h.b16 %v415
    %v2417 = vunpack.c.l.b16 %v416
    %v2418 = vunpack.c.h.b16 %v416
    %v2419 = vunpack.c.l.b16 %v417
    %v2420 = vunpack.c.h.b16 %v417
    %v2421 = vunpack.c.l.b16 %v418
    %v2422 = vunpack.c.h.b16 %v418
    %v2423 = vunpack.c.l.b16 %v419
    %v2424 = vunpack.c.h.b16 %v419
    %v2425 = vunpack.c.l.b16 %v420
    %v2426 = vunpack.c.h.b16 %v420
    %v2427 = vunpack.c.l.b16 %v421
    %v2428 = vunpack.c.h.b16 %v421
    %v2429 = vunpack.c.l.b16 %v422
    %v2430 = vunpack.c.h.b16 %v422
    %v2431 = vunpack.c.l.b16 %v423
    %v2432 = vunpack.c.h.b16 %v423
    %v2433 = vunpack.c.l.b16 %v424
    %v2434 = vunpack.c.h.b16 %v424
    %v2435 = vunpack.c.l.b16 %v425
    %v2436 = vunpack.c.h.b16 %v425
    %v2437 = vunpack.c.l.b16 %v426
    %v2438 = vunpack.c.h.b16 %v426
    %v2439 = vunpack.c.l.b16 %v427
    %v2440 = vunpack.c.h.b16 %v427
    %v2441 = vunpack.c.l.b16 %v428
    %v2442 = vunpack.c.h.b16 %v428
    %v2443 = vunpack.c.l.b16 %v429
    %v2444 = vunpack.c.h.b16 %v429
    %v2445 = vunpack.c.l.b16 %v430
    %v2446 = vunpack.c.h.b16 %v430
    %v2447 = vunpack.c.l.b16 %v431
    %v2448 = vunpack.c.h.b16 %v431
    %v2449 = vunpack.c.l.b16 %v432
    %v2450 = vunpack.c.h.b16 %v432
    %v2451 = vunpack.c.l.b16 %v433
    %v2452 = vunpack.c.h.b16 %v433
    %v2453 = vunpack.c.l.b16 %v434
    %v2454 = vunpack.c.h.b16 %v434
    %v2455 = vunpack.c.l.b16 %v435
    %v2456 = vunpack.c.h.b16 %v435
    %v2457 = vunpack.c.l.b16 %v436
    %v2458 = vunpack.c.h.b16 %v436
    %v2459 = vunpack.c.l.b16 %v437
    %v2460 = vunpack.c.h.b16 %v437
    %v2461 = vunpack.c.l.b16 %v438
    %v2462 = vunpack.c.h.b16 %v438
    %v2463 = vunpack.c.l.b16 %v439
    %v2464 = vunpack.c.h.b16 %v439
    %v2465 = vunpack.c.l.b16 %v440
    %v2466 = vunpack.c.h.b16 %v440
    %v2467 = vunpack.c.l.b16 %v441
    %v2468 = vunpack.c.h.b16 %v441
    %v2469 = vunpack.c.l.b16 %v442
    %v2470 = vunpack.c.h.b16 %v442
    %v2471 = vunpack.c.l.b16 %v443
    %v2472 = vunpack.c.h.b16 %v443
    %v2473 = vunpack.c.l.b16 %v444
    %v2474 = vunpack.c.h.b16 %v444
    %v2475 = vunpack.c.l.b16 %v445
    %v2476 = vunpack.c.h.b16 %v445
    %v2477 = vunpack.c.l.b16 %v446
    %v2478 = vunpack.c.h.b16 %v446
    %v2479 = vunpack.c.l.b16 %v447
    %v2480 = vunpack.c.h.b16 %v447
    %v2481 = vunpack.c.l.b16 %v448
    %v2482 = vunpack.c.h.b16 %v448
    %v2483 = vunpack.c.l.b16 %v449
    %v2484 = vunpack.c.h.b16 %v449
    %v2485 = vunpack.c.l.b16 %v450
    %v2486 = vunpack.c.h.b16 %v450
    %v2487 = vunpack.c.l.b16 %v451
    %v2488 = vunpack.c.h.b16 %v451
    %v2489 = vunpack.c.l.b16 %v452
    %v2490 = vunpack.c.h.b16 %v452
    %v2491 = vunpack.c.l.b16 %v453
    %v2492 = vunpack.c.h.b16 %v453
    %v2493 = vunpack.c.l.b16 %v454
    %v2494 = vunpack.c.h.b16 %v454
    %v2495 = vunpack.c.l.b16 %v455
    %v2496 = vunpack.c.h.b16 %v455
    %v2497 = vunpack.c.l.b16 %v456
    %v2498 = vunpack.c.h.b16 %v456
    %v2499 = vunpack.c.l.b16 %v457
    %v2500 = vunpack.c.h.b16 %v457
    %v2501 = vunpack.c.l.b16 %v458
    %v2502 = vunpack.c.h.b16 %v458
    %v2503 = vunpack.c.l.b16 %v459
    %v2504 = vunpack.c.h.b16 %v459
    %v2505 = vunpack.c.l.b16 %v460
    %v2506 = vunpack.c.h.b16 %v460
    %v2507 = vunpack.c.l.b16 %v461
    %v2508 = vunpack.c.h.b16 %v461
    %v2509 = vunpack.c.l.b16 %v462
    %v2510 = vunpack.c.h.b16 %v462
    %v2511 = vunpack.c.l.b16 %v463
    %v2512 = vunpack.c.h.b16 %v463
    %v2513 = vunpack.c.l.b16 %v464
    %v2514 = vunpack.c.h.b16 %v464
    %v2515 = vunpack.c.l.b16 %v465
    %v2516 = vunpack.c.h.b16 %v465
    %v2517 = vunpack.c.l.b16 %v466
    %v2518 = vunpack.c.h.b16 %v466
    %v2519 = vunpack.c.l.b16 %v467
    %v2520 = vunpack.c.h.b16 %v467
    %v2521 = vunpack.c.l.b16 %v468
    %v2522 = vunpack.c.h.b16 %v468
    %v2523 = vunpack.c.l.b16 %v469
    %v2524 = vunpack.c.h.b16 %v469
    %v2525 = vunpack.c.l.b16 %v470
    %v2526 = vunpack.c.h.b16 %v470
    %v2527 = vunpack.c.l.b16 %v471
    %v2528 = vunpack.c.h.b16 %v471
    %v2529 = vunpack.c.l.b16 %v472
    %v2530 = vunpack.c.h.b16 %v472
    %v2531 = vunpack.c.l.b16 %v473
    %v2532 = vunpack.c.h.b16 %v473
    %v2533 = vunpack.c.l.b16 %v474
    %v2534 = vunpack.c.h.b16 %v474
    %v2535 = vunpack.c.l.b16 %v475
    %v2536 = vunpack.c.h.b16 %v475
    %v2537 = vunpack.c.l.b16 %v476
    %v2538 = vunpack.c.h.b16 %v476
    %v2539 = vunpack.c.l.b16 %v477
    %v2540 = vunpack.c.h.b16 %v477
    %v2541 = vunpack.c.l.b16 %v478
    %v2542 = vunpack.c.h.b16 %v478
    %v2543 = vunpack.c.l.b16 %v479
    %v2544 = vunpack.c.h.b16 %v479
    %v2545 = vunpack.c.l.b16 %v480
    %v2546 = vunpack.c.h.b16 %v480
    %v2547 = vunpack.c.l.b16 %v481
    %v2548 = vunpack.c.h.b16 %v481
    %v2549 = vunpack.c.l.b16 %v482
    %v2550 = vunpack.c.h.b16 %v482
    %v2551 = vunpack.c.l.b16 %v483
    %v2552 = vunpack.c.h.b16 %v483
    %v2553 = vunpack.c.l.b16 %v484
    %v2554 = vunpack.c.h.b16 %v484
    %v2555 = vunpack.c.l.b16 %v485
    %v2556 = vunpack.c.h.b16 %v485
    %v2557 = vunpack.c.l.b16 %v486
    %v2558 = vunpack.c.h.b16 %v486
    %v2559 = vunpack.c.l.b16 %v487
    %v2560 = vunpack.c.h.b16 %v487
    %v2561 = vunpack.c.l.b16 %v488
    %v2562 = vunpack.c.h.b16 %v488
    %v2563 = vunpack.c.l.b16 %v489
    %v2564 = vunpack.c.h.b16 %v489
    %v2565 = vunpack.c.l.b16 %v490
    %v2566 = vunpack.c.h.b16 %v490
    %v2567 = vunpack.c.l.b16 %v491
    %v2568 = vunpack.c.h.b16 %v491
    %v2569 = vunpack.c.l.b16 %v492
    %v2570 = vunpack.c.h.b16 %v492
    %v2571 = vunpack.c.l.b16 %v493
    %v2572 = vunpack.c.h.b16 %v493
    %v2573 = vunpack.c.l.b16 %v494
    %v2574 = vunpack.c.h.b16 %v494
    %v2575 = vunpack.c.l.b16 %v495
    %v2576 = vunpack.c.h.b16 %v495
    %v2577 = vunpack.c.l.b16 %v496
    %v2578 = vunpack.c.h.b16 %v496
    %v2579 = vunpack.c.l.b16 %v497
    %v2580 = vunpack.c.h.b16 %v497
    %v2581 = vunpack.c.l.b16 %v498
    %v2582 = vunpack.c.h.b16 %v498
    %v2583 = vunpack.c.l.b16 %v499
    %v2584 = vunpack.c.h.b16 %v499
    %v2585 = vunpack.c.l.b16 %v500
    %v2586 = vunpack.c.h.b16 %v500
    %v2587 = vunpack.c.l.b16 %v501
    %v2588 = vunpack.c.h.b16 %v501
    %v2589 = vunpack.c.l.b16 %v502
    %v2590 = vunpack.c.h.b16 %v502
    %v2591 = vunpack.c.l.b16 %v503
    %v2592 = vunpack.c.h.b16 %v503
    %v2593 = vunpack.c.l.b16 %v504
    %v2594 = vunpack.c.h.b16 %v504
    %v2595 = vunpack.c.l.b16 %v505
    %v2596 = vunpack.c.h.b16 %v505
    %v2597 = vunpack.c.l.b16 %v506
    %v2598 = vunpack.c.h.b16 %v506
    %v2599 = vunpack.c.l.b16 %v507
    %v2600 = vunpack.c.h.b16 %v507
    %v2601 = vunpack.c.l.b16 %v508
    %v2602 = vunpack.c.h.b16 %v508
    %v2603 = vunpack.c.l.b16 %v509
    %v2604 = vunpack.c.h.b16 %v509
    %v2605 = vunpack.c.l.b16 %v510
    %v2606 = vunpack.c.h.b16 %v510
    %v2607 = vunpack.c.l.b16 %v511
    %v2608 = vunpack.c.h.b16 %v511
    %v2609 = vunpack.c.l.b16 %v512
    %v2610 = vunpack.c.h.b16 %v512
    %v2611 = vunpack.c.l.b16 %v513
    %v2612 = vunpack.c.h.b16 %v513
    %v2613 = vunpack.c.l.b16 %v514
    %v2614 = vunpack.c.h.b16 %v514
    %v2615 = vunpack.c.l.b16 %v515
    %v2616 = vunpack.c.h.b16 %v515
    %v2617 = vunpack.c.l.b16 %v516
    %v2618 = vunpack.c.h.b16 %v516
    %v2619 = vunpack.c.l.b16 %v517
    %v2620 = vunpack.c.h.b16 %v517
    %v2621 = vunpack.c.l.b16 %v518
    %v2622 = vunpack.c.h.b16 %v518
    %v2623 = vunpack.c.l.b16 %v519
    %v2624 = vunpack.c.h.b16 %v519
    %v2625 = vunpack.c.l.b16 %v520
    %v2626 = vunpack.c.h.b16 %v520
    %v2627 = vunpack.c.l.b16 %v521
    %v2628 = vunpack.c.h.b16 %v521
    %v2629 = vunpack.c.l.b16 %v522
    %v2630 = vunpack.c.h.b16 %v522
    %v2631 = vunpack.c.l.b16 %v523
    %v2632 = vunpack.c.h.b16 %v523
    %v2633 = vunpack.c.l.b16 %v524
    %v2634 = vunpack.c.h.b16 %v524
    %v2635 = vunpack.c.l.b16 %v525
    %v2636 = vunpack.c.h.b16 %v525
    %v2637 = vunpack.c.l.b16 %v526
    %v2638 = vunpack.c.h.b16 %v526
    %v2639 = vunpack.c.l.b16 %v527
    %v2640 = vunpack.c.h.b16 %v527
    %v2641 = vunpack.c.l.b16 %v528
    %v2642 = vunpack.c.h.b16 %v528
    %v2643 = vunpack.c.l.b16 %v529
    %v2644 = vunpack.c.h.b16 %v529
    %v2645 = vunpack.c.l.b16 %v530
    %v2646 = vunpack.c.h.b16 %v530
    %v2647 = vunpack.c.l.b16 %v531
    %v2648 = vunpack.c.h.b16 %v531
    %v2649 = vunpack.c.l.b16 %v532
    %v2650 = vunpack.c.h.b16 %v532
    %v2651 = vunpack.c.l.b16 %v533
    %v2652 = vunpack.c.h.b16 %v533
    %v2653 = vunpack.c.l.b16 %v534
    %v2654 = vunpack.c.h.b16 %v534
    %v2655 = vunpack.c.l.b16 %v535
    %v2656 = vunpack.c.h.b16 %v535
    %v2657 = vunpack.c.l.b16 %v536
    %v2658 = vunpack.c.h.b16 %v536
    %v2659 = vunpack.c.l.b16 %v537
    %v2660 = vunpack.c.h.b16 %v537
    %v2661 = vunpack.c.l.b16 %v538
    %v2662 = vunpack.c.h.b16 %v538
    %v2663 = vunpack.c.l.b16 %v539
    %v2664 = vunpack.c.h.b16 %v539
    %v2665 = vunpack.c.l.b16 %v540
    %v2666 = vunpack.c.h.b16 %v540
    %v2667 = vunpack.c.l.b16 %v541
    %v2668 = vunpack.c.h.b16 %v541
    %v2669 = vunpack.c.l.b16 %v542
    %v2670 = vunpack.c.h.b16 %v542
    %v2671 = vunpack.c.l.b16 %v543
    %v2672 = vunpack.c.h.b16 %v543
    %v2673 = vunpack.c.l.b16 %v544
    %v2674 = vunpack.c.h.b16 %v544
    %v2675 = vunpack.c.l.b16 %v545
    %v2676 = vunpack.c.h.b16 %v545
    %v2677 = vunpack.c.l.b16 %v546
    %v2678 = vunpack.c.h.b16 %v546
    %v2679 = vunpack.c.l.b16 %v547
    %v2680 = vunpack.c.h.b16 %v547
    %v2681 = vunpack.c.l.b16 %v548
    %v2682 = vunpack.c.h.b16 %v548
    %v2683 = vunpack.c.l.b16 %v549
    %v2684 = vunpack.c.h.b16 %v549
    %v2685 = vunpack.c.l.b16 %v550
    %v2686 = vunpack.c.h.b16 %v550
    %v2687 = vunpack.c.l.b16 %v551
    %v2688 = vunpack.c.h.b16 %v551
    %v2689 = vunpack.c.l.b16 %v552
    %v2690 = vunpack.c.h.b16 %v552
    %v2691 = vunpack.c.l.b16 %v553
    %v2692 = vunpack.c.h.b16 %v553
    %v2693 = vunpack.c.l.b16 %v554
    %v2694 = vunpack.c.h.b16 %v554
    %v2695 = vunpack.c.l.b16 %v555
    %v2696 = vunpack.c.h.b16 %v555
    %v2697 = vunpack.c.l.b16 %v556
    %v2698 = vunpack.c.h.b16 %v556
    %v2699 = vunpack.c.l.b16 %v557
    %v2700 = vunpack.c.h.b16 %v557
    %v2701 = vunpack.c.l.b16 %v558
    %v2702 = vunpack.c.h.b16 %v558
    %v2703 = vunpack.c.l.b16 %v559
    %v2704 = vunpack.c.h.b16 %v559
    %v2705 = vunpack.c.l.b16 %v560
    %v2706 = vunpack.c.h.b16 %v560
    %v2707 = vunpack.c.l.b16 %v561
    %v2708 = vunpack.c.h.b16 %v561
    %v2709 = vunpack.c.l.b16 %v562
    %v2710 = vunpack.c.h.b16 %v562
    %v2711 = vunpack.c.l.b16 %v563
    %v2712 = vunpack.c.h.b16 %v563
    %v2713 = vunpack.c.l.b16 %v564
    %v2714 = vunpack.c.h.b16 %v564
    %v2715 = vunpack.c.l.b16 %v565
    %v2716 = vunpack.c.h.b16 %v565
    %v2717 = vunpack.c.l.b16 %v566
    %v2718 = vunpack.c.h.b16 %v566
    %v2719 = vunpack.c.l.b16 %v567
    %v2720 = vunpack.c.h.b16 %v567
    %v2721 = vunpack.c.l.b16 %v568
    %v2722 = vunpack.c.h.b16 %v568
    %v2723 = vunpack.c.l.b16 %v569
    %v2724 = vunpack.c.h.b16 %v569
    %v2725 = vunpack.c.l.b16 %v570
    %v2726 = vunpack.c.h.b16 %v570
    %v2727 = vunpack.c.l.b16 %v571
    %v2728 = vunpack.c.h.b16 %v571
    %v2729 = vunpack.c.l.b16 %v572
    %v2730 = vunpack.c.h.b16 %v572
    %v2731 = vunpack.c.l.b16 %v573
    %v2732 = vunpack.c.h.b16 %v573
    %v2733 = vunpack.c.l.b16 %v574
    %v2734 = vunpack.c.h.b16 %v574
    %v2735 = vunpack.c.l.b16 %v575
    %v2736 = vunpack.c.h.b16 %v575
    %v2737 = vunpack.c.l.b16 %v576
    %v2738 = vunpack.c.h.b16 %v576
    %v2739 = vunpack.c.l.b16 %v577
    %v2740 = vunpack.c.h.b16 %v577
    %v2741 = vunpack.c.l.b16 %v578
    %v2742 = vunpack.c.h.b16 %v578
    %v2743 = vunpack.c.l.b16 %v579
    %v2744 = vunpack.c.h.b16 %v579
    %v2745 = vunpack.c.l.b16 %v580
    %v2746 = vunpack.c.h.b16 %v580
    %v2747 = vunpack.c.l.b16 %v581
    %v2748 = vunpack.c.h.b16 %v581
    %v2749 = vunpack.c.l.b16 %v582
    %v2750 = vunpack.c.h.b16 %v582
    %v2751 = vunpack.c.l.b16 %v583
    %v2752 = vunpack.c.h.b16 %v583
    %v2753 = vunpack.c.l.b16 %v584
    %v2754 = vunpack.c.h.b16 %v584
    %v2755 = vunpack.c.l.b16 %v585
    %v2756 = vunpack.c.h.b16 %v585
    %v2757 = vunpack.c.l.b16 %v586
    %v2758 = vunpack.c.h.b16 %v586
    %v2759 = vunpack.c.l.b16 %v587
    %v2760 = vunpack.c.h.b16 %v587
    %v2761 = vunpack.c.l.b16 %v588
    %v2762 = vunpack.c.h.b16 %v588
    %v2763 = vunpack.c.l.b16 %v589
    %v2764 = vunpack.c.h.b16 %v589
    %v2765 = vunpack.c.l.b16 %v590
    %v2766 = vunpack.c.h.b16 %v590
    %v2767 = vunpack.c.l.b16 %v591
    %v2768 = vunpack.c.h.b16 %v591
    %v2769 = vunpack.c.l.b16 %v592
    %v2770 = vunpack.c.h.b16 %v592
    %v2771 = vunpack.c.l.b16 %v593
    %v2772 = vunpack.c.h.b16 %v593
    %v2773 = vunpack.c.l.b16 %v594
    %v2774 = vunpack.c.h.b16 %v594
    %v2775 = vunpack.c.l.b16 %v595
    %v2776 = vunpack.c.h.b16 %v595
    %v2777 = vunpack.c.l.b16 %v596
    %v2778 = vunpack.c.h.b16 %v596
    %v2779 = vunpack.c.l.b16 %v597
    %v2780 = vunpack.c.h.b16 %v597
    %v2781 = vunpack.c.l.b16 %v598
    %v2782 = vunpack.c.h.b16 %v598
    %v2783 = vunpack.c.l.b16 %v599
    %v2784 = vunpack.c.h.b16 %v599
    %v2785 = vunpack.c.l.b16 %v600
    %v2786 = vunpack.c.h.b16 %v600
    %v2787 = vunpack.c.l.b16 %v601
    %v2788 = vunpack.c.h.b16 %v601
    %v2789 = vunpack.c.l.b16 %v602
    %v2790 = vunpack.c.h.b16 %v602
    %v2791 = vunpack.c.l.b16 %v603
    %v2792 = vunpack.c.h.b16 %v603
    %v2793 = vunpack.c.l.b16 %v604
    %v2794 = vunpack.c.h.b16 %v604
    %v2795 = vunpack.c.l.b16 %v605
    %v2796 = vunpack.c.h.b16 %v605
    %v2797 = vunpack.c.l.b16 %v606
    %v2798 = vunpack.c.h.b16 %v606
    %v2799 = vunpack.c.l.b16 %v607
    %v2800 = vunpack.c.h.b16 %v607
    %v2801 = vunpack.c.l.b16 %v608
    %v2802 = vunpack.c.h.b16 %v608
    %v2803 = vunpack.c.l.b16 %v609
    %v2804 = vunpack.c.h.b16 %v609
    %v2805 = vunpack.c.l.b16 %v610
    %v2806 = vunpack.c.h.b16 %v610
    %v2807 = vunpack.c.l.b16 %v611
    %v2808 = vunpack.c.h.b16 %v611
    %v2809 = vunpack.c.l.b16 %v612
    %v2810 = vunpack.c.h.b16 %v612
    %v2811 = vunpack.c.l.b16 %v613
    %v2812 = vunpack.c.h.b16 %v613
    %v2813 = vunpack.c.l.b16 %v614
    %v2814 = vunpack.c.h.b16 %v614
    %v2815 = vunpack.c.l.b16 %v615
    %v2816 = vunpack.c.h.b16 %v615
    %v2817 = vunpack.c.l.b16 %v616
    %v2818 = vunpack.c.h.b16 %v616
    %v2819 = vunpack.c.l.b16 %v617
    %v2820 = vunpack.c.h.b16 %v617
    %v2821 = vunpack.c.l.b16 %v618
    %v2822 = vunpack.c.h.b16 %v618
    %v2823 = vunpack.c.l.b16 %v619
    %v2824 = vunpack.c.h.b16 %v619
    %v2825 = vunpack.c.l.b16 %v620
    %v2826 = vunpack.c.h.b16 %v620
    %v2827 = vunpack.c.l.b16 %v621
    %v2828 = vunpack.c.h.b16 %v621
    %v2829 = vunpack.c.l.b16 %v622
    %v2830 = vunpack.c.h.b16 %v622
    %v2831 = vunpack.c.l.b16 %v623
    %v2832 = vunpack.c.h.b16 %v623
    %v2833 = vunpack.c.l.b16 %v624
    %v2834 = vunpack.c.h.b16 %v624
    %v2835 = vunpack.c.l.b16 %v625
    %v2836 = vunpack.c.h.b16 %v625
    %v2837 = vunpack.c.l.b16 %v626
    %v2838 = vunpack.c.h.b16 %v626
    %v2839 = vunpack.c.l.b16 %v627
    %v2840 = vunpack.c.h.b16 %v627
    %v2841 = vunpack.c.l.b16 %v628
    %v2842 = vunpack.c.h.b16 %v628
    %v2843 = vunpack.c.l.b16 %v629
    %v2844 = vunpack.c.h.b16 %v629
    %v2845 = vunpack.c.l.b16 %v630
    %v2846 = vunpack.c.h.b16 %v630
    %v2847 = vunpack.c.l.b16 %v631
    %v2848 = vunpack.c.h.b16 %v631
    %v2849 = vunpack.c.l.b16 %v632
    %v2850 = vunpack.c.h.b16 %v632
    %v2851 = vunpack.c.l.b16 %v633
    %v2852 = vunpack.c.h.b16 %v633
    %v2853 = vunpack.c.l.b16 %v634
    %v2854 = vunpack.c.h.b16 %v634
    %v2855 = vunpack.c.l.b16 %v635
    %v2856 = vunpack.c.h.b16 %v635
    %v2857 = vunpack.c.l.b16 %v636
    %v2858 = vunpack.c.h.b16 %v636
    %v2859 = vunpack.c.l.b16 %v637
    %v2860 = vunpack.c.h.b16 %v637
    %v2861 = vunpack.c.l.b16 %v638
    %v2862 = vunpack.c.h.b16 %v638
    %v2863 = vunpack.c.l.b16 %v639
    %v2864 = vunpack.c.h.b16 %v639
    %v2865 = vunpack.c.l.b16 %v640
    %v2866 = vunpack.c.h.b16 %v640
    %v2867 = vunpack.c.l.b16 %v641
    %v2868 = vunpack.c.h.b16 %v641
    %v2869 = vunpack.c.l.b16 %v642
    %v2870 = vunpack.c.h.b16 %v642
    %v2871 = vunpack.c.l.b16 %v643
    %v2872 = vunpack.c.h.b16 %v643
    %v2873 = vunpack.c.l.b16 %v644
    %v2874 = vunpack.c.h.b16 %v644
    %v2875 = vunpack.c.l.b16 %v645
    %v2876 = vunpack.c.h.b16 %v645
    %v2877 = vunpack.c.l.b16 %v646
    %v2878 = vunpack.c.h.b16 %v646
    %v2879 = vunpack.c.l.b16 %v647
    %v2880 = vunpack.c.h.b16 %v647
    %v2881 = vunpack.c.l.b16 %v648
    %v2882 = vunpack.c.h.b16 %v648
    %v2883 = vunpack.c.l.b16 %v649
    %v2884 = vunpack.c.h.b16 %v649
    %v2885 = vunpack.c.l.b16 %v650
    %v2886 = vunpack.c.h.b16 %v650
    %v2887 = vunpack.c.l.b16 %v651
    %v2888 = vunpack.c.h.b16 %v651
    %v2889 = vunpack.c.l.b16 %v652
    %v2890 = vunpack.c.h.b16 %v652
    %v2891 = vunpack.c.l.b16 %v653
    %v2892 = vunpack.c.h.b16 %v653
    %v2893 = vunpack.c.l.b16 %v654
    %v2894 = vunpack.c.h.b16 %v654
    %v2895 = vunpack.c.l.b16 %v655
    %v2896 = vunpack.c.h.b16 %v655
    %v2897 = vunpack.c.l.b16 %v656
    %v2898 = vunpack.c.h.b16 %v656
    %v2899 = vunpack.c.l.b16 %v657
    %v2900 = vunpack.c.h.b16 %v657
    %v2901 = vunpack.c.l.b16 %v658
    %v2902 = vunpack.c.h.b16 %v658
    %v2903 = vunpack.c.l.b16 %v659
    %v2904 = vunpack.c.h.b16 %v659
    %v2905 = vunpack.c.l.b16 %v660
    %v2906 = vunpack.c.h.b16 %v660
    %v2907 = vunpack.c.l.b16 %v661
    %v2908 = vunpack.c.h.b16 %v661
    %v2909 = vunpack.c.l.b16 %v662
    %v2910 = vunpack.c.h.b16 %v662
    %v2911 = vunpack.c.l.b16 %v663
    %v2912 = vunpack.c.h.b16 %v663
    %v2913 = vunpack.c.l.b16 %v664
    %v2914 = vunpack.c.h.b16 %v664
    %v2915 = vunpack.c.l.b16 %v665
    %v2916 = vunpack.c.h.b16 %v665
    %v2917 = vunpack.c.l.b16 %v666
    %v2918 = vunpack.c.h.b16 %v666
    %v2919 = vunpack.c.l.b16 %v667
    %v2920 = vunpack.c.h.b16 %v667
    %v2921 = vunpack.c.l.b16 %v668
    %v2922 = vunpack.c.h.b16 %v668
    %v2923 = vunpack.c.l.b16 %v669
    %v2924 = vunpack.c.h.b16 %v669
    %v2925 = vunpack.c.l.b16 %v670
    %v2926 = vunpack.c.h.b16 %v670
    %v2927 = vunpack.c.l.b16 %v671
    %v2928 = vunpack.c.h.b16 %v671
    %v2929 = vunpack.c.l.b16 %v672
    %v2930 = vunpack.c.h.b16 %v672
    %v2931 = vunpack.c.l.b16 %v673
    %v2932 = vunpack.c.h.b16 %v673
    %v2933 = vunpack.c.l.b16 %v674
    %v2934 = vunpack.c.h.b16 %v674
    %v2935 = vunpack.c.l.b16 %v675
    %v2936 = vunpack.c.h.b16 %v675
    %v2937 = vpack.c.b16 %v1643, %v1641
    %v2938 = vpack.c.b16 %v1644, %v1642
    %v2939 = vpack.c.b16 %v1647, %v1645
    %v2940 = vpack.c.b16 %v1648, %v1646
    %v2941 = vpack.c.b16 %v1651, %v1649
    %v2942 = vpack.c.b16 %v1652, %v1650
    %v2943 = vpack.c.b16 %v1655, %v1653
    %v2944 = vpack.c.b16 %v1656, %v1654
    %v2945 = vpack.c.b16 %v1659, %v1657
    %v2946 = vpack.c.b16 %v1660, %v1658
    %v2947 = vpack.c.b16 %v1663, %v1661
    %v2948 = vpack.c.b16 %v1664, %v1662
    %v2949 = vpack.c.b16 %v1667, %v1665
    %v2950 = vpack.c.b16 %v1668, %v1666
    %v2951 = vpack.c.b16 %v1671, %v1669
    %v2952 = vpack.c.b16 %v1672, %v1670
    %v2953 = vpack.c.b16 %v1675, %v1673
    %v2954 = vpack.c.b16 %v1676, %v1674
    %v2955 = vpack.c.b16 %v1679, %v1677
    %v2956 = vpack.c.b16 %v1680, %v1678
    %v2957 = vpack.c.b16 %v1683, %v1681
    %v2958 = vpack.c.b16 %v1684, %v1682
    %v2959 = vpack.c.b16 %v1687, %v1685
    %v2960 = vpack.c.b16 %v1688, %v1686
    %v2961 = vpack.c.b16 %v1691, %v1689
    %v2962 = vpack.c.b16 %v1692, %v1690
    %v2963 = vpack.c.b16 %v1695, %v1693
    %v2964 = vpack.c.b16 %v1696, %v1694
    %v2965 = vpack.c.b16 %v1699, %v1697
    %v2966 = vpack.c.b16 %v1700, %v1698
    %v2967 = vpack.c.b16 %v1703, %v1701
    %v2968 = vpack.c.b16 %v1704, %v1702
    %v2969 = vpack.c.b16 %v1707, %v1705
    %v2970 = vpack.c.b16 %v1708, %v1706
    %v2971 = vpack.c.b16 %v1711, %v1709
    %v2972 = vpack.c.b16 %v1712, %v1710
    %v2973 = vpack.c.b16 %v1715, %v1713
    %v2974 = vpack.c.b16 %v1716, %v1714
    %v2975 = vpack.c.b16 %v1719, %v1717
    %v2976 = vpack.c.b16 %v1720, %v1718
    %v2977 = vpack.c.b16 %v1723, %v1721
    %v2978 = vpack.c.b16 %v1724, %v1722
    %v2979 = vpack.c.b16 %v1727, %v1725
    %v2980 = vpack.c.b16 %v1728, %v1726
    %v2981 = vpack.c.b16 %v1731, %v1729
    %v2982 = vpack.c.b16 %v1732, %v1730
    %v2983 = vpack.c.b16 %v1735, %v1733
    %v2984 = vpack.c.b16 %v1736, %v1734
    %v2985 = vpack.c.b16 %v1739, %v1737
    %v2986 = vpack.c.b16 %v1740, %v1738
    %v2987 = vpack.c.b16 %v1743, %v1741
    %v2988 = vpack.c.b16 %v1744, %v1742
    %v2989 = vpack.c.b16 %v1747, %v1745
    %v2990 = vpack.c.b16 %v1748, %v1746
    %v2991 = vpack.c.b16 %v1751, %v1749
    %v2992 = vpack.c.b16 %v1752, %v1750
    %v2993 = vpack.c.b16 %v1755, %v1753
    %v2994 = vpack.c.b16 %v1756, %v1754
    %v2995 = vpack.c.b16 %v1759, %v1757
    %v2996 = vpack.c.b16 %v1760, %v1758
    %v2997 = vpack.c.b16 %v1763, %v1761
    %v2998 = vpack.c.b16 %v1764, %v1762
    %v2999 = vpack.c.b16 %v1767, %v1765
    %v3000 = vpack.c.b16 %v1768, %v1766
    %v3001 = vpack.c.b16 %v1771, %v1769
    %v3002 = vpack.c.b16 %v1772, %v1770
    %v3003 = vpack.c.b16 %v1775, %v1773
    %v3004 = vpack.c.b16 %v1776, %v1774
    %v3005 = vpack.c.b16 %v1779, %v1777
    %v3006 = vpack.c.b16 %v1780, %v1778
    %v3007 = vpack.c.b16 %v1783, %v1781
    %v3008 = vpack.c.b16 %v1784, %v1782
    %v3009 = vpack.c.b16 %v1787, %v1785
    %v3010 = vpack.c.b16 %v1788, %v1786
    %v3011 = vpack.c.b16 %v1791, %v1789
    %v3012 = vpack.c.b16 %v1792, %v1790
    %v3013 = vpack.c.b16 %v1795, %v1793
    %v3014 = vpack.c.b16 %v1796, %v1794
    %v3015 = vpack.c.b16 %v1799, %v1797
    %v3016 = vpack.c.b16 %v1800, %v1798
    %v3017 = vpack.c.b16 %v1803, %v1801
    %v3018 = vpack.c.b16 %v1804, %v1802
    %v3019 = vpack.c.b16 %v1807, %v1805
    %v3020 = vpack.c.b16 %v1808, %v1806
    %v3021 = vpack.c.b16 %v1811, %v1809
    %v3022 = vpack.c.b16 %v1812, %v1810
    %v3023 = vpack.c.b16 %v1815, %v1813
    %v3024 = vpack.c.b16 %v1816, %v1814
    %v3025 = vpack.c.b16 %v1819, %v1817
    %v3026 = vpack.c.b16 %v1820, %v1818
    %v3027 = vpack.c.b16 %v1823, %v1821
    %v3028 = vpack.c.b16 %v1824, %v1822
    %v3029 = vpack.c.b16 %v1827, %v1825
    %v3030 = vpack.c.b16 %v1828, %v1826
    %v3031 = vpack.c.b16 %v1831, %v1829
    %v3032 = vpack.c.b16 %v1832, %v1830
    %v3033 = vpack.c.b16 %v1835, %v1833
    %v3034 = vpack.c.b16 %v1836, %v1834
    %v3035 = vpack.c.b16 %v1839, %v1837
    %v3036 = vpack.c.b16 %v1840, %v1838
    %v3037 = vpack.c.b16 %v1843, %v1841
    %v3038 = vpack.c.b16 %v1844, %v1842
    %v3039 = vpack.c.b16 %v1847, %v1845
    %v3040 = vpack.c.b16 %v1848, %v1846
    %v3041 = vpack.c.b16 %v1851, %v1849
    %v3042 = vpack.c.b16 %v1852, %v1850
    %v3043 = vpack.c.b16 %v1855, %v1853
    %v3044 = vpack.c.b16 %v1856, %v1854
    %v3045 = vpack.c.b16 %v1859, %v1857
    %v3046 = vpack.c.b16 %v1860, %v1858
    %v3047 = vpack.c.b16 %v1863, %v1861
    %v3048 = vpack.c.b16 %v1864, %v1862
    %v3049 = vpack.c.b16 %v1867, %v1865
    %v3050 = vpack.c.b16 %v1868, %v1866
    %v3051 = vpack.c.b16 %v1871, %v1869
    %v3052 = vpack.c.b16 %v1872, %v1870
    %v3053 = vpack.c.b16 %v1875, %v1873
    %v3054 = vpack.c.b16 %v1876, %v1874
    %v3055 = vpack.c.b16 %v1879, %v1877
    %v3056 = vpack.c.b16 %v1880, %v1878
    %v3057 = vpack.c.b16 %v1883, %v1881
    %v3058 = vpack.c.b16 %v1884, %v1882
    %v3059 = vpack.c.b16 %v1887, %v1885
    %v3060 = vpack.c.b16 %v1888, %v1886
    %v3061 = vpack.c.b16 %v1891, %v1889
    %v3062 = vpack.c.b16 %v1892, %v1890
    %v3063 = vpack.c.b16 %v1895, %v1893
    %v3064 = vpack.c.b16 %v1896, %v1894
    %v3065 = vpack.c.b16 %v1899, %v1897
    %v3066 = vpack.c.b16 %v1900, %v1898
    %v3067 = vpack.c.b16 %v1903, %v1901
    %v3068 = vpack.c.b16 %v1904, %v1902
    %v3069 = vpack.c.b16 %v1907, %v1905
    %v3070 = vpack.c.b16 %v1908, %v1906
    %v3071 = vpack.c.b16 %v1911, %v1909
    %v3072 = vpack.c.b16 %v1912, %v1910
    %v3073 = vpack.c.b16 %v1915, %v1913
    %v3074 = vpack.c.b16 %v1916, %v1914
    %v3075 = vpack.c.b16 %v1919, %v1917
    %v3076 = vpack.c.b16 %v1920, %v1918
    %v3077 = vpack.c.b16 %v1923, %v1921
    %v3078 = vpack.c.b16 %v1924, %v1922
    %v3079 = vpack.c.b16 %v1927, %v1925
    %v3080 = vpack.c.b16 %v1928, %v1926
    %v3081 = vpack.c.b16 %v1931, %v1929
    %v3082 = vpack.c.b16 %v1932, %v1930
    %v3083 = vpack.c.b16 %v1935, %v1933
    %v3084 = vpack.c.b16 %v1936, %v1934
    %v3085 = vpack.c.b16 %v1939, %v1937
    %v3086 = vpack.c.b16 %v1940, %v1938
    %v3087 = vpack.c.b16 %v1943, %v1941
    %v3088 = vpack.c.b16 %v1944, %v1942
    %v3089 = vpack.c.b16 %v1947, %v1945
    %v3090 = vpack.c.b16 %v1948, %v1946
    %v3091 = vpack.c.b16 %v1951, %v1949
    %v3092 = vpack.c.b16 %v1952, %v1950
    %v3093 = vpack.c.b16 %v1955, %v1953
    %v3094 = vpack.c.b16 %v1956, %v1954
    %v3095 = vpack.c.b16 %v1959, %v1957
    %v3096 = vpack.c.b16 %v1960, %v1958
    %v3097 = vpack.c.b16 %v1963, %v1961
    %v3098 = vpack.c.b16 %v1964, %v1962
    %v3099 = vpack.c.b16 %v1967, %v1965
    %v3100 = vpack.c.b16 %v1968, %v1966
    %v3101 = vpack.c.b16 %v1971, %v1969
    %v3102 = vpack.c.b16 %v1972, %v1970
    %v3103 = vpack.c.b16 %v1975, %v1973
    %v3104 = vpack.c.b16 %v1976, %v1974
    %v3105 = vpack.c.b16 %v1979, %v1977
    %v3106 = vpack.c.b16 %v1980, %v1978
    %v3107 = vpack.c.b16 %v1983, %v1981
    %v3108 = vpack.c.b16 %v1984, %v1982
    %v3109 = vpack.c.b16 %v1987, %v1985
    %v3110 = vpack.c.b16 %v1988, %v1986
    %v3111 = vpack.c.b16 %v1991, %v1989
    %v3112 = vpack.c.b16 %v1992, %v1990
    %v3113 = vpack.c.b16 %v1995, %v1993
    %v3114 = vpack.c.b16 %v1996, %v1994
    %v3115 = vpack.c.b16 %v1999, %v1997
    %v3116 = vpack.c.b16 %v2000, %v1998
    %v3117 = vpack.c.b16 %v2003, %v2001
    %v3118 = vpack.c.b16 %v2004, %v2002
    %v3119 = vpack.c.b16 %v2007, %v2005
    %v3120 = vpack.c.b16 %v2008, %v2006
    %v3121 = vpack.c.b16 %v2011, %v2009
    %v3122 = vpack.c.b16 %v2012, %v2010
    %v3123 = vpack.c.b16 %v2015, %v2013
    %v3124 = vpack.c.b16 %v2016, %v2014
    %v3125 = vpack.c.b16 %v2019, %v2017
    %v3126 = vpack.c.b16 %v2020, %v2018
    %v3127 = vpack.c.b16 %v2023, %v2021
    %v3128 = vpack.c.b16 %v2024, %v2022
    %v3129 = vpack.c.b16 %v2027, %v2025
    %v3130 = vpack.c.b16 %v2028, %v2026
    %v3131 = vpack.c.b16 %v2031, %v2029
    %v3132 = vpack.c.b16 %v2032, %v2030
    %v3133 = vpack.c.b16 %v2035, %v2033
    %v3134 = vpack.c.b16 %v2036, %v2034
    %v3135 = vpack.c.b16 %v2039, %v2037
    %v3136 = vpack.c.b16 %v2040, %v2038
    %v3137 = vpack.c.b16 %v2043, %v2041
    %v3138 = vpack.c.b16 %v2044, %v2042
    %v3139 = vpack.c.b16 %v2047, %v2045
    %v3140 = vpack.c.b16 %v2048, %v2046
    %v3141 = vpack.c.b16 %v2051, %v2049
    %v3142 = vpack.c.b16 %v2052, %v2050
    %v3143 = vpack.c.b16 %v2055, %v2053
    %v3144 = vpack.c.b16 %v2056, %v2054
    %v3145 = vpack.c.b16 %v2059, %v2057
    %v3146 = vpack.c.b16 %v2060, %v2058
    %v3147 = vpack.c.b16 %v2063, %v2061
    %v3148 = vpack.c.b16 %v2064, %v2062
    %v3149 = vpack.c.b16 %v2067, %v2065
    %v3150 = vpack.c.b16 %v2068, %v2066
    %v3151 = vpack.c.b16 %v2071, %v2069
    %v3152 = vpack.c.b16 %v2072, %v2070
    %v3153 = vpack.c.b16 %v2075, %v2073
    %v3154 = vpack.c.b16 %v2076, %v2074
    %v3155 = vpack.c.b16 %v2079, %v2077
    %v3156 = vpack.c.b16 %v2080, %v2078
    %v3157 = vpack.c.b16 %v2083, %v2081
    %v3158 = vpack.c.b16 %v2084, %v2082
    %v3159 = vpack.c.b16 %v2087, %v2085
    %v3160 = vpack.c.b16 %v2088, %v2086
    %v3161 = vpack.c.b16 %v2091, %v2089
    %v3162 = vpack.c.b16 %v2092, %v2090
    %v3163 = vpack.c.b16 %v2095, %v2093
    %v3164 = vpack.c.b16 %v2096, %v2094
    %v3165 = vpack.c.b16 %v2099, %v2097
    %v3166 = vpack.c.b16 %v2100, %v2098
    %v3167 = vpack.c.b16 %v2103, %v2101
    %v3168 = vpack.c.b16 %v2104, %v2102
    %v3169 = vpack.c.b16 %v2107, %v2105
    %v3170 = vpack.c.b16 %v2108, %v2106
    %v3171 = vpack.c.b16 %v2111, %v2109
    %v3172 = vpack.c.b16 %v2112, %v2110
    %v3173 = vpack.c.b16 %v2115, %v2113
    %v3174 = vpack.c.b16 %v2116, %v2114
    %v3175 = vpack.c.b16 %v2119, %v2117
    %v3176 = vpack.c.b16 %v2120, %v2118
    %v3177 = vpack.c.b16 %v2123, %v2121
    %v3178 = vpack.c.b16 %v2124, %v2122
    %v3179 = vpack.c.b16 %v2127, %v2125
    %v3180 = vpack.c.b16 %v2128, %v2126
    %v3181 = vpack.c.b16 %v2131, %v2129
    %v3182 = vpack.c.b16 %v2132, %v2130
    %v3183 = vpack.c.b16 %v2135, %v2133
    %v3184 = vpack.c.b16 %v2136, %v2134
    %v3185 = vpack.c.b16 %v2139, %v2137
    %v3186 = vpack.c.b16 %v2140, %v2138
    %v3187 = vpack.c.b16 %v2143, %v2141
    %v3188 = vpack.c.b16 %v2144, %v2142
    %v3189 = vpack.c.b16 %v2147, %v2145
    %v3190 = vpack.c.b16 %v2148, %v2146
    %v3191 = vpack.c.b16 %v2151, %v2149
    %v3192 = vpack.c.b16 %v2152, %v2150
    %v3193 = vpack.c.b16 %v2155, %v2153
    %v3194 = vpack.c.b16 %v2156, %v2154
    %v3195 = vpack.c.b16 %v2159, %v2157
    %v3196 = vpack.c.b16 %v2160, %v2158
    %v3197 = vpack.c.b16 %v2163, %v2161
    %v3198 = vpack.c.b16 %v2164, %v2162
    %v3199 = vpack.c.b16 %v2167, %v2165
    %v3200 = vpack.c.b16 %v2168, %v2166
    %v3201 = vpack.c.b16 %v2171, %v2169
    %v3202 = vpack.c.b16 %v2172, %v2170
    %v3203 = vpack.c.b16 %v2175, %v2173
    %v3204 = vpack.c.b16 %v2176, %v2174
    %v3205 = vpack.c.b16 %v2179, %v2177
    %v3206 = vpack.c.b16 %v2180, %v2178
    %v3207 = vpack.c.b16 %v2183, %v2181
    %v3208 = vpack.c.b16 %v2184, %v2182
    %v3209 = vpack.c.b16 %v2187, %v2185
    %v3210 = vpack.c.b16 %v2188, %v2186
    %v3211 = vpack.c.b16 %v2191, %v2189
    %v3212 = vpack.c.b16 %v2192, %v2190
    %v3213 = vpack.c.b16 %v2195, %v2193
    %v3214 = vpack.c.b16 %v2196, %v2194
    %v3215 = vpack.c.b16 %v2199, %v2197
    %v3216 = vpack.c.b16 %v2200, %v2198
    %v3217 = vpack.c.b16 %v2203, %v2201
    %v3218 = vpack.c.b16 %v2204, %v2202
    %v3219 = vpack.c.b16 %v2207, %v2205
    %v3220 = vpack.c.b16 %v2208, %v2206
    %v3221 = vpack.c.b16 %v2211, %v2209
    %v3222 = vpack.c.b16 %v2212, %v2210
    %v3223 = vpack.c.b16 %v2215, %v2213
    %v3224 = vpack.c.b16 %v2216, %v2214
    %v3225 = vpack.c.b16 %v2219, %v2217
    %v3226 = vpack.c.b16 %v2220, %v2218
    %v3227 = vpack.c.b16 %v2223, %v2221
    %v3228 = vpack.c.b16 %v2224, %v2222
    %v3229 = vpack.c.b16 %v2227, %v2225
    %v3230 = vpack.c.b16 %v2228, %v2226
    %v3231 = vpack.c.b16 %v2231, %v2229
    %v3232 = vpack.c.b16 %v2232, %v2230
    %v3233 = vpack.c.b16 %v2235, %v2233
    %v3234 = vpack.c.b16 %v2236, %v2234
    %v3235 = vpack.c.b16 %v2239, %v2237
    %v3236 = vpack.c.b16 %v2240, %v2238
    %v3237 = vpack.c.b16 %v2243, %v2241
    %v3238 = vpack.c.b16 %v2244, %v2242
    %v3239 = vpack.c.b16 %v2247, %v2245
    %v3240 = vpack.c.b16 %v2248, %v2246
    %v3241 = vpack.c.b16 %v2251, %v2249
    %v3242 = vpack.c.b16 %v2252, %v2250
    %v3243 = vpack.c.b16 %v2255, %v2253
    %v3244 = vpack.c.b16 %v2256, %v2254
    %v3245 = vpack.c.b16 %v2259, %v2257
    %v3246 = vpack.c.b16 %v2260, %v2258
    %v3247 = vpack.c.b16 %v2263, %v2261
    %v3248 = vpack.c.b16 %v2264, %v2262
    %v3249 = vpack.c.b16 %v2267, %v2265
    %v3250 = vpack.c.b16 %v2268, %v2266
    %v3251 = vpack.c.b16 %v2271, %v2269
    %v3252 = vpack.c.b16 %v2272, %v2270
    %v3253 = vpack.c.b16 %v2275, %v2273
    %v3254 = vpack.c.b16 %v2276, %v2274
    %v3255 = vpack.c.b16 %v2279, %v2277
    %v3256 = vpack.c.b16 %v2280, %v2278
    %v3257 = vpack.c.b16 %v2283, %v2281
    %v3258 = vpack.c.b16 %v2284, %v2282
    %v3259 = vpack.c.b16 %v2287, %v2285
    %v3260 = vpack.c.b16 %v2288, %v2286
    %v3261 = vpack.c.b16 %v2291, %v2289
    %v3262 = vpack.c.b16 %v2292, %v2290
    %v3263 = vpack.c.b16 %v2295, %v2293
    %v3264 = vpack.c.b16 %v2296, %v2294
    %v3265 = vpack.c.b16 %v2299, %v2297
    %v3266 = vpack.c.b16 %v2300, %v2298
    %v3267 = vpack.c.b16 %v2303, %v2301
    %v3268 = vpack.c.b16 %v2304, %v2302
    %v3269 = vpack.c.b16 %v2307, %v2305
    %v3270 = vpack.c.b16 %v2308, %v2306
    %v3271 = vpack.c.b16 %v2311, %v2309
    %v3272 = vpack.c.b16 %v2312, %v2310
    %v3273 = vpack.c.b16 %v2315, %v2313
    %v3274 = vpack.c.b16 %v2316, %v2314
    %v3275 = vpack.c.b16 %v2319, %v2317
    %v3276 = vpack.c.b16 %v2320, %v2318
    %v3277 = vpack.c.b16 %v2323, %v2321
    %v3278 = vpack.c.b16 %v2324, %v2322
    %v3279 = vpack.c.b16 %v2327, %v2325
    %v3280 = vpack.c.b16 %v2328, %v2326
    %v3281 = vpack.c.b16 %v2331, %v2329
    %v3282 = vpack.c.b16 %v2332, %v2330
    %v3283 = vpack.c.b16 %v2335, %v2333
    %v3284 = vpack.c.b16 %v2336, %v2334
    %v3285 = vpack.c.b16 %v2339, %v2337
    %v3286 = vpack.c.b16 %v2340, %v2338
    %v3287 = vpack.c.b16 %v2343, %v2341
    %v3288 = vpack.c.b16 %v2344, %v2342
    %v3289 = vpack.c.b16 %v2347, %v2345
    %v3290 = vpack.c.b16 %v2348, %v2346
    %v3291 = vpack.c.b16 %v2351, %v2349
    %v3292 = vpack.c.b16 %v2352, %v2350
    %v3293 = vpack.c.b16 %v2355, %v2353
    %v3294 = vpack.c.b16 %v2356, %v2354
    %v3295 = vpack.c.b16 %v2359, %v2357
    %v3296 = vpack.c.b16 %v2360, %v2358
    %v3297 = vpack.c.b16 %v2363, %v2361
    %v3298 = vpack.c.b16 %v2364, %v2362
    %v3299 = vpack.c.b16 %v2367, %v2365
    %v3300 = vpack.c.b16 %v2368, %v2366
    %v3301 = vpack.c.b16 %v2371, %v2369
    %v3302 = vpack.c.b16 %v2372, %v2370
    %v3303 = vpack.c.b16 %v2375, %v2373
    %v3304 = vpack.c.b16 %v2376, %v2374
    %v3305 = vpack.c.b16 %v2379, %v2377
    %v3306 = vpack.c.b16 %v2380, %v2378
    %v3307 = vpack.c.b16 %v2383, %v2381
    %v3308 = vpack.c.b16 %v2384, %v2382
    %v3309 = vpack.c.b16 %v2387, %v2385
    %v3310 = vpack.c.b16 %v2388, %v2386
    %v3311 = vpack.c.b16 %v2391, %v2389
    %v3312 = vpack.c.b16 %v2392, %v2390
    %v3313 = vpack.c.b16 %v2395, %v2393
    %v3314 = vpack.c.b16 %v2396, %v2394
    %v3315 = vpack.c.b16 %v2399, %v2397
    %v3316 = vpack.c.b16 %v2400, %v2398
    %v3317 = vpack.c.b16 %v2403, %v2401
    %v3318 = vpack.c.b16 %v2404, %v2402
    %v3319 = vpack.c.b16 %v2407, %v2405
    %v3320 = vpack.c.b16 %v2408, %v2406
    %v3321 = vpack.c.b16 %v2411, %v2409
    %v3322 = vpack.c.b16 %v2412, %v2410
    %v3323 = vpack.c.b16 %v2415, %v2413
    %v3324 = vpack.c.b16 %v2416, %v2414
    %v3325 = vpack.c.b16 %v2419, %v2417
    %v3326 = vpack.c.b16 %v2420, %v2418
    %v3327 = vpack.c.b16 %v2423, %v2421
    %v3328 = vpack.c.b16 %v2424, %v2422
    %v3329 = vpack.c.b16 %v2427, %v2425
    %v3330 = vpack.c.b16 %v2428, %v2426
    %v3331 = vpack.c.b16 %v2431, %v2429
    %v3332 = vpack.c.b16 %v2432, %v2430
    %v3333 = vpack.c.b16 %v2435, %v2433
    %v3334 = vpack.c.b16 %v2436, %v2434
    %v3335 = vpack.c.b16 %v2439, %v2437
    %v3336 = vpack.c.b16 %v2440, %v2438
    %v3337 = vpack.c.b16 %v2443, %v2441
    %v3338 = vpack.c.b16 %v2444, %v2442
    %v3339 = vpack.c.b16 %v2447, %v2445
    %v3340 = vpack.c.b16 %v2448, %v2446
    %v3341 = vpack.c.b16 %v2451, %v2449
    %v3342 = vpack.c.b16 %v2452, %v2450
    %v3343 = vpack.c.b16 %v2455, %v2453
    %v3344 = vpack.c.b16 %v2456, %v2454
    %v3345 = vpack.c.b16 %v2459, %v2457
    %v3346 = vpack.c.b16 %v2460, %v2458
    %v3347 = vpack.c.b16 %v2463, %v2461
    %v3348 = vpack.c.b16 %v2464, %v2462
    %v3349 = vpack.c.b16 %v2467, %v2465
    %v3350 = vpack.c.b16 %v2468, %v2466
    %v3351 = vpack.c.b16 %v2471, %v2469
    %v3352 = vpack.c.b16 %v2472, %v2470
    %v3353 = vpack.c.b16 %v2475, %v2473
    %v3354 = vpack.c.b16 %v2476, %v2474
    %v3355 = vpack.c.b16 %v2479, %v2477
    %v3356 = vpack.c.b16 %v2480, %v2478
    %v3357 = vpack.c.b16 %v2483, %v2481
    %v3358 = vpack.c.b16 %v2484, %v2482
    %v3359 = vpack.c.b16 %v2487, %v2485
    %v3360 = vpack.c.b16 %v2488, %v2486
    %v3361 = vpack.c.b16 %v2491, %v2489
    %v3362 = vpack.c.b16 %v2492, %v2490
    %v3363 = vpack.c.b16 %v2495, %v2493
    %v3364 = vpack.c.b16 %v2496, %v2494
    %v3365 = vpack.c.b16 %v2499, %v2497
    %v3366 = vpack.c.b16 %v2500, %v2498
    %v3367 = vpack.c.b16 %v2503, %v2501
    %v3368 = vpack.c.b16 %v2504, %v2502
    %v3369 = vpack.c.b16 %v2507, %v2505
    %v3370 = vpack.c.b16 %v2508, %v2506
    %v3371 = vpack.c.b16 %v2511, %v2509
    %v3372 = vpack.c.b16 %v2512, %v2510
    %v3373 = vpack.c.b16 %v2515, %v2513
    %v3374 = vpack.c.b16 %v2516, %v2514
    %v3375 = vpack.c.b16 %v2519, %v2517
    %v3376 = vpack.c.b16 %v2520, %v2518
    %v3377 = vpack.c.b16 %v2523, %v2521
    %v3378 = vpack.c.b16 %v2524, %v2522
    %v3379 = vpack.c.b16 %v2527, %v2525
    %v3380 = vpack.c.b16 %v2528, %v2526
    %v3381 = vpack.c.b16 %v2531, %v2529
    %v3382 = vpack.c.b16 %v2532, %v2530
    %v3383 = vpack.c.b16 %v2535, %v2533
    %v3384 = vpack.c.b16 %v2536, %v2534
    %v3385 = vpack.c.b16 %v2539, %v2537
    %v3386 = vpack.c.b16 %v2540, %v2538
    %v3387 = vpack.c.b16 %v2543, %v2541
    %v3388 = vpack.c.b16 %v2544, %v2542
    %v3389 = vpack.c.b16 %v2547, %v2545
    %v3390 = vpack.c.b16 %v2548, %v2546
    %v3391 = vpack.c.b16 %v2551, %v2549
    %v3392 = vpack.c.b16 %v2552, %v2550
    %v3393 = vpack.c.b16 %v2555, %v2553
    %v3394 = vpack.c.b16 %v2556, %v2554
    %v3395 = vpack.c.b16 %v2559, %v2557
    %v3396 = vpack.c.b16 %v2560, %v2558
    %v3397 = vpack.c.b16 %v2563, %v2561
    %v3398 = vpack.c.b16 %v2564, %v2562
    %v3399 = vpack.c.b16 %v2567, %v2565
    %v3400 = vpack.c.b16 %v2568, %v2566
    %v3401 = vpack.c.b16 %v2571, %v2569
    %v3402 = vpack.c.b16 %v2572, %v2570
    %v3403 = vpack.c.b16 %v2575, %v2573
    %v3404 = vpack.c.b16 %v2576, %v2574
    %v3405 = vpack.c.b16 %v2579, %v2577
    %v3406 = vpack.c.b16 %v2580, %v2578
    %v3407 = vpack.c.b16 %v2583, %v2581
    %v3408 = vpack.c.b16 %v2584, %v2582
    %v3409 = vpack.c.b16 %v2587, %v2585
    %v3410 = vpack.c.b16 %v2588, %v2586
    %v3411 = vpack.c.b16 %v2591, %v2589
    %v3412 = vpack.c.b16 %v2592, %v2590
    %v3413 = vpack.c.b16 %v2595, %v2593
    %v3414 = vpack.c.b16 %v2596, %v2594
    %v3415 = vpack.c.b16 %v2599, %v2597
    %v3416 = vpack.c.b16 %v2600, %v2598
    %v3417 = vpack.c.b16 %v2603, %v2601
    %v3418 = vpack.c.b16 %v2604, %v2602
    %v3419 = vpack.c.b16 %v2607, %v2605
    %v3420 = vpack.c.b16 %v2608, %v2606
    %v3421 = vpack.c.b16 %v2611, %v2609
    %v3422 = vpack.c.b16 %v2612, %v2610
    %v3423 = vpack.c.b16 %v2615, %v2613
    %v3424 = vpack.c.b16 %v2616, %v2614
    %v3425 = vpack.c.b16 %v2619, %v2617
    %v3426 = vpack.c.b16 %v2620, %v2618
    %v3427 = vpack.c.b16 %v2623, %v2621
    %v3428 = vpack.c.b16 %v2624, %v2622
    %v3429 = vpack.c.b16 %v2627, %v2625
    %v3430 = vpack.c.b16 %v2628, %v2626
    %v3431 = vpack.c.b16 %v2631, %v2629
    %v3432 = vpack.c.b16 %v2632, %v2630
    %v3433 = vpack.c.b16 %v2635, %v2633
    %v3434 = vpack.c.b16 %v2636, %v2634
    %v3435 = vpack.c.b16 %v2639, %v2637
    %v3436 = vpack.c.b16 %v2640, %v2638
    %v3437 = vpack.c.b16 %v2643, %v2641
    %v3438 = vpack.c.b16 %v2644, %v2642
    %v3439 = vpack.c.b16 %v2647, %v2645
    %v3440 = vpack.c.b16 %v2648, %v2646
    %v3441 = vpack.c.b16 %v2651, %v2649
    %v3442 = vpack.c.b16 %v2652, %v2650
    %v3443 = vpack.c.b16 %v2655, %v2653
    %v3444 = vpack.c.b16 %v2656, %v2654
    %v3445 = vpack.c.b16 %v2659, %v2657
    %v3446 = vpack.c.b16 %v2660, %v2658
    %v3447 = vpack.c.b16 %v2663, %v2661
    %v3448 = vpack.c.b16 %v2664, %v2662
    %v3449 = vpack.c.b16 %v2667, %v2665
    %v3450 = vpack.c.b16 %v2668, %v2666
    %v3451 = vpack.c.b16 %v2671, %v2669
    %v3452 = vpack.c.b16 %v2672, %v2670
    %v3453 = vpack.c.b16 %v2675, %v2673
    %v3454 = vpack.c.b16 %v2676, %v2674
    %v3455 = vpack.c.b16 %v2679, %v2677
    %v3456 = vpack.c.b16 %v2680, %v2678
    %v3457 = vpack.c.b16 %v2683, %v2681
    %v3458 = vpack.c.b16 %v2684, %v2682
    %v3459 = vpack.c.b16 %v2687, %v2685
    %v3460 = vpack.c.b16 %v2688, %v2686
    %v3461 = vpack.c.b16 %v2691, %v2689
    %v3462 = vpack.c.b16 %v2692, %v2690
    %v3463 = vpack.c.b16 %v2695, %v2693
    %v3464 = vpack.c.b16 %v2696, %v2694
    %v3465 = vpack.c.b16 %v2699, %v2697
    %v3466 = vpack.c.b16 %v2700, %v2698
    %v3467 = vpack.c.b16 %v2703, %v2701
    %v3468 = vpack.c.b16 %v2704, %v2702
    %v3469 = vpack.c.b16 %v2707, %v2705
    %v3470 = vpack.c.b16 %v2708, %v2706
    %v3471 = vpack.c.b16 %v2711, %v2709
    %v3472 = vpack.c.b16 %v2712, %v2710
    %v3473 = vpack.c.b16 %v2715, %v2713
    %v3474 = vpack.c.b16 %v2716, %v2714
    %v3475 = vpack.c.b16 %v2719, %v2717
    %v3476 = vpack.c.b16 %v2720, %v2718
    %v3477 = vpack.c.b16 %v2723, %v2721
    %v3478 = vpack.c.b16 %v2724, %v2722
    %v3479 = vpack.c.b16 %v2727, %v2725
    %v3480 = vpack.c.b16 %v2728, %v2726
    %v3481 = vpack.c.b16 %v2731, %v2729
    %v3482 = vpack.c.b16 %v2732, %v2730
    %v3483 = vpack.c.b16 %v2735, %v2733
    %v3484 = vpack.c.b16 %v2736, %v2734
    %v3485 = vpack.c.b16 %v2739, %v2737
    %v3486 = vpack.c.b16 %v2740, %v2738
    %v3487 = vpack.c.b16 %v2743, %v2741
    %v3488 = vpack.c.b16 %v2744, %v2742
    %v3489 = vpack.c.b16 %v2747, %v2745
    %v3490 = vpack.c.b16 %v2748, %v2746
    %v3491 = vpack.c.b16 %v2751, %v2749
    %v3492 = vpack.c.b16 %v2752, %v2750
    %v3493 = vpack.c.b16 %v2755, %v2753
    %v3494 = vpack.c.b16 %v2756, %v2754
    %v3495 = vpack.c.b16 %v2759, %v2757
    %v3496 = vpack.c.b16 %v2760, %v2758
    %v3497 = vpack.c.b16 %v2763, %v2761
    %v3498 = vpack.c.b16 %v2764, %v2762
    %v3499 = vpack.c.b16 %v2767, %v2765
    %v3500 = vpack.c.b16 %v2768, %v2766
    %v3501 = vpack.c.b16 %v2771, %v2769
    %v3502 = vpack.c.b16 %v2772, %v2770
    %v3503 = vpack.c.b16 %v2775, %v2773
    %v3504 = vpack.c.b16 %v2776, %v2774
    %v3505 = vpack.c.b16 %v2779, %v2777
    %v3506 = vpack.c.b16 %v2780, %v2778
    %v3507 = vpack.c.b16 %v2783, %v2781
    %v3508 = vpack.c.b16 %v2784, %v2782
    %v3509 = vpack.c.b16 %v2787, %v2785
    %v3510 = vpack.c.b16 %v2788, %v2786
    %v3511 = vpack.c.b16 %v2791, %v2789
    %v3512 = vpack.c.b16 %v2792, %v2790
    %v3513 = vpack.c.b16 %v2795, %v2793
    %v3514 = vpack.c.b16 %v2796, %v2794
    %v3515 = vpack.c.b16 %v2799, %v2797
    %v3516 = vpack.c.b16 %v2800, %v2798
    %v3517 = vpack.c.b16 %v2803, %v2801
    %v3518 = vpack.c.b16 %v2804, %v2802
    %v3519 = vpack.c.b16 %v2807, %v2805
    %v3520 = vpack.c.b16 %v2808, %v2806
    %v3521 = vpack.c.b16 %v2811, %v2809
    %v3522 = vpack.c.b16 %v2812, %v2810
    %v3523 = vpack.c.b16 %v2815, %v2813
    %v3524 = vpack.c.b16 %v2816, %v2814
    %v3525 = vpack.c.b16 %v2819, %v2817
    %v3526 = vpack.c.b16 %v2820, %v2818
    %v3527 = vpack.c.b16 %v2823, %v2821
    %v3528 = vpack.c.b16 %v2824, %v2822
    %v3529 = vpack.c.b16 %v2827, %v2825
    %v3530 = vpack.c.b16 %v2828, %v2826
    %v3531 = vpack.c.b16 %v2831, %v2829
    %v3532 = vpack.c.b16 %v2832, %v2830
    %v3533 = vpack.c.b16 %v2835, %v2833
    %v3534 = vpack.c.b16 %v2836, %v2834
    %v3535 = vpack.c.b16 %v2839, %v2837
    %v3536 = vpack.c.b16 %v2840, %v2838
    %v3537 = vpack.c.b16 %v2843, %v2841
    %v3538 = vpack.c.b16 %v2844, %v2842
    %v3539 = vpack.c.b16 %v2847, %v2845
    %v3540 = vpack.c.b16 %v2848, %v2846
    %v3541 = vpack.c.b16 %v2851, %v2849
    %v3542 = vpack.c.b16 %v2852, %v2850
    %v3543 = vpack.c.b16 %v2855, %v2853
    %v3544 = vpack.c.b16 %v2856, %v2854
    %v3545 = vpack.c.b16 %v2859, %v2857
    %v3546 = vpack.c.b16 %v2860, %v2858
    %v3547 = vpack.c.b16 %v2863, %v2861
    %v3548 = vpack.c.b16 %v2864, %v2862
    %v3549 = vpack.c.b16 %v2867, %v2865
    %v3550 = vpack.c.b16 %v2868, %v2866
    %v3551 = vpack.c.b16 %v2871, %v2869
    %v3552 = vpack.c.b16 %v2872, %v2870
    %v3553 = vpack.c.b16 %v2875, %v2873
    %v3554 = vpack.c.b16 %v2876, %v2874
    %v3555 = vpack.c.b16 %v2879, %v2877
    %v3556 = vpack.c.b16 %v2880, %v2878
    %v3557 = vpack.c.b16 %v2883, %v2881
    %v3558 = vpack.c.b16 %v2884, %v2882
    %v3559 = vpack.c.b16 %v2887, %v2885
    %v3560 = vpack.c.b16 %v2888, %v2886
    %v3561 = vpack.c.b16 %v2891, %v2889
    %v3562 = vpack.c.b16 %v2892, %v2890
    %v3563 = vpack.c.b16 %v2895, %v2893
    %v3564 = vpack.c.b16 %v2896, %v2894
    %v3565 = vpack.c.b16 %v2899, %v2897
    %v3566 = vpack.c.b16 %v2900, %v2898
    %v3567 = vpack.c.b16 %v2903, %v2901
    %v3568 = vpack.c.b16 %v2904, %v2902
    %v3569 = vpack.c.b16 %v2907, %v2905
    %v3570 = vpack.c.b16 %v2908, %v2906
    %v3571 = vpack.c.b16 %v2911, %v2909
    %v3572 = vpack.c.b16 %v2912, %v2910
    %v3573 = vpack.c.b16 %v2915, %v2913
    %v3574 = vpack.c.b16 %v2916, %v2914
    %v3575 = vpack.c.b16 %v2919, %v2917
    %v3576 = vpack.c.b16 %v2920, %v2918
    %v3577 = vpack.c.b16 %v2923, %v2921
    %v3578 = vpack.c.b16 %v2924, %v2922
    %v3579 = vpack.c.b16 %v2927, %v2925
    %v3580 = vpack.c.b16 %v2928, %v2926
    %v3581 = vpack.c.b16 %v2931, %v2929
    %v3582 = vpack.c.b16 %v2932, %v2930
    %v3583 = vpack.c.b16 %v2935, %v2933
    %v3584 = vpack.c.b16 %v2936, %v2934
    %vm4233 = vcmask 523264
    %v4235 = vsel %vm4233, %v952, 0
    %4237 = vmatprep.subr.bf16.mxu0 %v2938
    %4238 = vmatpush1.bf16.msra.mxu0 %v2937
    %4239 = vmatprep.subr.bf16.mxu0 %v2940
    %4240 = vmatpush1.bf16.msra.mxu0 %v2939
    %4241 = vmatprep.subr.bf16.mxu0 %v2942
    %4242 = vmatpush1.bf16.msra.mxu0 %v2941
    %4243 = vmatprep.subr.bf16.mxu0 %v2944
    %4244 = vmatpush1.bf16.msra.mxu0 %v2943
    %4245 = vmatprep.subr.bf16.mxu0 %v2946
    %4246 = vmatpush1.bf16.msra.mxu0 %v2945
    %4247 = vmatprep.subr.bf16.mxu0 %v2948
    %4248 = vmatpush1.bf16.msra.mxu0 %v2947
    %4249 = vmatprep.subr.bf16.mxu0 %v2950
    %4250 = vmatpush1.bf16.msra.mxu0 %v2949
    %4251 = vmatprep.subr.bf16.mxu0 %v2952
    %4252 = vmatpush1.bf16.msra.mxu0 %v2951
    %4253 = vmatprep.subr.bf16.mxu0 %v2954
    %4254 = vmatpush1.bf16.msra.mxu0 %v2953
    %4255 = vmatprep.subr.bf16.mxu0 %v2956
    %4256 = vmatpush1.bf16.msra.mxu0 %v2955
    %4257 = vmatprep.subr.bf16.mxu0 %v2958
    %4258 = vmatpush1.bf16.msra.mxu0 %v2957
    %4259 = vmatprep.subr.bf16.mxu0 %v2960
    %4260 = vmatpush1.bf16.msra.mxu0 %v2959
    %4261 = vmatprep.subr.bf16.mxu0 %v2962
    %4262 = vmatpush1.bf16.msra.mxu0 %v2961
    %4263 = vmatprep.subr.bf16.mxu0 %v2964
    %4264 = vmatpush1.bf16.msra.mxu0 %v2963
    %4265 = vmatprep.subr.bf16.mxu0 %v2966
    %4266 = vmatpush1.bf16.msra.mxu0 %v2965
    %4267 = vmatprep.subr.bf16.mxu0 %v2968
    %4268 = vmatpush1.bf16.msra.mxu0 %v2967
    %4269 = vmatprep.mubr.bf16.mxu0 %v731
    %4270 = vmatmul.mubr.bf16.gmra.mrb[0].mxu0 %v717
    %v4271 = vpop.f32.mrb[0].mxu0
    %v4272 = vadd.f32 %v681, %v4271
    %v4273 = vpop.f32.mrb[0].mxu0
    %v4274 = vadd.f32 %v685, %v4273
    %v4275 = vpop.f32.mrb[0].mxu0
    %v4276 = vpop.f32.mrb[0].mxu0
    %4277 = vdwg.mxu0
    %4278 = vmatprep.subr.bf16.mxu0 %v2970
    %4279 = vmatpush1.bf16.msra.mxu0 %v2969
    %4280 = vmatprep.subr.bf16.mxu0 %v2972
    %4281 = vmatpush1.bf16.msra.mxu0 %v2971
    %4282 = vmatprep.subr.bf16.mxu0 %v2974
    %4283 = vmatpush1.bf16.msra.mxu0 %v2973
    %4284 = vmatprep.subr.bf16.mxu0 %v2976
    %4285 = vmatpush1.bf16.msra.mxu0 %v2975
    %4286 = vmatprep.subr.bf16.mxu0 %v2978
    %4287 = vmatpush1.bf16.msra.mxu0 %v2977
    %4288 = vmatprep.subr.bf16.mxu0 %v2980
    %4289 = vmatpush1.bf16.msra.mxu0 %v2979
    %4290 = vmatprep.subr.bf16.mxu0 %v2982
    %4291 = vmatpush1.bf16.msra.mxu0 %v2981
    %4292 = vmatprep.subr.bf16.mxu0 %v2984
    %4293 = vmatpush1.bf16.msra.mxu0 %v2983
    %4294 = vmatprep.subr.bf16.mxu0 %v2986
    %4295 = vmatpush1.bf16.msra.mxu0 %v2985
    %4296 = vmatprep.subr.bf16.mxu0 %v2988
    %4297 = vmatpush1.bf16.msra.mxu0 %v2987
    %4298 = vmatprep.subr.bf16.mxu0 %v2990
    %4299 = vmatpush1.bf16.msra.mxu0 %v2989
    %4300 = vmatprep.subr.bf16.mxu0 %v2992
    %4301 = vmatpush1.bf16.msra.mxu0 %v2991
    %4302 = vmatprep.subr.bf16.mxu0 %v2994
    %4303 = vmatpush1.bf16.msra.mxu0 %v2993
    %4304 = vmatprep.subr.bf16.mxu0 %v2996
    %4305 = vmatpush1.bf16.msra.mxu0 %v2995
    %4306 = vmatprep.subr.bf16.mxu0 %v2998
    %4307 = vmatpush1.bf16.msra.mxu0 %v2997
    %4308 = vmatprep.subr.bf16.mxu0 %v3000
    %4309 = vmatpush1.bf16.msra.mxu0 %v2999
    %4310 = vmatprep.mubr.bf16.mxu0 %v741
    %4311 = vmatmul.mubr.bf16.gmra.mrb[0].mxu0 %v739
    %v4312 = vpop.f32.mrb[0].mxu0
    %v4313 = vadd.f32 %v4272, %v4312
    %v4314 = vpop.f32.mrb[0].mxu0
    %v4315 = vadd.f32 %v4274, %v4314
    %v4316 = vpop.f32.mrb[0].mxu0
    %v4317 = vpop.f32.mrb[0].mxu0
    %4318 = vdwg.mxu0
    %4319 = vmatprep.subr.bf16.mxu0 %v3002
    %4320 = vmatpush1.bf16.msra.mxu0 %v3001
    %4321 = vmatprep.subr.bf16.mxu0 %v3004
    %4322 = vmatpush1.bf16.msra.mxu0 %v3003
    %4323 = vmatprep.subr.bf16.mxu0 %v3006
    %4324 = vmatpush1.bf16.msra.mxu0 %v3005
    %4325 = vmatprep.subr.bf16.mxu0 %v3008
    %4326 = vmatpush1.bf16.msra.mxu0 %v3007
    %4327 = vmatprep.subr.bf16.mxu0 %v3010
    %4328 = vmatpush1.bf16.msra.mxu0 %v3009
    %4329 = vmatprep.subr.bf16.mxu0 %v3012
    %4330 = vmatpush1.bf16.msra.mxu0 %v3011
    %4331 = vmatprep.subr.bf16.mxu0 %v3014
    %4332 = vmatpush1.bf16.msra.mxu0 %v3013
    %4333 = vmatprep.subr.bf16.mxu0 %v3016
    %4334 = vmatpush1.bf16.msra.mxu0 %v3015
    %4335 = vmatprep.subr.bf16.mxu0 %v3018
    %4336 = vmatpush1.bf16.msra.mxu0 %v3017
    %4337 = vmatprep.subr.bf16.mxu0 %v3020
    %4338 = vmatpush1.bf16.msra.mxu0 %v3019
    %4339 = vmatprep.subr.bf16.mxu0 %v3022
    %4340 = vmatpush1.bf16.msra.mxu0 %v3021
    %4341 = vmatprep.subr.bf16.mxu0 %v3024
    %4342 = vmatpush1.bf16.msra.mxu0 %v3023
    %4343 = vmatprep.subr.bf16.mxu0 %v3026
    %4344 = vmatpush1.bf16.msra.mxu0 %v3025
    %4345 = vmatprep.subr.bf16.mxu0 %v3028
    %4346 = vmatpush1.bf16.msra.mxu0 %v3027
    %4347 = vmatprep.subr.bf16.mxu0 %v3030
    %4348 = vmatpush1.bf16.msra.mxu0 %v3029
    %4349 = vmatprep.subr.bf16.mxu0 %v3032
    %4350 = vmatpush1.bf16.msra.mxu0 %v3031
    %4351 = vmatprep.mubr.bf16.mxu0 %v738
    %4352 = vmatmul.mubr.bf16.gmra.mrb[0].mxu0 %v724
    %v4353 = vpop.f32.mrb[0].mxu0
    %v4354 = vadd.f32 %v4313, %v4353
    %v4355 = vpop.f32.mrb[0].mxu0
    %v4356 = vadd.f32 %v4315, %v4355
    %v4357 = vpop.f32.mrb[0].mxu0
    %v4358 = vpop.f32.mrb[0].mxu0
    %4359 = vdwg.mxu0
    %4360 = vmatprep.subr.bf16.mxu0 %v3034
    %4361 = vmatpush1.bf16.msra.mxu0 %v3033
    %4362 = vmatprep.subr.bf16.mxu0 %v3036
    %4363 = vmatpush1.bf16.msra.mxu0 %v3035
    %4364 = vmatprep.subr.bf16.mxu0 %v3038
    %4365 = vmatpush1.bf16.msra.mxu0 %v3037
    %4366 = vmatprep.subr.bf16.mxu0 %v3040
    %4367 = vmatpush1.bf16.msra.mxu0 %v3039
    %4368 = vmatprep.subr.bf16.mxu0 %v3042
    %4369 = vmatpush1.bf16.msra.mxu0 %v3041
    %4370 = vmatprep.subr.bf16.mxu0 %v3044
    %4371 = vmatpush1.bf16.msra.mxu0 %v3043
    %4372 = vmatprep.subr.bf16.mxu0 %v3046
    %4373 = vmatpush1.bf16.msra.mxu0 %v3045
    %4374 = vmatprep.subr.bf16.mxu0 %v3048
    %4375 = vmatpush1.bf16.msra.mxu0 %v3047
    %4376 = vmatprep.subr.bf16.mxu0 %v3050
    %4377 = vmatpush1.bf16.msra.mxu0 %v3049
    %4378 = vmatprep.subr.bf16.mxu0 %v3052
    %4379 = vmatpush1.bf16.msra.mxu0 %v3051
    %4380 = vmatprep.subr.bf16.mxu0 %v3054
    %4381 = vmatpush1.bf16.msra.mxu0 %v3053
    %4382 = vmatprep.subr.bf16.mxu0 %v3056
    %4383 = vmatpush1.bf16.msra.mxu0 %v3055
    %4384 = vmatprep.subr.bf16.mxu0 %v3058
    %4385 = vmatpush1.bf16.msra.mxu0 %v3057
    %4386 = vmatprep.subr.bf16.mxu0 %v3060
    %4387 = vmatpush1.bf16.msra.mxu0 %v3059
    %4388 = vmatprep.subr.bf16.mxu0 %v3062
    %4389 = vmatpush1.bf16.msra.mxu0 %v3061
    %4390 = vmatprep.subr.bf16.mxu0 %v3064
    %4391 = vmatpush1.bf16.msra.mxu0 %v3063
    %4392 = vmatprep.mubr.bf16.mxu0 %v742
    %4393 = vmatmul.mubr.bf16.gmra.mrb[0].mxu0 %v740
    %v4394 = vpop.f32.mrb[0].mxu0
    %v4395 = vadd.f32 %v4354, %v4394
    %v4396 = vpop.f32.mrb[0].mxu0
    %v4397 = vadd.f32 %v4356, %v4396
    %v4398 = vpop.f32.mrb[0].mxu0
    %v4399 = vpop.f32.mrb[0].mxu0
    %4400 = vdwg.mxu0
    %4401 = vmatprep.subr.bf16.mxu0 %v3066
    %4402 = vmatpush1.bf16.msra.mxu0 %v3065
    %4403 = vmatprep.subr.bf16.mxu0 %v3068
    %4404 = vmatpush1.bf16.msra.mxu0 %v3067
    %4405 = vmatprep.subr.bf16.mxu0 %v3070
    %4406 = vmatpush1.bf16.msra.mxu0 %v3069
    %4407 = vmatprep.subr.bf16.mxu0 %v3072
    %4408 = vmatpush1.bf16.msra.mxu0 %v3071
    %4409 = vmatprep.subr.bf16.mxu0 %v3074
    %4410 = vmatpush1.bf16.msra.mxu0 %v3073
    %4411 = vmatprep.subr.bf16.mxu0 %v3076
    %4412 = vmatpush1.bf16.msra.mxu0 %v3075
    %4413 = vmatprep.subr.bf16.mxu0 %v3078
    %4414 = vmatpush1.bf16.msra.mxu0 %v3077
    %4415 = vmatprep.subr.bf16.mxu0 %v3080
    %4416 = vmatpush1.bf16.msra.mxu0 %v3079
    %4417 = vmatprep.subr.bf16.mxu0 %v3082
    %4418 = vmatpush1.bf16.msra.mxu0 %v3081
    %4419 = vmatprep.subr.bf16.mxu0 %v3084
    %4420 = vmatpush1.bf16.msra.mxu0 %v3083
    %4421 = vmatprep.subr.bf16.mxu0 %v3086
    %4422 = vmatpush1.bf16.msra.mxu0 %v3085
    %4423 = vmatprep.subr.bf16.mxu0 %v3088
    %4424 = vmatpush1.bf16.msra.mxu0 %v3087
    %4425 = vmatprep.subr.bf16.mxu0 %v3090
    %4426 = vmatpush1.bf16.msra.mxu0 %v3089
    %4427 = vmatprep.subr.bf16.mxu0 %v3092
    %4428 = vmatpush1.bf16.msra.mxu0 %v3091
    %4429 = vmatprep.subr.bf16.mxu0 %v3094
    %4430 = vmatpush1.bf16.msra.mxu0 %v3093
    %4431 = vmatprep.subr.bf16.mxu0 %v3096
    %4432 = vmatpush1.bf16.msra.mxu0 %v3095
    %4433 = vmatprep.mubr.bf16.mxu0 %v780
    %4434 = vmatmul.mubr.bf16.gmra.mrb[0].mxu0 %v766
    %v4435 = vpop.f32.mrb[0].mxu0
    %v4436 = vadd.f32 %v4395, %v4435
    %v4437 = vpop.f32.mrb[0].mxu0
    %v4438 = vadd.f32 %v4397, %v4437
    %v4439 = vpop.f32.mrb[0].mxu0
    %v4440 = vpop.f32.mrb[0].mxu0
    %4441 = vdwg.mxu0
    %4442 = vmatprep.subr.bf16.mxu0 %v3098
    %4443 = vmatpush1.bf16.msra.mxu0 %v3097
    %4444 = vmatprep.subr.bf16.mxu0 %v3100
    %4445 = vmatpush1.bf16.msra.mxu0 %v3099
    %4446 = vmatprep.subr.bf16.mxu0 %v3102
    %4447 = vmatpush1.bf16.msra.mxu0 %v3101
    %4448 = vmatprep.subr.bf16.mxu0 %v3104
    %4449 = vmatpush1.bf16.msra.mxu0 %v3103
    %4450 = vmatprep.subr.bf16.mxu0 %v3106
    %4451 = vmatpush1.bf16.msra.mxu0 %v3105
    %4452 = vmatprep.subr.bf16.mxu0 %v3108
    %4453 = vmatpush1.bf16.msra.mxu0 %v3107
    %4454 = vmatprep.subr.bf16.mxu0 %v3110
    %4455 = vmatpush1.bf16.msra.mxu0 %v3109
    %4456 = vmatprep.subr.bf16.mxu0 %v3112
    %4457 = vmatpush1.bf16.msra.mxu0 %v3111
    %4458 = vmatprep.subr.bf16.mxu0 %v3114
    %4459 = vmatpush1.bf16.msra.mxu0 %v3113
    %4460 = vmatprep.subr.bf16.mxu0 %v3116
    %4461 = vmatpush1.bf16.msra.mxu0 %v3115
    %4462 = vmatprep.subr.bf16.mxu0 %v3118
    %4463 = vmatpush1.bf16.msra.mxu0 %v3117
    %4464 = vmatprep.subr.bf16.mxu0 %v3120
    %4465 = vmatpush1.bf16.msra.mxu0 %v3119
    %4466 = vmatprep.subr.bf16.mxu0 %v3122
    %4467 = vmatpush1.bf16.msra.mxu0 %v3121
    %4468 = vmatprep.subr.bf16.mxu0 %v3124
    %4469 = vmatpush1.bf16.msra.mxu0 %v3123
    %4470 = vmatprep.subr.bf16.mxu0 %v3126
    %4471 = vmatpush1.bf16.msra.mxu0 %v3125
    %4472 = vmatprep.subr.bf16.mxu0 %v3128
    %4473 = vmatpush1.bf16.msra.mxu0 %v3127
    %4474 = vmatprep.mubr.bf16.mxu0 %v790
    %4475 = vmatmul.mubr.bf16.gmra.mrb[0].mxu0 %v788
    %v4476 = vpop.f32.mrb[0].mxu0
    %v4477 = vadd.f32 %v4436, %v4476
    %v4478 = vpop.f32.mrb[0].mxu0
    %v4479 = vadd.f32 %v4438, %v4478
    %v4480 = vpop.f32.mrb[0].mxu0
    %v4481 = vpop.f32.mrb[0].mxu0
    %4482 = vdwg.mxu0
    %4483 = vmatprep.subr.bf16.mxu0 %v3130
    %4484 = vmatpush1.bf16.msra.mxu0 %v3129
    %4485 = vmatprep.subr.bf16.mxu0 %v3132
    %4486 = vmatpush1.bf16.msra.mxu0 %v3131
    %4487 = vmatprep.subr.bf16.mxu0 %v3134
    %4488 = vmatpush1.bf16.msra.mxu0 %v3133
    %4489 = vmatprep.subr.bf16.mxu0 %v3136
    %4490 = vmatpush1.bf16.msra.mxu0 %v3135
    %4491 = vmatprep.subr.bf16.mxu0 %v3138
    %4492 = vmatpush1.bf16.msra.mxu0 %v3137
    %4493 = vmatprep.subr.bf16.mxu0 %v3140
    %4494 = vmatpush1.bf16.msra.mxu0 %v3139
    %4495 = vmatprep.subr.bf16.mxu0 %v3142
    %4496 = vmatpush1.bf16.msra.mxu0 %v3141
    %4497 = vmatprep.subr.bf16.mxu0 %v3144
    %4498 = vmatpush1.bf16.msra.mxu0 %v3143
    %4499 = vmatprep.subr.bf16.mxu0 %v3146
    %4500 = vmatpush1.bf16.msra.mxu0 %v3145
    %4501 = vmatprep.subr.bf16.mxu0 %v3148
    %4502 = vmatpush1.bf16.msra.mxu0 %v3147
    %4503 = vmatprep.subr.bf16.mxu0 %v3150
    %4504 = vmatpush1.bf16.msra.mxu0 %v3149
    %4505 = vmatprep.subr.bf16.mxu0 %v3152
    %4506 = vmatpush1.bf16.msra.mxu0 %v3151
    %4507 = vmatprep.subr.bf16.mxu0 %v3154
    %4508 = vmatpush1.bf16.msra.mxu0 %v3153
    %4509 = vmatprep.subr.bf16.mxu0 %v3156
    %4510 = vmatpush1.bf16.msra.mxu0 %v3155
    %4511 = vmatprep.subr.bf16.mxu0 %v3158
    %4512 = vmatpush1.bf16.msra.mxu0 %v3157
    %4513 = vmatprep.subr.bf16.mxu0 %v3160
    %4514 = vmatpush1.bf16.msra.mxu0 %v3159
    %4515 = vmatprep.mubr.bf16.mxu0 %v787
    %4516 = vmatmul.mubr.bf16.gmra.mrb[0].mxu0 %v773
    %v4517 = vpop.f32.mrb[0].mxu0
    %v4518 = vadd.f32 %v4477, %v4517
    %v4519 = vpop.f32.mrb[0].mxu0
    %v4520 = vadd.f32 %v4479, %v4519
    %v4521 = vpop.f32.mrb[0].mxu0
    %v4522 = vpop.f32.mrb[0].mxu0
    %4523 = vdwg.mxu0
    %4524 = vmatprep.subr.bf16.mxu0 %v3162
    %4525 = vmatpush1.bf16.msra.mxu0 %v3161
    %4526 = vmatprep.subr.bf16.mxu0 %v3164
    %4527 = vmatpush1.bf16.msra.mxu0 %v3163
    %4528 = vmatprep.subr.bf16.mxu0 %v3166
    %4529 = vmatpush1.bf16.msra.mxu0 %v3165
    %4530 = vmatprep.subr.bf16.mxu0 %v3168
    %4531 = vmatpush1.bf16.msra.mxu0 %v3167
    %4532 = vmatprep.subr.bf16.mxu0 %v3170
    %4533 = vmatpush1.bf16.msra.mxu0 %v3169
    %4534 = vmatprep.subr.bf16.mxu0 %v3172
    %4535 = vmatpush1.bf16.msra.mxu0 %v3171
    %4536 = vmatprep.subr.bf16.mxu0 %v3174
    %4537 = vmatpush1.bf16.msra.mxu0 %v3173
    %4538 = vmatprep.subr.bf16.mxu0 %v3176
    %4539 = vmatpush1.bf16.msra.mxu0 %v3175
    %4540 = vmatprep.subr.bf16.mxu0 %v3178
    %4541 = vmatpush1.bf16.msra.mxu0 %v3177
    %4542 = vmatprep.subr.bf16.mxu0 %v3180
    %4543 = vmatpush1.bf16.msra.mxu0 %v3179
    %4544 = vmatprep.subr.bf16.mxu0 %v3182
    %4545 = vmatpush1.bf16.msra.mxu0 %v3181
    %4546 = vmatprep.subr.bf16.mxu0 %v3184
    %4547 = vmatpush1.bf16.msra.mxu0 %v3183
    %4548 = vmatprep.subr.bf16.mxu0 %v3186
    %4549 = vmatpush1.bf16.msra.mxu0 %v3185
    %4550 = vmatprep.subr.bf16.mxu0 %v3188
    %4551 = vmatpush1.bf16.msra.mxu0 %v3187
    %4552 = vmatprep.subr.bf16.mxu0 %v3190
    %4553 = vmatpush1.bf16.msra.mxu0 %v3189
    %4554 = vmatprep.subr.bf16.mxu0 %v3192
    %4555 = vmatpush1.bf16.msra.mxu0 %v3191
    %4556 = vmatprep.mubr.bf16.mxu0 %v791
    %4557 = vmatmul.mubr.bf16.gmra.mrb[0].mxu0 %v789
    %v4558 = vpop.f32.mrb[0].mxu0
    %v4559 = vadd.f32 %v4518, %v4558
    %v4560 = vpop.f32.mrb[0].mxu0
    %v4561 = vadd.f32 %v4520, %v4560
    %v4562 = vpop.f32.mrb[0].mxu0
    %v4563 = vpop.f32.mrb[0].mxu0
    %4564 = vdwg.mxu0
    %4565 = vmatprep.subr.bf16.mxu0 %v3194
    %4566 = vmatpush1.bf16.msra.mxu0 %v3193
    %4567 = vmatprep.subr.bf16.mxu0 %v3196
    %4568 = vmatpush1.bf16.msra.mxu0 %v3195
    %4569 = vmatprep.subr.bf16.mxu0 %v3198
    %4570 = vmatpush1.bf16.msra.mxu0 %v3197
    %4571 = vmatprep.subr.bf16.mxu0 %v3200
    %4572 = vmatpush1.bf16.msra.mxu0 %v3199
    %4573 = vmatprep.subr.bf16.mxu0 %v3202
    %4574 = vmatpush1.bf16.msra.mxu0 %v3201
    %4575 = vmatprep.subr.bf16.mxu0 %v3204
    %4576 = vmatpush1.bf16.msra.mxu0 %v3203
    %4577 = vmatprep.subr.bf16.mxu0 %v3206
    %4578 = vmatpush1.bf16.msra.mxu0 %v3205
    %4579 = vmatprep.subr.bf16.mxu0 %v3208
    %4580 = vmatpush1.bf16.msra.mxu0 %v3207
    %4581 = vmatprep.subr.bf16.mxu0 %v3210
    %4582 = vmatpush1.bf16.msra.mxu0 %v3209
    %4583 = vmatprep.subr.bf16.mxu0 %v3212
    %4584 = vmatpush1.bf16.msra.mxu0 %v3211
    %4585 = vmatprep.subr.bf16.mxu0 %v3214
    %4586 = vmatpush1.bf16.msra.mxu0 %v3213
    %4587 = vmatprep.subr.bf16.mxu0 %v3216
    %4588 = vmatpush1.bf16.msra.mxu0 %v3215
    %4589 = vmatprep.subr.bf16.mxu0 %v3218
    %4590 = vmatpush1.bf16.msra.mxu0 %v3217
    %4591 = vmatprep.subr.bf16.mxu0 %v3220
    %4592 = vmatpush1.bf16.msra.mxu0 %v3219
    %4593 = vmatprep.subr.bf16.mxu0 %v3222
    %4594 = vmatpush1.bf16.msra.mxu0 %v3221
    %4595 = vmatprep.subr.bf16.mxu0 %v3224
    %4596 = vmatpush1.bf16.msra.mxu0 %v3223
    %4597 = vmatprep.mubr.bf16.mxu0 %v829
    %4598 = vmatmul.mubr.bf16.gmra.mrb[0].mxu0 %v815
    %v4599 = vpop.f32.mrb[0].mxu0
    %v4600 = vadd.f32 %v4559, %v4599
    %v4601 = vpop.f32.mrb[0].mxu0
    %v4602 = vadd.f32 %v4561, %v4601
    %v4603 = vpop.f32.mrb[0].mxu0
    %v4604 = vpop.f32.mrb[0].mxu0
    %4605 = vdwg.mxu0
    %4606 = vmatprep.subr.bf16.mxu0 %v3226
    %4607 = vmatpush1.bf16.msra.mxu0 %v3225
    %4608 = vmatprep.subr.bf16.mxu0 %v3228
    %4609 = vmatpush1.bf16.msra.mxu0 %v3227
    %4610 = vmatprep.subr.bf16.mxu0 %v3230
    %4611 = vmatpush1.bf16.msra.mxu0 %v3229
    %4612 = vmatprep.subr.bf16.mxu0 %v3232
    %4613 = vmatpush1.bf16.msra.mxu0 %v3231
    %4614 = vmatprep.subr.bf16.mxu0 %v3234
    %4615 = vmatpush1.bf16.msra.mxu0 %v3233
    %4616 = vmatprep.subr.bf16.mxu0 %v3236
    %4617 = vmatpush1.bf16.msra.mxu0 %v3235
    %4618 = vmatprep.subr.bf16.mxu0 %v3238
    %4619 = vmatpush1.bf16.msra.mxu0 %v3237
    %4620 = vmatprep.subr.bf16.mxu0 %v3240
    %4621 = vmatpush1.bf16.msra.mxu0 %v3239
    %4622 = vmatprep.subr.bf16.mxu0 %v3242
    %4623 = vmatpush1.bf16.msra.mxu0 %v3241
    %4624 = vmatprep.subr.bf16.mxu0 %v3244
    %4625 = vmatpush1.bf16.msra.mxu0 %v3243
    %4626 = vmatprep.subr.bf16.mxu0 %v3246
    %4627 = vmatpush1.bf16.msra.mxu0 %v3245
    %4628 = vmatprep.subr.bf16.mxu0 %v3248
    %4629 = vmatpush1.bf16.msra.mxu0 %v3247
    %4630 = vmatprep.subr.bf16.mxu0 %v3250
    %4631 = vmatpush1.bf16.msra.mxu0 %v3249
    %4632 = vmatprep.subr.bf16.mxu0 %v3252
    %4633 = vmatpush1.bf16.msra.mxu0 %v3251
    %4634 = vmatprep.subr.bf16.mxu0 %v3254
    %4635 = vmatpush1.bf16.msra.mxu0 %v3253
    %4636 = vmatprep.subr.bf16.mxu0 %v3256
    %4637 = vmatpush1.bf16.msra.mxu0 %v3255
    %4638 = vmatprep.mubr.bf16.mxu0 %v839
    %4639 = vmatmul.mubr.bf16.gmra.mrb[0].mxu0 %v837
    %v4640 = vpop.f32.mrb[0].mxu0
    %v4641 = vadd.f32 %v4600, %v4640
    %v4642 = vpop.f32.mrb[0].mxu0
    %v4643 = vadd.f32 %v4602, %v4642
    %v4644 = vpop.f32.mrb[0].mxu0
    %v4645 = vpop.f32.mrb[0].mxu0
    %4646 = vdwg.mxu0
    %4647 = vmatprep.subr.bf16.mxu0 %v3258
    %4648 = vmatpush1.bf16.msra.mxu0 %v3257
    %4649 = vmatprep.subr.bf16.mxu0 %v3260
    %4650 = vmatpush1.bf16.msra.mxu0 %v3259
    %4651 = vmatprep.subr.bf16.mxu0 %v3262
    %4652 = vmatpush1.bf16.msra.mxu0 %v3261
    %4653 = vmatprep.subr.bf16.mxu0 %v3264
    %4654 = vmatpush1.bf16.msra.mxu0 %v3263
    %4655 = vmatprep.subr.bf16.mxu0 %v3266
    %4656 = vmatpush1.bf16.msra.mxu0 %v3265
    %4657 = vmatprep.subr.bf16.mxu0 %v3268
    %4658 = vmatpush1.bf16.msra.mxu0 %v3267
    %4659 = vmatprep.subr.bf16.mxu0 %v3270
    %4660 = vmatpush1.bf16.msra.mxu0 %v3269
    %4661 = vmatprep.subr.bf16.mxu0 %v3272
    %4662 = vmatpush1.bf16.msra.mxu0 %v3271
    %4663 = vmatprep.subr.bf16.mxu0 %v3274
    %4664 = vmatpush1.bf16.msra.mxu0 %v3273
    %4665 = vmatprep.subr.bf16.mxu0 %v3276
    %4666 = vmatpush1.bf16.msra.mxu0 %v3275
    %4667 = vmatprep.subr.bf16.mxu0 %v3278
    %4668 = vmatpush1.bf16.msra.mxu0 %v3277
    %4669 = vmatprep.subr.bf16.mxu0 %v3280
    %4670 = vmatpush1.bf16.msra.mxu0 %v3279
    %4671 = vmatprep.subr.bf16.mxu0 %v3282
    %4672 = vmatpush1.bf16.msra.mxu0 %v3281
    %4673 = vmatprep.subr.bf16.mxu0 %v3284
    %4674 = vmatpush1.bf16.msra.mxu0 %v3283
    %4675 = vmatprep.subr.bf16.mxu0 %v3286
    %4676 = vmatpush1.bf16.msra.mxu0 %v3285
    %4677 = vmatprep.subr.bf16.mxu0 %v3288
    %4678 = vmatpush1.bf16.msra.mxu0 %v3287
    %4679 = vmatprep.mubr.bf16.mxu0 %v836
    %4680 = vmatmul.mubr.bf16.gmra.mrb[0].mxu0 %v822
    %v4681 = vpop.f32.mrb[0].mxu0
    %v4682 = vadd.f32 %v4641, %v4681
    %v4683 = vpop.f32.mrb[0].mxu0
    %v4684 = vadd.f32 %v4643, %v4683
    %v4685 = vpop.f32.mrb[0].mxu0
    %v4686 = vpop.f32.mrb[0].mxu0
    %4687 = vdwg.mxu0
    %4688 = vmatprep.subr.bf16.mxu0 %v3290
    %4689 = vmatpush1.bf16.msra.mxu0 %v3289
    %4690 = vmatprep.subr.bf16.mxu0 %v3292
    %4691 = vmatpush1.bf16.msra.mxu0 %v3291
    %4692 = vmatprep.subr.bf16.mxu0 %v3294
    %4693 = vmatpush1.bf16.msra.mxu0 %v3293
    %4694 = vmatprep.subr.bf16.mxu0 %v3296
    %4695 = vmatpush1.bf16.msra.mxu0 %v3295
    %4696 = vmatprep.subr.bf16.mxu0 %v3298
    %4697 = vmatpush1.bf16.msra.mxu0 %v3297
    %4698 = vmatprep.subr.bf16.mxu0 %v3300
    %4699 = vmatpush1.bf16.msra.mxu0 %v3299
    %4700 = vmatprep.subr.bf16.mxu0 %v3302
    %4701 = vmatpush1.bf16.msra.mxu0 %v3301
    %4702 = vmatprep.subr.bf16.mxu0 %v3304
    %4703 = vmatpush1.bf16.msra.mxu0 %v3303
    %4704 = vmatprep.subr.bf16.mxu0 %v3306
    %4705 = vmatpush1.bf16.msra.mxu0 %v3305
    %4706 = vmatprep.subr.bf16.mxu0 %v3308
    %4707 = vmatpush1.bf16.msra.mxu0 %v3307
    %4708 = vmatprep.subr.bf16.mxu0 %v3310
    %4709 = vmatpush1.bf16.msra.mxu0 %v3309
    %4710 = vmatprep.subr.bf16.mxu0 %v3312
    %4711 = vmatpush1.bf16.msra.mxu0 %v3311
    %4712 = vmatprep.subr.bf16.mxu0 %v3314
    %4713 = vmatpush1.bf16.msra.mxu0 %v3313
    %4714 = vmatprep.subr.bf16.mxu0 %v3316
    %4715 = vmatpush1.bf16.msra.mxu0 %v3315
    %4716 = vmatprep.subr.bf16.mxu0 %v3318
    %4717 = vmatpush1.bf16.msra.mxu0 %v3317
    %4718 = vmatprep.subr.bf16.mxu0 %v3320
    %4719 = vmatpush1.bf16.msra.mxu0 %v3319
    %4720 = vmatprep.mubr.bf16.mxu0 %v840
    %4721 = vmatmul.mubr.bf16.gmra.mrb[0].mxu0 %v838
    %v4722 = vpop.f32.mrb[0].mxu0
    %v4723 = vadd.f32 %v4682, %v4722
    %v4724 = vpop.f32.mrb[0].mxu0
    %v4725 = vadd.f32 %v4684, %v4724
    %v4726 = vpop.f32.mrb[0].mxu0
    %v4727 = vpop.f32.mrb[0].mxu0
    %4728 = vdwg.mxu0
    %4729 = vmatprep.subr.bf16.mxu0 %v3322
    %4730 = vmatpush1.bf16.msra.mxu0 %v3321
    %4731 = vmatprep.subr.bf16.mxu0 %v3324
    %4732 = vmatpush1.bf16.msra.mxu0 %v3323
    %4733 = vmatprep.subr.bf16.mxu0 %v3326
    %4734 = vmatpush1.bf16.msra.mxu0 %v3325
    %4735 = vmatprep.subr.bf16.mxu0 %v3328
    %4736 = vmatpush1.bf16.msra.mxu0 %v3327
    %4737 = vmatprep.subr.bf16.mxu0 %v3330
    %4738 = vmatpush1.bf16.msra.mxu0 %v3329
    %4739 = vmatprep.subr.bf16.mxu0 %v3332
    %4740 = vmatpush1.bf16.msra.mxu0 %v3331
    %4741 = vmatprep.subr.bf16.mxu0 %v3334
    %4742 = vmatpush1.bf16.msra.mxu0 %v3333
    %4743 = vmatprep.subr.bf16.mxu0 %v3336
    %4744 = vmatpush1.bf16.msra.mxu0 %v3335
    %4745 = vmatprep.subr.bf16.mxu0 %v3338
    %4746 = vmatpush1.bf16.msra.mxu0 %v3337
    %4747 = vmatprep.subr.bf16.mxu0 %v3340
    %4748 = vmatpush1.bf16.msra.mxu0 %v3339
    %4749 = vmatprep.subr.bf16.mxu0 %v3342
    %4750 = vmatpush1.bf16.msra.mxu0 %v3341
    %4751 = vmatprep.subr.bf16.mxu0 %v3344
    %4752 = vmatpush1.bf16.msra.mxu0 %v3343
    %4753 = vmatprep.subr.bf16.mxu0 %v3346
    %4754 = vmatpush1.bf16.msra.mxu0 %v3345
    %4755 = vmatprep.subr.bf16.mxu0 %v3348
    %4756 = vmatpush1.bf16.msra.mxu0 %v3347
    %4757 = vmatprep.subr.bf16.mxu0 %v3350
    %4758 = vmatpush1.bf16.msra.mxu0 %v3349
    %4759 = vmatprep.subr.bf16.mxu0 %v3352
    %4760 = vmatpush1.bf16.msra.mxu0 %v3351
    %4761 = vmatprep.mubr.bf16.mxu0 %v878
    %4762 = vmatmul.mubr.bf16.gmra.mrb[0].mxu0 %v864
    %v4763 = vpop.f32.mrb[0].mxu0
    %v4764 = vadd.f32 %v4723, %v4763
    %v4765 = vpop.f32.mrb[0].mxu0
    %v4766 = vadd.f32 %v4725, %v4765
    %v4767 = vpop.f32.mrb[0].mxu0
    %v4768 = vpop.f32.mrb[0].mxu0
    %4769 = vdwg.mxu0
    %4770 = vmatprep.subr.bf16.mxu0 %v3354
    %4771 = vmatpush1.bf16.msra.mxu0 %v3353
    %4772 = vmatprep.subr.bf16.mxu0 %v3356
    %4773 = vmatpush1.bf16.msra.mxu0 %v3355
    %4774 = vmatprep.subr.bf16.mxu0 %v3358
    %4775 = vmatpush1.bf16.msra.mxu0 %v3357
    %4776 = vmatprep.subr.bf16.mxu0 %v3360
    %4777 = vmatpush1.bf16.msra.mxu0 %v3359
    %4778 = vmatprep.subr.bf16.mxu0 %v3362
    %4779 = vmatpush1.bf16.msra.mxu0 %v3361
    %4780 = vmatprep.subr.bf16.mxu0 %v3364
    %4781 = vmatpush1.bf16.msra.mxu0 %v3363
    %4782 = vmatprep.subr.bf16.mxu0 %v3366
    %4783 = vmatpush1.bf16.msra.mxu0 %v3365
    %4784 = vmatprep.subr.bf16.mxu0 %v3368
    %4785 = vmatpush1.bf16.msra.mxu0 %v3367
    %4786 = vmatprep.subr.bf16.mxu0 %v3370
    %4787 = vmatpush1.bf16.msra.mxu0 %v3369
    %4788 = vmatprep.subr.bf16.mxu0 %v3372
    %4789 = vmatpush1.bf16.msra.mxu0 %v3371
    %4790 = vmatprep.subr.bf16.mxu0 %v3374
    %4791 = vmatpush1.bf16.msra.mxu0 %v3373
    %4792 = vmatprep.subr.bf16.mxu0 %v3376
    %4793 = vmatpush1.bf16.msra.mxu0 %v3375
    %4794 = vmatprep.subr.bf16.mxu0 %v3378
    %4795 = vmatpush1.bf16.msra.mxu0 %v3377
    %4796 = vmatprep.subr.bf16.mxu0 %v3380
    %4797 = vmatpush1.bf16.msra.mxu0 %v3379
    %4798 = vmatprep.subr.bf16.mxu0 %v3382
    %4799 = vmatpush1.bf16.msra.mxu0 %v3381
    %4800 = vmatprep.subr.bf16.mxu0 %v3384
    %4801 = vmatpush1.bf16.msra.mxu0 %v3383
    %4802 = vmatprep.mubr.bf16.mxu0 %v888
    %4803 = vmatmul.mubr.bf16.gmra.mrb[0].mxu0 %v886
    %v4804 = vpop.f32.mrb[0].mxu0
    %v4805 = vadd.f32 %v4764, %v4804
    %v4806 = vpop.f32.mrb[0].mxu0
    %v4807 = vadd.f32 %v4766, %v4806
    %v4808 = vpop.f32.mrb[0].mxu0
    %v4809 = vpop.f32.mrb[0].mxu0
    %4810 = vdwg.mxu0
    %4811 = vmatprep.subr.bf16.mxu0 %v3386
    %4812 = vmatpush1.bf16.msra.mxu0 %v3385
    %4813 = vmatprep.subr.bf16.mxu0 %v3388
    %4814 = vmatpush1.bf16.msra.mxu0 %v3387
    %4815 = vmatprep.subr.bf16.mxu0 %v3390
    %4816 = vmatpush1.bf16.msra.mxu0 %v3389
    %4817 = vmatprep.subr.bf16.mxu0 %v3392
    %4818 = vmatpush1.bf16.msra.mxu0 %v3391
    %4819 = vmatprep.subr.bf16.mxu0 %v3394
    %4820 = vmatpush1.bf16.msra.mxu0 %v3393
    %4821 = vmatprep.subr.bf16.mxu0 %v3396
    %4822 = vmatpush1.bf16.msra.mxu0 %v3395
    %4823 = vmatprep.subr.bf16.mxu0 %v3398
    %4824 = vmatpush1.bf16.msra.mxu0 %v3397
    %4825 = vmatprep.subr.bf16.mxu0 %v3400
    %4826 = vmatpush1.bf16.msra.mxu0 %v3399
    %4827 = vmatprep.subr.bf16.mxu0 %v3402
    %4828 = vmatpush1.bf16.msra.mxu0 %v3401
    %4829 = vmatprep.subr.bf16.mxu0 %v3404
    %4830 = vmatpush1.bf16.msra.mxu0 %v3403
    %4831 = vmatprep.subr.bf16.mxu0 %v3406
    %4832 = vmatpush1.bf16.msra.mxu0 %v3405
    %4833 = vmatprep.subr.bf16.mxu0 %v3408
    %4834 = vmatpush1.bf16.msra.mxu0 %v3407
    %4835 = vmatprep.subr.bf16.mxu0 %v3410
    %4836 = vmatpush1.bf16.msra.mxu0 %v3409
    %4837 = vmatprep.subr.bf16.mxu0 %v3412
    %4838 = vmatpush1.bf16.msra.mxu0 %v3411
    %4839 = vmatprep.subr.bf16.mxu0 %v3414
    %4840 = vmatpush1.bf16.msra.mxu0 %v3413
    %4841 = vmatprep.subr.bf16.mxu0 %v3416
    %4842 = vmatpush1.bf16.msra.mxu0 %v3415
    %4843 = vmatprep.mubr.bf16.mxu0 %v885
    %4844 = vmatmul.mubr.bf16.gmra.mrb[0].mxu0 %v871
    %v4845 = vpop.f32.mrb[0].mxu0
    %v4846 = vadd.f32 %v4805, %v4845
    %v4847 = vpop.f32.mrb[0].mxu0
    %v4848 = vadd.f32 %v4807, %v4847
    %v4849 = vpop.f32.mrb[0].mxu0
    %v4850 = vpop.f32.mrb[0].mxu0
    %4851 = vdwg.mxu0
    %4852 = vmatprep.subr.bf16.mxu0 %v3418
    %4853 = vmatpush1.bf16.msra.mxu0 %v3417
    %4854 = vmatprep.subr.bf16.mxu0 %v3420
    %4855 = vmatpush1.bf16.msra.mxu0 %v3419
    %4856 = vmatprep.subr.bf16.mxu0 %v3422
    %4857 = vmatpush1.bf16.msra.mxu0 %v3421
    %4858 = vmatprep.subr.bf16.mxu0 %v3424
    %4859 = vmatpush1.bf16.msra.mxu0 %v3423
    %4860 = vmatprep.subr.bf16.mxu0 %v3426
    %4861 = vmatpush1.bf16.msra.mxu0 %v3425
    %4862 = vmatprep.subr.bf16.mxu0 %v3428
    %4863 = vmatpush1.bf16.msra.mxu0 %v3427
    %4864 = vmatprep.subr.bf16.mxu0 %v3430
    %4865 = vmatpush1.bf16.msra.mxu0 %v3429
    %4866 = vmatprep.subr.bf16.mxu0 %v3432
    %4867 = vmatpush1.bf16.msra.mxu0 %v3431
    %4868 = vmatprep.subr.bf16.mxu0 %v3434
    %4869 = vmatpush1.bf16.msra.mxu0 %v3433
    %4870 = vmatprep.subr.bf16.mxu0 %v3436
    %4871 = vmatpush1.bf16.msra.mxu0 %v3435
    %4872 = vmatprep.subr.bf16.mxu0 %v3438
    %4873 = vmatpush1.bf16.msra.mxu0 %v3437
    %4874 = vmatprep.subr.bf16.mxu0 %v3440
    %4875 = vmatpush1.bf16.msra.mxu0 %v3439
    %4876 = vmatprep.subr.bf16.mxu0 %v3442
    %4877 = vmatpush1.bf16.msra.mxu0 %v3441
    %4878 = vmatprep.subr.bf16.mxu0 %v3444
    %4879 = vmatpush1.bf16.msra.mxu0 %v3443
    %4880 = vmatprep.subr.bf16.mxu0 %v3446
    %4881 = vmatpush1.bf16.msra.mxu0 %v3445
    %4882 = vmatprep.subr.bf16.mxu0 %v3448
    %4883 = vmatpush1.bf16.msra.mxu0 %v3447
    %4884 = vmatprep.mubr.bf16.mxu0 %v889
    %4885 = vmatmul.mubr.bf16.gmra.mrb[0].mxu0 %v887
    %v4886 = vpop.f32.mrb[0].mxu0
    %v4887 = vadd.f32 %v4846, %v4886
    %v4888 = vpop.f32.mrb[0].mxu0
    %v4889 = vadd.f32 %v4848, %v4888
    %v4890 = vpop.f32.mrb[0].mxu0
    %v4891 = vpop.f32.mrb[0].mxu0
    %4892 = vdwg.mxu0
    %4893 = vmatprep.subr.bf16.mxu0 %v3450
    %4894 = vmatpush1.bf16.msra.mxu0 %v3449
    %4895 = vmatprep.subr.bf16.mxu0 %v3452
    %4896 = vmatpush1.bf16.msra.mxu0 %v3451
    %4897 = vmatprep.subr.bf16.mxu0 %v3454
    %4898 = vmatpush1.bf16.msra.mxu0 %v3453
    %4899 = vmatprep.subr.bf16.mxu0 %v3456
    %4900 = vmatpush1.bf16.msra.mxu0 %v3455
    %4901 = vmatprep.subr.bf16.mxu0 %v3458
    %4902 = vmatpush1.bf16.msra.mxu0 %v3457
    %4903 = vmatprep.subr.bf16.mxu0 %v3460
    %4904 = vmatpush1.bf16.msra.mxu0 %v3459
    %4905 = vmatprep.subr.bf16.mxu0 %v3462
    %4906 = vmatpush1.bf16.msra.mxu0 %v3461
    %4907 = vmatprep.subr.bf16.mxu0 %v3464
    %4908 = vmatpush1.bf16.msra.mxu0 %v3463
    %4909 = vmatprep.subr.bf16.mxu0 %v3466
    %4910 = vmatpush1.bf16.msra.mxu0 %v3465
    %4911 = vmatprep.subr.bf16.mxu0 %v3468
    %4912 = vmatpush1.bf16.msra.mxu0 %v3467
    %4913 = vmatprep.subr.bf16.mxu0 %v3470
    %4914 = vmatpush1.bf16.msra.mxu0 %v3469
    %4915 = vmatprep.subr.bf16.mxu0 %v3472
    %4916 = vmatpush1.bf16.msra.mxu0 %v3471
    %4917 = vmatprep.subr.bf16.mxu0 %v3474
    %4918 = vmatpush1.bf16.msra.mxu0 %v3473
    %4919 = vmatprep.subr.bf16.mxu0 %v3476
    %4920 = vmatpush1.bf16.msra.mxu0 %v3475
    %4921 = vmatprep.subr.bf16.mxu0 %v3478
    %4922 = vmatpush1.bf16.msra.mxu0 %v3477
    %4923 = vmatprep.subr.bf16.mxu0 %v3480
    %4924 = vmatpush1.bf16.msra.mxu0 %v3479
    %4925 = vmatprep.mubr.bf16.mxu0 %v927
    %4926 = vmatmul.mubr.bf16.gmra.mrb[0].mxu0 %v913
    %v4927 = vpop.f32.mrb[0].mxu0
    %v4928 = vadd.f32 %v4887, %v4927
    %v4929 = vpop.f32.mrb[0].mxu0
    %v4930 = vadd.f32 %v4889, %v4929
    %v4931 = vpop.f32.mrb[0].mxu0
    %v4932 = vpop.f32.mrb[0].mxu0
    %4933 = vdwg.mxu0
    %4934 = vmatprep.subr.bf16.mxu0 %v3482
    %4935 = vmatpush1.bf16.msra.mxu0 %v3481
    %4936 = vmatprep.subr.bf16.mxu0 %v3484
    %4937 = vmatpush1.bf16.msra.mxu0 %v3483
    %4938 = vmatprep.subr.bf16.mxu0 %v3486
    %4939 = vmatpush1.bf16.msra.mxu0 %v3485
    %4940 = vmatprep.subr.bf16.mxu0 %v3488
    %4941 = vmatpush1.bf16.msra.mxu0 %v3487
    %4942 = vmatprep.subr.bf16.mxu0 %v3490
    %4943 = vmatpush1.bf16.msra.mxu0 %v3489
    %4944 = vmatprep.subr.bf16.mxu0 %v3492
    %4945 = vmatpush1.bf16.msra.mxu0 %v3491
    %4946 = vmatprep.subr.bf16.mxu0 %v3494
    %4947 = vmatpush1.bf16.msra.mxu0 %v3493
    %4948 = vmatprep.subr.bf16.mxu0 %v3496
    %4949 = vmatpush1.bf16.msra.mxu0 %v3495
    %4950 = vmatprep.subr.bf16.mxu0 %v3498
    %4951 = vmatpush1.bf16.msra.mxu0 %v3497
    %4952 = vmatprep.subr.bf16.mxu0 %v3500
    %4953 = vmatpush1.bf16.msra.mxu0 %v3499
    %4954 = vmatprep.subr.bf16.mxu0 %v3502
    %4955 = vmatpush1.bf16.msra.mxu0 %v3501
    %4956 = vmatprep.subr.bf16.mxu0 %v3504
    %4957 = vmatpush1.bf16.msra.mxu0 %v3503
    %4958 = vmatprep.subr.bf16.mxu0 %v3506
    %4959 = vmatpush1.bf16.msra.mxu0 %v3505
    %4960 = vmatprep.subr.bf16.mxu0 %v3508
    %4961 = vmatpush1.bf16.msra.mxu0 %v3507
    %4962 = vmatprep.subr.bf16.mxu0 %v3510
    %4963 = vmatpush1.bf16.msra.mxu0 %v3509
    %4964 = vmatprep.subr.bf16.mxu0 %v3512
    %4965 = vmatpush1.bf16.msra.mxu0 %v3511
    %4966 = vmatprep.mubr.bf16.mxu0 %v937
    %4967 = vmatmul.mubr.bf16.gmra.mrb[0].mxu0 %v935
    %v4968 = vpop.f32.mrb[0].mxu0
    %v4969 = vadd.f32 %v4928, %v4968
    %v4970 = vpop.f32.mrb[0].mxu0
    %v4971 = vadd.f32 %v4930, %v4970
    %v4972 = vpop.f32.mrb[0].mxu0
    %v4973 = vpop.f32.mrb[0].mxu0
    %4974 = vdwg.mxu0
    %4975 = vmatprep.subr.bf16.mxu0 %v3514
    %4976 = vmatpush1.bf16.msra.mxu0 %v3513
    %4977 = vmatprep.subr.bf16.mxu0 %v3516
    %4978 = vmatpush1.bf16.msra.mxu0 %v3515
    %4979 = vmatprep.subr.bf16.mxu0 %v3518
    %4980 = vmatpush1.bf16.msra.mxu0 %v3517
    %4981 = vmatprep.subr.bf16.mxu0 %v3520
    %4982 = vmatpush1.bf16.msra.mxu0 %v3519
    %4983 = vmatprep.subr.bf16.mxu0 %v3522
    %4984 = vmatpush1.bf16.msra.mxu0 %v3521
    %4985 = vmatprep.subr.bf16.mxu0 %v3524
    %4986 = vmatpush1.bf16.msra.mxu0 %v3523
    %4987 = vmatprep.subr.bf16.mxu0 %v3526
    %4988 = vmatpush1.bf16.msra.mxu0 %v3525
    %4989 = vmatprep.subr.bf16.mxu0 %v3528
    %4990 = vmatpush1.bf16.msra.mxu0 %v3527
    %4991 = vmatprep.subr.bf16.mxu0 %v3530
    %4992 = vmatpush1.bf16.msra.mxu0 %v3529
    %4993 = vmatprep.subr.bf16.mxu0 %v3532
    %4994 = vmatpush1.bf16.msra.mxu0 %v3531
    %4995 = vmatprep.subr.bf16.mxu0 %v3534
    %4996 = vmatpush1.bf16.msra.mxu0 %v3533
    %4997 = vmatprep.subr.bf16.mxu0 %v3536
    %4998 = vmatpush1.bf16.msra.mxu0 %v3535
    %4999 = vmatprep.subr.bf16.mxu0 %v3538
    %5000 = vmatpush1.bf16.msra.mxu0 %v3537
    %5001 = vmatprep.subr.bf16.mxu0 %v3540
    %5002 = vmatpush1.bf16.msra.mxu0 %v3539
    %5003 = vmatprep.subr.bf16.mxu0 %v3542
    %5004 = vmatpush1.bf16.msra.mxu0 %v3541
    %5005 = vmatprep.subr.bf16.mxu0 %v3544
    %5006 = vmatpush1.bf16.msra.mxu0 %v3543
    %5007 = vmatprep.mubr.bf16.mxu0 %v934
    %5008 = vmatmul.mubr.bf16.gmra.mrb[0].mxu0 %v920
    %v5009 = vpop.f32.mrb[0].mxu0
    %v5010 = vadd.f32 %v4969, %v5009
    %v5011 = vpop.f32.mrb[0].mxu0
    %v5012 = vadd.f32 %v4971, %v5011
    %v5013 = vpop.f32.mrb[0].mxu0
    %v5014 = vpop.f32.mrb[0].mxu0
    %5015 = vdwg.mxu0
    %5016 = vmatprep.subr.bf16.mxu0 %v3546
    %5017 = vmatpush1.bf16.msra.mxu0 %v3545
    %5018 = vmatprep.subr.bf16.mxu0 %v3548
    %5019 = vmatpush1.bf16.msra.mxu0 %v3547
    %5020 = vmatprep.subr.bf16.mxu0 %v3550
    %5021 = vmatpush1.bf16.msra.mxu0 %v3549
    %5022 = vmatprep.subr.bf16.mxu0 %v3552
    %5023 = vmatpush1.bf16.msra.mxu0 %v3551
    %5024 = vmatprep.subr.bf16.mxu0 %v3554
    %5025 = vmatpush1.bf16.msra.mxu0 %v3553
    %5026 = vmatprep.subr.bf16.mxu0 %v3556
    %5027 = vmatpush1.bf16.msra.mxu0 %v3555
    %5028 = vmatprep.subr.bf16.mxu0 %v3558
    %5029 = vmatpush1.bf16.msra.mxu0 %v3557
    %5030 = vmatprep.subr.bf16.mxu0 %v3560
    %5031 = vmatpush1.bf16.msra.mxu0 %v3559
    %5032 = vmatprep.subr.bf16.mxu0 %v3562
    %5033 = vmatpush1.bf16.msra.mxu0 %v3561
    %5034 = vmatprep.subr.bf16.mxu0 %v3564
    %5035 = vmatpush1.bf16.msra.mxu0 %v3563
    %5036 = vmatprep.subr.bf16.mxu0 %v3566
    %5037 = vmatpush1.bf16.msra.mxu0 %v3565
    %5038 = vmatprep.subr.bf16.mxu0 %v3568
    %5039 = vmatpush1.bf16.msra.mxu0 %v3567
    %5040 = vmatprep.subr.bf16.mxu0 %v3570
    %5041 = vmatpush1.bf16.msra.mxu0 %v3569
    %5042 = vmatprep.subr.bf16.mxu0 %v3572
    %5043 = vmatpush1.bf16.msra.mxu0 %v3571
    %5044 = vmatprep.subr.bf16.mxu0 %v3574
    %5045 = vmatpush1.bf16.msra.mxu0 %v3573
    %5046 = vmatprep.subr.bf16.mxu0 %v3576
    %5047 = vmatpush1.bf16.msra.mxu0 %v3575
    %5048 = vmatprep.mubr.bf16.mxu0 %v938
    %5049 = vmatmul.mubr.bf16.gmra.mrb[0].mxu0 %v936
    %v5050 = vpop.f32.mrb[0].mxu0
    %v5051 = vadd.f32 %v5010, %v5050
    %v5052 = vpop.f32.mrb[0].mxu0
    %v5053 = vadd.f32 %v5012, %v5052
    %v5054 = vpop.f32.mrb[0].mxu0
    %v5055 = vpop.f32.mrb[0].mxu0
    %5056 = vdwg.mxu0
    %5057 = vmatprep.subr.bf16.mxu0 %v3578
    %5058 = vmatpush1.bf16.msra.mxu0 %v3577
    %5059 = vmatprep.subr.bf16.mxu0 %v3580
    %5060 = vmatpush1.bf16.msra.mxu0 %v3579
    %5061 = vmatprep.subr.bf16.mxu0 %v3582
    %5062 = vmatpush1.bf16.msra.mxu0 %v3581
    %5063 = vmatprep.subr.bf16.mxu0 %v3584
    %5064 = vmatpush1.bf16.msra.mxu0 %v3583
    %5065 = vmatprep.subr.bf16.mxu0 0
    %5066 = vmatpush1.bf16.msra.mxu0 0
    %5067 = vmatprep.subr.bf16.mxu0 0
    %5068 = vmatpush1.bf16.msra.mxu0 0
    %5069 = vmatprep.subr.bf16.mxu0 0
    %5070 = vmatpush1.bf16.msra.mxu0 0
    %5071 = vmatprep.subr.bf16.mxu0 0
    %5072 = vmatpush1.bf16.msra.mxu0 0
    %5073 = vmatprep.subr.bf16.mxu0 0
    %5074 = vmatpush1.bf16.msra.mxu0 0
    %5075 = vmatprep.subr.bf16.mxu0 0
    %5076 = vmatpush1.bf16.msra.mxu0 0
    %5077 = vmatprep.subr.bf16.mxu0 0
    %5078 = vmatpush1.bf16.msra.mxu0 0
    %5079 = vmatprep.subr.bf16.mxu0 0
    %5080 = vmatpush1.bf16.msra.mxu0 0
    %5081 = vmatprep.subr.bf16.mxu0 0
    %5082 = vmatpush1.bf16.msra.mxu0 0
    %5083 = vmatprep.subr.bf16.mxu0 0
    %5084 = vmatpush1.bf16.msra.mxu0 0
    %5085 = vmatprep.subr.bf16.mxu0 0
    %5086 = vmatpush1.bf16.msra.mxu0 0
    %5087 = vmatprep.subr.bf16.mxu0 0
    %5088 = vmatpush1.bf16.msra.mxu0 0
    %5089 = vmatprep.mubr.bf16.mxu0 0
    %5090 = vmatmul.mubr.bf16.gmra.mrb[0].mxu0 %v4235
    %v5091 = vpop.f32.mrb[0].mxu0
    %v5092 = vadd.f32 %v5051, %v5091
    %v5093 = vpop.f32.mrb[0].mxu0
    %v5094 = vadd.f32 %v5053, %v5093
    %v5095 = vpop.f32.mrb[0].mxu0
    %v5096 = vpop.f32.mrb[0].mxu0
    %5097 = vdwg.mxu0
    %v5098 = vmax.f32 %v5092, 0.0
    %v5099 = vmax.f32 %v5094, 0.0
    %v5100 = vpack.c.bf16 %v5098, %v5098
    %v5101 = vpack.c.bf16 %v5099, %v5099
    %v5102 = vld [vmem:[%s3] sm:$0xf]
    %v5103 = vld [vmem:[%s3 + $0x4] sm:$0xf]
    %v5104 = vld [vmem:[%s3 + $0x8] sm:$0xf]
    %v5105 = vld [vmem:[%s3 + $0xc] sm:$0xf]
    %v5106 = vld [vmem:[%s3 + $0x10] sm:$0xf]
    %v5107 = vld [vmem:[%s3 + $0x14] sm:$0xf]
    %v5108 = vld [vmem:[%s3 + $0x18] sm:$0xf]
    %v5109 = vld [vmem:[%s3 + $0x1c] sm:$0xf]
    %v5110 = vld [vmem:[%s3 + $0x20] sm:$0xf]
    %v5111 = vld [vmem:[%s3 + $0x24] sm:$0xf]
    %v5112 = vld [vmem:[%s3 + $0x28] sm:$0xf]
    %v5113 = vld [vmem:[%s3 + $0x2c] sm:$0xf]
    %v5114 = vld [vmem:[%s3 + $0x30] sm:$0xf]
    %v5115 = vld [vmem:[%s3 + $0x34] sm:$0xf]
    %v5116 = vld [vmem:[%s3 + $0x38] sm:$0xf]
    %v5117 = vld [vmem:[%s3 + $0x3c] sm:$0xf]
    %v5118 = vld [vmem:[%s3 + $0x40] sm:$0xf]
    %v5119 = vld [vmem:[%s3 + $0x44] sm:$0xf]
    %v5120 = vld [vmem:[%s3 + $0x48] sm:$0xf]
    %v5121 = vld [vmem:[%s3 + $0x4c] sm:$0xf]
    %v5122 = vld [vmem:[%s3 + $0x50] sm:$0xf]
    %v5123 = vld [vmem:[%s3 + $0x54] sm:$0xf]
    %v5124 = vld [vmem:[%s3 + $0x58] sm:$0xf]
    %v5125 = vld [vmem:[%s3 + $0x5c] sm:$0xf]
    %v5126 = vld [vmem:[%s3 + $0x60] sm:$0xf]
    %v5127 = vld [vmem:[%s3 + $0x64] sm:$0xf]
    %v5128 = vld [vmem:[%s3 + $0x68] sm:$0xf]
    %v5129 = vld [vmem:[%s3 + $0x6c] sm:$0xf]
    %v5130 = vld [vmem:[%s3 + $0x70] sm:$0xf]
    %v5131 = vld [vmem:[%s3 + $0x74] sm:$0xf]
    %v5132 = vld [vmem:[%s3 + $0x78] sm:$0xf]
    %v5133 = vld [vmem:[%s3 + $0x7c] sm:$0xf]
    %v5134 = vld [vmem:[%s4] sm:$0x1]
    %v5136 = vlaneseq
    %v5137 = vshrl.u32 %v5136, 7
    %v5138 = vsub.s32 0, %v5137
    %v5139 = vrot.slane %v5134, %v5138
    %v5173 = vunpack.c.l.b16 %v5102
    %v5174 = vunpack.c.l.b16 %v5103
    %v5175 = vunpack.c.l.b16 %v5104
    %v5176 = vunpack.c.l.b16 %v5105
    %v5177 = vunpack.c.l.b16 %v5106
    %v5178 = vunpack.c.l.b16 %v5107
    %v5179 = vunpack.c.l.b16 %v5108
    %v5180 = vunpack.c.l.b16 %v5109
    %v5181 = vunpack.c.l.b16 %v5110
    %v5182 = vunpack.c.l.b16 %v5111
    %v5183 = vunpack.c.l.b16 %v5112
    %v5184 = vunpack.c.l.b16 %v5113
    %v5185 = vunpack.c.l.b16 %v5114
    %v5186 = vunpack.c.l.b16 %v5115
    %v5187 = vunpack.c.l.b16 %v5116
    %v5188 = vunpack.c.l.b16 %v5117
    %v5189 = vunpack.c.l.b16 %v5118
    %v5190 = vunpack.c.l.b16 %v5119
    %v5191 = vunpack.c.l.b16 %v5120
    %v5192 = vunpack.c.l.b16 %v5121
    %v5193 = vunpack.c.l.b16 %v5122
    %v5194 = vunpack.c.l.b16 %v5123
    %v5195 = vunpack.c.l.b16 %v5124
    %v5196 = vunpack.c.l.b16 %v5125
    %v5197 = vunpack.c.l.b16 %v5126
    %v5198 = vunpack.c.l.b16 %v5127
    %v5199 = vunpack.c.l.b16 %v5128
    %v5200 = vunpack.c.l.b16 %v5129
    %v5201 = vunpack.c.l.b16 %v5130
    %v5202 = vunpack.c.l.b16 %v5131
    %v5203 = vunpack.c.l.b16 %v5132
    %v5204 = vunpack.c.l.b16 %v5133
    %v5205 = vpack.c.b16 %v5174, %v5173
    %v5206 = vpack.c.b16 %v5176, %v5175
    %v5207 = vpack.c.b16 %v5178, %v5177
    %v5208 = vpack.c.b16 %v5180, %v5179
    %v5209 = vpack.c.b16 %v5182, %v5181
    %v5210 = vpack.c.b16 %v5184, %v5183
    %v5211 = vpack.c.b16 %v5186, %v5185
    %v5212 = vpack.c.b16 %v5188, %v5187
    %v5213 = vpack.c.b16 %v5190, %v5189
    %v5214 = vpack.c.b16 %v5192, %v5191
    %v5215 = vpack.c.b16 %v5194, %v5193
    %v5216 = vpack.c.b16 %v5196, %v5195
    %v5217 = vpack.c.b16 %v5198, %v5197
    %v5218 = vpack.c.b16 %v5200, %v5199
    %v5219 = vpack.c.b16 %v5202, %v5201
    %v5220 = vpack.c.b16 %v5204, %v5203
    %5237 = vmatprep.subr.bf16.mxu0 0
    %5238 = vmatpush1.bf16.msra.mxu0 %v5205
    %5239 = vmatprep.subr.bf16.mxu0 0
    %5240 = vmatpush1.bf16.msra.mxu0 %v5206
    %5241 = vmatprep.subr.bf16.mxu0 0
    %5242 = vmatpush1.bf16.msra.mxu0 %v5207
    %5243 = vmatprep.subr.bf16.mxu0 0
    %5244 = vmatpush1.bf16.msra.mxu0 %v5208
    %5245 = vmatprep.subr.bf16.mxu0 0
    %5246 = vmatpush1.bf16.msra.mxu0 %v5209
    %5247 = vmatprep.subr.bf16.mxu0 0
    %5248 = vmatpush1.bf16.msra.mxu0 %v5210
    %5249 = vmatprep.subr.bf16.mxu0 0
    %5250 = vmatpush1.bf16.msra.mxu0 %v5211
    %5251 = vmatprep.subr.bf16.mxu0 0
    %5252 = vmatpush1.bf16.msra.mxu0 %v5212
    %5253 = vmatprep.subr.bf16.mxu0 0
    %5254 = vmatpush1.bf16.msra.mxu0 %v5213
    %5255 = vmatprep.subr.bf16.mxu0 0
    %5256 = vmatpush1.bf16.msra.mxu0 %v5214
    %5257 = vmatprep.subr.bf16.mxu0 0
    %5258 = vmatpush1.bf16.msra.mxu0 %v5215
    %5259 = vmatprep.subr.bf16.mxu0 0
    %5260 = vmatpush1.bf16.msra.mxu0 %v5216
    %5261 = vmatprep.subr.bf16.mxu0 0
    %5262 = vmatpush1.bf16.msra.mxu0 %v5217
    %5263 = vmatprep.subr.bf16.mxu0 0
    %5264 = vmatpush1.bf16.msra.mxu0 %v5218
    %5265 = vmatprep.subr.bf16.mxu0 0
    %5266 = vmatpush1.bf16.msra.mxu0 %v5219
    %5267 = vmatprep.subr.bf16.mxu0 0
    %5268 = vmatpush1.bf16.msra.mxu0 %v5220
    %5269 = vmatprep.mubr.bf16.mxu0 %v5101
    %5270 = vmatmul.mubr.bf16.gmra.mrb[0].mxu0 %v5100
    %v5271 = vpop.f32.mrb[0].mxu0
    %v5272 = vadd.f32 %v5139, %v5271
    %v5273 = vpop.f32.mrb[0].mxu0
    %v5274 = vpop.f32.mrb[0].mxu0
    %v5275 = vpop.f32.mrb[0].mxu0
    %5276 = vdwg.mxu0
    %vm5277 = vcmask 41984
    %5278 = vst.msk [vmem:[#allocation2] sm:$0x3] %vm5277, %v5272
    // Predicated region
    $region22: #{dqn_forward.7} parent=1 // pred_check
      _
    $region23: #{dqn_forward.7} parent=1 // pred_check_branch
      %5280 = sbr.rel (0) target = $region25
    $region24: #{dqn_forward.7} parent=1 // pred_region
      %s5282 = ssub.s32 32, 32
      %5283 = vsyncadd [#allocation3], %s5282
      %s5285 = sshll.u32 [#allocation2], 4
      %s5286 = int_to_ptr.vmem [resolvable:$true] %s5285
      %5288 = dma.vmem_to_hbm [thread:$0]  %s5286, 32, %s5, [#allocation3]
    $region25: #{dqn_forward.7} parent=1 // pred_fallthru
      _
    // Predicated region
    $region26: #{dqn_forward.7} parent=1 // pred_check
      _
    $region27: #{dqn_forward.7} parent=1 // pred_check_branch
      %5290 = sbr.rel (0) target = $region29
    $region28: #{dqn_forward.7} parent=1 // pred_region
      %5291 = dma.done [#allocation3], 32
    $region29: #{dqn_forward.7} parent=1 // pred_fallthru
      _
    %5292 = vsyncpa [#allocation3], 1

</llo_original>
